<compile_context>
chip_gen: v6e
topology: v6e:2x2x1
jax: 0.10.0
libtpu: 0.0.40
codegen_flags: <defaults>
</compile_context>

<pallas_src>
import math
from functools import partial
from typing import NamedTuple

import jax
import jax.numpy as jnp
from jax.experimental import pallas as pl
from jax.experimental.pallas import tpu as pltpu


_MXU_DTYPE = jnp.bfloat16          # matmul-operand dtype (accumulation stays f32)
_VMEM_LIMIT = 32 * 1024 * 1024     # explicit scoped-VMEM limit (safe on v5e/v6e/v7x)
_NEG_INF = -1e30                   # additive mask value (finite, avoids bf16/inf issues)
_LN_EPS = 1e-5                     # nn.LayerNorm default
_LRELU_SLOPE = 0.01                # nn.LeakyReLU default


def _dot(a, b):
    """MXU matmul with bf16 operands and f32 accumulation."""
    return jnp.dot(a.astype(_MXU_DTYPE), b.astype(_MXU_DTYPE),
                   preferred_element_type=jnp.float32)


def _dot_qk(a, b):
    """Contract last dims of a:(Lq,Dh) and b:(Lk,Dh) -> (Lq,Lk) without a transpose."""
    return jax.lax.dot_general(
        a.astype(_MXU_DTYPE), b.astype(_MXU_DTYPE),
        (((1,), (1,)), ((), ())), preferred_element_type=jnp.float32)


def _layernorm(x, g, b):
    """PyTorch LayerNorm over the last axis (biased variance, eps=1e-5), f32."""
    mean = jnp.mean(x, axis=-1, keepdims=True)
    var = jnp.mean(jnp.square(x - mean), axis=-1, keepdims=True)
    return (x - mean) * jax.lax.rsqrt(var + _LN_EPS) * g + b


# ----------------------------------------------------------------------------
# Pallas kernels
# ----------------------------------------------------------------------------

def _mlp_kernel(x_ref, w1_ref, b1_ref, w2_ref, b2_ref, o_ref):
    """o = W2 @ leaky_relu(W1 @ x + b1) + b2   (input/output embedding networks)."""
    h = _dot(x_ref[...], w1_ref[...]) + b1_ref[...]
    h = jnp.where(h > 0, h, _LRELU_SLOPE * h)
    o_ref[...] = _dot(h, w2_ref[...]) + b2_ref[...]


def _ca_layer_kernel(num_heads,
                     q_ref, kv_ref, m_ref,
                     g0_ref, be0_ref, g1_ref, be1_ref, g2_ref, be2_ref,
                     wq_ref, bq_ref, wkv_ref, bkv_ref, wo_ref, bo_ref,
                     w1_ref, b1_ref, w2_ref, b2_ref,
                     o_ref):
    """One whole TransformerCrossAttentionLayer for one batch element.

      x  <- q_seq + OutProj( MHA( LN1(q_seq)Wq , LN0(kv_seq)[Wk|Wv] , mask ) )
      o  <- x + W2 @ leaky_relu(W1 @ LN2(x) + b1) + b2

    q_ref:(1,Lq,F) f32   kv_ref:(1,Lk,F) f32   m_ref:(1,1,Lk) f32 additive key mask
    weights (wq/wkv/wo/w1/w2) are bf16; biases/LN params f32; all intermediates
    (q_proj, kv_proj, per-head scores, hidden MLP activation) live only in VMEM/vregs.
    """
    x = q_ref[0]                                  # (Lq, F) f32 residual stream
    kv = kv_ref[0]                                # (Lk, F) f32
    bias = m_ref[0]                               # (1, Lk) f32
    f = x.shape[-1]
    dh = f // num_heads
    scale = 1.0 / math.sqrt(dh)

    # LN1(q) @ Wq   and   LN0(kv) @ [Wk | Wv]   (LayerNorms fused into the matmuls)
    qp = _dot(_layernorm(x, g1_ref[...], be1_ref[...]), wq_ref[...]) + bq_ref[...]
    kvp = _dot(_layernorm(kv, g0_ref[...], be0_ref[...]), wkv_ref[...]) + bkv_ref[...]
    k = kvp[:, :f]
    v = kvp[:, f:]
    wo = wo_ref[...]                              # (F, F) bf16

    # Per-head attention, accumulated directly through the matching Wo row-slice
    # (no head concat / lane stitching; identical FLOPs on the MXU).
    attn = None
    for h in range(num_heads):                    # static unroll over heads
        sl = slice(h * dh, (h + 1) * dh)
        s = _dot_qk(qp[:, sl], k[:, sl]) * scale + bias       # (Lq, Lk) f32
        s = s - jnp.max(s, axis=-1, keepdims=True)
        p = jnp.exp(s)
        p = p * pl.reciprocal(jnp.sum(p, axis=-1, keepdims=True), approx=True)
        hv = _dot(p, v[:, sl])                                # (Lq, Dh) f32
        part = _dot(hv, wo[sl, :])                            # (Lq, F)  f32
        attn = part if attn is None else attn + part

    x = x + attn + bo_ref[...]                                # residual 1

    # x + MLP(LN2(x))  (hidden 2F activation never touches HBM)
    xn = _layernorm(x, g2_ref[...], be2_ref[...])
    hmid = _dot(xn, w1_ref[...]) + b1_ref[...]
    hmid = jnp.where(hmid > 0, hmid, _LRELU_SLOPE * hmid)
    o_ref[0] = x + _dot(hmid, w2_ref[...]) + b2_ref[...]      # residual 2


# ----------------------------------------------------------------------------
# pallas_call wrappers
# ----------------------------------------------------------------------------

def _row_tile(n, max_rows=512):
    """Largest multiple-of-8 row tile dividing n, capped at max_rows and at n//2
    so the grid always has >= 2 steps (keeps both v7x TensorCores busy)."""
    if n <= 8 or n % 8:
        return n
    cap = min(max_rows, n // 2)
    cap -= cap % 8
    t = cap
    while t >= 8:
        if n % t == 0:
            return t
        t -= 8
    return n


def _compiler_params(n_axes=1):
    return pltpu.CompilerParams(
        dimension_semantics=("parallel",) * n_axes,
        vmem_limit_bytes=_VMEM_LIMIT,
    )


def pallas_mlp(x2d, dense):
    """Fused Linear -> LeakyReLU -> Linear (embedding networks).

    The output feature dim is zero-padded up to a multiple of 128 so the store
    path is lane-dense (no masked vst); the pad is sliced off afterwards.
    """
    n, fin = x2d.shape
    hddn = dense["w1"].shape[1]
    fout = dense["w2"].shape[1]
    fpad = ((fout + 127) // 128) * 128
    w2, b2 = dense["w2"], dense["b2"]
    if fpad != fout:
        w2 = jnp.pad(w2, ((0, 0), (0, fpad - fout)))
        b2 = jnp.pad(b2, ((0, fpad - fout),))
    tm = _row_tile(n)
    out = pl.pallas_call(
        _mlp_kernel,
        out_shape=jax.ShapeDtypeStruct((n, fpad), jnp.float32),
        grid=(n // tm,),
        in_specs=[
            pl.BlockSpec((tm, fin), lambda i: (i, 0)),
            pl.BlockSpec((fin, hddn), lambda i: (0, 0)),
            pl.BlockSpec((1, hddn), lambda i: (0, 0)),
            pl.BlockSpec((hddn, fpad), lambda i: (0, 0)),
            pl.BlockSpec((1, fpad), lambda i: (0, 0)),
        ],
        out_specs=pl.BlockSpec((tm, fpad), lambda i: (i, 0)),
        compiler_params=_compiler_params(),
    )(x2d, dense["w1"], dense["b1"].reshape(1, hddn), w2, b2.reshape(1, fpad))
    return out if fpad == fout else out[:, :fout]


def pallas_ca_layer(q_seq, kv_seq, mask_add, layer, num_heads):
    """One fused TransformerCrossAttentionLayer call, gridded over batch.

    q_seq:(B,Lq,F) f32   kv_seq:(B,Lk,F) f32   mask_add:(B,1,Lk) f32  -> (B,Lq,F) f32
    """
    b_, lq, f = q_seq.shape
    lk = kv_seq.shape[1]
    h2 = layer["dense"]["w1"].shape[1]

    def const(shape):
        return pl.BlockSpec(shape, lambda b: (0,) * len(shape))

    return pl.pallas_call(
        partial(_ca_layer_kernel, num_heads),
        out_shape=jax.ShapeDtypeStruct((b_, lq, f), jnp.float32),
        grid=(b_,),
        in_specs=[
            pl.BlockSpec((1, lq, f), lambda b: (b, 0, 0)),
            pl.BlockSpec((1, lk, f), lambda b: (b, 0, 0)),
            pl.BlockSpec((1, 1, lk), lambda b: (b, 0, 0)),
            const((1, f)), const((1, f)),            # norm0 g, b
            const((1, f)), const((1, f)),            # norm1 g, b
            const((1, f)), const((1, f)),            # norm2 g, b
            const((f, f)), const((1, f)),            # wq (bf16), bq
            const((f, 2 * f)), const((1, 2 * f)),    # wkv (bf16), bkv
            const((f, f)), const((1, f)),            # wo (bf16), bo
            const((f, h2)), const((1, h2)),          # w1 (bf16), b1
            const((h2, f)), const((1, f)),           # w2 (bf16), b2
        ],
        out_specs=pl.BlockSpec((1, lq, f), lambda b: (b, 0, 0)),
        compiler_params=_compiler_params(),
    )(q_seq, kv_seq, mask_add,
      layer["norm0"]["g"].reshape(1, f), layer["norm0"]["b"].reshape(1, f),
      layer["norm1"]["g"].reshape(1, f), layer["norm1"]["b"].reshape(1, f),
      layer["norm2"]["g"].reshape(1, f), layer["norm2"]["b"].reshape(1, f),
      layer["mha"]["wq"], layer["mha"]["bq"].reshape(1, f),
      layer["mha"]["wkv"], layer["mha"]["bkv"].reshape(1, 2 * f),
      layer["mha"]["wo"], layer["mha"]["bo"].reshape(1, f),
      layer["dense"]["w1"], layer["dense"]["b1"].reshape(1, h2),
      layer["dense"]["w2"], layer["dense"]["b2"].reshape(1, f))


# ----------------------------------------------------------------------------
# Parameter initialisation (deterministic, synthetic, PyTorch-default-like)
# ----------------------------------------------------------------------------

class EncoderConfig(NamedTuple):
    model_dim: int
    num_heads: int
    num_tokens: int


def init_linear(key, fin, fout):
    kw, kb = jax.random.split(key)
    lim = 1.0 / math.sqrt(fin)
    # Weight matrices are stored as bf16 (halves HBM DMA + VMEM footprint);
    # biases stay f32 (tiny, added to f32 accumulators).
    w = jax.random.uniform(kw, (fin, fout), jnp.float32, -lim, lim).astype(_MXU_DTYPE)
    b = jax.random.uniform(kb, (fout,), jnp.float32, -lim, lim)
    return {"w": w, "b": b}


def init_layernorm(dim):
    return {"g": jnp.ones((dim,), jnp.float32), "b": jnp.zeros((dim,), jnp.float32)}


def init_dense(key, fin, fout, hddn):
    # TODO(synk): DenseNetwork is not defined in the reference file; we assume a
    # standard 2-layer MLP: Linear(fin, hddn) -> LeakyReLU -> Linear(hddn, fout).
    k1, k2 = jax.random.split(key)
    l1 = init_linear(k1, fin, hddn)
    l2 = init_linear(k2, hddn, fout)
    return {"w1": l1["w"], "b1": l1["b"], "w2": l2["w"], "b2": l2["b"]}


def init_mha(key, model_dim):
    kq, kk, kv, ko = jax.random.split(key, 4)
    lq = init_linear(kq, model_dim, model_dim)
    lk = init_linear(kk, model_dim, model_dim)
    lv = init_linear(kv, model_dim, model_dim)
    lo = init_linear(ko, model_dim, model_dim)
    return {
        "wq": lq["w"], "bq": lq["b"],
        # fused [K | V] projection (one lane-dense matmul with Fout = 2*model_dim)
        "wkv": jnp.concatenate([lk["w"], lv["w"]], axis=1),
        "bkv": jnp.concatenate([lk["b"], lv["b"]], axis=0),
        "wo": lo["w"], "bo": lo["b"],
    }


def init_ca_layer(key, model_dim):
    k1, k2 = jax.random.split(key)
    return {
        "mha": init_mha(k1, model_dim),
        "dense": init_dense(k2, model_dim, model_dim, 2 * model_dim),
        "norm0": init_layernorm(model_dim),
        "norm1": init_layernorm(model_dim),
        "norm2": init_layernorm(model_dim),
    }


def init_full_encoder(key, cfg, inpt_dim, outp_dim, num_layers):
    keys = jax.random.split(key, 3 + 2 * num_layers)
    return {
        "global_tokens": jax.random.normal(
            keys[0], (1, cfg.num_tokens, cfg.model_dim), jnp.float32),
        "node_embd": init_dense(keys[1], inpt_dim, cfg.model_dim, 2 * cfg.model_dim),
        "outp_embd": init_dense(keys[2], cfg.model_dim, outp_dim, 2 * cfg.model_dim),
        "from_layers": [init_ca_layer(keys[3 + i], cfg.model_dim)
                        for i in range(num_layers)],
        "to_layers": [init_ca_layer(keys[3 + num_layers + i], cfg.model_dim)
                      for i in range(num_layers)],
    }


# ----------------------------------------------------------------------------
# Forward pass (mirrors the PyTorch module semantics, ctxt_dim = 0)
# ----------------------------------------------------------------------------

def full_cross_attention_encoder_fwd(cfg, params, x, mask=None):
    """FullCrossAttentionEncoder.forward (ctxt_dim = 0, eval mode / no dropout)."""
    b_, s, _ = x.shape
    f, nt, nh = cfg.model_dim, cfg.num_tokens, cfg.num_heads

    # node embedding MLP (one fused kernel)
    seq = pallas_mlp(x.reshape(b_ * s, -1), params["node_embd"]).reshape(b_, s, f)
    global_tokens = jnp.broadcast_to(params["global_tokens"], (b_, nt, f))

    # additive key masks kept as (B, 1, Lk) rows (never materialise (B, Lq, Lk))
    if mask is None:
        mask = jnp.ones((b_, s), bool)
    mask_add_seq = jnp.where(mask[:, None, :], 0.0, _NEG_INF).astype(jnp.float32)
    mask_add_tok = jnp.zeros((b_, 1, nt), jnp.float32)

    # one fused pallas_call per cross-attention layer, per direction
    for from_layer, to_layer in zip(params["from_layers"], params["to_layers"]):
        global_tokens = pallas_ca_layer(global_tokens, seq, mask_add_seq, from_layer, nh)
        seq = pallas_ca_layer(seq, global_tokens, mask_add_tok, to_layer, nh)

    # output embedding MLP (lane-dense padded store, sliced back to outp_dim)
    out = pallas_mlp(seq.reshape(b_ * s, f), params["outp_embd"])
    return out.reshape(b_, s, -1)


# ----------------------------------------------------------------------------
# Main
# ----------------------------------------------------------------------------

if __name__ == "__main__":
    # Small, deterministic test configuration. model_dim = 128 keeps every hot
    # activation lane-dense (multiple of 128 lanes).
    B, S = 2, 16
    INPT_DIM, OUTP_DIM = 8, 8
    MODEL_DIM, NUM_HEADS, NUM_TOKENS, NUM_LAYERS = 128, 4, 8, 2

    cfg = EncoderConfig(model_dim=MODEL_DIM, num_heads=NUM_HEADS,
                        num_tokens=NUM_TOKENS)

    key = jax.random.PRNGKey(0)
    k_param, k_x = jax.random.split(key)
    params = init_full_encoder(k_param, cfg, INPT_DIM, OUTP_DIM, NUM_LAYERS)

    x = jax.random.normal(k_x, (B, S, INPT_DIM), jnp.float32)
    # kv_mask: batch 0 fully valid, batch 1 has the last three elements padded.
    lengths = jnp.array([[S], [S - 3]], jnp.int32)
    mask = jnp.arange(S)[None, :] < lengths

    fwd = jax.jit(partial(full_cross_attention_encoder_fwd, cfg))
    out = fwd(params, x, mask)
    out = jax.block_until_ready(out)

    assert out.shape == (B, S, OUTP_DIM)
    assert bool(jnp.all(jnp.isfinite(out)))
    print("KERNEL_OK")
</pallas_src>

<mosaic_0001>
module attributes {stable_mosaic.version = 11 : i64} {
  func.func @_mlp_kernel(%arg0: i32, %arg1: memref<16x8xf32, #tpu.memory_space<vmem>>, %arg2: memref<8x256xbf16, #tpu.memory_space<vmem>>, %arg3: memref<1x256xf32, #tpu.memory_space<vmem>>, %arg4: memref<256x128xbf16, #tpu.memory_space<vmem>>, %arg5: memref<1x128xf32, #tpu.memory_space<vmem>>, %arg6: memref<16x128xf32, #tpu.memory_space<vmem>>) attributes {dimension_semantics = [#tpu.dimension_semantics<parallel>], iteration_bounds = array<i64: 2>, scalar_prefetch = 0 : i64, scratch_operands = 0 : i64, tpu.core_type = #tpu.core_type<tc>, window_params = [{transform_indices = @transform_0, window_bounds = array<i64: 16, 8>}, {pipeline_mode = #tpu.pipeline_mode<synchronous>, transform_indices = @transform_1, window_bounds = array<i64: 8, 256>}, {pipeline_mode = #tpu.pipeline_mode<synchronous>, transform_indices = @transform_2, window_bounds = array<i64: 1, 256>}, {pipeline_mode = #tpu.pipeline_mode<synchronous>, transform_indices = @transform_3, window_bounds = array<i64: 256, 128>}, {pipeline_mode = #tpu.pipeline_mode<synchronous>, transform_indices = @transform_4, window_bounds = array<i64: 1, 128>}, {transform_indices = @transform_5, window_bounds = array<i64: 16, 128>}]} {
    %c0 = arith.constant 0 : index
    %c0_0 = arith.constant 0 : index
    %0 = vector.load %arg1[%c0, %c0_0] : memref<16x8xf32, #tpu.memory_space<vmem>>, vector<16x8xf32>
    %c0_1 = arith.constant 0 : index
    %c0_2 = arith.constant 0 : index
    %1 = vector.load %arg2[%c0_1, %c0_2] : memref<8x256xbf16, #tpu.memory_space<vmem>>, vector<8x256xbf16>
    %2 = arith.truncf %0 : vector<16x8xf32> to vector<16x8xbf16>
    %cst = arith.constant dense<0.000000e+00> : vector<16x256xf32>
    %3 = tpu.matmul %2, %1, %cst {dimension_numbers = #tpu.dot_dimension_numbers<[1], [0], [0], [1], [0, 0, 1, 1], [], []>} : vector<16x8xbf16>, vector<8x256xbf16>, vector<16x256xf32> -> vector<16x256xf32>
    %c0_3 = arith.constant 0 : index
    %c0_4 = arith.constant 0 : index
    %4 = vector.load %arg3[%c0_3, %c0_4] : memref<1x256xf32, #tpu.memory_space<vmem>>, vector<1x256xf32>
    %5 = vector.broadcast %4 : vector<1x256xf32> to vector<16x256xf32>
    %6 = arith.addf %3, %5 : vector<16x256xf32>
    %cst_5 = arith.constant 0.000000e+00 : f32
    %7 = vector.broadcast %cst_5 : f32 to vector<16x256xf32>
    %8 = arith.cmpf ogt, %6, %7 : vector<16x256xf32>
    %cst_6 = arith.constant 0.00999999977 : f32
    %9 = vector.broadcast %cst_6 : f32 to vector<16x256xf32>
    %10 = arith.mulf %9, %6 : vector<16x256xf32>
    %11 = arith.select %8, %6, %10 : vector<16x256xi1>, vector<16x256xf32>
    %c0_7 = arith.constant 0 : index
    %c0_8 = arith.constant 0 : index
    %12 = vector.load %arg4[%c0_7, %c0_8] : memref<256x128xbf16, #tpu.memory_space<vmem>>, vector<256x128xbf16>
    %13 = arith.truncf %11 : vector<16x256xf32> to vector<16x256xbf16>
    %cst_9 = arith.constant dense<0.000000e+00> : vector<16x128xf32>
    %14 = tpu.matmul %13, %12, %cst_9 {dimension_numbers = #tpu.dot_dimension_numbers<[1], [0], [0], [1], [0, 0, 1, 1], [], []>} : vector<16x256xbf16>, vector<256x128xbf16>, vector<16x128xf32> -> vector<16x128xf32>
    %c0_10 = arith.constant 0 : index
    %c0_11 = arith.constant 0 : index
    %15 = vector.load %arg5[%c0_10, %c0_11] : memref<1x128xf32, #tpu.memory_space<vmem>>, vector<1x128xf32>
    %16 = vector.broadcast %15 : vector<1x128xf32> to vector<16x128xf32>
    %17 = arith.addf %14, %16 : vector<16x128xf32>
    %c0_12 = arith.constant 0 : index
    %c0_13 = arith.constant 0 : index
    %18 = vector.load %arg6[%c0_12, %c0_13] : memref<16x128xf32, #tpu.memory_space<vmem>>, vector<16x128xf32>
    tpu.vector_store %arg6[%c0_12, %c0_13], %17 {strides = array<i32>} : memref<16x128xf32, #tpu.memory_space<vmem>>, vector<16x128xf32>,
    return
  }
  func.func @transform_0(%arg0: i32) -> (i32, i32) {
    %c0_i32 = arith.constant 0 : i32
    %c0_i32_0 = arith.constant 0 : i32
    return %arg0, %c0_i32 : i32, i32
  }
  func.func @transform_1(%arg0: i32) -> (i32, i32) {
    %c0_i32 = arith.constant 0 : i32
    %c0_i32_0 = arith.constant 0 : i32
    %c0_i32_1 = arith.constant 0 : i32
    return %c0_i32, %c0_i32_0 : i32, i32
  }
  func.func @transform_2(%arg0: i32) -> (i32, i32) {
    %c0_i32 = arith.constant 0 : i32
    %c0_i32_0 = arith.constant 0 : i32
    %c0_i32_1 = arith.constant 0 : i32
    return %c0_i32, %c0_i32_0 : i32, i32
  }
  func.func @transform_3(%arg0: i32) -> (i32, i32) {
    %c0_i32 = arith.constant 0 : i32
    %c0_i32_0 = arith.constant 0 : i32
    %c0_i32_1 = arith.constant 0 : i32
    return %c0_i32, %c0_i32_0 : i32, i32
  }
  func.func @transform_4(%arg0: i32) -> (i32, i32) {
    %c0_i32 = arith.constant 0 : i32
    %c0_i32_0 = arith.constant 0 : i32
    %c0_i32_1 = arith.constant 0 : i32
    return %c0_i32, %c0_i32_0 : i32, i32
  }
  func.func @transform_5(%arg0: i32) -> (i32, i32) {
    %c0_i32 = arith.constant 0 : i32
    %c0_i32_0 = arith.constant 0 : i32
    return %arg0, %c0_i32 : i32, i32
  }
}

module attributes {stable_mosaic.version = 11 : i64} {
  func.func @_ca_layer_kernel(%arg0: i32, %arg1: memref<1x8x128xf32, #tpu.memory_space<vmem>>, %arg2: memref<1x16x128xf32, #tpu.memory_space<vmem>>, %arg3: memref<1x1x16xf32, #tpu.memory_space<vmem>>, %arg4: memref<1x128xf32, #tpu.memory_space<vmem>>, %arg5: memref<1x128xf32, #tpu.memory_space<vmem>>, %arg6: memref<1x128xf32, #tpu.memory_space<vmem>>, %arg7: memref<1x128xf32, #tpu.memory_space<vmem>>, %arg8: memref<1x128xf32, #tpu.memory_space<vmem>>, %arg9: memref<1x128xf32, #tpu.memory_space<vmem>>, %arg10: memref<128x128xbf16, #tpu.memory_space<vmem>>, %arg11: memref<1x128xf32, #tpu.memory_space<vmem>>, %arg12: memref<128x256xbf16, #tpu.memory_space<vmem>>, %arg13: memref<1x256xf32, #tpu.memory_space<vmem>>, %arg14: memref<128x128xbf16, #tpu.memory_space<vmem>>, %arg15: memref<1x128xf32, #tpu.memory_space<vmem>>, %arg16: memref<128x256xbf16, #tpu.memory_space<vmem>>, %arg17: memref<1x256xf32, #tpu.memory_space<vmem>>, %arg18: memref<256x128xbf16, #tpu.memory_space<vmem>>, %arg19: memref<1x128xf32, #tpu.memory_space<vmem>>, %arg20: memref<1x8x128xf32, #tpu.memory_space<vmem>>) attributes {dimension_semantics = [#tpu.dimension_semantics<parallel>], iteration_bounds = array<i64: 2>, scalar_prefetch = 0 : i64, scratch_operands = 0 : i64, tpu.core_type = #tpu.core_type<tc>, window_params = [{transform_indices = @transform_0, window_bounds = array<i64: 1, 8, 128>}, {transform_indices = @transform_1, window_bounds = array<i64: 1, 16, 128>}, {transform_indices = @transform_2, window_bounds = array<i64: 1, 1, 16>}, {pipeline_mode = #tpu.pipeline_mode<synchronous>, transform_indices = @transform_3, window_bounds = array<i64: 1, 128>}, {pipeline_mode = #tpu.pipeline_mode<synchronous>, transform_indices = @transform_4, window_bounds = array<i64: 1, 128>}, {pipeline_mode = #tpu.pipeline_mode<synchronous>, transform_indices = @transform_5, window_bounds = array<i64: 1, 128>}, {pipeline_mode = #tpu.pipeline_mode<synchronous>, transform_indices = @transform_6, window_bounds = array<i64: 1, 128>}, {pipeline_mode = #tpu.pipeline_mode<synchronous>, transform_indices = @transform_7, window_bounds = array<i64: 1, 128>}, {pipeline_mode = #tpu.pipeline_mode<synchronous>, transform_indices = @transform_8, window_bounds = array<i64: 1, 128>}, {pipeline_mode = #tpu.pipeline_mode<synchronous>, transform_indices = @transform_9, window_bounds = array<i64: 128, 128>}, {pipeline_mode = #tpu.pipeline_mode<synchronous>, transform_indices = @transform_10, window_bounds = array<i64: 1, 128>}, {pipeline_mode = #tpu.pipeline_mode<synchronous>, transform_indices = @transform_11, window_bounds = array<i64: 128, 256>}, {pipeline_mode = #tpu.pipeline_mode<synchronous>, transform_indices = @transform_12, window_bounds = array<i64: 1, 256>}, {pipeline_mode = #tpu.pipeline_mode<synchronous>, transform_indices = @transform_13, window_bounds = array<i64: 128, 128>}, {pipeline_mode = #tpu.pipeline_mode<synchronous>, transform_indices = @transform_14, window_bounds = array<i64: 1, 128>}, {pipeline_mode = #tpu.pipeline_mode<synchronous>, transform_indices = @transform_15, window_bounds = array<i64: 128, 256>}, {pipeline_mode = #tpu.pipeline_mode<synchronous>, transform_indices = @transform_16, window_bounds = array<i64: 1, 256>}, {pipeline_mode = #tpu.pipeline_mode<synchronous>, transform_indices = @transform_17, window_bounds = array<i64: 256, 128>}, {pipeline_mode = #tpu.pipeline_mode<synchronous>, transform_indices = @transform_18, window_bounds = array<i64: 1, 128>}, {transform_indices = @transform_19, window_bounds = array<i64: 1, 8, 128>}]} {
    %c0 = arith.constant 0 : index
    %c0_0 = arith.constant 0 : index
    %c0_1 = arith.constant 0 : index
    %0 = vector.load %arg1[%c0, %c0_0, %c0_1] : memref<1x8x128xf32, #tpu.memory_space<vmem>>, vector<1x8x128xf32>
    %1 = vector.shape_cast %0 : vector<1x8x128xf32> to vector<8x128xf32>
    %c0_2 = arith.constant 0 : index
    %c0_3 = arith.constant 0 : index
    %c0_4 = arith.constant 0 : index
    %2 = vector.load %arg2[%c0_2, %c0_3, %c0_4] : memref<1x16x128xf32, #tpu.memory_space<vmem>>, vector<1x16x128xf32>
    %3 = vector.shape_cast %2 : vector<1x16x128xf32> to vector<16x128xf32>
    %c0_5 = arith.constant 0 : index
    %c0_6 = arith.constant 0 : index
    %c0_7 = arith.constant 0 : index
    %4 = vector.load %arg3[%c0_5, %c0_6, %c0_7] : memref<1x1x16xf32, #tpu.memory_space<vmem>>, vector<1x1x16xf32>
    %5 = vector.shape_cast %4 : vector<1x1x16xf32> to vector<1x16xf32>
    %c0_8 = arith.constant 0 : index
    %c0_9 = arith.constant 0 : index
    %6 = vector.load %arg6[%c0_8, %c0_9] : memref<1x128xf32, #tpu.memory_space<vmem>>, vector<1x128xf32>
    %c0_10 = arith.constant 0 : index
    %c0_11 = arith.constant 0 : index
    %7 = vector.load %arg7[%c0_10, %c0_11] : memref<1x128xf32, #tpu.memory_space<vmem>>, vector<1x128xf32>
    %cst = arith.constant dense<0.000000e+00> : vector<8xf32>
    %8 = vector.multi_reduction <add>, %1, %cst [1] : vector<8x128xf32> to vector<8xf32>
    %9 = vector.shape_cast %8 : vector<8xf32> to vector<8x1xf32>
    %cst_12 = arith.constant 1.280000e+02 : f32
    %10 = vector.broadcast %cst_12 : f32 to vector<8x1xf32>
    %11 = arith.divf %9, %10 : vector<8x1xf32>
    %12 = vector.broadcast %11 : vector<8x1xf32> to vector<8x128xf32>
    %13 = arith.subf %1, %12 : vector<8x128xf32>
    %14 = arith.mulf %13, %13 : vector<8x128xf32>
    %cst_13 = arith.constant dense<0.000000e+00> : vector<8xf32>
    %15 = vector.multi_reduction <add>, %14, %cst_13 [1] : vector<8x128xf32> to vector<8xf32>
    %16 = vector.shape_cast %15 : vector<8xf32> to vector<8x1xf32>
    %cst_14 = arith.constant 1.280000e+02 : f32
    %17 = vector.broadcast %cst_14 : f32 to vector<8x1xf32>
    %18 = arith.divf %16, %17 : vector<8x1xf32>
    %19 = vector.broadcast %11 : vector<8x1xf32> to vector<8x128xf32>
    %20 = arith.subf %1, %19 : vector<8x128xf32>
    %cst_15 = arith.constant 9.99999974E-6 : f32
    %21 = vector.broadcast %cst_15 : f32 to vector<8x1xf32>
    %22 = arith.addf %18, %21 : vector<8x1xf32>
    %23 = math.rsqrt %22 : vector<8x1xf32>
    %24 = vector.broadcast %23 : vector<8x1xf32> to vector<8x128xf32>
    %25 = arith.mulf %20, %24 : vector<8x128xf32>
    %26 = vector.broadcast %6 : vector<1x128xf32> to vector<8x128xf32>
    %27 = arith.mulf %25, %26 : vector<8x128xf32>
    %28 = vector.broadcast %7 : vector<1x128xf32> to vector<8x128xf32>
    %29 = arith.addf %27, %28 : vector<8x128xf32>
    %c0_16 = arith.constant 0 : index
    %c0_17 = arith.constant 0 : index
    %30 = vector.load %arg10[%c0_16, %c0_17] : memref<128x128xbf16, #tpu.memory_space<vmem>>, vector<128x128xbf16>
    %31 = arith.truncf %29 : vector<8x128xf32> to vector<8x128xbf16>
    %cst_18 = arith.constant dense<0.000000e+00> : vector<8x128xf32>
    %32 = tpu.matmul %31, %30, %cst_18 {dimension_numbers = #tpu.dot_dimension_numbers<[1], [0], [0], [1], [0, 0, 1, 1], [], []>} : vector<8x128xbf16>, vector<128x128xbf16>, vector<8x128xf32> -> vector<8x128xf32>
    %c0_19 = arith.constant 0 : index
    %c0_20 = arith.constant 0 : index
    %33 = vector.load %arg11[%c0_19, %c0_20] : memref<1x128xf32, #tpu.memory_space<vmem>>, vector<1x128xf32>
    %34 = vector.broadcast %33 : vector<1x128xf32> to vector<8x128xf32>
    %35 = arith.addf %32, %34 : vector<8x128xf32>
    %c0_21 = arith.constant 0 : index
    %c0_22 = arith.constant 0 : index
    %36 = vector.load %arg4[%c0_21, %c0_22] : memref<1x128xf32, #tpu.memory_space<vmem>>, vector<1x128xf32>
    %c0_23 = arith.constant 0 : index
    %c0_24 = arith.constant 0 : index
    %37 = vector.load %arg5[%c0_23, %c0_24] : memref<1x128xf32, #tpu.memory_space<vmem>>, vector<1x128xf32>
    %cst_25 = arith.constant dense<0.000000e+00> : vector<16xf32>
    %38 = vector.multi_reduction <add>, %3, %cst_25 [1] : vector<16x128xf32> to vector<16xf32>
    %39 = vector.shape_cast %38 : vector<16xf32> to vector<16x1xf32>
    %cst_26 = arith.constant 1.280000e+02 : f32
    %40 = vector.broadcast %cst_26 : f32 to vector<16x1xf32>
    %41 = arith.divf %39, %40 : vector<16x1xf32>
    %42 = vector.broadcast %41 : vector<16x1xf32> to vector<16x128xf32>
    %43 = arith.subf %3, %42 : vector<16x128xf32>
    %44 = arith.mulf %43, %43 : vector<16x128xf32>
    %cst_27 = arith.constant dense<0.000000e+00> : vector<16xf32>
    %45 = vector.multi_reduction <add>, %44, %cst_27 [1] : vector<16x128xf32> to vector<16xf32>
    %46 = vector.shape_cast %45 : vector<16xf32> to vector<16x1xf32>
    %cst_28 = arith.constant 1.280000e+02 : f32
    %47 = vector.broadcast %cst_28 : f32 to vector<16x1xf32>
    %48 = arith.divf %46, %47 : vector<16x1xf32>
    %49 = vector.broadcast %41 : vector<16x1xf32> to vector<16x128xf32>
    %50 = arith.subf %3, %49 : vector<16x128xf32>
    %cst_29 = arith.constant 9.99999974E-6 : f32
    %51 = vector.broadcast %cst_29 : f32 to vector<16x1xf32>
    %52 = arith.addf %48, %51 : vector<16x1xf32>
    %53 = math.rsqrt %52 : vector<16x1xf32>
    %54 = vector.broadcast %53 : vector<16x1xf32> to vector<16x128xf32>
    %55 = arith.mulf %50, %54 : vector<16x128xf32>
    %56 = vector.broadcast %36 : vector<1x128xf32> to vector<16x128xf32>
    %57 = arith.mulf %55, %56 : vector<16x128xf32>
    %58 = vector.broadcast %37 : vector<1x128xf32> to vector<16x128xf32>
    %59 = arith.addf %57, %58 : vector<16x128xf32>
    %c0_30 = arith.constant 0 : index
    %c0_31 = arith.constant 0 : index
    %60 = vector.load %arg12[%c0_30, %c0_31] : memref<128x256xbf16, #tpu.memory_space<vmem>>, vector<128x256xbf16>
    %61 = arith.truncf %59 : vector<16x128xf32> to vector<16x128xbf16>
    %cst_32 = arith.constant dense<0.000000e+00> : vector<16x256xf32>
    %62 = tpu.matmul %61, %60, %cst_32 {dimension_numbers = #tpu.dot_dimension_numbers<[1], [0], [0], [1], [0, 0, 1, 1], [], []>} : vector<16x128xbf16>, vector<128x256xbf16>, vector<16x256xf32> -> vector<16x256xf32>
    %c0_33 = arith.constant 0 : index
    %c0_34 = arith.constant 0 : index
    %63 = vector.load %arg13[%c0_33, %c0_34] : memref<1x256xf32, #tpu.memory_space<vmem>>, vector<1x256xf32>
    %64 = vector.broadcast %63 : vector<1x256xf32> to vector<16x256xf32>
    %65 = arith.addf %62, %64 : vector<16x256xf32>
    %66 = vector.extract_strided_slice %65 {offsets = [0, 0], sizes = [16, 128], strides = [1, 1]} : vector<16x256xf32> to vector<16x128xf32>
    %67 = vector.extract_strided_slice %65 {offsets = [0, 128], sizes = [16, 128], strides = [1, 1]} : vector<16x256xf32> to vector<16x128xf32>
    %c0_35 = arith.constant 0 : index
    %c0_36 = arith.constant 0 : index
    %68 = vector.load %arg14[%c0_35, %c0_36] : memref<128x128xbf16, #tpu.memory_space<vmem>>, vector<128x128xbf16>
    %69 = vector.extract_strided_slice %35 {offsets = [0, 0], sizes = [8, 32], strides = [1, 1]} : vector<8x128xf32> to vector<8x32xf32>
    %70 = vector.extract_strided_slice %66 {offsets = [0, 0], sizes = [16, 32], strides = [1, 1]} : vector<16x128xf32> to vector<16x32xf32>
    %71 = arith.truncf %69 : vector<8x32xf32> to vector<8x32xbf16>
    %72 = arith.truncf %70 : vector<16x32xf32> to vector<16x32xbf16>
    %cst_37 = arith.constant dense<0.000000e+00> : vector<8x16xf32>
    %73 = tpu.matmul %71, %72, %cst_37 {dimension_numbers = #tpu.dot_dimension_numbers<[1], [1], [0], [0], [0, 0, 1, 0], [], []>} : vector<8x32xbf16>, vector<16x32xbf16>, vector<8x16xf32> -> vector<8x16xf32>
    %cst_38 = arith.constant 0.176776692 : f32
    %74 = vector.broadcast %cst_38 : f32 to vector<8x16xf32>
    %75 = arith.mulf %73, %74 : vector<8x16xf32>
    %76 = vector.broadcast %5 : vector<1x16xf32> to vector<8x16xf32>
    %77 = arith.addf %75, %76 : vector<8x16xf32>
    %cst_39 = arith.constant dense<0xFF800000> : vector<8xf32>
    %78 = vector.multi_reduction <maximumf>, %77, %cst_39 [1] : vector<8x16xf32> to vector<8xf32>
    %79 = vector.shape_cast %78 : vector<8xf32> to vector<8x1xf32>
    %80 = vector.broadcast %79 : vector<8x1xf32> to vector<8x16xf32>
    %81 = arith.subf %77, %80 : vector<8x16xf32>
    %82 = math.exp %81 : vector<8x16xf32>
    %cst_40 = arith.constant dense<0.000000e+00> : vector<8xf32>
    %83 = vector.multi_reduction <add>, %82, %cst_40 [1] : vector<8x16xf32> to vector<8xf32>
    %84 = vector.shape_cast %83 : vector<8xf32> to vector<8x1xf32>
    %85 = tpu.reciprocal %84 {approx = true} : vector<8x1xf32> -> vector<8x1xf32>
    %86 = vector.broadcast %85 : vector<8x1xf32> to vector<8x16xf32>
    %87 = arith.mulf %82, %86 : vector<8x16xf32>
    %88 = vector.extract_strided_slice %67 {offsets = [0, 0], sizes = [16, 32], strides = [1, 1]} : vector<16x128xf32> to vector<16x32xf32>
    %89 = arith.truncf %87 : vector<8x16xf32> to vector<8x16xbf16>
    %90 = arith.truncf %88 : vector<16x32xf32> to vector<16x32xbf16>
    %cst_41 = arith.constant dense<0.000000e+00> : vector<8x32xf32>
    %91 = tpu.matmul %89, %90, %cst_41 {dimension_numbers = #tpu.dot_dimension_numbers<[1], [0], [0], [1], [0, 0, 1, 1], [], []>} : vector<8x16xbf16>, vector<16x32xbf16>, vector<8x32xf32> -> vector<8x32xf32>
    %92 = vector.extract_strided_slice %68 {offsets = [0, 0], sizes = [32, 128], strides = [1, 1]} : vector<128x128xbf16> to vector<32x128xbf16>
    %93 = arith.truncf %91 : vector<8x32xf32> to vector<8x32xbf16>
    %cst_42 = arith.constant dense<0.000000e+00> : vector<8x128xf32>
    %94 = tpu.matmul %93, %92, %cst_42 {dimension_numbers = #tpu.dot_dimension_numbers<[1], [0], [0], [1], [0, 0, 1, 1], [], []>} : vector<8x32xbf16>, vector<32x128xbf16>, vector<8x128xf32> -> vector<8x128xf32>
    %95 = vector.extract_strided_slice %35 {offsets = [0, 32], sizes = [8, 32], strides = [1, 1]} : vector<8x128xf32> to vector<8x32xf32>
    %96 = vector.extract_strided_slice %66 {offsets = [0, 32], sizes = [16, 32], strides = [1, 1]} : vector<16x128xf32> to vector<16x32xf32>
    %97 = arith.truncf %95 : vector<8x32xf32> to vector<8x32xbf16>
    %98 = arith.truncf %96 : vector<16x32xf32> to vector<16x32xbf16>
    %cst_43 = arith.constant dense<0.000000e+00> : vector<8x16xf32>
    %99 = tpu.matmul %97, %98, %cst_43 {dimension_numbers = #tpu.dot_dimension_numbers<[1], [1], [0], [0], [0, 0, 1, 0], [], []>} : vector<8x32xbf16>, vector<16x32xbf16>, vector<8x16xf32> -> vector<8x16xf32>
    %cst_44 = arith.constant 0.176776692 : f32
    %100 = vector.broadcast %cst_44 : f32 to vector<8x16xf32>
    %101 = arith.mulf %99, %100 : vector<8x16xf32>
    %102 = vector.broadcast %5 : vector<1x16xf32> to vector<8x16xf32>
    %103 = arith.addf %101, %102 : vector<8x16xf32>
    %cst_45 = arith.constant dense<0xFF800000> : vector<8xf32>
    %104 = vector.multi_reduction <maximumf>, %103, %cst_45 [1] : vector<8x16xf32> to vector<8xf32>
    %105 = vector.shape_cast %104 : vector<8xf32> to vector<8x1xf32>
    %106 = vector.broadcast %105 : vector<8x1xf32> to vector<8x16xf32>
    %107 = arith.subf %103, %106 : vector<8x16xf32>
    %108 = math.exp %107 : vector<8x16xf32>
    %cst_46 = arith.constant dense<0.000000e+00> : vector<8xf32>
    %109 = vector.multi_reduction <add>, %108, %cst_46 [1] : vector<8x16xf32> to vector<8xf32>
    %110 = vector.shape_cast %109 : vector<8xf32> to vector<8x1xf32>
    %111 = tpu.reciprocal %110 {approx = true} : vector<8x1xf32> -> vector<8x1xf32>
    %112 = vector.broadcast %111 : vector<8x1xf32> to vector<8x16xf32>
    %113 = arith.mulf %108, %112 : vector<8x16xf32>
    %114 = vector.extract_strided_slice %67 {offsets = [0, 32], sizes = [16, 32], strides = [1, 1]} : vector<16x128xf32> to vector<16x32xf32>
    %115 = arith.truncf %113 : vector<8x16xf32> to vector<8x16xbf16>
    %116 = arith.truncf %114 : vector<16x32xf32> to vector<16x32xbf16>
    %cst_47 = arith.constant dense<0.000000e+00> : vector<8x32xf32>
    %117 = tpu.matmul %115, %116, %cst_47 {dimension_numbers = #tpu.dot_dimension_numbers<[1], [0], [0], [1], [0, 0, 1, 1], [], []>} : vector<8x16xbf16>, vector<16x32xbf16>, vector<8x32xf32> -> vector<8x32xf32>
    %118 = vector.extract_strided_slice %68 {offsets = [32, 0], sizes = [32, 128], strides = [1, 1]} : vector<128x128xbf16> to vector<32x128xbf16>
    %119 = arith.truncf %117 : vector<8x32xf32> to vector<8x32xbf16>
    %cst_48 = arith.constant dense<0.000000e+00> : vector<8x128xf32>
    %120 = tpu.matmul %119, %118, %cst_48 {dimension_numbers = #tpu.dot_dimension_numbers<[1], [0], [0], [1], [0, 0, 1, 1], [], []>} : vector<8x32xbf16>, vector<32x128xbf16>, vector<8x128xf32> -> vector<8x128xf32>
    %121 = arith.addf %94, %120 : vector<8x128xf32>
    %122 = vector.extract_strided_slice %35 {offsets = [0, 64], sizes = [8, 32], strides = [1, 1]} : vector<8x128xf32> to vector<8x32xf32>
    %123 = vector.extract_strided_slice %66 {offsets = [0, 64], sizes = [16, 32], strides = [1, 1]} : vector<16x128xf32> to vector<16x32xf32>
    %124 = arith.truncf %122 : vector<8x32xf32> to vector<8x32xbf16>
    %125 = arith.truncf %123 : vector<16x32xf32> to vector<16x32xbf16>
    %cst_49 = arith.constant dense<0.000000e+00> : vector<8x16xf32>
    %126 = tpu.matmul %124, %125, %cst_49 {dimension_numbers = #tpu.dot_dimension_numbers<[1], [1], [0], [0], [0, 0, 1, 0], [], []>} : vector<8x32xbf16>, vector<16x32xbf16>, vector<8x16xf32> -> vector<8x16xf32>
    %cst_50 = arith.constant 0.176776692 : f32
    %127 = vector.broadcast %cst_50 : f32 to vector<8x16xf32>
    %128 = arith.mulf %126, %127 : vector<8x16xf32>
    %129 = vector.broadcast %5 : vector<1x16xf32> to vector<8x16xf32>
    %130 = arith.addf %128, %129 : vector<8x16xf32>
    %cst_51 = arith.constant dense<0xFF800000> : vector<8xf32>
    %131 = vector.multi_reduction <maximumf>, %130, %cst_51 [1] : vector<8x16xf32> to vector<8xf32>
    %132 = vector.shape_cast %131 : vector<8xf32> to vector<8x1xf32>
    %133 = vector.broadcast %132 : vector<8x1xf32> to vector<8x16xf32>
    %134 = arith.subf %130, %133 : vector<8x16xf32>
    %135 = math.exp %134 : vector<8x16xf32>
    %cst_52 = arith.constant dense<0.000000e+00> : vector<8xf32>
    %136 = vector.multi_reduction <add>, %135, %cst_52 [1] : vector<8x16xf32> to vector<8xf32>
    %137 = vector.shape_cast %136 : vector<8xf32> to vector<8x1xf32>
    %138 = tpu.reciprocal %137 {approx = true} : vector<8x1xf32> -> vector<8x1xf32>
    %139 = vector.broadcast %138 : vector<8x1xf32> to vector<8x16xf32>
    %140 = arith.mulf %135, %139 : vector<8x16xf32>
    %141 = vector.extract_strided_slice %67 {offsets = [0, 64], sizes = [16, 32], strides = [1, 1]} : vector<16x128xf32> to vector<16x32xf32>
    %142 = arith.truncf %140 : vector<8x16xf32> to vector<8x16xbf16>
    %143 = arith.truncf %141 : vector<16x32xf32> to vector<16x32xbf16>
    %cst_53 = arith.constant dense<0.000000e+00> : vector<8x32xf32>
    %144 = tpu.matmul %142, %143, %cst_53 {dimension_numbers = #tpu.dot_dimension_numbers<[1], [0], [0], [1], [0, 0, 1, 1], [], []>} : vector<8x16xbf16>, vector<16x32xbf16>, vector<8x32xf32> -> vector<8x32xf32>
    %145 = vector.extract_strided_slice %68 {offsets = [64, 0], sizes = [32, 128], strides = [1, 1]} : vector<128x128xbf16> to vector<32x128xbf16>
    %146 = arith.truncf %144 : vector<8x32xf32> to vector<8x32xbf16>
    %cst_54 = arith.constant dense<0.000000e+00> : vector<8x128xf32>
    %147 = tpu.matmul %146, %145, %cst_54 {dimension_numbers = #tpu.dot_dimension_numbers<[1], [0], [0], [1], [0, 0, 1, 1], [], []>} : vector<8x32xbf16>, vector<32x128xbf16>, vector<8x128xf32> -> vector<8x128xf32>
    %148 = arith.addf %121, %147 : vector<8x128xf32>
    %149 = vector.extract_strided_slice %35 {offsets = [0, 96], sizes = [8, 32], strides = [1, 1]} : vector<8x128xf32> to vector<8x32xf32>
    %150 = vector.extract_strided_slice %66 {offsets = [0, 96], sizes = [16, 32], strides = [1, 1]} : vector<16x128xf32> to vector<16x32xf32>
    %151 = arith.truncf %149 : vector<8x32xf32> to vector<8x32xbf16>
    %152 = arith.truncf %150 : vector<16x32xf32> to vector<16x32xbf16>
    %cst_55 = arith.constant dense<0.000000e+00> : vector<8x16xf32>
    %153 = tpu.matmul %151, %152, %cst_55 {dimension_numbers = #tpu.dot_dimension_numbers<[1], [1], [0], [0], [0, 0, 1, 0], [], []>} : vector<8x32xbf16>, vector<16x32xbf16>, vector<8x16xf32> -> vector<8x16xf32>
    %cst_56 = arith.constant 0.176776692 : f32
    %154 = vector.broadcast %cst_56 : f32 to vector<8x16xf32>
    %155 = arith.mulf %153, %154 : vector<8x16xf32>
    %156 = vector.broadcast %5 : vector<1x16xf32> to vector<8x16xf32>
    %157 = arith.addf %155, %156 : vector<8x16xf32>
    %cst_57 = arith.constant dense<0xFF800000> : vector<8xf32>
    %158 = vector.multi_reduction <maximumf>, %157, %cst_57 [1] : vector<8x16xf32> to vector<8xf32>
    %159 = vector.shape_cast %158 : vector<8xf32> to vector<8x1xf32>
    %160 = vector.broadcast %159 : vector<8x1xf32> to vector<8x16xf32>
    %161 = arith.subf %157, %160 : vector<8x16xf32>
    %162 = math.exp %161 : vector<8x16xf32>
    %cst_58 = arith.constant dense<0.000000e+00> : vector<8xf32>
    %163 = vector.multi_reduction <add>, %162, %cst_58 [1] : vector<8x16xf32> to vector<8xf32>
    %164 = vector.shape_cast %163 : vector<8xf32> to vector<8x1xf32>
    %165 = tpu.reciprocal %164 {approx = true} : vector<8x1xf32> -> vector<8x1xf32>
    %166 = vector.broadcast %165 : vector<8x1xf32> to vector<8x16xf32>
    %167 = arith.mulf %162, %166 : vector<8x16xf32>
    %168 = vector.extract_strided_slice %67 {offsets = [0, 96], sizes = [16, 32], strides = [1, 1]} : vector<16x128xf32> to vector<16x32xf32>
    %169 = arith.truncf %167 : vector<8x16xf32> to vector<8x16xbf16>
    %170 = arith.truncf %168 : vector<16x32xf32> to vector<16x32xbf16>
    %cst_59 = arith.constant dense<0.000000e+00> : vector<8x32xf32>
    %171 = tpu.matmul %169, %170, %cst_59 {dimension_numbers = #tpu.dot_dimension_numbers<[1], [0], [0], [1], [0, 0, 1, 1], [], []>} : vector<8x16xbf16>, vector<16x32xbf16>, vector<8x32xf32> -> vector<8x32xf32>
    %172 = vector.extract_strided_slice %68 {offsets = [96, 0], sizes = [32, 128], strides = [1, 1]} : vector<128x128xbf16> to vector<32x128xbf16>
    %173 = arith.truncf %171 : vector<8x32xf32> to vector<8x32xbf16>
    %cst_60 = arith.constant dense<0.000000e+00> : vector<8x128xf32>
    %174 = tpu.matmul %173, %172, %cst_60 {dimension_numbers = #tpu.dot_dimension_numbers<[1], [0], [0], [1], [0, 0, 1, 1], [], []>} : vector<8x32xbf16>, vector<32x128xbf16>, vector<8x128xf32> -> vector<8x128xf32>
    %175 = arith.addf %148, %174 : vector<8x128xf32>
    %176 = arith.addf %1, %175 : vector<8x128xf32>
    %c0_61 = arith.constant 0 : index
    %c0_62 = arith.constant 0 : index
    %177 = vector.load %arg15[%c0_61, %c0_62] : memref<1x128xf32, #tpu.memory_space<vmem>>, vector<1x128xf32>
    %178 = vector.broadcast %177 : vector<1x128xf32> to vector<8x128xf32>
    %179 = arith.addf %176, %178 : vector<8x128xf32>
    %c0_63 = arith.constant 0 : index
    %c0_64 = arith.constant 0 : index
    %180 = vector.load %arg8[%c0_63, %c0_64] : memref<1x128xf32, #tpu.memory_space<vmem>>, vector<1x128xf32>
    %c0_65 = arith.constant 0 : index
    %c0_66 = arith.constant 0 : index
    %181 = vector.load %arg9[%c0_65, %c0_66] : memref<1x128xf32, #tpu.memory_space<vmem>>, vector<1x128xf32>
    %cst_67 = arith.constant dense<0.000000e+00> : vector<8xf32>
    %182 = vector.multi_reduction <add>, %179, %cst_67 [1] : vector<8x128xf32> to vector<8xf32>
    %183 = vector.shape_cast %182 : vector<8xf32> to vector<8x1xf32>
    %cst_68 = arith.constant 1.280000e+02 : f32
    %184 = vector.broadcast %cst_68 : f32 to vector<8x1xf32>
    %185 = arith.divf %183, %184 : vector<8x1xf32>
    %186 = vector.broadcast %185 : vector<8x1xf32> to vector<8x128xf32>
    %187 = arith.subf %179, %186 : vector<8x128xf32>
    %188 = arith.mulf %187, %187 : vector<8x128xf32>
    %cst_69 = arith.constant dense<0.000000e+00> : vector<8xf32>
    %189 = vector.multi_reduction <add>, %188, %cst_69 [1] : vector<8x128xf32> to vector<8xf32>
    %190 = vector.shape_cast %189 : vector<8xf32> to vector<8x1xf32>
    %cst_70 = arith.constant 1.280000e+02 : f32
    %191 = vector.broadcast %cst_70 : f32 to vector<8x1xf32>
    %192 = arith.divf %190, %191 : vector<8x1xf32>
    %193 = vector.broadcast %185 : vector<8x1xf32> to vector<8x128xf32>
    %194 = arith.subf %179, %193 : vector<8x128xf32>
    %cst_71 = arith.constant 9.99999974E-6 : f32
    %195 = vector.broadcast %cst_71 : f32 to vector<8x1xf32>
    %196 = arith.addf %192, %195 : vector<8x1xf32>
    %197 = math.rsqrt %196 : vector<8x1xf32>
    %198 = vector.broadcast %197 : vector<8x1xf32> to vector<8x128xf32>
    %199 = arith.mulf %194, %198 : vector<8x128xf32>
    %200 = vector.broadcast %180 : vector<1x128xf32> to vector<8x128xf32>
    %201 = arith.mulf %199, %200 : vector<8x128xf32>
    %202 = vector.broadcast %181 : vector<1x128xf32> to vector<8x128xf32>
    %203 = arith.addf %201, %202 : vector<8x128xf32>
    %c0_72 = arith.constant 0 : index
    %c0_73 = arith.constant 0 : index
    %204 = vector.load %arg16[%c0_72, %c0_73] : memref<128x256xbf16, #tpu.memory_space<vmem>>, vector<128x256xbf16>
    %205 = arith.truncf %203 : vector<8x128xf32> to vector<8x128xbf16>
    %cst_74 = arith.constant dense<0.000000e+00> : vector<8x256xf32>
    %206 = tpu.matmul %205, %204, %cst_74 {dimension_numbers = #tpu.dot_dimension_numbers<[1], [0], [0], [1], [0, 0, 1, 1], [], []>} : vector<8x128xbf16>, vector<128x256xbf16>, vector<8x256xf32> -> vector<8x256xf32>
    %c0_75 = arith.constant 0 : index
    %c0_76 = arith.constant 0 : index
    %207 = vector.load %arg17[%c0_75, %c0_76] : memref<1x256xf32, #tpu.memory_space<vmem>>, vector<1x256xf32>
    %208 = vector.broadcast %207 : vector<1x256xf32> to vector<8x256xf32>
    %209 = arith.addf %206, %208 : vector<8x256xf32>
    %cst_77 = arith.constant 0.000000e+00 : f32
    %210 = vector.broadcast %cst_77 : f32 to vector<8x256xf32>
    %211 = arith.cmpf ogt, %209, %210 : vector<8x256xf32>
    %cst_78 = arith.constant 0.00999999977 : f32
    %212 = vector.broadcast %cst_78 : f32 to vector<8x256xf32>
    %213 = arith.mulf %212, %209 : vector<8x256xf32>
    %214 = arith.select %211, %209, %213 : vector<8x256xi1>, vector<8x256xf32>
    %c0_79 = arith.constant 0 : index
    %c0_80 = arith.constant 0 : index
    %215 = vector.load %arg18[%c0_79, %c0_80] : memref<256x128xbf16, #tpu.memory_space<vmem>>, vector<256x128xbf16>
    %216 = arith.truncf %214 : vector<8x256xf32> to vector<8x256xbf16>
    %cst_81 = arith.constant dense<0.000000e+00> : vector<8x128xf32>
    %217 = tpu.matmul %216, %215, %cst_81 {dimension_numbers = #tpu.dot_dimension_numbers<[1], [0], [0], [1], [0, 0, 1, 1], [], []>} : vector<8x256xbf16>, vector<256x128xbf16>, vector<8x128xf32> -> vector<8x128xf32>
    %218 = arith.addf %179, %217 : vector<8x128xf32>
    %c0_82 = arith.constant 0 : index
    %c0_83 = arith.constant 0 : index
    %219 = vector.load %arg19[%c0_82, %c0_83] : memref<1x128xf32, #tpu.memory_space<vmem>>, vector<1x128xf32>
    %220 = vector.broadcast %219 : vector<1x128xf32> to vector<8x128xf32>
    %221 = arith.addf %218, %220 : vector<8x128xf32>
    %c0_84 = arith.constant 0 : index
    %c0_85 = arith.constant 0 : index
    %c0_86 = arith.constant 0 : index
    %222 = vector.load %arg20[%c0_84, %c0_85, %c0_86] : memref<1x8x128xf32, #tpu.memory_space<vmem>>, vector<1x8x128xf32>
    %223 = vector.shape_cast %222 : vector<1x8x128xf32> to vector<8x128xf32>
    %224 = vector.shape_cast %221 : vector<8x128xf32> to vector<1x8x128xf32>
    tpu.vector_store %arg20[%c0_84, %c0_85, %c0_86], %224 {strides = array<i32>} : memref<1x8x128xf32, #tpu.memory_space<vmem>>, vector<1x8x128xf32>,
    return
  }
  func.func @transform_0(%arg0: i32) -> (i32, i32, i32) {
    %c0_i32 = arith.constant 0 : i32
    %c0_i32_0 = arith.constant 0 : i32
    %c0_i32_1 = arith.constant 0 : i32
    return %arg0, %c0_i32, %c0_i32_0 : i32, i32, i32
  }
  func.func @transform_1(%arg0: i32) -> (i32, i32, i32) {
    %c0_i32 = arith.constant 0 : i32
    %c0_i32_0 = arith.constant 0 : i32
    %c0_i32_1 = arith.constant 0 : i32
    return %arg0, %c0_i32, %c0_i32_0 : i32, i32, i32
  }
  func.func @transform_2(%arg0: i32) -> (i32, i32, i32) {
    %c0_i32 = arith.constant 0 : i32
    %c0_i32_0 = arith.constant 0 : i32
    %c0_i32_1 = arith.constant 0 : i32
    return %arg0, %c0_i32, %c0_i32_0 : i32, i32, i32
  }
  func.func @transform_3(%arg0: i32) -> (i32, i32) {
    %c0_i32 = arith.constant 0 : i32
    %c0_i32_0 = arith.constant 0 : i32
    %c0_i32_1 = arith.constant 0 : i32
    return %c0_i32, %c0_i32_0 : i32, i32
  }
  func.func @transform_4(%arg0: i32) -> (i32, i32) {
    %c0_i32 = arith.constant 0 : i32
    %c0_i32_0 = arith.constant 0 : i32
    %c0_i32_1 = arith.constant 0 : i32
    return %c0_i32, %c0_i32_0 : i32, i32
  }
  func.func @transform_5(%arg0: i32) -> (i32, i32) {
    %c0_i32 = arith.constant 0 : i32
    %c0_i32_0 = arith.constant 0 : i32
    %c0_i32_1 = arith.constant 0 : i32
    return %c0_i32, %c0_i32_0 : i32, i32
  }
  func.func @transform_6(%arg0: i32) -> (i32, i32) {
    %c0_i32 = arith.constant 0 : i32
    %c0_i32_0 = arith.constant 0 : i32
    %c0_i32_1 = arith.constant 0 : i32
    return %c0_i32, %c0_i32_0 : i32, i32
  }
  func.func @transform_7(%arg0: i32) -> (i32, i32) {
    %c0_i32 = arith.constant 0 : i32
    %c0_i32_0 = arith.constant 0 : i32
    %c0_i32_1 = arith.constant 0 : i32
    return %c0_i32, %c0_i32_0 : i32, i32
  }
  func.func @transform_8(%arg0: i32) -> (i32, i32) {
    %c0_i32 = arith.constant 0 : i32
    %c0_i32_0 = arith.constant 0 : i32
    %c0_i32_1 = arith.constant 0 : i32
    return %c0_i32, %c0_i32_0 : i32, i32
  }
  func.func @transform_9(%arg0: i32) -> (i32, i32) {
    %c0_i32 = arith.constant 0 : i32
    %c0_i32_0 = arith.constant 0 : i32
    %c0_i32_1 = arith.constant 0 : i32
    return %c0_i32, %c0_i32_0 : i32, i32
  }
  func.func @transform_10(%arg0: i32) -> (i32, i32) {
    %c0_i32 = arith.constant 0 : i32
    %c0_i32_0 = arith.constant 0 : i32
    %c0_i32_1 = arith.constant 0 : i32
    return %c0_i32, %c0_i32_0 : i32, i32
  }
  func.func @transform_11(%arg0: i32) -> (i32, i32) {
    %c0_i32 = arith.constant 0 : i32
    %c0_i32_0 = arith.constant 0 : i32
    %c0_i32_1 = arith.constant 0 : i32
    return %c0_i32, %c0_i32_0 : i32, i32
  }
  func.func @transform_12(%arg0: i32) -> (i32, i32) {
    %c0_i32 = arith.constant 0 : i32
    %c0_i32_0 = arith.constant 0 : i32
    %c0_i32_1 = arith.constant 0 : i32
    return %c0_i32, %c0_i32_0 : i32, i32
  }
  func.func @transform_13(%arg0: i32) -> (i32, i32) {
    %c0_i32 = arith.constant 0 : i32
    %c0_i32_0 = arith.constant 0 : i32
    %c0_i32_1 = arith.constant 0 : i32
    return %c0_i32, %c0_i32_0 : i32, i32
  }
  func.func @transform_14(%arg0: i32) -> (i32, i32) {
    %c0_i32 = arith.constant 0 : i32
    %c0_i32_0 = arith.constant 0 : i32
    %c0_i32_1 = arith.constant 0 : i32
    return %c0_i32, %c0_i32_0 : i32, i32
  }
  func.func @transform_15(%arg0: i32) -> (i32, i32) {
    %c0_i32 = arith.constant 0 : i32
    %c0_i32_0 = arith.constant 0 : i32
    %c0_i32_1 = arith.constant 0 : i32
    return %c0_i32, %c0_i32_0 : i32, i32
  }
  func.func @transform_16(%arg0: i32) -> (i32, i32) {
    %c0_i32 = arith.constant 0 : i32
    %c0_i32_0 = arith.constant 0 : i32
    %c0_i32_1 = arith.constant 0 : i32
    return %c0_i32, %c0_i32_0 : i32, i32
  }
  func.func @transform_17(%arg0: i32) -> (i32, i32) {
    %c0_i32 = arith.constant 0 : i32
    %c0_i32_0 = arith.constant 0 : i32
    %c0_i32_1 = arith.constant 0 : i32
    return %c0_i32, %c0_i32_0 : i32, i32
  }
  func.func @transform_18(%arg0: i32) -> (i32, i32) {
    %c0_i32 = arith.constant 0 : i32
    %c0_i32_0 = arith.constant 0 : i32
    %c0_i32_1 = arith.constant 0 : i32
    return %c0_i32, %c0_i32_0 : i32, i32
  }
  func.func @transform_19(%arg0: i32) -> (i32, i32, i32) {
    %c0_i32 = arith.constant 0 : i32
    %c0_i32_0 = arith.constant 0 : i32
    %c0_i32_1 = arith.constant 0 : i32
    return %arg0, %c0_i32, %c0_i32_0 : i32, i32, i32
  }
}

module attributes {stable_mosaic.version = 11 : i64} {
  func.func @_ca_layer_kernel(%arg0: i32, %arg1: memref<1x8x128xf32, #tpu.memory_space<vmem>>, %arg2: memref<1x16x128xf32, #tpu.memory_space<vmem>>, %arg3: memref<1x1x16xf32, #tpu.memory_space<vmem>>, %arg4: memref<1x128xf32, #tpu.memory_space<vmem>>, %arg5: memref<1x128xf32, #tpu.memory_space<vmem>>, %arg6: memref<1x128xf32, #tpu.memory_space<vmem>>, %arg7: memref<1x128xf32, #tpu.memory_space<vmem>>, %arg8: memref<1x128xf32, #tpu.memory_space<vmem>>, %arg9: memref<1x128xf32, #tpu.memory_space<vmem>>, %arg10: memref<128x128xbf16, #tpu.memory_space<vmem>>, %arg11: memref<1x128xf32, #tpu.memory_space<vmem>>, %arg12: memref<128x256xbf16, #tpu.memory_space<vmem>>, %arg13: memref<1x256xf32, #tpu.memory_space<vmem>>, %arg14: memref<128x128xbf16, #tpu.memory_space<vmem>>, %arg15: memref<1x128xf32, #tpu.memory_space<vmem>>, %arg16: memref<128x256xbf16, #tpu.memory_space<vmem>>, %arg17: memref<1x256xf32, #tpu.memory_space<vmem>>, %arg18: memref<256x128xbf16, #tpu.memory_space<vmem>>, %arg19: memref<1x128xf32, #tpu.memory_space<vmem>>, %arg20: memref<1x8x128xf32, #tpu.memory_space<vmem>>) attributes {dimension_semantics = [#tpu.dimension_semantics<parallel>], iteration_bounds = array<i64: 2>, scalar_prefetch = 0 : i64, scratch_operands = 0 : i64, tpu.core_type = #tpu.core_type<tc>, window_params = [{transform_indices = @transform_0, window_bounds = array<i64: 1, 8, 128>}, {transform_indices = @transform_1, window_bounds = array<i64: 1, 16, 128>}, {transform_indices = @transform_2, window_bounds = array<i64: 1, 1, 16>}, {pipeline_mode = #tpu.pipeline_mode<synchronous>, transform_indices = @transform_3, window_bounds = array<i64: 1, 128>}, {pipeline_mode = #tpu.pipeline_mode<synchronous>, transform_indices = @transform_4, window_bounds = array<i64: 1, 128>}, {pipeline_mode = #tpu.pipeline_mode<synchronous>, transform_indices = @transform_5, window_bounds = array<i64: 1, 128>}, {pipeline_mode = #tpu.pipeline_mode<synchronous>, transform_indices = @transform_6, window_bounds = array<i64: 1, 128>}, {pipeline_mode = #tpu.pipeline_mode<synchronous>, transform_indices = @transform_7, window_bounds = array<i64: 1, 128>}, {pipeline_mode = #tpu.pipeline_mode<synchronous>, transform_indices = @transform_8, window_bounds = array<i64: 1, 128>}, {pipeline_mode = #tpu.pipeline_mode<synchronous>, transform_indices = @transform_9, window_bounds = array<i64: 128, 128>}, {pipeline_mode = #tpu.pipeline_mode<synchronous>, transform_indices = @transform_10, window_bounds = array<i64: 1, 128>}, {pipeline_mode = #tpu.pipeline_mode<synchronous>, transform_indices = @transform_11, window_bounds = array<i64: 128, 256>}, {pipeline_mode = #tpu.pipeline_mode<synchronous>, transform_indices = @transform_12, window_bounds = array<i64: 1, 256>}, {pipeline_mode = #tpu.pipeline_mode<synchronous>, transform_indices = @transform_13, window_bounds = array<i64: 128, 128>}, {pipeline_mode = #tpu.pipeline_mode<synchronous>, transform_indices = @transform_14, window_bounds = array<i64: 1, 128>}, {pipeline_mode = #tpu.pipeline_mode<synchronous>, transform_indices = @transform_15, window_bounds = array<i64: 128, 256>}, {pipeline_mode = #tpu.pipeline_mode<synchronous>, transform_indices = @transform_16, window_bounds = array<i64: 1, 256>}, {pipeline_mode = #tpu.pipeline_mode<synchronous>, transform_indices = @transform_17, window_bounds = array<i64: 256, 128>}, {pipeline_mode = #tpu.pipeline_mode<synchronous>, transform_indices = @transform_18, window_bounds = array<i64: 1, 128>}, {transform_indices = @transform_19, window_bounds = array<i64: 1, 8, 128>}]} {
    %c0 = arith.constant 0 : index
    %c0_0 = arith.constant 0 : index
    %c0_1 = arith.constant 0 : index
    %0 = vector.load %arg1[%c0, %c0_0, %c0_1] : memref<1x8x128xf32, #tpu.memory_space<vmem>>, vector<1x8x128xf32>
    %1 = vector.shape_cast %0 : vector<1x8x128xf32> to vector<8x128xf32>
    %c0_2 = arith.constant 0 : index
    %c0_3 = arith.constant 0 : index
    %c0_4 = arith.constant 0 : index
    %2 = vector.load %arg2[%c0_2, %c0_3, %c0_4] : memref<1x16x128xf32, #tpu.memory_space<vmem>>, vector<1x16x128xf32>
    %3 = vector.shape_cast %2 : vector<1x16x128xf32> to vector<16x128xf32>
    %c0_5 = arith.constant 0 : index
    %c0_6 = arith.constant 0 : index
    %c0_7 = arith.constant 0 : index
    %4 = vector.load %arg3[%c0_5, %c0_6, %c0_7] : memref<1x1x16xf32, #tpu.memory_space<vmem>>, vector<1x1x16xf32>
    %5 = vector.shape_cast %4 : vector<1x1x16xf32> to vector<1x16xf32>
    %c0_8 = arith.constant 0 : index
    %c0_9 = arith.constant 0 : index
    %6 = vector.load %arg6[%c0_8, %c0_9] : memref<1x128xf32, #tpu.memory_space<vmem>>, vector<1x128xf32>
    %c0_10 = arith.constant 0 : index
    %c0_11 = arith.constant 0 : index
    %7 = vector.load %arg7[%c0_10, %c0_11] : memref<1x128xf32, #tpu.memory_space<vmem>>, vector<1x128xf32>
    %cst = arith.constant dense<0.000000e+00> : vector<8xf32>
    %8 = vector.multi_reduction <add>, %1, %cst [1] : vector<8x128xf32> to vector<8xf32>
    %9 = vector.shape_cast %8 : vector<8xf32> to vector<8x1xf32>
    %cst_12 = arith.constant 1.280000e+02 : f32
    %10 = vector.broadcast %cst_12 : f32 to vector<8x1xf32>
    %11 = arith.divf %9, %10 : vector<8x1xf32>
    %12 = vector.broadcast %11 : vector<8x1xf32> to vector<8x128xf32>
    %13 = arith.subf %1, %12 : vector<8x128xf32>
    %14 = arith.mulf %13, %13 : vector<8x128xf32>
    %cst_13 = arith.constant dense<0.000000e+00> : vector<8xf32>
    %15 = vector.multi_reduction <add>, %14, %cst_13 [1] : vector<8x128xf32> to vector<8xf32>
    %16 = vector.shape_cast %15 : vector<8xf32> to vector<8x1xf32>
    %cst_14 = arith.constant 1.280000e+02 : f32
    %17 = vector.broadcast %cst_14 : f32 to vector<8x1xf32>
    %18 = arith.divf %16, %17 : vector<8x1xf32>
    %19 = vector.broadcast %11 : vector<8x1xf32> to vector<8x128xf32>
    %20 = arith.subf %1, %19 : vector<8x128xf32>
    %cst_15 = arith.constant 9.99999974E-6 : f32
    %21 = vector.broadcast %cst_15 : f32 to vector<8x1xf32>
    %22 = arith.addf %18, %21 : vector<8x1xf32>
    %23 = math.rsqrt %22 : vector<8x1xf32>
    %24 = vector.broadcast %23 : vector<8x1xf32> to vector<8x128xf32>
    %25 = arith.mulf %20, %24 : vector<8x128xf32>
    %26 = vector.broadcast %6 : vector<1x128xf32> to vector<8x128xf32>
    %27 = arith.mulf %25, %26 : vector<8x128xf32>
    %28 = vector.broadcast %7 : vector<1x128xf32> to vector<8x128xf32>
    %29 = arith.addf %27, %28 : vector<8x128xf32>
    %c0_16 = arith.constant 0 : index
    %c0_17 = arith.constant 0 : index
    %30 = vector.load %arg10[%c0_16, %c0_17] : memref<128x128xbf16, #tpu.memory_space<vmem>>, vector<128x128xbf16>
    %31 = arith.truncf %29 : vector<8x128xf32> to vector<8x128xbf16>
    %cst_18 = arith.constant dense<0.000000e+00> : vector<8x128xf32>
    %32 = tpu.matmul %31, %30, %cst_18 {dimension_numbers = #tpu.dot_dimension_numbers<[1], [0], [0], [1], [0, 0, 1, 1], [], []>} : vector<8x128xbf16>, vector<128x128xbf16>, vector<8x128xf32> -> vector<8x128xf32>
    %c0_19 = arith.constant 0 : index
    %c0_20 = arith.constant 0 : index
    %33 = vector.load %arg11[%c0_19, %c0_20] : memref<1x128xf32, #tpu.memory_space<vmem>>, vector<1x128xf32>
    %34 = vector.broadcast %33 : vector<1x128xf32> to vector<8x128xf32>
    %35 = arith.addf %32, %34 : vector<8x128xf32>
    %c0_21 = arith.constant 0 : index
    %c0_22 = arith.constant 0 : index
    %36 = vector.load %arg4[%c0_21, %c0_22] : memref<1x128xf32, #tpu.memory_space<vmem>>, vector<1x128xf32>
    %c0_23 = arith.constant 0 : index
    %c0_24 = arith.constant 0 : index
    %37 = vector.load %arg5[%c0_23, %c0_24] : memref<1x128xf32, #tpu.memory_space<vmem>>, vector<1x128xf32>
    %cst_25 = arith.constant dense<0.000000e+00> : vector<16xf32>
    %38 = vector.multi_reduction <add>, %3, %cst_25 [1] : vector<16x128xf32> to vector<16xf32>
    %39 = vector.shape_cast %38 : vector<16xf32> to vector<16x1xf32>
    %cst_26 = arith.constant 1.280000e+02 : f32
    %40 = vector.broadcast %cst_26 : f32 to vector<16x1xf32>
    %41 = arith.divf %39, %40 : vector<16x1xf32>
    %42 = vector.broadcast %41 : vector<16x1xf32> to vector<16x128xf32>
    %43 = arith.subf %3, %42 : vector<16x128xf32>
    %44 = arith.mulf %43, %43 : vector<16x128xf32>
    %cst_27 = arith.constant dense<0.000000e+00> : vector<16xf32>
    %45 = vector.multi_reduction <add>, %44, %cst_27 [1] : vector<16x128xf32> to vector<16xf32>
    %46 = vector.shape_cast %45 : vector<16xf32> to vector<16x1xf32>
    %cst_28 = arith.constant 1.280000e+02 : f32
    %47 = vector.broadcast %cst_28 : f32 to vector<16x1xf32>
    %48 = arith.divf %46, %47 : vector<16x1xf32>
    %49 = vector.broadcast %41 : vector<16x1xf32> to vector<16x128xf32>
    %50 = arith.subf %3, %49 : vector<16x128xf32>
    %cst_29 = arith.constant 9.99999974E-6 : f32
    %51 = vector.broadcast %cst_29 : f32 to vector<16x1xf32>
    %52 = arith.addf %48, %51 : vector<16x1xf32>
    %53 = math.rsqrt %52 : vector<16x1xf32>
    %54 = vector.broadcast %53 : vector<16x1xf32> to vector<16x128xf32>
    %55 = arith.mulf %50, %54 : vector<16x128xf32>
    %56 = vector.broadcast %36 : vector<1x128xf32> to vector<16x128xf32>
    %57 = arith.mulf %55, %56 : vector<16x128xf32>
    %58 = vector.broadcast %37 : vector<1x128xf32> to vector<16x128xf32>
    %59 = arith.addf %57, %58 : vector<16x128xf32>
    %c0_30 = arith.constant 0 : index
    %c0_31 = arith.constant 0 : index
    %60 = vector.load %arg12[%c0_30, %c0_31] : memref<128x256xbf16, #tpu.memory_space<vmem>>, vector<128x256xbf16>
    %61 = arith.truncf %59 : vector<16x128xf32> to vector<16x128xbf16>
    %cst_32 = arith.constant dense<0.000000e+00> : vector<16x256xf32>
    %62 = tpu.matmul %61, %60, %cst_32 {dimension_numbers = #tpu.dot_dimension_numbers<[1], [0], [0], [1], [0, 0, 1, 1], [], []>} : vector<16x128xbf16>, vector<128x256xbf16>, vector<16x256xf32> -> vector<16x256xf32>
    %c0_33 = arith.constant 0 : index
    %c0_34 = arith.constant 0 : index
    %63 = vector.load %arg13[%c0_33, %c0_34] : memref<1x256xf32, #tpu.memory_space<vmem>>, vector<1x256xf32>
    %64 = vector.broadcast %63 : vector<1x256xf32> to vector<16x256xf32>
    %65 = arith.addf %62, %64 : vector<16x256xf32>
    %66 = vector.extract_strided_slice %65 {offsets = [0, 0], sizes = [16, 128], strides = [1, 1]} : vector<16x256xf32> to vector<16x128xf32>
    %67 = vector.extract_strided_slice %65 {offsets = [0, 128], sizes = [16, 128], strides = [1, 1]} : vector<16x256xf32> to vector<16x128xf32>
    %c0_35 = arith.constant 0 : index
    %c0_36 = arith.constant 0 : index
    %68 = vector.load %arg14[%c0_35, %c0_36] : memref<128x128xbf16, #tpu.memory_space<vmem>>, vector<128x128xbf16>
    %69 = vector.extract_strided_slice %35 {offsets = [0, 0], sizes = [8, 32], strides = [1, 1]} : vector<8x128xf32> to vector<8x32xf32>
    %70 = vector.extract_strided_slice %66 {offsets = [0, 0], sizes = [16, 32], strides = [1, 1]} : vector<16x128xf32> to vector<16x32xf32>
    %71 = arith.truncf %69 : vector<8x32xf32> to vector<8x32xbf16>
    %72 = arith.truncf %70 : vector<16x32xf32> to vector<16x32xbf16>
    %cst_37 = arith.constant dense<0.000000e+00> : vector<8x16xf32>
    %73 = tpu.matmul %71, %72, %cst_37 {dimension_numbers = #tpu.dot_dimension_numbers<[1], [1], [0], [0], [0, 0, 1, 0], [], []>} : vector<8x32xbf16>, vector<16x32xbf16>, vector<8x16xf32> -> vector<8x16xf32>
    %cst_38 = arith.constant 0.176776692 : f32
    %74 = vector.broadcast %cst_38 : f32 to vector<8x16xf32>
    %75 = arith.mulf %73, %74 : vector<8x16xf32>
    %76 = vector.broadcast %5 : vector<1x16xf32> to vector<8x16xf32>
    %77 = arith.addf %75, %76 : vector<8x16xf32>
    %cst_39 = arith.constant dense<0xFF800000> : vector<8xf32>
    %78 = vector.multi_reduction <maximumf>, %77, %cst_39 [1] : vector<8x16xf32> to vector<8xf32>
    %79 = vector.shape_cast %78 : vector<8xf32> to vector<8x1xf32>
    %80 = vector.broadcast %79 : vector<8x1xf32> to vector<8x16xf32>
    %81 = arith.subf %77, %80 : vector<8x16xf32>
    %82 = math.exp %81 : vector<8x16xf32>
    %cst_40 = arith.constant dense<0.000000e+00> : vector<8xf32>
    %83 = vector.multi_reduction <add>, %82, %cst_40 [1] : vector<8x16xf32> to vector<8xf32>
    %84 = vector.shape_cast %83 : vector<8xf32> to vector<8x1xf32>
    %85 = tpu.reciprocal %84 {approx = true} : vector<8x1xf32> -> vector<8x1xf32>
    %86 = vector.broadcast %85 : vector<8x1xf32> to vector<8x16xf32>
    %87 = arith.mulf %82, %86 : vector<8x16xf32>
    %88 = vector.extract_strided_slice %67 {offsets = [0, 0], sizes = [16, 32], strides = [1, 1]} : vector<16x128xf32> to vector<16x32xf32>
    %89 = arith.truncf %87 : vector<8x16xf32> to vector<8x16xbf16>
    %90 = arith.truncf %88 : vector<16x32xf32> to vector<16x32xbf16>
    %cst_41 = arith.constant dense<0.000000e+00> : vector<8x32xf32>
    %91 = tpu.matmul %89, %90, %cst_41 {dimension_numbers = #tpu.dot_dimension_numbers<[1], [0], [0], [1], [0, 0, 1, 1], [], []>} : vector<8x16xbf16>, vector<16x32xbf16>, vector<8x32xf32> -> vector<8x32xf32>
    %92 = vector.extract_strided_slice %68 {offsets = [0, 0], sizes = [32, 128], strides = [1, 1]} : vector<128x128xbf16> to vector<32x128xbf16>
    %93 = arith.truncf %91 : vector<8x32xf32> to vector<8x32xbf16>
    %cst_42 = arith.constant dense<0.000000e+00> : vector<8x128xf32>
    %94 = tpu.matmul %93, %92, %cst_42 {dimension_numbers = #tpu.dot_dimension_numbers<[1], [0], [0], [1], [0, 0, 1, 1], [], []>} : vector<8x32xbf16>, vector<32x128xbf16>, vector<8x128xf32> -> vector<8x128xf32>
    %95 = vector.extract_strided_slice %35 {offsets = [0, 32], sizes = [8, 32], strides = [1, 1]} : vector<8x128xf32> to vector<8x32xf32>
    %96 = vector.extract_strided_slice %66 {offsets = [0, 32], sizes = [16, 32], strides = [1, 1]} : vector<16x128xf32> to vector<16x32xf32>
    %97 = arith.truncf %95 : vector<8x32xf32> to vector<8x32xbf16>
    %98 = arith.truncf %96 : vector<16x32xf32> to vector<16x32xbf16>
    %cst_43 = arith.constant dense<0.000000e+00> : vector<8x16xf32>
    %99 = tpu.matmul %97, %98, %cst_43 {dimension_numbers = #tpu.dot_dimension_numbers<[1], [1], [0], [0], [0, 0, 1, 0], [], []>} : vector<8x32xbf16>, vector<16x32xbf16>, vector<8x16xf32> -> vector<8x16xf32>
    %cst_44 = arith.constant 0.176776692 : f32
    %100 = vector.broadcast %cst_44 : f32 to vector<8x16xf32>
    %101 = arith.mulf %99, %100 : vector<8x16xf32>
    %102 = vector.broadcast %5 : vector<1x16xf32> to vector<8x16xf32>
    %103 = arith.addf %101, %102 : vector<8x16xf32>
    %cst_45 = arith.constant dense<0xFF800000> : vector<8xf32>
    %104 = vector.multi_reduction <maximumf>, %103, %cst_45 [1] : vector<8x16xf32> to vector<8xf32>
    %105 = vector.shape_cast %104 : vector<8xf32> to vector<8x1xf32>
    %106 = vector.broadcast %105 : vector<8x1xf32> to vector<8x16xf32>
    %107 = arith.subf %103, %106 : vector<8x16xf32>
    %108 = math.exp %107 : vector<8x16xf32>
    %cst_46 = arith.constant dense<0.000000e+00> : vector<8xf32>
    %109 = vector.multi_reduction <add>, %108, %cst_46 [1] : vector<8x16xf32> to vector<8xf32>
    %110 = vector.shape_cast %109 : vector<8xf32> to vector<8x1xf32>
    %111 = tpu.reciprocal %110 {approx = true} : vector<8x1xf32> -> vector<8x1xf32>
    %112 = vector.broadcast %111 : vector<8x1xf32> to vector<8x16xf32>
    %113 = arith.mulf %108, %112 : vector<8x16xf32>
    %114 = vector.extract_strided_slice %67 {offsets = [0, 32], sizes = [16, 32], strides = [1, 1]} : vector<16x128xf32> to vector<16x32xf32>
    %115 = arith.truncf %113 : vector<8x16xf32> to vector<8x16xbf16>
    %116 = arith.truncf %114 : vector<16x32xf32> to vector<16x32xbf16>
    %cst_47 = arith.constant dense<0.000000e+00> : vector<8x32xf32>
    %117 = tpu.matmul %115, %116, %cst_47 {dimension_numbers = #tpu.dot_dimension_numbers<[1], [0], [0], [1], [0, 0, 1, 1], [], []>} : vector<8x16xbf16>, vector<16x32xbf16>, vector<8x32xf32> -> vector<8x32xf32>
    %118 = vector.extract_strided_slice %68 {offsets = [32, 0], sizes = [32, 128], strides = [1, 1]} : vector<128x128xbf16> to vector<32x128xbf16>
    %119 = arith.truncf %117 : vector<8x32xf32> to vector<8x32xbf16>
    %cst_48 = arith.constant dense<0.000000e+00> : vector<8x128xf32>
    %120 = tpu.matmul %119, %118, %cst_48 {dimension_numbers = #tpu.dot_dimension_numbers<[1], [0], [0], [1], [0, 0, 1, 1], [], []>} : vector<8x32xbf16>, vector<32x128xbf16>, vector<8x128xf32> -> vector<8x128xf32>
    %121 = arith.addf %94, %120 : vector<8x128xf32>
    %122 = vector.extract_strided_slice %35 {offsets = [0, 64], sizes = [8, 32], strides = [1, 1]} : vector<8x128xf32> to vector<8x32xf32>
    %123 = vector.extract_strided_slice %66 {offsets = [0, 64], sizes = [16, 32], strides = [1, 1]} : vector<16x128xf32> to vector<16x32xf32>
    %124 = arith.truncf %122 : vector<8x32xf32> to vector<8x32xbf16>
    %125 = arith.truncf %123 : vector<16x32xf32> to vector<16x32xbf16>
    %cst_49 = arith.constant dense<0.000000e+00> : vector<8x16xf32>
    %126 = tpu.matmul %124, %125, %cst_49 {dimension_numbers = #tpu.dot_dimension_numbers<[1], [1], [0], [0], [0, 0, 1, 0], [], []>} : vector<8x32xbf16>, vector<16x32xbf16>, vector<8x16xf32> -> vector<8x16xf32>
    %cst_50 = arith.constant 0.176776692 : f32
    %127 = vector.broadcast %cst_50 : f32 to vector<8x16xf32>
    %128 = arith.mulf %126, %127 : vector<8x16xf32>
    %129 = vector.broadcast %5 : vector<1x16xf32> to vector<8x16xf32>
    %130 = arith.addf %128, %129 : vector<8x16xf32>
    %cst_51 = arith.constant dense<0xFF800000> : vector<8xf32>
    %131 = vector.multi_reduction <maximumf>, %130, %cst_51 [1] : vector<8x16xf32> to vector<8xf32>
    %132 = vector.shape_cast %131 : vector<8xf32> to vector<8x1xf32>
    %133 = vector.broadcast %132 : vector<8x1xf32> to vector<8x16xf32>
    %134 = arith.subf %130, %133 : vector<8x16xf32>
    %135 = math.exp %134 : vector<8x16xf32>
    %cst_52 = arith.constant dense<0.000000e+00> : vector<8xf32>
    %136 = vector.multi_reduction <add>, %135, %cst_52 [1] : vector<8x16xf32> to vector<8xf32>
    %137 = vector.shape_cast %136 : vector<8xf32> to vector<8x1xf32>
    %138 = tpu.reciprocal %137 {approx = true} : vector<8x1xf32> -> vector<8x1xf32>
    %139 = vector.broadcast %138 : vector<8x1xf32> to vector<8x16xf32>
    %140 = arith.mulf %135, %139 : vector<8x16xf32>
    %141 = vector.extract_strided_slice %67 {offsets = [0, 64], sizes = [16, 32], strides = [1, 1]} : vector<16x128xf32> to vector<16x32xf32>
    %142 = arith.truncf %140 : vector<8x16xf32> to vector<8x16xbf16>
    %143 = arith.truncf %141 : vector<16x32xf32> to vector<16x32xbf16>
    %cst_53 = arith.constant dense<0.000000e+00> : vector<8x32xf32>
    %144 = tpu.matmul %142, %143, %cst_53 {dimension_numbers = #tpu.dot_dimension_numbers<[1], [0], [0], [1], [0, 0, 1, 1], [], []>} : vector<8x16xbf16>, vector<16x32xbf16>, vector<8x32xf32> -> vector<8x32xf32>
    %145 = vector.extract_strided_slice %68 {offsets = [64, 0], sizes = [32, 128], strides = [1, 1]} : vector<128x128xbf16> to vector<32x128xbf16>
    %146 = arith.truncf %144 : vector<8x32xf32> to vector<8x32xbf16>
    %cst_54 = arith.constant dense<0.000000e+00> : vector<8x128xf32>
    %147 = tpu.matmul %146, %145, %cst_54 {dimension_numbers = #tpu.dot_dimension_numbers<[1], [0], [0], [1], [0, 0, 1, 1], [], []>} : vector<8x32xbf16>, vector<32x128xbf16>, vector<8x128xf32> -> vector<8x128xf32>
    %148 = arith.addf %121, %147 : vector<8x128xf32>
    %149 = vector.extract_strided_slice %35 {offsets = [0, 96], sizes = [8, 32], strides = [1, 1]} : vector<8x128xf32> to vector<8x32xf32>
    %150 = vector.extract_strided_slice %66 {offsets = [0, 96], sizes = [16, 32], strides = [1, 1]} : vector<16x128xf32> to vector<16x32xf32>
    %151 = arith.truncf %149 : vector<8x32xf32> to vector<8x32xbf16>
    %152 = arith.truncf %150 : vector<16x32xf32> to vector<16x32xbf16>
    %cst_55 = arith.constant dense<0.000000e+00> : vector<8x16xf32>
    %153 = tpu.matmul %151, %152, %cst_55 {dimension_numbers = #tpu.dot_dimension_numbers<[1], [1], [0], [0], [0, 0, 1, 0], [], []>} : vector<8x32xbf16>, vector<16x32xbf16>, vector<8x16xf32> -> vector<8x16xf32>
    %cst_56 = arith.constant 0.176776692 : f32
    %154 = vector.broadcast %cst_56 : f32 to vector<8x16xf32>
    %155 = arith.mulf %153, %154 : vector<8x16xf32>
    %156 = vector.broadcast %5 : vector<1x16xf32> to vector<8x16xf32>
    %157 = arith.addf %155, %156 : vector<8x16xf32>
    %cst_57 = arith.constant dense<0xFF800000> : vector<8xf32>
    %158 = vector.multi_reduction <maximumf>, %157, %cst_57 [1] : vector<8x16xf32> to vector<8xf32>
    %159 = vector.shape_cast %158 : vector<8xf32> to vector<8x1xf32>
    %160 = vector.broadcast %159 : vector<8x1xf32> to vector<8x16xf32>
    %161 = arith.subf %157, %160 : vector<8x16xf32>
    %162 = math.exp %161 : vector<8x16xf32>
    %cst_58 = arith.constant dense<0.000000e+00> : vector<8xf32>
    %163 = vector.multi_reduction <add>, %162, %cst_58 [1] : vector<8x16xf32> to vector<8xf32>
    %164 = vector.shape_cast %163 : vector<8xf32> to vector<8x1xf32>
    %165 = tpu.reciprocal %164 {approx = true} : vector<8x1xf32> -> vector<8x1xf32>
    %166 = vector.broadcast %165 : vector<8x1xf32> to vector<8x16xf32>
    %167 = arith.mulf %162, %166 : vector<8x16xf32>
    %168 = vector.extract_strided_slice %67 {offsets = [0, 96], sizes = [16, 32], strides = [1, 1]} : vector<16x128xf32> to vector<16x32xf32>
    %169 = arith.truncf %167 : vector<8x16xf32> to vector<8x16xbf16>
    %170 = arith.truncf %168 : vector<16x32xf32> to vector<16x32xbf16>
    %cst_59 = arith.constant dense<0.000000e+00> : vector<8x32xf32>
    %171 = tpu.matmul %169, %170, %cst_59 {dimension_numbers = #tpu.dot_dimension_numbers<[1], [0], [0], [1], [0, 0, 1, 1], [], []>} : vector<8x16xbf16>, vector<16x32xbf16>, vector<8x32xf32> -> vector<8x32xf32>
    %172 = vector.extract_strided_slice %68 {offsets = [96, 0], sizes = [32, 128], strides = [1, 1]} : vector<128x128xbf16> to vector<32x128xbf16>
    %173 = arith.truncf %171 : vector<8x32xf32> to vector<8x32xbf16>
    %cst_60 = arith.constant dense<0.000000e+00> : vector<8x128xf32>
    %174 = tpu.matmul %173, %172, %cst_60 {dimension_numbers = #tpu.dot_dimension_numbers<[1], [0], [0], [1], [0, 0, 1, 1], [], []>} : vector<8x32xbf16>, vector<32x128xbf16>, vector<8x128xf32> -> vector<8x128xf32>
    %175 = arith.addf %148, %174 : vector<8x128xf32>
    %176 = arith.addf %1, %175 : vector<8x128xf32>
    %c0_61 = arith.constant 0 : index
    %c0_62 = arith.constant 0 : index
    %177 = vector.load %arg15[%c0_61, %c0_62] : memref<1x128xf32, #tpu.memory_space<vmem>>, vector<1x128xf32>
    %178 = vector.broadcast %177 : vector<1x128xf32> to vector<8x128xf32>
    %179 = arith.addf %176, %178 : vector<8x128xf32>
    %c0_63 = arith.constant 0 : index
    %c0_64 = arith.constant 0 : index
    %180 = vector.load %arg8[%c0_63, %c0_64] : memref<1x128xf32, #tpu.memory_space<vmem>>, vector<1x128xf32>
    %c0_65 = arith.constant 0 : index
    %c0_66 = arith.constant 0 : index
    %181 = vector.load %arg9[%c0_65, %c0_66] : memref<1x128xf32, #tpu.memory_space<vmem>>, vector<1x128xf32>
    %cst_67 = arith.constant dense<0.000000e+00> : vector<8xf32>
    %182 = vector.multi_reduction <add>, %179, %cst_67 [1] : vector<8x128xf32> to vector<8xf32>
    %183 = vector.shape_cast %182 : vector<8xf32> to vector<8x1xf32>
    %cst_68 = arith.constant 1.280000e+02 : f32
    %184 = vector.broadcast %cst_68 : f32 to vector<8x1xf32>
    %185 = arith.divf %183, %184 : vector<8x1xf32>
    %186 = vector.broadcast %185 : vector<8x1xf32> to vector<8x128xf32>
    %187 = arith.subf %179, %186 : vector<8x128xf32>
    %188 = arith.mulf %187, %187 : vector<8x128xf32>
    %cst_69 = arith.constant dense<0.000000e+00> : vector<8xf32>
    %189 = vector.multi_reduction <add>, %188, %cst_69 [1] : vector<8x128xf32> to vector<8xf32>
    %190 = vector.shape_cast %189 : vector<8xf32> to vector<8x1xf32>
    %cst_70 = arith.constant 1.280000e+02 : f32
    %191 = vector.broadcast %cst_70 : f32 to vector<8x1xf32>
    %192 = arith.divf %190, %191 : vector<8x1xf32>
    %193 = vector.broadcast %185 : vector<8x1xf32> to vector<8x128xf32>
    %194 = arith.subf %179, %193 : vector<8x128xf32>
    %cst_71 = arith.constant 9.99999974E-6 : f32
    %195 = vector.broadcast %cst_71 : f32 to vector<8x1xf32>
    %196 = arith.addf %192, %195 : vector<8x1xf32>
    %197 = math.rsqrt %196 : vector<8x1xf32>
    %198 = vector.broadcast %197 : vector<8x1xf32> to vector<8x128xf32>
    %199 = arith.mulf %194, %198 : vector<8x128xf32>
    %200 = vector.broadcast %180 : vector<1x128xf32> to vector<8x128xf32>
    %201 = arith.mulf %199, %200 : vector<8x128xf32>
    %202 = vector.broadcast %181 : vector<1x128xf32> to vector<8x128xf32>
    %203 = arith.addf %201, %202 : vector<8x128xf32>
    %c0_72 = arith.constant 0 : index
    %c0_73 = arith.constant 0 : index
    %204 = vector.load %arg16[%c0_72, %c0_73] : memref<128x256xbf16, #tpu.memory_space<vmem>>, vector<128x256xbf16>
    %205 = arith.truncf %203 : vector<8x128xf32> to vector<8x128xbf16>
    %cst_74 = arith.constant dense<0.000000e+00> : vector<8x256xf32>
    %206 = tpu.matmul %205, %204, %cst_74 {dimension_numbers = #tpu.dot_dimension_numbers<[1], [0], [0], [1], [0, 0, 1, 1], [], []>} : vector<8x128xbf16>, vector<128x256xbf16>, vector<8x256xf32> -> vector<8x256xf32>
    %c0_75 = arith.constant 0 : index
    %c0_76 = arith.constant 0 : index
    %207 = vector.load %arg17[%c0_75, %c0_76] : memref<1x256xf32, #tpu.memory_space<vmem>>, vector<1x256xf32>
    %208 = vector.broadcast %207 : vector<1x256xf32> to vector<8x256xf32>
    %209 = arith.addf %206, %208 : vector<8x256xf32>
    %cst_77 = arith.constant 0.000000e+00 : f32
    %210 = vector.broadcast %cst_77 : f32 to vector<8x256xf32>
    %211 = arith.cmpf ogt, %209, %210 : vector<8x256xf32>
    %cst_78 = arith.constant 0.00999999977 : f32
    %212 = vector.broadcast %cst_78 : f32 to vector<8x256xf32>
    %213 = arith.mulf %212, %209 : vector<8x256xf32>
    %214 = arith.select %211, %209, %213 : vector<8x256xi1>, vector<8x256xf32>
    %c0_79 = arith.constant 0 : index
    %c0_80 = arith.constant 0 : index
    %215 = vector.load %arg18[%c0_79, %c0_80] : memref<256x128xbf16, #tpu.memory_space<vmem>>, vector<256x128xbf16>
    %216 = arith.truncf %214 : vector<8x256xf32> to vector<8x256xbf16>
    %cst_81 = arith.constant dense<0.000000e+00> : vector<8x128xf32>
    %217 = tpu.matmul %216, %215, %cst_81 {dimension_numbers = #tpu.dot_dimension_numbers<[1], [0], [0], [1], [0, 0, 1, 1], [], []>} : vector<8x256xbf16>, vector<256x128xbf16>, vector<8x128xf32> -> vector<8x128xf32>
    %218 = arith.addf %179, %217 : vector<8x128xf32>
    %c0_82 = arith.constant 0 : index
    %c0_83 = arith.constant 0 : index
    %219 = vector.load %arg19[%c0_82, %c0_83] : memref<1x128xf32, #tpu.memory_space<vmem>>, vector<1x128xf32>
    %220 = vector.broadcast %219 : vector<1x128xf32> to vector<8x128xf32>
    %221 = arith.addf %218, %220 : vector<8x128xf32>
    %c0_84 = arith.constant 0 : index
    %c0_85 = arith.constant 0 : index
    %c0_86 = arith.constant 0 : index
    %222 = vector.load %arg20[%c0_84, %c0_85, %c0_86] : memref<1x8x128xf32, #tpu.memory_space<vmem>>, vector<1x8x128xf32>
    %223 = vector.shape_cast %222 : vector<1x8x128xf32> to vector<8x128xf32>
    %224 = vector.shape_cast %221 : vector<8x128xf32> to vector<1x8x128xf32>
    tpu.vector_store %arg20[%c0_84, %c0_85, %c0_86], %224 {strides = array<i32>} : memref<1x8x128xf32, #tpu.memory_space<vmem>>, vector<1x8x128xf32>,
    return
  }
  func.func @transform_0(%arg0: i32) -> (i32, i32, i32) {
    %c0_i32 = arith.constant 0 : i32
    %c0_i32_0 = arith.constant 0 : i32
    %c0_i32_1 = arith.constant 0 : i32
    return %arg0, %c0_i32, %c0_i32_0 : i32, i32, i32
  }
  func.func @transform_1(%arg0: i32) -> (i32, i32, i32) {
    %c0_i32 = arith.constant 0 : i32
    %c0_i32_0 = arith.constant 0 : i32
    %c0_i32_1 = arith.constant 0 : i32
    return %arg0, %c0_i32, %c0_i32_0 : i32, i32, i32
  }
  func.func @transform_2(%arg0: i32) -> (i32, i32, i32) {
    %c0_i32 = arith.constant 0 : i32
    %c0_i32_0 = arith.constant 0 : i32
    %c0_i32_1 = arith.constant 0 : i32
    return %arg0, %c0_i32, %c0_i32_0 : i32, i32, i32
  }
  func.func @transform_3(%arg0: i32) -> (i32, i32) {
    %c0_i32 = arith.constant 0 : i32
    %c0_i32_0 = arith.constant 0 : i32
    %c0_i32_1 = arith.constant 0 : i32
    return %c0_i32, %c0_i32_0 : i32, i32
  }
  func.func @transform_4(%arg0: i32) -> (i32, i32) {
    %c0_i32 = arith.constant 0 : i32
    %c0_i32_0 = arith.constant 0 : i32
    %c0_i32_1 = arith.constant 0 : i32
    return %c0_i32, %c0_i32_0 : i32, i32
  }
  func.func @transform_5(%arg0: i32) -> (i32, i32) {
    %c0_i32 = arith.constant 0 : i32
    %c0_i32_0 = arith.constant 0 : i32
    %c0_i32_1 = arith.constant 0 : i32
    return %c0_i32, %c0_i32_0 : i32, i32
  }
  func.func @transform_6(%arg0: i32) -> (i32, i32) {
    %c0_i32 = arith.constant 0 : i32
    %c0_i32_0 = arith.constant 0 : i32
    %c0_i32_1 = arith.constant 0 : i32
    return %c0_i32, %c0_i32_0 : i32, i32
  }
  func.func @transform_7(%arg0: i32) -> (i32, i32) {
    %c0_i32 = arith.constant 0 : i32
    %c0_i32_0 = arith.constant 0 : i32
    %c0_i32_1 = arith.constant 0 : i32
    return %c0_i32, %c0_i32_0 : i32, i32
  }
  func.func @transform_8(%arg0: i32) -> (i32, i32) {
    %c0_i32 = arith.constant 0 : i32
    %c0_i32_0 = arith.constant 0 : i32
    %c0_i32_1 = arith.constant 0 : i32
    return %c0_i32, %c0_i32_0 : i32, i32
  }
  func.func @transform_9(%arg0: i32) -> (i32, i32) {
    %c0_i32 = arith.constant 0 : i32
    %c0_i32_0 = arith.constant 0 : i32
    %c0_i32_1 = arith.constant 0 : i32
    return %c0_i32, %c0_i32_0 : i32, i32
  }
  func.func @transform_10(%arg0: i32) -> (i32, i32) {
    %c0_i32 = arith.constant 0 : i32
    %c0_i32_0 = arith.constant 0 : i32
    %c0_i32_1 = arith.constant 0 : i32
    return %c0_i32, %c0_i32_0 : i32, i32
  }
  func.func @transform_11(%arg0: i32) -> (i32, i32) {
    %c0_i32 = arith.constant 0 : i32
    %c0_i32_0 = arith.constant 0 : i32
    %c0_i32_1 = arith.constant 0 : i32
    return %c0_i32, %c0_i32_0 : i32, i32
  }
  func.func @transform_12(%arg0: i32) -> (i32, i32) {
    %c0_i32 = arith.constant 0 : i32
    %c0_i32_0 = arith.constant 0 : i32
    %c0_i32_1 = arith.constant 0 : i32
    return %c0_i32, %c0_i32_0 : i32, i32
  }
  func.func @transform_13(%arg0: i32) -> (i32, i32) {
    %c0_i32 = arith.constant 0 : i32
    %c0_i32_0 = arith.constant 0 : i32
    %c0_i32_1 = arith.constant 0 : i32
    return %c0_i32, %c0_i32_0 : i32, i32
  }
  func.func @transform_14(%arg0: i32) -> (i32, i32) {
    %c0_i32 = arith.constant 0 : i32
    %c0_i32_0 = arith.constant 0 : i32
    %c0_i32_1 = arith.constant 0 : i32
    return %c0_i32, %c0_i32_0 : i32, i32
  }
  func.func @transform_15(%arg0: i32) -> (i32, i32) {
    %c0_i32 = arith.constant 0 : i32
    %c0_i32_0 = arith.constant 0 : i32
    %c0_i32_1 = arith.constant 0 : i32
    return %c0_i32, %c0_i32_0 : i32, i32
  }
  func.func @transform_16(%arg0: i32) -> (i32, i32) {
    %c0_i32 = arith.constant 0 : i32
    %c0_i32_0 = arith.constant 0 : i32
    %c0_i32_1 = arith.constant 0 : i32
    return %c0_i32, %c0_i32_0 : i32, i32
  }
  func.func @transform_17(%arg0: i32) -> (i32, i32) {
    %c0_i32 = arith.constant 0 : i32
    %c0_i32_0 = arith.constant 0 : i32
    %c0_i32_1 = arith.constant 0 : i32
    return %c0_i32, %c0_i32_0 : i32, i32
  }
  func.func @transform_18(%arg0: i32) -> (i32, i32) {
    %c0_i32 = arith.constant 0 : i32
    %c0_i32_0 = arith.constant 0 : i32
    %c0_i32_1 = arith.constant 0 : i32
    return %c0_i32, %c0_i32_0 : i32, i32
  }
  func.func @transform_19(%arg0: i32) -> (i32, i32, i32) {
    %c0_i32 = arith.constant 0 : i32
    %c0_i32_0 = arith.constant 0 : i32
    %c0_i32_1 = arith.constant 0 : i32
    return %arg0, %c0_i32, %c0_i32_0 : i32, i32, i32
  }
}

module attributes {stable_mosaic.version = 11 : i64} {
  func.func @_ca_layer_kernel(%arg0: i32, %arg1: memref<1x16x128xf32, #tpu.memory_space<vmem>>, %arg2: memref<1x8x128xf32, #tpu.memory_space<vmem>>, %arg3: memref<1x1x8xf32, #tpu.memory_space<vmem>>, %arg4: memref<1x128xf32, #tpu.memory_space<vmem>>, %arg5: memref<1x128xf32, #tpu.memory_space<vmem>>, %arg6: memref<1x128xf32, #tpu.memory_space<vmem>>, %arg7: memref<1x128xf32, #tpu.memory_space<vmem>>, %arg8: memref<1x128xf32, #tpu.memory_space<vmem>>, %arg9: memref<1x128xf32, #tpu.memory_space<vmem>>, %arg10: memref<128x128xbf16, #tpu.memory_space<vmem>>, %arg11: memref<1x128xf32, #tpu.memory_space<vmem>>, %arg12: memref<128x256xbf16, #tpu.memory_space<vmem>>, %arg13: memref<1x256xf32, #tpu.memory_space<vmem>>, %arg14: memref<128x128xbf16, #tpu.memory_space<vmem>>, %arg15: memref<1x128xf32, #tpu.memory_space<vmem>>, %arg16: memref<128x256xbf16, #tpu.memory_space<vmem>>, %arg17: memref<1x256xf32, #tpu.memory_space<vmem>>, %arg18: memref<256x128xbf16, #tpu.memory_space<vmem>>, %arg19: memref<1x128xf32, #tpu.memory_space<vmem>>, %arg20: memref<1x16x128xf32, #tpu.memory_space<vmem>>) attributes {dimension_semantics = [#tpu.dimension_semantics<parallel>], iteration_bounds = array<i64: 2>, scalar_prefetch = 0 : i64, scratch_operands = 0 : i64, tpu.core_type = #tpu.core_type<tc>, window_params = [{transform_indices = @transform_0, window_bounds = array<i64: 1, 16, 128>}, {transform_indices = @transform_1, window_bounds = array<i64: 1, 8, 128>}, {transform_indices = @transform_2, window_bounds = array<i64: 1, 1, 8>}, {pipeline_mode = #tpu.pipeline_mode<synchronous>, transform_indices = @transform_3, window_bounds = array<i64: 1, 128>}, {pipeline_mode = #tpu.pipeline_mode<synchronous>, transform_indices = @transform_4, window_bounds = array<i64: 1, 128>}, {pipeline_mode = #tpu.pipeline_mode<synchronous>, transform_indices = @transform_5, window_bounds = array<i64: 1, 128>}, {pipeline_mode = #tpu.pipeline_mode<synchronous>, transform_indices = @transform_6, window_bounds = array<i64: 1, 128>}, {pipeline_mode = #tpu.pipeline_mode<synchronous>, transform_indices = @transform_7, window_bounds = array<i64: 1, 128>}, {pipeline_mode = #tpu.pipeline_mode<synchronous>, transform_indices = @transform_8, window_bounds = array<i64: 1, 128>}, {pipeline_mode = #tpu.pipeline_mode<synchronous>, transform_indices = @transform_9, window_bounds = array<i64: 128, 128>}, {pipeline_mode = #tpu.pipeline_mode<synchronous>, transform_indices = @transform_10, window_bounds = array<i64: 1, 128>}, {pipeline_mode = #tpu.pipeline_mode<synchronous>, transform_indices = @transform_11, window_bounds = array<i64: 128, 256>}, {pipeline_mode = #tpu.pipeline_mode<synchronous>, transform_indices = @transform_12, window_bounds = array<i64: 1, 256>}, {pipeline_mode = #tpu.pipeline_mode<synchronous>, transform_indices = @transform_13, window_bounds = array<i64: 128, 128>}, {pipeline_mode = #tpu.pipeline_mode<synchronous>, transform_indices = @transform_14, window_bounds = array<i64: 1, 128>}, {pipeline_mode = #tpu.pipeline_mode<synchronous>, transform_indices = @transform_15, window_bounds = array<i64: 128, 256>}, {pipeline_mode = #tpu.pipeline_mode<synchronous>, transform_indices = @transform_16, window_bounds = array<i64: 1, 256>}, {pipeline_mode = #tpu.pipeline_mode<synchronous>, transform_indices = @transform_17, window_bounds = array<i64: 256, 128>}, {pipeline_mode = #tpu.pipeline_mode<synchronous>, transform_indices = @transform_18, window_bounds = array<i64: 1, 128>}, {transform_indices = @transform_19, window_bounds = array<i64: 1, 16, 128>}]} {
    %c0 = arith.constant 0 : index
    %c0_0 = arith.constant 0 : index
    %c0_1 = arith.constant 0 : index
    %0 = vector.load %arg1[%c0, %c0_0, %c0_1] : memref<1x16x128xf32, #tpu.memory_space<vmem>>, vector<1x16x128xf32>
    %1 = vector.shape_cast %0 : vector<1x16x128xf32> to vector<16x128xf32>
    %c0_2 = arith.constant 0 : index
    %c0_3 = arith.constant 0 : index
    %c0_4 = arith.constant 0 : index
    %2 = vector.load %arg2[%c0_2, %c0_3, %c0_4] : memref<1x8x128xf32, #tpu.memory_space<vmem>>, vector<1x8x128xf32>
    %3 = vector.shape_cast %2 : vector<1x8x128xf32> to vector<8x128xf32>
    %c0_5 = arith.constant 0 : index
    %c0_6 = arith.constant 0 : index
    %c0_7 = arith.constant 0 : index
    %4 = vector.load %arg3[%c0_5, %c0_6, %c0_7] : memref<1x1x8xf32, #tpu.memory_space<vmem>>, vector<1x1x8xf32>
    %5 = vector.shape_cast %4 : vector<1x1x8xf32> to vector<1x8xf32>
    %c0_8 = arith.constant 0 : index
    %c0_9 = arith.constant 0 : index
    %6 = vector.load %arg6[%c0_8, %c0_9] : memref<1x128xf32, #tpu.memory_space<vmem>>, vector<1x128xf32>
    %c0_10 = arith.constant 0 : index
    %c0_11 = arith.constant 0 : index
    %7 = vector.load %arg7[%c0_10, %c0_11] : memref<1x128xf32, #tpu.memory_space<vmem>>, vector<1x128xf32>
    %cst = arith.constant dense<0.000000e+00> : vector<16xf32>
    %8 = vector.multi_reduction <add>, %1, %cst [1] : vector<16x128xf32> to vector<16xf32>
    %9 = vector.shape_cast %8 : vector<16xf32> to vector<16x1xf32>
    %cst_12 = arith.constant 1.280000e+02 : f32
    %10 = vector.broadcast %cst_12 : f32 to vector<16x1xf32>
    %11 = arith.divf %9, %10 : vector<16x1xf32>
    %12 = vector.broadcast %11 : vector<16x1xf32> to vector<16x128xf32>
    %13 = arith.subf %1, %12 : vector<16x128xf32>
    %14 = arith.mulf %13, %13 : vector<16x128xf32>
    %cst_13 = arith.constant dense<0.000000e+00> : vector<16xf32>
    %15 = vector.multi_reduction <add>, %14, %cst_13 [1] : vector<16x128xf32> to vector<16xf32>
    %16 = vector.shape_cast %15 : vector<16xf32> to vector<16x1xf32>
    %cst_14 = arith.constant 1.280000e+02 : f32
    %17 = vector.broadcast %cst_14 : f32 to vector<16x1xf32>
    %18 = arith.divf %16, %17 : vector<16x1xf32>
    %19 = vector.broadcast %11 : vector<16x1xf32> to vector<16x128xf32>
    %20 = arith.subf %1, %19 : vector<16x128xf32>
    %cst_15 = arith.constant 9.99999974E-6 : f32
    %21 = vector.broadcast %cst_15 : f32 to vector<16x1xf32>
    %22 = arith.addf %18, %21 : vector<16x1xf32>
    %23 = math.rsqrt %22 : vector<16x1xf32>
    %24 = vector.broadcast %23 : vector<16x1xf32> to vector<16x128xf32>
    %25 = arith.mulf %20, %24 : vector<16x128xf32>
    %26 = vector.broadcast %6 : vector<1x128xf32> to vector<16x128xf32>
    %27 = arith.mulf %25, %26 : vector<16x128xf32>
    %28 = vector.broadcast %7 : vector<1x128xf32> to vector<16x128xf32>
    %29 = arith.addf %27, %28 : vector<16x128xf32>
    %c0_16 = arith.constant 0 : index
    %c0_17 = arith.constant 0 : index
    %30 = vector.load %arg10[%c0_16, %c0_17] : memref<128x128xbf16, #tpu.memory_space<vmem>>, vector<128x128xbf16>
    %31 = arith.truncf %29 : vector<16x128xf32> to vector<16x128xbf16>
    %cst_18 = arith.constant dense<0.000000e+00> : vector<16x128xf32>
    %32 = tpu.matmul %31, %30, %cst_18 {dimension_numbers = #tpu.dot_dimension_numbers<[1], [0], [0], [1], [0, 0, 1, 1], [], []>} : vector<16x128xbf16>, vector<128x128xbf16>, vector<16x128xf32> -> vector<16x128xf32>
    %c0_19 = arith.constant 0 : index
    %c0_20 = arith.constant 0 : index
    %33 = vector.load %arg11[%c0_19, %c0_20] : memref<1x128xf32, #tpu.memory_space<vmem>>, vector<1x128xf32>
    %34 = vector.broadcast %33 : vector<1x128xf32> to vector<16x128xf32>
    %35 = arith.addf %32, %34 : vector<16x128xf32>
    %c0_21 = arith.constant 0 : index
    %c0_22 = arith.constant 0 : index
    %36 = vector.load %arg4[%c0_21, %c0_22] : memref<1x128xf32, #tpu.memory_space<vmem>>, vector<1x128xf32>
    %c0_23 = arith.constant 0 : index
    %c0_24 = arith.constant 0 : index
    %37 = vector.load %arg5[%c0_23, %c0_24] : memref<1x128xf32, #tpu.memory_space<vmem>>, vector<1x128xf32>
    %cst_25 = arith.constant dense<0.000000e+00> : vector<8xf32>
    %38 = vector.multi_reduction <add>, %3, %cst_25 [1] : vector<8x128xf32> to vector<8xf32>
    %39 = vector.shape_cast %38 : vector<8xf32> to vector<8x1xf32>
    %cst_26 = arith.constant 1.280000e+02 : f32
    %40 = vector.broadcast %cst_26 : f32 to vector<8x1xf32>
    %41 = arith.divf %39, %40 : vector<8x1xf32>
    %42 = vector.broadcast %41 : vector<8x1xf32> to vector<8x128xf32>
    %43 = arith.subf %3, %42 : vector<8x128xf32>
    %44 = arith.mulf %43, %43 : vector<8x128xf32>
    %cst_27 = arith.constant dense<0.000000e+00> : vector<8xf32>
    %45 = vector.multi_reduction <add>, %44, %cst_27 [1] : vector<8x128xf32> to vector<8xf32>
    %46 = vector.shape_cast %45 : vector<8xf32> to vector<8x1xf32>
    %cst_28 = arith.constant 1.280000e+02 : f32
    %47 = vector.broadcast %cst_28 : f32 to vector<8x1xf32>
    %48 = arith.divf %46, %47 : vector<8x1xf32>
    %49 = vector.broadcast %41 : vector<8x1xf32> to vector<8x128xf32>
    %50 = arith.subf %3, %49 : vector<8x128xf32>
    %cst_29 = arith.constant 9.99999974E-6 : f32
    %51 = vector.broadcast %cst_29 : f32 to vector<8x1xf32>
    %52 = arith.addf %48, %51 : vector<8x1xf32>
    %53 = math.rsqrt %52 : vector<8x1xf32>
    %54 = vector.broadcast %53 : vector<8x1xf32> to vector<8x128xf32>
    %55 = arith.mulf %50, %54 : vector<8x128xf32>
    %56 = vector.broadcast %36 : vector<1x128xf32> to vector<8x128xf32>
    %57 = arith.mulf %55, %56 : vector<8x128xf32>
    %58 = vector.broadcast %37 : vector<1x128xf32> to vector<8x128xf32>
    %59 = arith.addf %57, %58 : vector<8x128xf32>
    %c0_30 = arith.constant 0 : index
    %c0_31 = arith.constant 0 : index
    %60 = vector.load %arg12[%c0_30, %c0_31] : memref<128x256xbf16, #tpu.memory_space<vmem>>, vector<128x256xbf16>
    %61 = arith.truncf %59 : vector<8x128xf32> to vector<8x128xbf16>
    %cst_32 = arith.constant dense<0.000000e+00> : vector<8x256xf32>
    %62 = tpu.matmul %61, %60, %cst_32 {dimension_numbers = #tpu.dot_dimension_numbers<[1], [0], [0], [1], [0, 0, 1, 1], [], []>} : vector<8x128xbf16>, vector<128x256xbf16>, vector<8x256xf32> -> vector<8x256xf32>
    %c0_33 = arith.constant 0 : index
    %c0_34 = arith.constant 0 : index
    %63 = vector.load %arg13[%c0_33, %c0_34] : memref<1x256xf32, #tpu.memory_space<vmem>>, vector<1x256xf32>
    %64 = vector.broadcast %63 : vector<1x256xf32> to vector<8x256xf32>
    %65 = arith.addf %62, %64 : vector<8x256xf32>
    %66 = vector.extract_strided_slice %65 {offsets = [0, 0], sizes = [8, 128], strides = [1, 1]} : vector<8x256xf32> to vector<8x128xf32>
    %67 = vector.extract_strided_slice %65 {offsets = [0, 128], sizes = [8, 128], strides = [1, 1]} : vector<8x256xf32> to vector<8x128xf32>
    %c0_35 = arith.constant 0 : index
    %c0_36 = arith.constant 0 : index
    %68 = vector.load %arg14[%c0_35, %c0_36] : memref<128x128xbf16, #tpu.memory_space<vmem>>, vector<128x128xbf16>
    %69 = vector.extract_strided_slice %35 {offsets = [0, 0], sizes = [16, 32], strides = [1, 1]} : vector<16x128xf32> to vector<16x32xf32>
    %70 = vector.extract_strided_slice %66 {offsets = [0, 0], sizes = [8, 32], strides = [1, 1]} : vector<8x128xf32> to vector<8x32xf32>
    %71 = arith.truncf %69 : vector<16x32xf32> to vector<16x32xbf16>
    %72 = arith.truncf %70 : vector<8x32xf32> to vector<8x32xbf16>
    %cst_37 = arith.constant dense<0.000000e+00> : vector<16x8xf32>
    %73 = tpu.matmul %71, %72, %cst_37 {dimension_numbers = #tpu.dot_dimension_numbers<[1], [1], [0], [0], [0, 0, 1, 0], [], []>} : vector<16x32xbf16>, vector<8x32xbf16>, vector<16x8xf32> -> vector<16x8xf32>
    %cst_38 = arith.constant 0.176776692 : f32
    %74 = vector.broadcast %cst_38 : f32 to vector<16x8xf32>
    %75 = arith.mulf %73, %74 : vector<16x8xf32>
    %76 = vector.broadcast %5 : vector<1x8xf32> to vector<16x8xf32>
    %77 = arith.addf %75, %76 : vector<16x8xf32>
    %cst_39 = arith.constant dense<0xFF800000> : vector<16xf32>
    %78 = vector.multi_reduction <maximumf>, %77, %cst_39 [1] : vector<16x8xf32> to vector<16xf32>
    %79 = vector.shape_cast %78 : vector<16xf32> to vector<16x1xf32>
    %80 = vector.broadcast %79 : vector<16x1xf32> to vector<16x8xf32>
    %81 = arith.subf %77, %80 : vector<16x8xf32>
    %82 = math.exp %81 : vector<16x8xf32>
    %cst_40 = arith.constant dense<0.000000e+00> : vector<16xf32>
    %83 = vector.multi_reduction <add>, %82, %cst_40 [1] : vector<16x8xf32> to vector<16xf32>
    %84 = vector.shape_cast %83 : vector<16xf32> to vector<16x1xf32>
    %85 = tpu.reciprocal %84 {approx = true} : vector<16x1xf32> -> vector<16x1xf32>
    %86 = vector.broadcast %85 : vector<16x1xf32> to vector<16x8xf32>
    %87 = arith.mulf %82, %86 : vector<16x8xf32>
    %88 = vector.extract_strided_slice %67 {offsets = [0, 0], sizes = [8, 32], strides = [1, 1]} : vector<8x128xf32> to vector<8x32xf32>
    %89 = arith.truncf %87 : vector<16x8xf32> to vector<16x8xbf16>
    %90 = arith.truncf %88 : vector<8x32xf32> to vector<8x32xbf16>
    %cst_41 = arith.constant dense<0.000000e+00> : vector<16x32xf32>
    %91 = tpu.matmul %89, %90, %cst_41 {dimension_numbers = #tpu.dot_dimension_numbers<[1], [0], [0], [1], [0, 0, 1, 1], [], []>} : vector<16x8xbf16>, vector<8x32xbf16>, vector<16x32xf32> -> vector<16x32xf32>
    %92 = vector.extract_strided_slice %68 {offsets = [0, 0], sizes = [32, 128], strides = [1, 1]} : vector<128x128xbf16> to vector<32x128xbf16>
    %93 = arith.truncf %91 : vector<16x32xf32> to vector<16x32xbf16>
    %cst_42 = arith.constant dense<0.000000e+00> : vector<16x128xf32>
    %94 = tpu.matmul %93, %92, %cst_42 {dimension_numbers = #tpu.dot_dimension_numbers<[1], [0], [0], [1], [0, 0, 1, 1], [], []>} : vector<16x32xbf16>, vector<32x128xbf16>, vector<16x128xf32> -> vector<16x128xf32>
    %95 = vector.extract_strided_slice %35 {offsets = [0, 32], sizes = [16, 32], strides = [1, 1]} : vector<16x128xf32> to vector<16x32xf32>
    %96 = vector.extract_strided_slice %66 {offsets = [0, 32], sizes = [8, 32], strides = [1, 1]} : vector<8x128xf32> to vector<8x32xf32>
    %97 = arith.truncf %95 : vector<16x32xf32> to vector<16x32xbf16>
    %98 = arith.truncf %96 : vector<8x32xf32> to vector<8x32xbf16>
    %cst_43 = arith.constant dense<0.000000e+00> : vector<16x8xf32>
    %99 = tpu.matmul %97, %98, %cst_43 {dimension_numbers = #tpu.dot_dimension_numbers<[1], [1], [0], [0], [0, 0, 1, 0], [], []>} : vector<16x32xbf16>, vector<8x32xbf16>, vector<16x8xf32> -> vector<16x8xf32>
    %cst_44 = arith.constant 0.176776692 : f32
    %100 = vector.broadcast %cst_44 : f32 to vector<16x8xf32>
    %101 = arith.mulf %99, %100 : vector<16x8xf32>
    %102 = vector.broadcast %5 : vector<1x8xf32> to vector<16x8xf32>
    %103 = arith.addf %101, %102 : vector<16x8xf32>
    %cst_45 = arith.constant dense<0xFF800000> : vector<16xf32>
    %104 = vector.multi_reduction <maximumf>, %103, %cst_45 [1] : vector<16x8xf32> to vector<16xf32>
    %105 = vector.shape_cast %104 : vector<16xf32> to vector<16x1xf32>
    %106 = vector.broadcast %105 : vector<16x1xf32> to vector<16x8xf32>
    %107 = arith.subf %103, %106 : vector<16x8xf32>
    %108 = math.exp %107 : vector<16x8xf32>
    %cst_46 = arith.constant dense<0.000000e+00> : vector<16xf32>
    %109 = vector.multi_reduction <add>, %108, %cst_46 [1] : vector<16x8xf32> to vector<16xf32>
    %110 = vector.shape_cast %109 : vector<16xf32> to vector<16x1xf32>
    %111 = tpu.reciprocal %110 {approx = true} : vector<16x1xf32> -> vector<16x1xf32>
    %112 = vector.broadcast %111 : vector<16x1xf32> to vector<16x8xf32>
    %113 = arith.mulf %108, %112 : vector<16x8xf32>
    %114 = vector.extract_strided_slice %67 {offsets = [0, 32], sizes = [8, 32], strides = [1, 1]} : vector<8x128xf32> to vector<8x32xf32>
    %115 = arith.truncf %113 : vector<16x8xf32> to vector<16x8xbf16>
    %116 = arith.truncf %114 : vector<8x32xf32> to vector<8x32xbf16>
    %cst_47 = arith.constant dense<0.000000e+00> : vector<16x32xf32>
    %117 = tpu.matmul %115, %116, %cst_47 {dimension_numbers = #tpu.dot_dimension_numbers<[1], [0], [0], [1], [0, 0, 1, 1], [], []>} : vector<16x8xbf16>, vector<8x32xbf16>, vector<16x32xf32> -> vector<16x32xf32>
    %118 = vector.extract_strided_slice %68 {offsets = [32, 0], sizes = [32, 128], strides = [1, 1]} : vector<128x128xbf16> to vector<32x128xbf16>
    %119 = arith.truncf %117 : vector<16x32xf32> to vector<16x32xbf16>
    %cst_48 = arith.constant dense<0.000000e+00> : vector<16x128xf32>
    %120 = tpu.matmul %119, %118, %cst_48 {dimension_numbers = #tpu.dot_dimension_numbers<[1], [0], [0], [1], [0, 0, 1, 1], [], []>} : vector<16x32xbf16>, vector<32x128xbf16>, vector<16x128xf32> -> vector<16x128xf32>
    %121 = arith.addf %94, %120 : vector<16x128xf32>
    %122 = vector.extract_strided_slice %35 {offsets = [0, 64], sizes = [16, 32], strides = [1, 1]} : vector<16x128xf32> to vector<16x32xf32>
    %123 = vector.extract_strided_slice %66 {offsets = [0, 64], sizes = [8, 32], strides = [1, 1]} : vector<8x128xf32> to vector<8x32xf32>
    %124 = arith.truncf %122 : vector<16x32xf32> to vector<16x32xbf16>
    %125 = arith.truncf %123 : vector<8x32xf32> to vector<8x32xbf16>
    %cst_49 = arith.constant dense<0.000000e+00> : vector<16x8xf32>
    %126 = tpu.matmul %124, %125, %cst_49 {dimension_numbers = #tpu.dot_dimension_numbers<[1], [1], [0], [0], [0, 0, 1, 0], [], []>} : vector<16x32xbf16>, vector<8x32xbf16>, vector<16x8xf32> -> vector<16x8xf32>
    %cst_50 = arith.constant 0.176776692 : f32
    %127 = vector.broadcast %cst_50 : f32 to vector<16x8xf32>
    %128 = arith.mulf %126, %127 : vector<16x8xf32>
    %129 = vector.broadcast %5 : vector<1x8xf32> to vector<16x8xf32>
    %130 = arith.addf %128, %129 : vector<16x8xf32>
    %cst_51 = arith.constant dense<0xFF800000> : vector<16xf32>
    %131 = vector.multi_reduction <maximumf>, %130, %cst_51 [1] : vector<16x8xf32> to vector<16xf32>
    %132 = vector.shape_cast %131 : vector<16xf32> to vector<16x1xf32>
    %133 = vector.broadcast %132 : vector<16x1xf32> to vector<16x8xf32>
    %134 = arith.subf %130, %133 : vector<16x8xf32>
    %135 = math.exp %134 : vector<16x8xf32>
    %cst_52 = arith.constant dense<0.000000e+00> : vector<16xf32>
    %136 = vector.multi_reduction <add>, %135, %cst_52 [1] : vector<16x8xf32> to vector<16xf32>
    %137 = vector.shape_cast %136 : vector<16xf32> to vector<16x1xf32>
    %138 = tpu.reciprocal %137 {approx = true} : vector<16x1xf32> -> vector<16x1xf32>
    %139 = vector.broadcast %138 : vector<16x1xf32> to vector<16x8xf32>
    %140 = arith.mulf %135, %139 : vector<16x8xf32>
    %141 = vector.extract_strided_slice %67 {offsets = [0, 64], sizes = [8, 32], strides = [1, 1]} : vector<8x128xf32> to vector<8x32xf32>
    %142 = arith.truncf %140 : vector<16x8xf32> to vector<16x8xbf16>
    %143 = arith.truncf %141 : vector<8x32xf32> to vector<8x32xbf16>
    %cst_53 = arith.constant dense<0.000000e+00> : vector<16x32xf32>
    %144 = tpu.matmul %142, %143, %cst_53 {dimension_numbers = #tpu.dot_dimension_numbers<[1], [0], [0], [1], [0, 0, 1, 1], [], []>} : vector<16x8xbf16>, vector<8x32xbf16>, vector<16x32xf32> -> vector<16x32xf32>
    %145 = vector.extract_strided_slice %68 {offsets = [64, 0], sizes = [32, 128], strides = [1, 1]} : vector<128x128xbf16> to vector<32x128xbf16>
    %146 = arith.truncf %144 : vector<16x32xf32> to vector<16x32xbf16>
    %cst_54 = arith.constant dense<0.000000e+00> : vector<16x128xf32>
    %147 = tpu.matmul %146, %145, %cst_54 {dimension_numbers = #tpu.dot_dimension_numbers<[1], [0], [0], [1], [0, 0, 1, 1], [], []>} : vector<16x32xbf16>, vector<32x128xbf16>, vector<16x128xf32> -> vector<16x128xf32>
    %148 = arith.addf %121, %147 : vector<16x128xf32>
    %149 = vector.extract_strided_slice %35 {offsets = [0, 96], sizes = [16, 32], strides = [1, 1]} : vector<16x128xf32> to vector<16x32xf32>
    %150 = vector.extract_strided_slice %66 {offsets = [0, 96], sizes = [8, 32], strides = [1, 1]} : vector<8x128xf32> to vector<8x32xf32>
    %151 = arith.truncf %149 : vector<16x32xf32> to vector<16x32xbf16>
    %152 = arith.truncf %150 : vector<8x32xf32> to vector<8x32xbf16>
    %cst_55 = arith.constant dense<0.000000e+00> : vector<16x8xf32>
    %153 = tpu.matmul %151, %152, %cst_55 {dimension_numbers = #tpu.dot_dimension_numbers<[1], [1], [0], [0], [0, 0, 1, 0], [], []>} : vector<16x32xbf16>, vector<8x32xbf16>, vector<16x8xf32> -> vector<16x8xf32>
    %cst_56 = arith.constant 0.176776692 : f32
    %154 = vector.broadcast %cst_56 : f32 to vector<16x8xf32>
    %155 = arith.mulf %153, %154 : vector<16x8xf32>
    %156 = vector.broadcast %5 : vector<1x8xf32> to vector<16x8xf32>
    %157 = arith.addf %155, %156 : vector<16x8xf32>
    %cst_57 = arith.constant dense<0xFF800000> : vector<16xf32>
    %158 = vector.multi_reduction <maximumf>, %157, %cst_57 [1] : vector<16x8xf32> to vector<16xf32>
    %159 = vector.shape_cast %158 : vector<16xf32> to vector<16x1xf32>
    %160 = vector.broadcast %159 : vector<16x1xf32> to vector<16x8xf32>
    %161 = arith.subf %157, %160 : vector<16x8xf32>
    %162 = math.exp %161 : vector<16x8xf32>
    %cst_58 = arith.constant dense<0.000000e+00> : vector<16xf32>
    %163 = vector.multi_reduction <add>, %162, %cst_58 [1] : vector<16x8xf32> to vector<16xf32>
    %164 = vector.shape_cast %163 : vector<16xf32> to vector<16x1xf32>
    %165 = tpu.reciprocal %164 {approx = true} : vector<16x1xf32> -> vector<16x1xf32>
    %166 = vector.broadcast %165 : vector<16x1xf32> to vector<16x8xf32>
    %167 = arith.mulf %162, %166 : vector<16x8xf32>
    %168 = vector.extract_strided_slice %67 {offsets = [0, 96], sizes = [8, 32], strides = [1, 1]} : vector<8x128xf32> to vector<8x32xf32>
    %169 = arith.truncf %167 : vector<16x8xf32> to vector<16x8xbf16>
    %170 = arith.truncf %168 : vector<8x32xf32> to vector<8x32xbf16>
    %cst_59 = arith.constant dense<0.000000e+00> : vector<16x32xf32>
    %171 = tpu.matmul %169, %170, %cst_59 {dimension_numbers = #tpu.dot_dimension_numbers<[1], [0], [0], [1], [0, 0, 1, 1], [], []>} : vector<16x8xbf16>, vector<8x32xbf16>, vector<16x32xf32> -> vector<16x32xf32>
    %172 = vector.extract_strided_slice %68 {offsets = [96, 0], sizes = [32, 128], strides = [1, 1]} : vector<128x128xbf16> to vector<32x128xbf16>
    %173 = arith.truncf %171 : vector<16x32xf32> to vector<16x32xbf16>
    %cst_60 = arith.constant dense<0.000000e+00> : vector<16x128xf32>
    %174 = tpu.matmul %173, %172, %cst_60 {dimension_numbers = #tpu.dot_dimension_numbers<[1], [0], [0], [1], [0, 0, 1, 1], [], []>} : vector<16x32xbf16>, vector<32x128xbf16>, vector<16x128xf32> -> vector<16x128xf32>
    %175 = arith.addf %148, %174 : vector<16x128xf32>
    %176 = arith.addf %1, %175 : vector<16x128xf32>
    %c0_61 = arith.constant 0 : index
    %c0_62 = arith.constant 0 : index
    %177 = vector.load %arg15[%c0_61, %c0_62] : memref<1x128xf32, #tpu.memory_space<vmem>>, vector<1x128xf32>
    %178 = vector.broadcast %177 : vector<1x128xf32> to vector<16x128xf32>
    %179 = arith.addf %176, %178 : vector<16x128xf32>
    %c0_63 = arith.constant 0 : index
    %c0_64 = arith.constant 0 : index
    %180 = vector.load %arg8[%c0_63, %c0_64] : memref<1x128xf32, #tpu.memory_space<vmem>>, vector<1x128xf32>
    %c0_65 = arith.constant 0 : index
    %c0_66 = arith.constant 0 : index
    %181 = vector.load %arg9[%c0_65, %c0_66] : memref<1x128xf32, #tpu.memory_space<vmem>>, vector<1x128xf32>
    %cst_67 = arith.constant dense<0.000000e+00> : vector<16xf32>
    %182 = vector.multi_reduction <add>, %179, %cst_67 [1] : vector<16x128xf32> to vector<16xf32>
    %183 = vector.shape_cast %182 : vector<16xf32> to vector<16x1xf32>
    %cst_68 = arith.constant 1.280000e+02 : f32
    %184 = vector.broadcast %cst_68 : f32 to vector<16x1xf32>
    %185 = arith.divf %183, %184 : vector<16x1xf32>
    %186 = vector.broadcast %185 : vector<16x1xf32> to vector<16x128xf32>
    %187 = arith.subf %179, %186 : vector<16x128xf32>
    %188 = arith.mulf %187, %187 : vector<16x128xf32>
    %cst_69 = arith.constant dense<0.000000e+00> : vector<16xf32>
    %189 = vector.multi_reduction <add>, %188, %cst_69 [1] : vector<16x128xf32> to vector<16xf32>
    %190 = vector.shape_cast %189 : vector<16xf32> to vector<16x1xf32>
    %cst_70 = arith.constant 1.280000e+02 : f32
    %191 = vector.broadcast %cst_70 : f32 to vector<16x1xf32>
    %192 = arith.divf %190, %191 : vector<16x1xf32>
    %193 = vector.broadcast %185 : vector<16x1xf32> to vector<16x128xf32>
    %194 = arith.subf %179, %193 : vector<16x128xf32>
    %cst_71 = arith.constant 9.99999974E-6 : f32
    %195 = vector.broadcast %cst_71 : f32 to vector<16x1xf32>
    %196 = arith.addf %192, %195 : vector<16x1xf32>
    %197 = math.rsqrt %196 : vector<16x1xf32>
    %198 = vector.broadcast %197 : vector<16x1xf32> to vector<16x128xf32>
    %199 = arith.mulf %194, %198 : vector<16x128xf32>
    %200 = vector.broadcast %180 : vector<1x128xf32> to vector<16x128xf32>
    %201 = arith.mulf %199, %200 : vector<16x128xf32>
    %202 = vector.broadcast %181 : vector<1x128xf32> to vector<16x128xf32>
    %203 = arith.addf %201, %202 : vector<16x128xf32>
    %c0_72 = arith.constant 0 : index
    %c0_73 = arith.constant 0 : index
    %204 = vector.load %arg16[%c0_72, %c0_73] : memref<128x256xbf16, #tpu.memory_space<vmem>>, vector<128x256xbf16>
    %205 = arith.truncf %203 : vector<16x128xf32> to vector<16x128xbf16>
    %cst_74 = arith.constant dense<0.000000e+00> : vector<16x256xf32>
    %206 = tpu.matmul %205, %204, %cst_74 {dimension_numbers = #tpu.dot_dimension_numbers<[1], [0], [0], [1], [0, 0, 1, 1], [], []>} : vector<16x128xbf16>, vector<128x256xbf16>, vector<16x256xf32> -> vector<16x256xf32>
    %c0_75 = arith.constant 0 : index
    %c0_76 = arith.constant 0 : index
    %207 = vector.load %arg17[%c0_75, %c0_76] : memref<1x256xf32, #tpu.memory_space<vmem>>, vector<1x256xf32>
    %208 = vector.broadcast %207 : vector<1x256xf32> to vector<16x256xf32>
    %209 = arith.addf %206, %208 : vector<16x256xf32>
    %cst_77 = arith.constant 0.000000e+00 : f32
    %210 = vector.broadcast %cst_77 : f32 to vector<16x256xf32>
    %211 = arith.cmpf ogt, %209, %210 : vector<16x256xf32>
    %cst_78 = arith.constant 0.00999999977 : f32
    %212 = vector.broadcast %cst_78 : f32 to vector<16x256xf32>
    %213 = arith.mulf %212, %209 : vector<16x256xf32>
    %214 = arith.select %211, %209, %213 : vector<16x256xi1>, vector<16x256xf32>
    %c0_79 = arith.constant 0 : index
    %c0_80 = arith.constant 0 : index
    %215 = vector.load %arg18[%c0_79, %c0_80] : memref<256x128xbf16, #tpu.memory_space<vmem>>, vector<256x128xbf16>
    %216 = arith.truncf %214 : vector<16x256xf32> to vector<16x256xbf16>
    %cst_81 = arith.constant dense<0.000000e+00> : vector<16x128xf32>
    %217 = tpu.matmul %216, %215, %cst_81 {dimension_numbers = #tpu.dot_dimension_numbers<[1], [0], [0], [1], [0, 0, 1, 1], [], []>} : vector<16x256xbf16>, vector<256x128xbf16>, vector<16x128xf32> -> vector<16x128xf32>
    %218 = arith.addf %179, %217 : vector<16x128xf32>
    %c0_82 = arith.constant 0 : index
    %c0_83 = arith.constant 0 : index
    %219 = vector.load %arg19[%c0_82, %c0_83] : memref<1x128xf32, #tpu.memory_space<vmem>>, vector<1x128xf32>
    %220 = vector.broadcast %219 : vector<1x128xf32> to vector<16x128xf32>
    %221 = arith.addf %218, %220 : vector<16x128xf32>
    %c0_84 = arith.constant 0 : index
    %c0_85 = arith.constant 0 : index
    %c0_86 = arith.constant 0 : index
    %222 = vector.load %arg20[%c0_84, %c0_85, %c0_86] : memref<1x16x128xf32, #tpu.memory_space<vmem>>, vector<1x16x128xf32>
    %223 = vector.shape_cast %222 : vector<1x16x128xf32> to vector<16x128xf32>
    %224 = vector.shape_cast %221 : vector<16x128xf32> to vector<1x16x128xf32>
    tpu.vector_store %arg20[%c0_84, %c0_85, %c0_86], %224 {strides = array<i32>} : memref<1x16x128xf32, #tpu.memory_space<vmem>>, vector<1x16x128xf32>,
    return
  }
  func.func @transform_0(%arg0: i32) -> (i32, i32, i32) {
    %c0_i32 = arith.constant 0 : i32
    %c0_i32_0 = arith.constant 0 : i32
    %c0_i32_1 = arith.constant 0 : i32
    return %arg0, %c0_i32, %c0_i32_0 : i32, i32, i32
  }
  func.func @transform_1(%arg0: i32) -> (i32, i32, i32) {
    %c0_i32 = arith.constant 0 : i32
    %c0_i32_0 = arith.constant 0 : i32
    %c0_i32_1 = arith.constant 0 : i32
    return %arg0, %c0_i32, %c0_i32_0 : i32, i32, i32
  }
  func.func @transform_2(%arg0: i32) -> (i32, i32, i32) {
    %c0_i32 = arith.constant 0 : i32
    %c0_i32_0 = arith.constant 0 : i32
    %c0_i32_1 = arith.constant 0 : i32
    return %arg0, %c0_i32, %c0_i32_0 : i32, i32, i32
  }
  func.func @transform_3(%arg0: i32) -> (i32, i32) {
    %c0_i32 = arith.constant 0 : i32
    %c0_i32_0 = arith.constant 0 : i32
    %c0_i32_1 = arith.constant 0 : i32
    return %c0_i32, %c0_i32_0 : i32, i32
  }
  func.func @transform_4(%arg0: i32) -> (i32, i32) {
    %c0_i32 = arith.constant 0 : i32
    %c0_i32_0 = arith.constant 0 : i32
    %c0_i32_1 = arith.constant 0 : i32
    return %c0_i32, %c0_i32_0 : i32, i32
  }
  func.func @transform_5(%arg0: i32) -> (i32, i32) {
    %c0_i32 = arith.constant 0 : i32
    %c0_i32_0 = arith.constant 0 : i32
    %c0_i32_1 = arith.constant 0 : i32
    return %c0_i32, %c0_i32_0 : i32, i32
  }
  func.func @transform_6(%arg0: i32) -> (i32, i32) {
    %c0_i32 = arith.constant 0 : i32
    %c0_i32_0 = arith.constant 0 : i32
    %c0_i32_1 = arith.constant 0 : i32
    return %c0_i32, %c0_i32_0 : i32, i32
  }
  func.func @transform_7(%arg0: i32) -> (i32, i32) {
    %c0_i32 = arith.constant 0 : i32
    %c0_i32_0 = arith.constant 0 : i32
    %c0_i32_1 = arith.constant 0 : i32
    return %c0_i32, %c0_i32_0 : i32, i32
  }
  func.func @transform_8(%arg0: i32) -> (i32, i32) {
    %c0_i32 = arith.constant 0 : i32
    %c0_i32_0 = arith.constant 0 : i32
    %c0_i32_1 = arith.constant 0 : i32
    return %c0_i32, %c0_i32_0 : i32, i32
  }
  func.func @transform_9(%arg0: i32) -> (i32, i32) {
    %c0_i32 = arith.constant 0 : i32
    %c0_i32_0 = arith.constant 0 : i32
    %c0_i32_1 = arith.constant 0 : i32
    return %c0_i32, %c0_i32_0 : i32, i32
  }
  func.func @transform_10(%arg0: i32) -> (i32, i32) {
    %c0_i32 = arith.constant 0 : i32
    %c0_i32_0 = arith.constant 0 : i32
    %c0_i32_1 = arith.constant 0 : i32
    return %c0_i32, %c0_i32_0 : i32, i32
  }
  func.func @transform_11(%arg0: i32) -> (i32, i32) {
    %c0_i32 = arith.constant 0 : i32
    %c0_i32_0 = arith.constant 0 : i32
    %c0_i32_1 = arith.constant 0 : i32
    return %c0_i32, %c0_i32_0 : i32, i32
  }
  func.func @transform_12(%arg0: i32) -> (i32, i32) {
    %c0_i32 = arith.constant 0 : i32
    %c0_i32_0 = arith.constant 0 : i32
    %c0_i32_1 = arith.constant 0 : i32
    return %c0_i32, %c0_i32_0 : i32, i32
  }
  func.func @transform_13(%arg0: i32) -> (i32, i32) {
    %c0_i32 = arith.constant 0 : i32
    %c0_i32_0 = arith.constant 0 : i32
    %c0_i32_1 = arith.constant 0 : i32
    return %c0_i32, %c0_i32_0 : i32, i32
  }
  func.func @transform_14(%arg0: i32) -> (i32, i32) {
    %c0_i32 = arith.constant 0 : i32
    %c0_i32_0 = arith.constant 0 : i32
    %c0_i32_1 = arith.constant 0 : i32
    return %c0_i32, %c0_i32_0 : i32, i32
  }
  func.func @transform_15(%arg0: i32) -> (i32, i32) {
    %c0_i32 = arith.constant 0 : i32
    %c0_i32_0 = arith.constant 0 : i32
    %c0_i32_1 = arith.constant 0 : i32
    return %c0_i32, %c0_i32_0 : i32, i32
  }
  func.func @transform_16(%arg0: i32) -> (i32, i32) {
    %c0_i32 = arith.constant 0 : i32
    %c0_i32_0 = arith.constant 0 : i32
    %c0_i32_1 = arith.constant 0 : i32
    return %c0_i32, %c0_i32_0 : i32, i32
  }
  func.func @transform_17(%arg0: i32) -> (i32, i32) {
    %c0_i32 = arith.constant 0 : i32
    %c0_i32_0 = arith.constant 0 : i32
    %c0_i32_1 = arith.constant 0 : i32
    return %c0_i32, %c0_i32_0 : i32, i32
  }
  func.func @transform_18(%arg0: i32) -> (i32, i32) {
    %c0_i32 = arith.constant 0 : i32
    %c0_i32_0 = arith.constant 0 : i32
    %c0_i32_1 = arith.constant 0 : i32
    return %c0_i32, %c0_i32_0 : i32, i32
  }
  func.func @transform_19(%arg0: i32) -> (i32, i32, i32) {
    %c0_i32 = arith.constant 0 : i32
    %c0_i32_0 = arith.constant 0 : i32
    %c0_i32_1 = arith.constant 0 : i32
    return %arg0, %c0_i32, %c0_i32_0 : i32, i32, i32
  }
}

module attributes {stable_mosaic.version = 11 : i64} {
  func.func @_mlp_kernel(%arg0: i32, %arg1: memref<16x128xf32, #tpu.memory_space<vmem>>, %arg2: memref<128x256xbf16, #tpu.memory_space<vmem>>, %arg3: memref<1x256xf32, #tpu.memory_space<vmem>>, %arg4: memref<256x128xbf16, #tpu.memory_space<vmem>>, %arg5: memref<1x128xf32, #tpu.memory_space<vmem>>, %arg6: memref<16x128xf32, #tpu.memory_space<vmem>>) attributes {dimension_semantics = [#tpu.dimension_semantics<parallel>], iteration_bounds = array<i64: 2>, scalar_prefetch = 0 : i64, scratch_operands = 0 : i64, tpu.core_type = #tpu.core_type<tc>, window_params = [{transform_indices = @transform_0, window_bounds = array<i64: 16, 128>}, {pipeline_mode = #tpu.pipeline_mode<synchronous>, transform_indices = @transform_1, window_bounds = array<i64: 128, 256>}, {pipeline_mode = #tpu.pipeline_mode<synchronous>, transform_indices = @transform_2, window_bounds = array<i64: 1, 256>}, {pipeline_mode = #tpu.pipeline_mode<synchronous>, transform_indices = @transform_3, window_bounds = array<i64: 256, 128>}, {pipeline_mode = #tpu.pipeline_mode<synchronous>, transform_indices = @transform_4, window_bounds = array<i64: 1, 128>}, {transform_indices = @transform_5, window_bounds = array<i64: 16, 128>}]} {
    %c0 = arith.constant 0 : index
    %c0_0 = arith.constant 0 : index
    %0 = vector.load %arg1[%c0, %c0_0] : memref<16x128xf32, #tpu.memory_space<vmem>>, vector<16x128xf32>
    %c0_1 = arith.constant 0 : index
    %c0_2 = arith.constant 0 : index
    %1 = vector.load %arg2[%c0_1, %c0_2] : memref<128x256xbf16, #tpu.memory_space<vmem>>, vector<128x256xbf16>
    %2 = arith.truncf %0 : vector<16x128xf32> to vector<16x128xbf16>
    %cst = arith.constant dense<0.000000e+00> : vector<16x256xf32>
    %3 = tpu.matmul %2, %1, %cst {dimension_numbers = #tpu.dot_dimension_numbers<[1], [0], [0], [1], [0, 0, 1, 1], [], []>} : vector<16x128xbf16>, vector<128x256xbf16>, vector<16x256xf32> -> vector<16x256xf32>
    %c0_3 = arith.constant 0 : index
    %c0_4 = arith.constant 0 : index
    %4 = vector.load %arg3[%c0_3, %c0_4] : memref<1x256xf32, #tpu.memory_space<vmem>>, vector<1x256xf32>
    %5 = vector.broadcast %4 : vector<1x256xf32> to vector<16x256xf32>
    %6 = arith.addf %3, %5 : vector<16x256xf32>
    %cst_5 = arith.constant 0.000000e+00 : f32
    %7 = vector.broadcast %cst_5 : f32 to vector<16x256xf32>
    %8 = arith.cmpf ogt, %6, %7 : vector<16x256xf32>
    %cst_6 = arith.constant 0.00999999977 : f32
    %9 = vector.broadcast %cst_6 : f32 to vector<16x256xf32>
    %10 = arith.mulf %9, %6 : vector<16x256xf32>
    %11 = arith.select %8, %6, %10 : vector<16x256xi1>, vector<16x256xf32>
    %c0_7 = arith.constant 0 : index
    %c0_8 = arith.constant 0 : index
    %12 = vector.load %arg4[%c0_7, %c0_8] : memref<256x128xbf16, #tpu.memory_space<vmem>>, vector<256x128xbf16>
    %13 = arith.truncf %11 : vector<16x256xf32> to vector<16x256xbf16>
    %cst_9 = arith.constant dense<0.000000e+00> : vector<16x128xf32>
    %14 = tpu.matmul %13, %12, %cst_9 {dimension_numbers = #tpu.dot_dimension_numbers<[1], [0], [0], [1], [0, 0, 1, 1], [], []>} : vector<16x256xbf16>, vector<256x128xbf16>, vector<16x128xf32> -> vector<16x128xf32>
    %c0_10 = arith.constant 0 : index
    %c0_11 = arith.constant 0 : index
    %15 = vector.load %arg5[%c0_10, %c0_11] : memref<1x128xf32, #tpu.memory_space<vmem>>, vector<1x128xf32>
    %16 = vector.broadcast %15 : vector<1x128xf32> to vector<16x128xf32>
    %17 = arith.addf %14, %16 : vector<16x128xf32>
    %c0_12 = arith.constant 0 : index
    %c0_13 = arith.constant 0 : index
    %18 = vector.load %arg6[%c0_12, %c0_13] : memref<16x128xf32, #tpu.memory_space<vmem>>, vector<16x128xf32>
    tpu.vector_store %arg6[%c0_12, %c0_13], %17 {strides = array<i32>} : memref<16x128xf32, #tpu.memory_space<vmem>>, vector<16x128xf32>,
    return
  }
  func.func @transform_0(%arg0: i32) -> (i32, i32) {
    %c0_i32 = arith.constant 0 : i32
    %c0_i32_0 = arith.constant 0 : i32
    return %arg0, %c0_i32 : i32, i32
  }
  func.func @transform_1(%arg0: i32) -> (i32, i32) {
    %c0_i32 = arith.constant 0 : i32
    %c0_i32_0 = arith.constant 0 : i32
    %c0_i32_1 = arith.constant 0 : i32
    return %c0_i32, %c0_i32_0 : i32, i32
  }
  func.func @transform_2(%arg0: i32) -> (i32, i32) {
    %c0_i32 = arith.constant 0 : i32
    %c0_i32_0 = arith.constant 0 : i32
    %c0_i32_1 = arith.constant 0 : i32
    return %c0_i32, %c0_i32_0 : i32, i32
  }
  func.func @transform_3(%arg0: i32) -> (i32, i32) {
    %c0_i32 = arith.constant 0 : i32
    %c0_i32_0 = arith.constant 0 : i32
    %c0_i32_1 = arith.constant 0 : i32
    return %c0_i32, %c0_i32_0 : i32, i32
  }
  func.func @transform_4(%arg0: i32) -> (i32, i32) {
    %c0_i32 = arith.constant 0 : i32
    %c0_i32_0 = arith.constant 0 : i32
    %c0_i32_1 = arith.constant 0 : i32
    return %c0_i32, %c0_i32_0 : i32, i32
  }
  func.func @transform_5(%arg0: i32) -> (i32, i32) {
    %c0_i32 = arith.constant 0 : i32
    %c0_i32_0 = arith.constant 0 : i32
    return %arg0, %c0_i32 : i32, i32
  }
}

</mosaic_0001>

<llo_original>
// kernel: full_cross_attention_encoder_fwd.6
$region0: #{full_cross_attention_encoder_fwd.6}
  #allocation0 [shape = 'u32[]', space=smem, size = 0x4, offset = 0x4, fixed_abs, tag = 'smem constant byte address 0x4 - core index']
  #allocation1 [shape = 'u32[144,128]{1,0:T(1,128)}', space=vmem, size = 0x12000, scoped, tag = 'internal scratch']
  %s0 = inlined_call_operand.vmem [shape: f32[32,8], index: 0, kind: input, shape index: {}]
  %s1 = inlined_call_operand.vmem [shape: bf16[8,256], index: 1, kind: input, shape index: {}]
  %s2 = inlined_call_operand.vmem [shape: f32[1,256], index: 2, kind: input, shape index: {}]
  %s3 = inlined_call_operand.vmem [shape: bf16[256,128], index: 3, kind: input, shape index: {}]
  %s4 = inlined_call_operand.vmem [shape: f32[1,128], index: 4, kind: input, shape index: {}]
  %s5 = inlined_call_operand.vmem [shape: f32[32,128], index: 5, kind: output, shape index: {}]
  %s6 = sld [smem:[#allocation0]]
  $region53: #{full_cross_attention_encoder_fwd.6} parent=0
    _
  %s8 = ssub.s32 1, %s6
  %s9 = scalar_select 0, %s8, %s6
  loop: start=0, step=1, limit=4
  $region2: #{full_cross_attention_encoder_fwd.6} parent=0 // loop_pre_header
    _
  $region3: #{full_cross_attention_encoder_fwd.6} parent=0 // loop_header
    %s11 = sphi 0, %s15
    %p12 = scmp.ge.s32.totalorder %s11, 4
    %s21 = sphi 0, %s23
    %s24 = sphi 0, %s21
    %s25 = sphi 0, %s24
    %s41 = sphi 0, %s25
    %s45 = sphi 0, %s45
    %s47 = sphi 0, %s45
    %s48 = sphi 0, %s47
    %s62 = sphi 0, %s48
    %s66 = sphi 0, %s66
    %s68 = sphi 0, %s66
    %s69 = sphi 0, %s68
    %s83 = sphi 0, %s69
    %s87 = sphi 0, %s87
    %s89 = sphi 0, %s87
    %s90 = sphi 0, %s89
    %s104 = sphi 0, %s90
    %s108 = sphi 0, %s108
    %s110 = sphi 0, %s108
    %s111 = sphi 0, %s110
    %s125 = sphi 0, %s111
    %s131 = sphi 0, %s133
    %s134 = sphi 0, %s131
    %s135 = sphi 0, %s134
    %s151 = sphi 0, %s135
  $region4: #{full_cross_attention_encoder_fwd.6} parent=0 // loop_header_branch
    %14 = sbr.rel (%p12) target = $region8
  $region5: #{full_cross_attention_encoder_fwd.6} parent=0 // loop_body
    %s16 = ssub.s32 %s11, 1
    %s17 = ssub.s32 %s11, 2
    %s18 = sadd.s32 %s11, 1
    %s19 = ssub.s32 %s11, %s18
    %p20 = scmp.eq.s32.totalorder %s19, 0
    %s22 = sadd.s32 %s21, 1
    %s23 = scalar_select %p20, %s21, %s22
    %p26 = pneg %p20
    %p27 = scmp.eq.s32.totalorder %s11, 1
    %p28 = por %p26, %p27
    %p29 = scmp.ne.s32.totalorder %s21, %s24
    %p30 = scmp.eq.s32.totalorder %s11, 0
    %p31 = por %p29, %p30
    %p32 = scmp.ne.s32.totalorder %s21, %s24
    %p33 = scmp.eq.s32.totalorder %s16, 1
    %p34 = por %p32, %p33
    %p35 = scmp.ne.s32.totalorder %s24, %s25
    %p36 = scmp.eq.s32.totalorder %s16, 0
    %p37 = por %p35, %p36
    %p38 = scmp.ne.s32.totalorder %s24, %s25
    %p39 = scmp.eq.s32.totalorder %s17, 1
    %p40 = por %p38, %p39
    %p42 = scmp.ne.s32.totalorder %s25, %s41
    %p43 = scmp.eq.s32.totalorder %s17, 0
    %p44 = por %p42, %p43
    %s46 = sadd.s32 %s45, 1
    %p49 = scmp.eq.s32.totalorder %s11, 1
    %p50 = scmp.ne.s32.totalorder %s45, %s47
    %p51 = scmp.eq.s32.totalorder %s11, 0
    %p52 = por %p50, %p51
    %p53 = scmp.ne.s32.totalorder %s45, %s47
    %p54 = scmp.eq.s32.totalorder %s16, 1
    %p55 = por %p53, %p54
    %p56 = scmp.ne.s32.totalorder %s47, %s48
    %p57 = scmp.eq.s32.totalorder %s16, 0
    %p58 = por %p56, %p57
    %p59 = scmp.ne.s32.totalorder %s47, %s48
    %p60 = scmp.eq.s32.totalorder %s17, 1
    %p61 = por %p59, %p60
    %p63 = scmp.ne.s32.totalorder %s48, %s62
    %p64 = scmp.eq.s32.totalorder %s17, 0
    %p65 = por %p63, %p64
    %s67 = sadd.s32 %s66, 1
    %p70 = scmp.eq.s32.totalorder %s11, 1
    %p71 = scmp.ne.s32.totalorder %s66, %s68
    %p72 = scmp.eq.s32.totalorder %s11, 0
    %p73 = por %p71, %p72
    %p74 = scmp.ne.s32.totalorder %s66, %s68
    %p75 = scmp.eq.s32.totalorder %s16, 1
    %p76 = por %p74, %p75
    %p77 = scmp.ne.s32.totalorder %s68, %s69
    %p78 = scmp.eq.s32.totalorder %s16, 0
    %p79 = por %p77, %p78
    %p80 = scmp.ne.s32.totalorder %s68, %s69
    %p81 = scmp.eq.s32.totalorder %s17, 1
    %p82 = por %p80, %p81
    %p84 = scmp.ne.s32.totalorder %s69, %s83
    %p85 = scmp.eq.s32.totalorder %s17, 0
    %p86 = por %p84, %p85
    %s88 = sadd.s32 %s87, 1
    %p91 = scmp.eq.s32.totalorder %s11, 1
    %p92 = scmp.ne.s32.totalorder %s87, %s89
    %p93 = scmp.eq.s32.totalorder %s11, 0
    %p94 = por %p92, %p93
    %p95 = scmp.ne.s32.totalorder %s87, %s89
    %p96 = scmp.eq.s32.totalorder %s16, 1
    %p97 = por %p95, %p96
    %p98 = scmp.ne.s32.totalorder %s89, %s90
    %p99 = scmp.eq.s32.totalorder %s16, 0
    %p100 = por %p98, %p99
    %p101 = scmp.ne.s32.totalorder %s89, %s90
    %p102 = scmp.eq.s32.totalorder %s17, 1
    %p103 = por %p101, %p102
    %p105 = scmp.ne.s32.totalorder %s90, %s104
    %p106 = scmp.eq.s32.totalorder %s17, 0
    %p107 = por %p105, %p106
    %s109 = sadd.s32 %s108, 1
    %p112 = scmp.eq.s32.totalorder %s11, 1
    %p113 = scmp.ne.s32.totalorder %s108, %s110
    %p114 = scmp.eq.s32.totalorder %s11, 0
    %p115 = por %p113, %p114
    %p116 = scmp.ne.s32.totalorder %s108, %s110
    %p117 = scmp.eq.s32.totalorder %s16, 1
    %p118 = por %p116, %p117
    %p119 = scmp.ne.s32.totalorder %s110, %s111
    %p120 = scmp.eq.s32.totalorder %s16, 0
    %p121 = por %p119, %p120
    %p122 = scmp.ne.s32.totalorder %s110, %s111
    %p123 = scmp.eq.s32.totalorder %s17, 1
    %p124 = por %p122, %p123
    %p126 = scmp.ne.s32.totalorder %s111, %s125
    %p127 = scmp.eq.s32.totalorder %s17, 0
    %p128 = por %p126, %p127
    %s129 = ssub.s32 %s11, %s18
    %p130 = scmp.eq.s32.totalorder %s129, 0
    %s132 = sadd.s32 %s131, 1
    %s133 = scalar_select %p130, %s131, %s132
    %p136 = pneg %p130
    %p137 = scmp.eq.s32.totalorder %s11, 1
    %p138 = por %p136, %p137
    %p139 = scmp.ne.s32.totalorder %s131, %s134
    %p140 = scmp.eq.s32.totalorder %s11, 0
    %p141 = por %p139, %p140
    %p142 = scmp.ne.s32.totalorder %s131, %s134
    %p143 = scmp.eq.s32.totalorder %s16, 1
    %p144 = por %p142, %p143
    %p145 = scmp.ne.s32.totalorder %s134, %s135
    %p146 = scmp.eq.s32.totalorder %s16, 0
    %p147 = por %p145, %p146
    %p148 = scmp.ne.s32.totalorder %s134, %s135
    %p149 = scmp.eq.s32.totalorder %s17, 1
    %p150 = por %p148, %p149
    %p152 = scmp.ne.s32.totalorder %s135, %s151
    %p153 = scmp.eq.s32.totalorder %s17, 0
    %p154 = por %p152, %p153
    %p155 = scmp.le.s32.totalorder 1, %s11
    %p156 = scmp.lt.s32.totalorder %s11, 3
    %p157 = pnand %p155, %p156
    %p158 = pneg %p157
    // Predicated region
    $region9: #{full_cross_attention_encoder_fwd.6} parent=5 // pred_check
      _
    $region10: #{full_cross_attention_encoder_fwd.6} parent=5 // pred_check_branch
      %160 = sbr.rel (%p157) target = $region12
    $region11: #{full_cross_attention_encoder_fwd.6} parent=5 // pred_region
      %s161 = ssub.s32 %s11, 1
      // Predicated region
      $region13: #{full_cross_attention_encoder_fwd.6} parent=11 // pred_check
        %p162 = pneg %p58
      $region14: #{full_cross_attention_encoder_fwd.6} parent=11 // pred_check_branch
        %164 = sbr.rel (%p162) target = $region16
      $region15: #{full_cross_attention_encoder_fwd.6} parent=11 // pred_region
        _
      $region16: #{full_cross_attention_encoder_fwd.6} parent=11 // pred_fallthru
        _
      // Predicated region
      $region17: #{full_cross_attention_encoder_fwd.6} parent=11 // pred_check
        %p165 = pneg %p79
      $region18: #{full_cross_attention_encoder_fwd.6} parent=11 // pred_check_branch
        %167 = sbr.rel (%p165) target = $region20
      $region19: #{full_cross_attention_encoder_fwd.6} parent=11 // pred_region
        _
      $region20: #{full_cross_attention_encoder_fwd.6} parent=11 // pred_fallthru
        _
      // Predicated region
      $region21: #{full_cross_attention_encoder_fwd.6} parent=11 // pred_check
        %p168 = pneg %p100
      $region22: #{full_cross_attention_encoder_fwd.6} parent=11 // pred_check_branch
        %170 = sbr.rel (%p168) target = $region24
      $region23: #{full_cross_attention_encoder_fwd.6} parent=11 // pred_region
        _
      $region24: #{full_cross_attention_encoder_fwd.6} parent=11 // pred_fallthru
        _
      // Predicated region
      $region25: #{full_cross_attention_encoder_fwd.6} parent=11 // pred_check
        %p171 = pneg %p121
      $region26: #{full_cross_attention_encoder_fwd.6} parent=11 // pred_check_branch
        %173 = sbr.rel (%p171) target = $region28
      $region27: #{full_cross_attention_encoder_fwd.6} parent=11 // pred_region
        _
      $region28: #{full_cross_attention_encoder_fwd.6} parent=11 // pred_fallthru
        _
    $region12: #{full_cross_attention_encoder_fwd.6} parent=5 // pred_fallthru
      _
    %p174 = scmp.lt.s32.totalorder %s11, 2
    // Predicated region
    $region29: #{full_cross_attention_encoder_fwd.6} parent=5 // pred_check
      %p175 = pneg %p174
    $region30: #{full_cross_attention_encoder_fwd.6} parent=5 // pred_check_branch
      %177 = sbr.rel (%p175) target = $region32
    $region31: #{full_cross_attention_encoder_fwd.6} parent=5 // pred_region
      // Predicated region
      $region33: #{full_cross_attention_encoder_fwd.6} parent=31 // pred_check
        %p178 = pneg %p31
      $region34: #{full_cross_attention_encoder_fwd.6} parent=31 // pred_check_branch
        %180 = sbr.rel (%p178) target = $region36
      $region35: #{full_cross_attention_encoder_fwd.6} parent=31 // pred_region
        %s181 = smul.u32 2, %s11
        %p182 = scmp.lt.s32.totalorder %s181, 3
        %s183 = scalar_select %p182, %s181, 3
        %s184 = smul.addr %s183, 8
        %s185 = scalar_lea.vmem %s0, %s184
        %s186 = smul.u32 2, %s11
      $region36: #{full_cross_attention_encoder_fwd.6} parent=31 // pred_fallthru
        _
    $region32: #{full_cross_attention_encoder_fwd.6} parent=5 // pred_fallthru
      _
    %p187 = scmp.le.s32.totalorder 1, %s11
    %p188 = scmp.lt.s32.totalorder %s11, 3
    %p189 = pnand %p187, %p188
    %p190 = pneg %p189
    // Predicated region
    $region37: #{full_cross_attention_encoder_fwd.6} parent=5 // pred_check
      _
    $region38: #{full_cross_attention_encoder_fwd.6} parent=5 // pred_check_branch
      %192 = sbr.rel (%p189) target = $region40
    $region39: #{full_cross_attention_encoder_fwd.6} parent=5 // pred_region
      %s193 = ssub.s32 %s11, 1
      %s194 = smul.u32 2, %s16
      %p195 = scmp.lt.s32.totalorder %s194, 3
      %s196 = scalar_select %p195, %s194, 3
      %s197 = smul.addr %s196, 8
      %s198 = scalar_lea.vmem %s0, %s197
      %p199 = pneg %p37
      %p200 = pneg %p34
      %p201 = pneg %p58
      %p202 = pneg %p55
      %p203 = pneg %p79
      %p204 = pneg %p76
      %p205 = pneg %p100
      %p206 = pneg %p97
      %p207 = pneg %p121
      %p208 = pneg %p118
      %p209 = pneg %p147
      %p210 = pneg %p144
      %s211 = smul.u32 2, %s16
      %p212 = scmp.lt.s32.totalorder %s211, 3
      %s213 = scalar_select %p212, %s211, 3
      %s214 = smul.addr %s213, 8
      %s215 = scalar_lea.vmem %s5, %s214
      %s216 = smul.u32 2, %s16
      %p217 = scmp.lt.s32.totalorder %s216, 3
      %s218 = scalar_select %p217, %s216, 3
      %s219 = smul.addr %s218, 8
      %s220 = scalar_lea.vmem %s0, %s219
      %s221 = smul.u32 2, %s16
      %s222 = smul.u32 2, %s16
      %p223 = scmp.lt.s32.totalorder %s222, 3
      %s224 = scalar_select %p223, %s222, 3
      %s225 = smul.addr %s224, 8
      %s226 = scalar_lea.vmem %s5, %s225
      %s227 = smul.u32 2, %s16
      %v229 = vld [vmem:[%s220] sm:$0xff]
      %v230 = vld [vmem:[%s220 + $0x8] sm:$0xff]
      %v231 = vld [vmem:[%s1] sm:$0xff]
      %v232 = vpack.c.bf16 %v230, %v229
      %v233 = vld [vmem:[%s2] sm:$0x3]
      %v235 = vlaneseq
      %v236 = vshrl.u32 %v235, 7
      %v237 = vsub.s32 0, %v236
      %v238 = vrot.slane %v233, %v237
      %v239 = vlaneseq
      %v240 = vshrl.u32 %v239, 7
      %v241 = vsub.s32 1, %v240
      %v242 = vrot.slane %v233, %v241
      %v246 = vunpack.c.l.b16 %v231
      %v247 = vunpack.c.h.b16 %v231
      %v248 = vpack.c.b16 %v246, %v246
      %v249 = vpack.c.b16 %v247, %v247
      %vm250 = vcmask 64512
      %v252 = vsel %vm250, %v232, 0
      %vm254 = vcmask 1043456
      %v256 = vsel %vm254, %v248, 0
      %v259 = vsel %vm254, %v249, 0
      %261 = vmatprep.subr.bf16.mxu0 0
      %262 = vmatpush1.bf16.msra.mxu0 0
      %263 = vmatprep.subr.bf16.mxu0 0
      %264 = vmatpush1.bf16.msra.mxu0 0
      %265 = vmatprep.subr.bf16.mxu0 0
      %266 = vmatpush1.bf16.msra.mxu0 0
      %267 = vmatprep.subr.bf16.mxu0 0
      %268 = vmatpush1.bf16.msra.mxu0 0
      %269 = vmatprep.subr.bf16.mxu0 0
      %270 = vmatpush1.bf16.msra.mxu0 0
      %271 = vmatprep.subr.bf16.mxu0 0
      %272 = vmatpush1.bf16.msra.mxu0 0
      %273 = vmatprep.subr.bf16.mxu0 0
      %274 = vmatpush1.bf16.msra.mxu0 0
      %275 = vmatprep.subr.bf16.mxu0 %v259
      %276 = vmatpush1.bf16.msra.mxu0 %v256
      %277 = vmatprep.subr.bf16.mxu0 0
      %278 = vmatpush2.bf16.msra.mxu0 0
      %279 = vmatprep.subr.bf16.mxu0 0
      %280 = vmatpush2.bf16.msra.mxu0 0
      %281 = vmatprep.subr.bf16.mxu0 0
      %282 = vmatpush2.bf16.msra.mxu0 0
      %283 = vmatprep.subr.bf16.mxu0 0
      %284 = vmatpush2.bf16.msra.mxu0 0
      %285 = vmatprep.subr.bf16.mxu0 0
      %286 = vmatpush2.bf16.msra.mxu0 0
      %287 = vmatprep.subr.bf16.mxu0 0
      %288 = vmatpush2.bf16.msra.mxu0 0
      %289 = vmatprep.subr.bf16.mxu0 0
      %290 = vmatpush2.bf16.msra.mxu0 0
      %291 = vmatprep.subr.bf16.mxu0 0
      %292 = vmatpush2.bf16.msra.mxu0 0
      %293 = vmatprep.mubr.bf16.mxu0 0
      %294 = vmatmul.mubr.bf16.gmra.mxu0 %v252
      %v295 = vpop.f32.mrf.mxu0
      %v296 = vadd.f32 %v238, %v295
      %v297 = vpop.f32.mrf.mxu0
      %v298 = vadd.f32 %v242, %v297
      %v299 = vpop.f32.mrf.mxu0
      %v300 = vadd.f32 %v238, %v299
      %v301 = vpop.f32.mrf.mxu0
      %v302 = vadd.f32 %v242, %v301
      %303 = vdwg.mxu0
      %vm304 = vcmp.gt.f32.partialorder %v296, 0.0
      %vm305 = vcmp.gt.f32.partialorder %v298, 0.0
      %vm306 = vcmp.gt.f32.partialorder %v300, 0.0
      %vm307 = vcmp.gt.f32.partialorder %v302, 0.0
      %v308 = vmul.f32 %v296, 0.01
      %v309 = vmul.f32 %v298, 0.01
      %v310 = vmul.f32 %v300, 0.01
      %v311 = vmul.f32 %v302, 0.01
      %v312 = vsel %vm304, %v296, %v308
      %v313 = vsel %vm305, %v298, %v309
      %v314 = vsel %vm306, %v300, %v310
      %v315 = vsel %vm307, %v302, %v311
      %v316 = vld [vmem:[%s3] sm:$0xf]
      %v317 = vld [vmem:[%s3 + $0x4] sm:$0xf]
      %v318 = vld [vmem:[%s3 + $0x8] sm:$0xf]
      %v319 = vld [vmem:[%s3 + $0xc] sm:$0xf]
      %v320 = vld [vmem:[%s3 + $0x10] sm:$0xf]
      %v321 = vld [vmem:[%s3 + $0x14] sm:$0xf]
      %v322 = vld [vmem:[%s3 + $0x18] sm:$0xf]
      %v323 = vld [vmem:[%s3 + $0x1c] sm:$0xf]
      %v324 = vld [vmem:[%s3 + $0x20] sm:$0xf]
      %v325 = vld [vmem:[%s3 + $0x24] sm:$0xf]
      %v326 = vld [vmem:[%s3 + $0x28] sm:$0xf]
      %v327 = vld [vmem:[%s3 + $0x2c] sm:$0xf]
      %v328 = vld [vmem:[%s3 + $0x30] sm:$0xf]
      %v329 = vld [vmem:[%s3 + $0x34] sm:$0xf]
      %v330 = vld [vmem:[%s3 + $0x38] sm:$0xf]
      %v331 = vld [vmem:[%s3 + $0x3c] sm:$0xf]
      %v332 = vld [vmem:[%s3 + $0x40] sm:$0xf]
      %v333 = vld [vmem:[%s3 + $0x44] sm:$0xf]
      %v334 = vld [vmem:[%s3 + $0x48] sm:$0xf]
      %v335 = vld [vmem:[%s3 + $0x4c] sm:$0xf]
      %v336 = vld [vmem:[%s3 + $0x50] sm:$0xf]
      %v337 = vld [vmem:[%s3 + $0x54] sm:$0xf]
      %v338 = vld [vmem:[%s3 + $0x58] sm:$0xf]
      %v339 = vld [vmem:[%s3 + $0x5c] sm:$0xf]
      %v340 = vld [vmem:[%s3 + $0x60] sm:$0xf]
      %v341 = vld [vmem:[%s3 + $0x64] sm:$0xf]
      %v342 = vld [vmem:[%s3 + $0x68] sm:$0xf]
      %v343 = vld [vmem:[%s3 + $0x6c] sm:$0xf]
      %v344 = vld [vmem:[%s3 + $0x70] sm:$0xf]
      %v345 = vld [vmem:[%s3 + $0x74] sm:$0xf]
      %v346 = vld [vmem:[%s3 + $0x78] sm:$0xf]
      %v347 = vld [vmem:[%s3 + $0x7c] sm:$0xf]
      %v348 = vpack.c.bf16 %v314, %v312
      %v349 = vpack.c.bf16 %v315, %v313
      %v350 = vld [vmem:[%s4] sm:$0x1]
      %v352 = vlaneseq
      %v353 = vshrl.u32 %v352, 7
      %v354 = vsub.s32 0, %v353
      %v355 = vrot.slane %v350, %v354
      %v389 = vunpack.c.l.b16 %v316
      %v390 = vunpack.c.l.b16 %v317
      %v391 = vunpack.c.l.b16 %v318
      %v392 = vunpack.c.l.b16 %v319
      %v393 = vunpack.c.l.b16 %v320
      %v394 = vunpack.c.l.b16 %v321
      %v395 = vunpack.c.l.b16 %v322
      %v396 = vunpack.c.l.b16 %v323
      %v397 = vunpack.c.l.b16 %v324
      %v398 = vunpack.c.l.b16 %v325
      %v399 = vunpack.c.l.b16 %v326
      %v400 = vunpack.c.l.b16 %v327
      %v401 = vunpack.c.l.b16 %v328
      %v402 = vunpack.c.l.b16 %v329
      %v403 = vunpack.c.l.b16 %v330
      %v404 = vunpack.c.l.b16 %v331
      %v405 = vunpack.c.l.b16 %v332
      %v406 = vunpack.c.l.b16 %v333
      %v407 = vunpack.c.l.b16 %v334
      %v408 = vunpack.c.l.b16 %v335
      %v409 = vunpack.c.l.b16 %v336
      %v410 = vunpack.c.l.b16 %v337
      %v411 = vunpack.c.l.b16 %v338
      %v412 = vunpack.c.l.b16 %v339
      %v413 = vunpack.c.l.b16 %v340
      %v414 = vunpack.c.l.b16 %v341
      %v415 = vunpack.c.l.b16 %v342
      %v416 = vunpack.c.l.b16 %v343
      %v417 = vunpack.c.l.b16 %v344
      %v418 = vunpack.c.l.b16 %v345
      %v419 = vunpack.c.l.b16 %v346
      %v420 = vunpack.c.l.b16 %v347
      %v421 = vpack.c.b16 %v390, %v389
      %v422 = vpack.c.b16 %v392, %v391
      %v423 = vpack.c.b16 %v394, %v393
      %v424 = vpack.c.b16 %v396, %v395
      %v425 = vpack.c.b16 %v398, %v397
      %v426 = vpack.c.b16 %v400, %v399
      %v427 = vpack.c.b16 %v402, %v401
      %v428 = vpack.c.b16 %v404, %v403
      %v429 = vpack.c.b16 %v406, %v405
      %v430 = vpack.c.b16 %v408, %v407
      %v431 = vpack.c.b16 %v410, %v409
      %v432 = vpack.c.b16 %v412, %v411
      %v433 = vpack.c.b16 %v414, %v413
      %v434 = vpack.c.b16 %v416, %v415
      %v435 = vpack.c.b16 %v418, %v417
      %v436 = vpack.c.b16 %v420, %v419
      %453 = vmatprep.subr.bf16.mxu0 0
      %454 = vmatpush1.bf16.msra.mxu0 %v428
      %455 = vmatprep.subr.bf16.mxu0 0
      %456 = vmatpush1.bf16.msra.mxu0 %v427
      %457 = vmatprep.subr.bf16.mxu0 0
      %458 = vmatpush1.bf16.msra.mxu0 %v426
      %459 = vmatprep.subr.bf16.mxu0 0
      %460 = vmatpush1.bf16.msra.mxu0 %v425
      %461 = vmatprep.subr.bf16.mxu0 0
      %462 = vmatpush1.bf16.msra.mxu0 %v424
      %463 = vmatprep.subr.bf16.mxu0 0
      %464 = vmatpush1.bf16.msra.mxu0 %v423
      %465 = vmatprep.subr.bf16.mxu0 0
      %466 = vmatpush1.bf16.msra.mxu0 %v422
      %467 = vmatprep.subr.bf16.mxu0 0
      %468 = vmatpush1.bf16.msra.mxu0 %v421
      %469 = vmatprep.subr.bf16.mxu0 0
      %470 = vmatpush2.bf16.msra.mxu0 %v436
      %471 = vmatprep.subr.bf16.mxu0 0
      %472 = vmatpush2.bf16.msra.mxu0 %v435
      %473 = vmatprep.subr.bf16.mxu0 0
      %474 = vmatpush2.bf16.msra.mxu0 %v434
      %475 = vmatprep.subr.bf16.mxu0 0
      %476 = vmatpush2.bf16.msra.mxu0 %v433
      %477 = vmatprep.subr.bf16.mxu0 0
      %478 = vmatpush2.bf16.msra.mxu0 %v432
      %479 = vmatprep.subr.bf16.mxu0 0
      %480 = vmatpush2.bf16.msra.mxu0 %v431
      %481 = vmatprep.subr.bf16.mxu0 0
      %482 = vmatpush2.bf16.msra.mxu0 %v430
      %483 = vmatprep.subr.bf16.mxu0 0
      %484 = vmatpush2.bf16.msra.mxu0 %v429
      %485 = vmatprep.mubr.bf16.mxu0 %v349
      %486 = vmatmul.mubr.bf16.gmra.mxu0 %v348
      %v487 = vpop.f32.mrf.mxu0
      %v488 = vadd.f32 %v355, %v487
      %v489 = vpop.f32.mrf.mxu0
      %v490 = vpop.f32.mrf.mxu0
      %v491 = vadd.f32 %v355, %v490
      %v492 = vpop.f32.mrf.mxu0
      %493 = vdwg.mxu0
      %494 = vst [vmem:[%s226] sm:$0xff] %v488
      %495 = vst [vmem:[%s226 + $0x8] sm:$0xff] %v491
      %s496 = smul.u32 2, %s16
      %p497 = scmp.lt.s32.totalorder %s496, 3
      %s498 = scalar_select %p497, %s496, 3
      %s499 = smul.addr %s498, 8
      %s500 = scalar_lea.vmem %s5, %s499
      // Predicated region
      $region41: #{full_cross_attention_encoder_fwd.6} parent=39 // pred_check
        %p501 = pneg %p144
      $region42: #{full_cross_attention_encoder_fwd.6} parent=39 // pred_check_branch
        %503 = sbr.rel (%p501) target = $region44
      $region43: #{full_cross_attention_encoder_fwd.6} parent=39 // pred_region
        %s504 = smul.u32 2, %s16
      $region44: #{full_cross_attention_encoder_fwd.6} parent=39 // pred_fallthru
        _
    $region40: #{full_cross_attention_encoder_fwd.6} parent=5 // pred_fallthru
      _
    %p505 = scmp.le.s32.totalorder 2, %s11
    // Predicated region
    $region45: #{full_cross_attention_encoder_fwd.6} parent=5 // pred_check
      %p506 = pneg %p505
    $region46: #{full_cross_attention_encoder_fwd.6} parent=5 // pred_check_branch
      %508 = sbr.rel (%p506) target = $region48
    $region47: #{full_cross_attention_encoder_fwd.6} parent=5 // pred_region
      %s509 = ssub.s32 %s11, 2
      // Predicated region
      $region49: #{full_cross_attention_encoder_fwd.6} parent=47 // pred_check
        %p510 = pneg %p150
      $region50: #{full_cross_attention_encoder_fwd.6} parent=47 // pred_check_branch
        %512 = sbr.rel (%p510) target = $region52
      $region51: #{full_cross_attention_encoder_fwd.6} parent=47 // pred_region
        %s513 = smul.u32 2, %s17
        %p514 = scmp.lt.s32.totalorder %s513, 3
        %s515 = scalar_select %p514, %s513, 3
        %s516 = smul.addr %s515, 8
        %s517 = scalar_lea.vmem %s5, %s516
      $region52: #{full_cross_attention_encoder_fwd.6} parent=47 // pred_fallthru
        _
    $region48: #{full_cross_attention_encoder_fwd.6} parent=5 // pred_fallthru
      _
  $region6: #{full_cross_attention_encoder_fwd.6} parent=0 // loop_footer
    %s15 = sadd.s32 1, %s11
  $region7: #{full_cross_attention_encoder_fwd.6} parent=0 // loop_footer_branch
    %10 = sbr.rel target = $region3
  $region8: #{full_cross_attention_encoder_fwd.6} parent=0 // loop_exit
    _

// kernel: full_cross_attention_encoder_fwd.7
$region0: #{full_cross_attention_encoder_fwd.7}
  #allocation0 [shape = 'u32[]', space=smem, size = 0x4, offset = 0x4, fixed_abs, tag = 'smem constant byte address 0x4 - core index']
  #allocation1 [shape = 'u32[144,128]{1,0:T(1,128)}', space=vmem, size = 0x12000, scoped, tag = 'internal scratch']
  %s0 = inlined_call_operand.vmem [shape: f32[2,8,128], index: 0, kind: input, shape index: {}]
  %s1 = inlined_call_operand.vmem [shape: f32[2,16,128], index: 1, kind: input, shape index: {}]
  %s2 = inlined_call_operand.vmem [shape: f32[2,1,16], index: 2, kind: input, shape index: {}]
  %s3 = inlined_call_operand.vmem [shape: f32[1,128], index: 3, kind: input, shape index: {}]
  %s4 = inlined_call_operand.vmem [shape: f32[1,128], index: 4, kind: input, shape index: {}]
  %s5 = inlined_call_operand.vmem [shape: f32[1,128], index: 5, kind: input, shape index: {}]
  %s6 = inlined_call_operand.vmem [shape: f32[1,128], index: 6, kind: input, shape index: {}]
  %s7 = inlined_call_operand.vmem [shape: f32[1,128], index: 7, kind: input, shape index: {}]
  %s8 = inlined_call_operand.vmem [shape: f32[1,128], index: 8, kind: input, shape index: {}]
  %s9 = inlined_call_operand.hbm [shape: bf16[128,128], index: 9, kind: input, shape index: {}]
  %s10 = inlined_call_operand.vmem [shape: f32[1,128], index: 10, kind: input, shape index: {}]
  %s11 = inlined_call_operand.vmem [shape: bf16[128,256], index: 11, kind: input, shape index: {}]
  %s12 = inlined_call_operand.vmem [shape: f32[1,256], index: 12, kind: input, shape index: {}]
  %s13 = inlined_call_operand.hbm [shape: bf16[128,128], index: 13, kind: input, shape index: {}]
  %s14 = inlined_call_operand.vmem [shape: f32[1,128], index: 14, kind: input, shape index: {}]
  %s15 = inlined_call_operand.vmem [shape: bf16[128,256], index: 15, kind: input, shape index: {}]
  %s16 = inlined_call_operand.vmem [shape: f32[1,256], index: 16, kind: input, shape index: {}]
  %s17 = inlined_call_operand.hbm [shape: bf16[256,128], index: 17, kind: input, shape index: {}]
  %s18 = inlined_call_operand.vmem [shape: f32[1,128], index: 18, kind: input, shape index: {}]
  %s19 = inlined_call_operand.vmem [shape: f32[2,8,128], index: 19, kind: output, shape index: {}]
  %s20 = sld [smem:[#allocation0]]
  $region121: #{full_cross_attention_encoder_fwd.7} parent=0
    _
  %s22 = ssub.s32 1, %s20
  %s23 = scalar_select 0, %s22, %s20
  $region1: #{full_cross_attention_encoder_fwd.7} parent=0
    #allocation2 [shape = 'u8[32768]{0}', space=vmem, size = 0x8000, scoped, tag = 'input window, operand 9, single buffered']
    #allocation3 [shape = 's32[2]{0}', space=sflag, size = 0x8, scoped, tag = 'scoped memory for full_cross_attention_encoder_fwd.7']
    #allocation4 [shape = 'u8[32768]{0}', space=vmem, size = 0x8000, scoped, tag = 'input window, operand 13, single buffered']
    #allocation5 [shape = 's32[1]{0}', space=sflag, size = 0x4, scoped, tag = 'scoped memory for full_cross_attention_encoder_fwd.7']
    #allocation6 [shape = 'u8[65536]{0}', space=vmem, size = 0x10000, scoped, tag = 'input window, operand 17, single buffered']
    %24 = vsyncpa [#allocation3], 0
    %25 = vsyncpa [#allocation5], 0
    loop: start=0, step=1, limit=4
    $region2: #{full_cross_attention_encoder_fwd.7} parent=1 // loop_pre_header
      _
    $region3: #{full_cross_attention_encoder_fwd.7} parent=1 // loop_header
      %s27 = sphi 0, %s31
      %p28 = scmp.ge.s32.totalorder %s27, 4
      %s37 = sphi 0, %s39
      %s40 = sphi 0, %s37
      %s41 = sphi 0, %s40
      %s57 = sphi 0, %s41
      %s63 = sphi 0, %s65
      %s66 = sphi 0, %s63
      %s67 = sphi 0, %s66
      %s83 = sphi 0, %s67
      %s89 = sphi 0, %s91
      %s92 = sphi 0, %s89
      %s93 = sphi 0, %s92
      %s109 = sphi 0, %s93
      %s113 = sphi 0, %s113
      %s115 = sphi 0, %s113
      %s116 = sphi 0, %s115
      %s130 = sphi 0, %s116
      %s134 = sphi 0, %s134
      %s136 = sphi 0, %s134
      %s137 = sphi 0, %s136
      %s151 = sphi 0, %s137
      %s155 = sphi 0, %s155
      %s157 = sphi 0, %s155
      %s158 = sphi 0, %s157
      %s172 = sphi 0, %s158
      %s176 = sphi 0, %s176
      %s178 = sphi 0, %s176
      %s179 = sphi 0, %s178
      %s193 = sphi 0, %s179
      %s197 = sphi 0, %s197
      %s199 = sphi 0, %s197
      %s200 = sphi 0, %s199
      %s214 = sphi 0, %s200
      %s218 = sphi 0, %s218
      %s220 = sphi 0, %s218
      %s221 = sphi 0, %s220
      %s235 = sphi 0, %s221
      %s239 = sphi 0, %s239
      %s241 = sphi 0, %s239
      %s242 = sphi 0, %s241
      %s256 = sphi 0, %s242
      %s260 = sphi 0, %s260
      %s262 = sphi 0, %s260
      %s263 = sphi 0, %s262
      %s277 = sphi 0, %s263
      %s281 = sphi 0, %s281
      %s283 = sphi 0, %s281
      %s284 = sphi 0, %s283
      %s298 = sphi 0, %s284
      %s302 = sphi 0, %s302
      %s304 = sphi 0, %s302
      %s305 = sphi 0, %s304
      %s319 = sphi 0, %s305
      %s323 = sphi 0, %s323
      %s325 = sphi 0, %s323
      %s326 = sphi 0, %s325
      %s340 = sphi 0, %s326
      %s344 = sphi 0, %s344
      %s346 = sphi 0, %s344
      %s347 = sphi 0, %s346
      %s361 = sphi 0, %s347
      %s365 = sphi 0, %s365
      %s367 = sphi 0, %s365
      %s368 = sphi 0, %s367
      %s382 = sphi 0, %s368
      %s386 = sphi 0, %s386
      %s388 = sphi 0, %s386
      %s389 = sphi 0, %s388
      %s403 = sphi 0, %s389
      %s407 = sphi 0, %s407
      %s409 = sphi 0, %s407
      %s410 = sphi 0, %s409
      %s424 = sphi 0, %s410
      %s428 = sphi 0, %s428
      %s430 = sphi 0, %s428
      %s431 = sphi 0, %s430
      %s445 = sphi 0, %s431
      %s451 = sphi 0, %s453
      %s454 = sphi 0, %s451
      %s455 = sphi 0, %s454
      %s471 = sphi 0, %s455
    $region4: #{full_cross_attention_encoder_fwd.7} parent=1 // loop_header_branch
      %30 = sbr.rel (%p28) target = $region8
    $region5: #{full_cross_attention_encoder_fwd.7} parent=1 // loop_body
      %s32 = ssub.s32 %s27, 1
      %s33 = ssub.s32 %s27, 2
      %s34 = sadd.s32 %s27, 1
      %s35 = ssub.s32 %s27, %s34
      %p36 = scmp.eq.s32.totalorder %s35, 0
      %s38 = sadd.s32 %s37, 1
      %s39 = scalar_select %p36, %s37, %s38
      %p42 = pneg %p36
      %p43 = scmp.eq.s32.totalorder %s27, 1
      %p44 = por %p42, %p43
      %p45 = scmp.ne.s32.totalorder %s37, %s40
      %p46 = scmp.eq.s32.totalorder %s27, 0
      %p47 = por %p45, %p46
      %p48 = scmp.ne.s32.totalorder %s37, %s40
      %p49 = scmp.eq.s32.totalorder %s32, 1
      %p50 = por %p48, %p49
      %p51 = scmp.ne.s32.totalorder %s40, %s41
      %p52 = scmp.eq.s32.totalorder %s32, 0
      %p53 = por %p51, %p52
      %p54 = scmp.ne.s32.totalorder %s40, %s41
      %p55 = scmp.eq.s32.totalorder %s33, 1
      %p56 = por %p54, %p55
      %p58 = scmp.ne.s32.totalorder %s41, %s57
      %p59 = scmp.eq.s32.totalorder %s33, 0
      %p60 = por %p58, %p59
      %s61 = ssub.s32 %s27, %s34
      %p62 = scmp.eq.s32.totalorder %s61, 0
      %s64 = sadd.s32 %s63, 1
      %s65 = scalar_select %p62, %s63, %s64
      %p68 = pneg %p62
      %p69 = scmp.eq.s32.totalorder %s27, 1
      %p70 = por %p68, %p69
      %p71 = scmp.ne.s32.totalorder %s63, %s66
      %p72 = scmp.eq.s32.totalorder %s27, 0
      %p73 = por %p71, %p72
      %p74 = scmp.ne.s32.totalorder %s63, %s66
      %p75 = scmp.eq.s32.totalorder %s32, 1
      %p76 = por %p74, %p75
      %p77 = scmp.ne.s32.totalorder %s66, %s67
      %p78 = scmp.eq.s32.totalorder %s32, 0
      %p79 = por %p77, %p78
      %p80 = scmp.ne.s32.totalorder %s66, %s67
      %p81 = scmp.eq.s32.totalorder %s33, 1
      %p82 = por %p80, %p81
      %p84 = scmp.ne.s32.totalorder %s67, %s83
      %p85 = scmp.eq.s32.totalorder %s33, 0
      %p86 = por %p84, %p85
      %s87 = ssub.s32 %s27, %s34
      %p88 = scmp.eq.s32.totalorder %s87, 0
      %s90 = sadd.s32 %s89, 1
      %s91 = scalar_select %p88, %s89, %s90
      %p94 = pneg %p88
      %p95 = scmp.eq.s32.totalorder %s27, 1
      %p96 = por %p94, %p95
      %p97 = scmp.ne.s32.totalorder %s89, %s92
      %p98 = scmp.eq.s32.totalorder %s27, 0
      %p99 = por %p97, %p98
      %p100 = scmp.ne.s32.totalorder %s89, %s92
      %p101 = scmp.eq.s32.totalorder %s32, 1
      %p102 = por %p100, %p101
      %p103 = scmp.ne.s32.totalorder %s92, %s93
      %p104 = scmp.eq.s32.totalorder %s32, 0
      %p105 = por %p103, %p104
      %p106 = scmp.ne.s32.totalorder %s92, %s93
      %p107 = scmp.eq.s32.totalorder %s33, 1
      %p108 = por %p106, %p107
      %p110 = scmp.ne.s32.totalorder %s93, %s109
      %p111 = scmp.eq.s32.totalorder %s33, 0
      %p112 = por %p110, %p111
      %s114 = sadd.s32 %s113, 1
      %p117 = scmp.eq.s32.totalorder %s27, 1
      %p118 = scmp.ne.s32.totalorder %s113, %s115
      %p119 = scmp.eq.s32.totalorder %s27, 0
      %p120 = por %p118, %p119
      %p121 = scmp.ne.s32.totalorder %s113, %s115
      %p122 = scmp.eq.s32.totalorder %s32, 1
      %p123 = por %p121, %p122
      %p124 = scmp.ne.s32.totalorder %s115, %s116
      %p125 = scmp.eq.s32.totalorder %s32, 0
      %p126 = por %p124, %p125
      %p127 = scmp.ne.s32.totalorder %s115, %s116
      %p128 = scmp.eq.s32.totalorder %s33, 1
      %p129 = por %p127, %p128
      %p131 = scmp.ne.s32.totalorder %s116, %s130
      %p132 = scmp.eq.s32.totalorder %s33, 0
      %p133 = por %p131, %p132
      %s135 = sadd.s32 %s134, 1
      %p138 = scmp.eq.s32.totalorder %s27, 1
      %p139 = scmp.ne.s32.totalorder %s134, %s136
      %p140 = scmp.eq.s32.totalorder %s27, 0
      %p141 = por %p139, %p140
      %p142 = scmp.ne.s32.totalorder %s134, %s136
      %p143 = scmp.eq.s32.totalorder %s32, 1
      %p144 = por %p142, %p143
      %p145 = scmp.ne.s32.totalorder %s136, %s137
      %p146 = scmp.eq.s32.totalorder %s32, 0
      %p147 = por %p145, %p146
      %p148 = scmp.ne.s32.totalorder %s136, %s137
      %p149 = scmp.eq.s32.totalorder %s33, 1
      %p150 = por %p148, %p149
      %p152 = scmp.ne.s32.totalorder %s137, %s151
      %p153 = scmp.eq.s32.totalorder %s33, 0
      %p154 = por %p152, %p153
      %s156 = sadd.s32 %s155, 1
      %p159 = scmp.eq.s32.totalorder %s27, 1
      %p160 = scmp.ne.s32.totalorder %s155, %s157
      %p161 = scmp.eq.s32.totalorder %s27, 0
      %p162 = por %p160, %p161
      %p163 = scmp.ne.s32.totalorder %s155, %s157
      %p164 = scmp.eq.s32.totalorder %s32, 1
      %p165 = por %p163, %p164
      %p166 = scmp.ne.s32.totalorder %s157, %s158
      %p167 = scmp.eq.s32.totalorder %s32, 0
      %p168 = por %p166, %p167
      %p169 = scmp.ne.s32.totalorder %s157, %s158
      %p170 = scmp.eq.s32.totalorder %s33, 1
      %p171 = por %p169, %p170
      %p173 = scmp.ne.s32.totalorder %s158, %s172
      %p174 = scmp.eq.s32.totalorder %s33, 0
      %p175 = por %p173, %p174
      %s177 = sadd.s32 %s176, 1
      %p180 = scmp.eq.s32.totalorder %s27, 1
      %p181 = scmp.ne.s32.totalorder %s176, %s178
      %p182 = scmp.eq.s32.totalorder %s27, 0
      %p183 = por %p181, %p182
      %p184 = scmp.ne.s32.totalorder %s176, %s178
      %p185 = scmp.eq.s32.totalorder %s32, 1
      %p186 = por %p184, %p185
      %p187 = scmp.ne.s32.totalorder %s178, %s179
      %p188 = scmp.eq.s32.totalorder %s32, 0
      %p189 = por %p187, %p188
      %p190 = scmp.ne.s32.totalorder %s178, %s179
      %p191 = scmp.eq.s32.totalorder %s33, 1
      %p192 = por %p190, %p191
      %p194 = scmp.ne.s32.totalorder %s179, %s193
      %p195 = scmp.eq.s32.totalorder %s33, 0
      %p196 = por %p194, %p195
      %s198 = sadd.s32 %s197, 1
      %p201 = scmp.eq.s32.totalorder %s27, 1
      %p202 = scmp.ne.s32.totalorder %s197, %s199
      %p203 = scmp.eq.s32.totalorder %s27, 0
      %p204 = por %p202, %p203
      %p205 = scmp.ne.s32.totalorder %s197, %s199
      %p206 = scmp.eq.s32.totalorder %s32, 1
      %p207 = por %p205, %p206
      %p208 = scmp.ne.s32.totalorder %s199, %s200
      %p209 = scmp.eq.s32.totalorder %s32, 0
      %p210 = por %p208, %p209
      %p211 = scmp.ne.s32.totalorder %s199, %s200
      %p212 = scmp.eq.s32.totalorder %s33, 1
      %p213 = por %p211, %p212
      %p215 = scmp.ne.s32.totalorder %s200, %s214
      %p216 = scmp.eq.s32.totalorder %s33, 0
      %p217 = por %p215, %p216
      %s219 = sadd.s32 %s218, 1
      %p222 = scmp.eq.s32.totalorder %s27, 1
      %p223 = scmp.ne.s32.totalorder %s218, %s220
      %p224 = scmp.eq.s32.totalorder %s27, 0
      %p225 = por %p223, %p224
      %p226 = scmp.ne.s32.totalorder %s218, %s220
      %p227 = scmp.eq.s32.totalorder %s32, 1
      %p228 = por %p226, %p227
      %p229 = scmp.ne.s32.totalorder %s220, %s221
      %p230 = scmp.eq.s32.totalorder %s32, 0
      %p231 = por %p229, %p230
      %p232 = scmp.ne.s32.totalorder %s220, %s221
      %p233 = scmp.eq.s32.totalorder %s33, 1
      %p234 = por %p232, %p233
      %p236 = scmp.ne.s32.totalorder %s221, %s235
      %p237 = scmp.eq.s32.totalorder %s33, 0
      %p238 = por %p236, %p237
      %s240 = sadd.s32 %s239, 1
      %p243 = scmp.eq.s32.totalorder %s27, 1
      %p244 = scmp.ne.s32.totalorder %s239, %s241
      %p245 = scmp.eq.s32.totalorder %s27, 0
      %p246 = por %p244, %p245
      %p247 = scmp.ne.s32.totalorder %s239, %s241
      %p248 = scmp.eq.s32.totalorder %s32, 1
      %p249 = por %p247, %p248
      %p250 = scmp.ne.s32.totalorder %s241, %s242
      %p251 = scmp.eq.s32.totalorder %s32, 0
      %p252 = por %p250, %p251
      %p253 = scmp.ne.s32.totalorder %s241, %s242
      %p254 = scmp.eq.s32.totalorder %s33, 1
      %p255 = por %p253, %p254
      %p257 = scmp.ne.s32.totalorder %s242, %s256
      %p258 = scmp.eq.s32.totalorder %s33, 0
      %p259 = por %p257, %p258
      %s261 = sadd.s32 %s260, 1
      %p264 = scmp.eq.s32.totalorder %s27, 1
      %p265 = scmp.ne.s32.totalorder %s260, %s262
      %p266 = scmp.eq.s32.totalorder %s27, 0
      %p267 = por %p265, %p266
      %p268 = scmp.ne.s32.totalorder %s260, %s262
      %p269 = scmp.eq.s32.totalorder %s32, 1
      %p270 = por %p268, %p269
      %p271 = scmp.ne.s32.totalorder %s262, %s263
      %p272 = scmp.eq.s32.totalorder %s32, 0
      %p273 = por %p271, %p272
      %p274 = scmp.ne.s32.totalorder %s262, %s263
      %p275 = scmp.eq.s32.totalorder %s33, 1
      %p276 = por %p274, %p275
      %p278 = scmp.ne.s32.totalorder %s263, %s277
      %p279 = scmp.eq.s32.totalorder %s33, 0
      %p280 = por %p278, %p279
      %s282 = sadd.s32 %s281, 1
      %p285 = scmp.eq.s32.totalorder %s27, 1
      %p286 = scmp.ne.s32.totalorder %s281, %s283
      %p287 = scmp.eq.s32.totalorder %s27, 0
      %p288 = por %p286, %p287
      %p289 = scmp.ne.s32.totalorder %s281, %s283
      %p290 = scmp.eq.s32.totalorder %s32, 1
      %p291 = por %p289, %p290
      %p292 = scmp.ne.s32.totalorder %s283, %s284
      %p293 = scmp.eq.s32.totalorder %s32, 0
      %p294 = por %p292, %p293
      %p295 = scmp.ne.s32.totalorder %s283, %s284
      %p296 = scmp.eq.s32.totalorder %s33, 1
      %p297 = por %p295, %p296
      %p299 = scmp.ne.s32.totalorder %s284, %s298
      %p300 = scmp.eq.s32.totalorder %s33, 0
      %p301 = por %p299, %p300
      %s303 = sadd.s32 %s302, 1
      %p306 = scmp.eq.s32.totalorder %s27, 1
      %p307 = scmp.ne.s32.totalorder %s302, %s304
      %p308 = scmp.eq.s32.totalorder %s27, 0
      %p309 = por %p307, %p308
      %p310 = scmp.ne.s32.totalorder %s302, %s304
      %p311 = scmp.eq.s32.totalorder %s32, 1
      %p312 = por %p310, %p311
      %p313 = scmp.ne.s32.totalorder %s304, %s305
      %p314 = scmp.eq.s32.totalorder %s32, 0
      %p315 = por %p313, %p314
      %p316 = scmp.ne.s32.totalorder %s304, %s305
      %p317 = scmp.eq.s32.totalorder %s33, 1
      %p318 = por %p316, %p317
      %p320 = scmp.ne.s32.totalorder %s305, %s319
      %p321 = scmp.eq.s32.totalorder %s33, 0
      %p322 = por %p320, %p321
      %s324 = sadd.s32 %s323, 1
      %p327 = scmp.eq.s32.totalorder %s27, 1
      %p328 = scmp.ne.s32.totalorder %s323, %s325
      %p329 = scmp.eq.s32.totalorder %s27, 0
      %p330 = por %p328, %p329
      %p331 = scmp.ne.s32.totalorder %s323, %s325
      %p332 = scmp.eq.s32.totalorder %s32, 1
      %p333 = por %p331, %p332
      %p334 = scmp.ne.s32.totalorder %s325, %s326
      %p335 = scmp.eq.s32.totalorder %s32, 0
      %p336 = por %p334, %p335
      %p337 = scmp.ne.s32.totalorder %s325, %s326
      %p338 = scmp.eq.s32.totalorder %s33, 1
      %p339 = por %p337, %p338
      %p341 = scmp.ne.s32.totalorder %s326, %s340
      %p342 = scmp.eq.s32.totalorder %s33, 0
      %p343 = por %p341, %p342
      %s345 = sadd.s32 %s344, 1
      %p348 = scmp.eq.s32.totalorder %s27, 1
      %p349 = scmp.ne.s32.totalorder %s344, %s346
      %p350 = scmp.eq.s32.totalorder %s27, 0
      %p351 = por %p349, %p350
      %p352 = scmp.ne.s32.totalorder %s344, %s346
      %p353 = scmp.eq.s32.totalorder %s32, 1
      %p354 = por %p352, %p353
      %p355 = scmp.ne.s32.totalorder %s346, %s347
      %p356 = scmp.eq.s32.totalorder %s32, 0
      %p357 = por %p355, %p356
      %p358 = scmp.ne.s32.totalorder %s346, %s347
      %p359 = scmp.eq.s32.totalorder %s33, 1
      %p360 = por %p358, %p359
      %p362 = scmp.ne.s32.totalorder %s347, %s361
      %p363 = scmp.eq.s32.totalorder %s33, 0
      %p364 = por %p362, %p363
      %s366 = sadd.s32 %s365, 1
      %p369 = scmp.eq.s32.totalorder %s27, 1
      %p370 = scmp.ne.s32.totalorder %s365, %s367
      %p371 = scmp.eq.s32.totalorder %s27, 0
      %p372 = por %p370, %p371
      %p373 = scmp.ne.s32.totalorder %s365, %s367
      %p374 = scmp.eq.s32.totalorder %s32, 1
      %p375 = por %p373, %p374
      %p376 = scmp.ne.s32.totalorder %s367, %s368
      %p377 = scmp.eq.s32.totalorder %s32, 0
      %p378 = por %p376, %p377
      %p379 = scmp.ne.s32.totalorder %s367, %s368
      %p380 = scmp.eq.s32.totalorder %s33, 1
      %p381 = por %p379, %p380
      %p383 = scmp.ne.s32.totalorder %s368, %s382
      %p384 = scmp.eq.s32.totalorder %s33, 0
      %p385 = por %p383, %p384
      %s387 = sadd.s32 %s386, 1
      %p390 = scmp.eq.s32.totalorder %s27, 1
      %p391 = scmp.ne.s32.totalorder %s386, %s388
      %p392 = scmp.eq.s32.totalorder %s27, 0
      %p393 = por %p391, %p392
      %p394 = scmp.ne.s32.totalorder %s386, %s388
      %p395 = scmp.eq.s32.totalorder %s32, 1
      %p396 = por %p394, %p395
      %p397 = scmp.ne.s32.totalorder %s388, %s389
      %p398 = scmp.eq.s32.totalorder %s32, 0
      %p399 = por %p397, %p398
      %p400 = scmp.ne.s32.totalorder %s388, %s389
      %p401 = scmp.eq.s32.totalorder %s33, 1
      %p402 = por %p400, %p401
      %p404 = scmp.ne.s32.totalorder %s389, %s403
      %p405 = scmp.eq.s32.totalorder %s33, 0
      %p406 = por %p404, %p405
      %s408 = sadd.s32 %s407, 1
      %p411 = scmp.eq.s32.totalorder %s27, 1
      %p412 = scmp.ne.s32.totalorder %s407, %s409
      %p413 = scmp.eq.s32.totalorder %s27, 0
      %p414 = por %p412, %p413
      %p415 = scmp.ne.s32.totalorder %s407, %s409
      %p416 = scmp.eq.s32.totalorder %s32, 1
      %p417 = por %p415, %p416
      %p418 = scmp.ne.s32.totalorder %s409, %s410
      %p419 = scmp.eq.s32.totalorder %s32, 0
      %p420 = por %p418, %p419
      %p421 = scmp.ne.s32.totalorder %s409, %s410
      %p422 = scmp.eq.s32.totalorder %s33, 1
      %p423 = por %p421, %p422
      %p425 = scmp.ne.s32.totalorder %s410, %s424
      %p426 = scmp.eq.s32.totalorder %s33, 0
      %p427 = por %p425, %p426
      %s429 = sadd.s32 %s428, 1
      %p432 = scmp.eq.s32.totalorder %s27, 1
      %p433 = scmp.ne.s32.totalorder %s428, %s430
      %p434 = scmp.eq.s32.totalorder %s27, 0
      %p435 = por %p433, %p434
      %p436 = scmp.ne.s32.totalorder %s428, %s430
      %p437 = scmp.eq.s32.totalorder %s32, 1
      %p438 = por %p436, %p437
      %p439 = scmp.ne.s32.totalorder %s430, %s431
      %p440 = scmp.eq.s32.totalorder %s32, 0
      %p441 = por %p439, %p440
      %p442 = scmp.ne.s32.totalorder %s430, %s431
      %p443 = scmp.eq.s32.totalorder %s33, 1
      %p444 = por %p442, %p443
      %p446 = scmp.ne.s32.totalorder %s431, %s445
      %p447 = scmp.eq.s32.totalorder %s33, 0
      %p448 = por %p446, %p447
      %s449 = ssub.s32 %s27, %s34
      %p450 = scmp.eq.s32.totalorder %s449, 0
      %s452 = sadd.s32 %s451, 1
      %s453 = scalar_select %p450, %s451, %s452
      %p456 = pneg %p450
      %p457 = scmp.eq.s32.totalorder %s27, 1
      %p458 = por %p456, %p457
      %p459 = scmp.ne.s32.totalorder %s451, %s454
      %p460 = scmp.eq.s32.totalorder %s27, 0
      %p461 = por %p459, %p460
      %p462 = scmp.ne.s32.totalorder %s451, %s454
      %p463 = scmp.eq.s32.totalorder %s32, 1
      %p464 = por %p462, %p463
      %p465 = scmp.ne.s32.totalorder %s454, %s455
      %p466 = scmp.eq.s32.totalorder %s32, 0
      %p467 = por %p465, %p466
      %p468 = scmp.ne.s32.totalorder %s454, %s455
      %p469 = scmp.eq.s32.totalorder %s33, 1
      %p470 = por %p468, %p469
      %p472 = scmp.ne.s32.totalorder %s455, %s471
      %p473 = scmp.eq.s32.totalorder %s33, 0
      %p474 = por %p472, %p473
      %p475 = scmp.le.s32.totalorder 1, %s27
      %p476 = scmp.lt.s32.totalorder %s27, 3
      %p477 = pnand %p475, %p476
      %p478 = pneg %p477
      // Predicated region
      $region9: #{full_cross_attention_encoder_fwd.7} parent=5 // pred_check
        _
      $region10: #{full_cross_attention_encoder_fwd.7} parent=5 // pred_check_branch
        %480 = sbr.rel (%p477) target = $region12
      $region11: #{full_cross_attention_encoder_fwd.7} parent=5 // pred_region
        %s481 = ssub.s32 %s27, 1
        // Predicated region
        $region13: #{full_cross_attention_encoder_fwd.7} parent=11 // pred_check
          %p482 = pneg %p126
        $region14: #{full_cross_attention_encoder_fwd.7} parent=11 // pred_check_branch
          %484 = sbr.rel (%p482) target = $region16
        $region15: #{full_cross_attention_encoder_fwd.7} parent=11 // pred_region
          _
        $region16: #{full_cross_attention_encoder_fwd.7} parent=11 // pred_fallthru
          _
        // Predicated region
        $region17: #{full_cross_attention_encoder_fwd.7} parent=11 // pred_check
          %p485 = pneg %p147
        $region18: #{full_cross_attention_encoder_fwd.7} parent=11 // pred_check_branch
          %487 = sbr.rel (%p485) target = $region20
        $region19: #{full_cross_attention_encoder_fwd.7} parent=11 // pred_region
          _
        $region20: #{full_cross_attention_encoder_fwd.7} parent=11 // pred_fallthru
          _
        // Predicated region
        $region21: #{full_cross_attention_encoder_fwd.7} parent=11 // pred_check
          %p488 = pneg %p168
        $region22: #{full_cross_attention_encoder_fwd.7} parent=11 // pred_check_branch
          %490 = sbr.rel (%p488) target = $region24
        $region23: #{full_cross_attention_encoder_fwd.7} parent=11 // pred_region
          _
        $region24: #{full_cross_attention_encoder_fwd.7} parent=11 // pred_fallthru
          _
        // Predicated region
        $region25: #{full_cross_attention_encoder_fwd.7} parent=11 // pred_check
          %p491 = pneg %p189
        $region26: #{full_cross_attention_encoder_fwd.7} parent=11 // pred_check_branch
          %493 = sbr.rel (%p491) target = $region28
        $region27: #{full_cross_attention_encoder_fwd.7} parent=11 // pred_region
          _
        $region28: #{full_cross_attention_encoder_fwd.7} parent=11 // pred_fallthru
          _
        // Predicated region
        $region29: #{full_cross_attention_encoder_fwd.7} parent=11 // pred_check
          %p494 = pneg %p210
        $region30: #{full_cross_attention_encoder_fwd.7} parent=11 // pred_check_branch
          %496 = sbr.rel (%p494) target = $region32
        $region31: #{full_cross_attention_encoder_fwd.7} parent=11 // pred_region
          _
        $region32: #{full_cross_attention_encoder_fwd.7} parent=11 // pred_fallthru
          _
        // Predicated region
        $region33: #{full_cross_attention_encoder_fwd.7} parent=11 // pred_check
          %p497 = pneg %p231
        $region34: #{full_cross_attention_encoder_fwd.7} parent=11 // pred_check_branch
          %499 = sbr.rel (%p497) target = $region36
        $region35: #{full_cross_attention_encoder_fwd.7} parent=11 // pred_region
          _
        $region36: #{full_cross_attention_encoder_fwd.7} parent=11 // pred_fallthru
          _
        // Predicated region
        $region37: #{full_cross_attention_encoder_fwd.7} parent=11 // pred_check
          %p500 = pneg %p252
        $region38: #{full_cross_attention_encoder_fwd.7} parent=11 // pred_check_branch
          %502 = sbr.rel (%p500) target = $region40
        $region39: #{full_cross_attention_encoder_fwd.7} parent=11 // pred_region
          %s504 = ssub.s32 1024, 1024
          %505 = vsyncadd [#allocation3], %s504
          %s506 = sshll.u32 [#allocation2], 4
          %s507 = int_to_ptr.vmem [resolvable:$true] %s506
          %512 = dma.hbm_to_vmem [thread:$0]  %s9, 1024, %s507, [#allocation3], 64, 64, 4
        $region40: #{full_cross_attention_encoder_fwd.7} parent=11 // pred_fallthru
          _
        // Predicated region
        $region41: #{full_cross_attention_encoder_fwd.7} parent=11 // pred_check
          %p513 = pneg %p273
        $region42: #{full_cross_attention_encoder_fwd.7} parent=11 // pred_check_branch
          %515 = sbr.rel (%p513) target = $region44
        $region43: #{full_cross_attention_encoder_fwd.7} parent=11 // pred_region
          _
        $region44: #{full_cross_attention_encoder_fwd.7} parent=11 // pred_fallthru
          _
        // Predicated region
        $region45: #{full_cross_attention_encoder_fwd.7} parent=11 // pred_check
          %p516 = pneg %p294
        $region46: #{full_cross_attention_encoder_fwd.7} parent=11 // pred_check_branch
          %518 = sbr.rel (%p516) target = $region48
        $region47: #{full_cross_attention_encoder_fwd.7} parent=11 // pred_region
          _
        $region48: #{full_cross_attention_encoder_fwd.7} parent=11 // pred_fallthru
          _
        // Predicated region
        $region49: #{full_cross_attention_encoder_fwd.7} parent=11 // pred_check
          %p519 = pneg %p315
        $region50: #{full_cross_attention_encoder_fwd.7} parent=11 // pred_check_branch
          %521 = sbr.rel (%p519) target = $region52
        $region51: #{full_cross_attention_encoder_fwd.7} parent=11 // pred_region
          _
        $region52: #{full_cross_attention_encoder_fwd.7} parent=11 // pred_fallthru
          _
        // Predicated region
        $region53: #{full_cross_attention_encoder_fwd.7} parent=11 // pred_check
          %p522 = pneg %p336
        $region54: #{full_cross_attention_encoder_fwd.7} parent=11 // pred_check_branch
          %524 = sbr.rel (%p522) target = $region56
        $region55: #{full_cross_attention_encoder_fwd.7} parent=11 // pred_region
          %s526 = ssub.s32 1024, 1024
          %527 = vsyncadd [#allocation5], %s526
          %s528 = sshll.u32 [#allocation4], 4
          %s529 = int_to_ptr.vmem [resolvable:$true] %s528
          %534 = dma.hbm_to_vmem [thread:$0]  %s13, 1024, %s529, [#allocation5], 64, 64, 4
        $region56: #{full_cross_attention_encoder_fwd.7} parent=11 // pred_fallthru
          _
        // Predicated region
        $region57: #{full_cross_attention_encoder_fwd.7} parent=11 // pred_check
          %p535 = pneg %p357
        $region58: #{full_cross_attention_encoder_fwd.7} parent=11 // pred_check_branch
          %537 = sbr.rel (%p535) target = $region60
        $region59: #{full_cross_attention_encoder_fwd.7} parent=11 // pred_region
          _
        $region60: #{full_cross_attention_encoder_fwd.7} parent=11 // pred_fallthru
          _
        // Predicated region
        $region61: #{full_cross_attention_encoder_fwd.7} parent=11 // pred_check
          %p538 = pneg %p378
        $region62: #{full_cross_attention_encoder_fwd.7} parent=11 // pred_check_branch
          %540 = sbr.rel (%p538) target = $region64
        $region63: #{full_cross_attention_encoder_fwd.7} parent=11 // pred_region
          _
        $region64: #{full_cross_attention_encoder_fwd.7} parent=11 // pred_fallthru
          _
        // Predicated region
        $region65: #{full_cross_attention_encoder_fwd.7} parent=11 // pred_check
          %p541 = pneg %p399
        $region66: #{full_cross_attention_encoder_fwd.7} parent=11 // pred_check_branch
          %543 = sbr.rel (%p541) target = $region68
        $region67: #{full_cross_attention_encoder_fwd.7} parent=11 // pred_region
          _
        $region68: #{full_cross_attention_encoder_fwd.7} parent=11 // pred_fallthru
          _
        // Predicated region
        $region69: #{full_cross_attention_encoder_fwd.7} parent=11 // pred_check
          %p544 = pneg %p420
        $region70: #{full_cross_attention_encoder_fwd.7} parent=11 // pred_check_branch
          %546 = sbr.rel (%p544) target = $region72
        $region71: #{full_cross_attention_encoder_fwd.7} parent=11 // pred_region
          %s548 = ssub.s32 2048, 2048
          %549 = vsyncadd [#allocation5], %s548
          %s550 = sshll.u32 [#allocation6], 4
          %s551 = int_to_ptr.vmem [resolvable:$true] %s550
          %556 = dma.hbm_to_vmem [thread:$0]  %s17, 2048, %s551, [#allocation5], 64, 64, 4
        $region72: #{full_cross_attention_encoder_fwd.7} parent=11 // pred_fallthru
          _
        // Predicated region
        $region73: #{full_cross_attention_encoder_fwd.7} parent=11 // pred_check
          %p557 = pneg %p441
        $region74: #{full_cross_attention_encoder_fwd.7} parent=11 // pred_check_branch
          %559 = sbr.rel (%p557) target = $region76
        $region75: #{full_cross_attention_encoder_fwd.7} parent=11 // pred_region
          _
        $region76: #{full_cross_attention_encoder_fwd.7} parent=11 // pred_fallthru
          _
      $region12: #{full_cross_attention_encoder_fwd.7} parent=5 // pred_fallthru
        _
      %p560 = scmp.lt.s32.totalorder %s27, 2
      // Predicated region
      $region77: #{full_cross_attention_encoder_fwd.7} parent=5 // pred_check
        %p561 = pneg %p560
      $region78: #{full_cross_attention_encoder_fwd.7} parent=5 // pred_check_branch
        %563 = sbr.rel (%p561) target = $region80
      $region79: #{full_cross_attention_encoder_fwd.7} parent=5 // pred_region
        // Predicated region
        $region81: #{full_cross_attention_encoder_fwd.7} parent=79 // pred_check
          %p564 = pneg %p47
        $region82: #{full_cross_attention_encoder_fwd.7} parent=79 // pred_check_branch
          %566 = sbr.rel (%p564) target = $region84
        $region83: #{full_cross_attention_encoder_fwd.7} parent=79 // pred_region
          %p567 = scmp.lt.s32.totalorder %s27, 1
          %s568 = scalar_select %p567, %s27, 1
          %s569 = smul.addr %s568, 8
          %s570 = scalar_lea.vmem %s0, %s569
        $region84: #{full_cross_attention_encoder_fwd.7} parent=79 // pred_fallthru
          _
        // Predicated region
        $region85: #{full_cross_attention_encoder_fwd.7} parent=79 // pred_check
          %p571 = pneg %p73
        $region86: #{full_cross_attention_encoder_fwd.7} parent=79 // pred_check_branch
          %573 = sbr.rel (%p571) target = $region88
        $region87: #{full_cross_attention_encoder_fwd.7} parent=79 // pred_region
          %p574 = scmp.lt.s32.totalorder %s27, 1
          %s575 = scalar_select %p574, %s27, 1
          %s576 = smul.addr %s575, 2
          %s577 = smul.addr %s576, 8
          %s578 = scalar_lea.vmem %s1, %s577
        $region88: #{full_cross_attention_encoder_fwd.7} parent=79 // pred_fallthru
          _
        // Predicated region
        $region89: #{full_cross_attention_encoder_fwd.7} parent=79 // pred_check
          %p579 = pneg %p99
        $region90: #{full_cross_attention_encoder_fwd.7} parent=79 // pred_check_branch
          %581 = sbr.rel (%p579) target = $region92
        $region91: #{full_cross_attention_encoder_fwd.7} parent=79 // pred_region
          %p582 = scmp.lt.s32.totalorder %s27, 1
          %s583 = scalar_select %p582, %s27, 1
          %s584 = scalar_lea.vmem %s2, %s583
        $region92: #{full_cross_attention_encoder_fwd.7} parent=79 // pred_fallthru
          _
      $region80: #{full_cross_attention_encoder_fwd.7} parent=5 // pred_fallthru
        _
      %p585 = scmp.le.s32.totalorder 1, %s27
      %p586 = scmp.lt.s32.totalorder %s27, 3
      %p587 = pnand %p585, %p586
      %p588 = pneg %p587
      // Predicated region
      $region93: #{full_cross_attention_encoder_fwd.7} parent=5 // pred_check
        _
      $region94: #{full_cross_attention_encoder_fwd.7} parent=5 // pred_check_branch
        %590 = sbr.rel (%p587) target = $region96
      $region95: #{full_cross_attention_encoder_fwd.7} parent=5 // pred_region
        %s591 = ssub.s32 %s27, 1
        // Predicated region
        $region97: #{full_cross_attention_encoder_fwd.7} parent=95 // pred_check
          %p592 = pneg %p252
        $region98: #{full_cross_attention_encoder_fwd.7} parent=95 // pred_check_branch
          %594 = sbr.rel (%p592) target = $region100
        $region99: #{full_cross_attention_encoder_fwd.7} parent=95 // pred_region
          %595 = dma.done [#allocation3], 1024
        $region100: #{full_cross_attention_encoder_fwd.7} parent=95 // pred_fallthru
          _
        // Predicated region
        $region101: #{full_cross_attention_encoder_fwd.7} parent=95 // pred_check
          %p596 = pneg %p336
        $region102: #{full_cross_attention_encoder_fwd.7} parent=95 // pred_check_branch
          %598 = sbr.rel (%p596) target = $region104
        $region103: #{full_cross_attention_encoder_fwd.7} parent=95 // pred_region
          %599 = dma.done [#allocation5], 1024
        $region104: #{full_cross_attention_encoder_fwd.7} parent=95 // pred_fallthru
          _
        // Predicated region
        $region105: #{full_cross_attention_encoder_fwd.7} parent=95 // pred_check
          %p600 = pneg %p420
        $region106: #{full_cross_attention_encoder_fwd.7} parent=95 // pred_check_branch
          %602 = sbr.rel (%p600) target = $region108
        $region107: #{full_cross_attention_encoder_fwd.7} parent=95 // pred_region
          %603 = dma.done [#allocation5], 2048
        $region108: #{full_cross_attention_encoder_fwd.7} parent=95 // pred_fallthru
          _
        %p604 = scmp.lt.s32.totalorder %s32, 1
        %s605 = scalar_select %p604, %s32, 1
        %s606 = smul.addr %s605, 8
        %s607 = scalar_lea.vmem %s0, %s606
        %p608 = pneg %p53
        %p609 = pneg %p50
        %p610 = scmp.lt.s32.totalorder %s32, 1
        %s611 = scalar_select %p610, %s32, 1
        %s612 = smul.addr %s611, 2
        %s613 = smul.addr %s612, 8
        %s614 = scalar_lea.vmem %s1, %s613
        %p615 = pneg %p79
        %p616 = pneg %p76
        %p617 = scmp.lt.s32.totalorder %s32, 1
        %s618 = scalar_select %p617, %s32, 1
        %s619 = scalar_lea.vmem %s2, %s618
        %p620 = pneg %p105
        %p621 = pneg %p102
        %p622 = pneg %p126
        %p623 = pneg %p123
        %p624 = pneg %p147
        %p625 = pneg %p144
        %p626 = pneg %p168
        %p627 = pneg %p165
        %p628 = pneg %p189
        %p629 = pneg %p186
        %p630 = pneg %p210
        %p631 = pneg %p207
        %p632 = pneg %p231
        %p633 = pneg %p228
        %p634 = pneg %p252
        %p635 = pneg %p249
        %p636 = pneg %p273
        %p637 = pneg %p270
        %p638 = pneg %p294
        %p639 = pneg %p291
        %p640 = pneg %p315
        %p641 = pneg %p312
        %p642 = pneg %p336
        %p643 = pneg %p333
        %p644 = pneg %p357
        %p645 = pneg %p354
        %p646 = pneg %p378
        %p647 = pneg %p375
        %p648 = pneg %p399
        %p649 = pneg %p396
        %p650 = pneg %p420
        %p651 = pneg %p417
        %p652 = pneg %p441
        %p653 = pneg %p438
        %p654 = pneg %p467
        %p655 = pneg %p464
        %p656 = scmp.lt.s32.totalorder %s32, 1
        %s657 = scalar_select %p656, %s32, 1
        %s658 = smul.addr %s657, 8
        %s659 = scalar_lea.vmem %s19, %s658
        %p660 = scmp.lt.s32.totalorder %s32, 1
        %s661 = scalar_select %p660, %s32, 1
        %s662 = smul.addr %s661, 8
        %s663 = scalar_lea.vmem %s0, %s662
        %p664 = scmp.lt.s32.totalorder %s32, 1
        %s665 = scalar_select %p664, %s32, 1
        %s666 = smul.addr %s665, 2
        %s667 = smul.addr %s666, 8
        %s668 = scalar_lea.vmem %s1, %s667
        %p669 = scmp.lt.s32.totalorder %s32, 1
        %s670 = scalar_select %p669, %s32, 1
        %s671 = scalar_lea.vmem %s2, %s670
        %p672 = scmp.lt.s32.totalorder %s32, 1
        %s673 = scalar_select %p672, %s32, 1
        %s674 = smul.addr %s673, 8
        %s675 = scalar_lea.vmem %s19, %s674
        %v677 = vld [vmem:[%s663] sm:$0xff]
        %v678 = vld [vmem:[%s668] sm:$0xff]
        %v679 = vld [vmem:[%s668 + $0x8] sm:$0xff]
        %v680 = vld [vmem:[%s671] sm:$0x1]
        %v681 = vld [vmem:[%s5] sm:$0x1]
        %v682 = vld [vmem:[%s6] sm:$0x1]
        %683 = vadd.xlane.f32.xlu0 %v677
        %v684 = vpop.xlane.xlu0 %683
        %v685 = vrcp.pop 128.0
        %v686 = vmul.f32 %v684, %v685
        %v687 = vsub.f32 %v677, %v686
        %v688 = vmul.f32 %v687, %v687
        %689 = vadd.xlane.f32.xlu0 %v688
        %v690 = vpop.xlane.xlu0 %689
        %v691 = vmul.f32 %v690, %v685
        %v692 = vadd.f32 %v691, 1e-05
        %v693 = vrsqrt.pop %v692
        %v694 = vmul.f32 %v687, %v693
        %v696 = vlaneseq
        %v697 = vshrl.u32 %v696, 7
        %v698 = vsub.s32 0, %v697
        %v699 = vrot.slane %v681, %v698
        %v701 = vmul.f32 %v694, %v699
        %v703 = vlaneseq
        %v704 = vshrl.u32 %v703, 7
        %v705 = vsub.s32 0, %v704
        %v706 = vrot.slane %v682, %v705
        %v708 = vadd.f32 %v701, %v706
        %v709 = vld [vmem:[#allocation2] sm:$0xf]
        %v710 = vld [vmem:[#allocation2 + $0x4] sm:$0xf]
        %v711 = vld [vmem:[#allocation2 + $0x8] sm:$0xf]
        %v712 = vld [vmem:[#allocation2 + $0xc] sm:$0xf]
        %v713 = vld [vmem:[#allocation2 + $0x10] sm:$0xf]
        %v714 = vld [vmem:[#allocation2 + $0x14] sm:$0xf]
        %v715 = vld [vmem:[#allocation2 + $0x18] sm:$0xf]
        %v716 = vld [vmem:[#allocation2 + $0x1c] sm:$0xf]
        %v717 = vld [vmem:[#allocation2 + $0x20] sm:$0xf]
        %v718 = vld [vmem:[#allocation2 + $0x24] sm:$0xf]
        %v719 = vld [vmem:[#allocation2 + $0x28] sm:$0xf]
        %v720 = vld [vmem:[#allocation2 + $0x2c] sm:$0xf]
        %v721 = vld [vmem:[#allocation2 + $0x30] sm:$0xf]
        %v722 = vld [vmem:[#allocation2 + $0x34] sm:$0xf]
        %v723 = vld [vmem:[#allocation2 + $0x38] sm:$0xf]
        %v724 = vld [vmem:[#allocation2 + $0x3c] sm:$0xf]
        %v725 = vpack.c.bf16 %v708, %v708
        %v726 = vld [vmem:[%s10] sm:$0x1]
        %v728 = vlaneseq
        %v729 = vshrl.u32 %v728, 7
        %v730 = vsub.s32 0, %v729
        %v731 = vrot.slane %v726, %v730
        %v749 = vunpack.c.l.b16 %v709
        %v750 = vunpack.c.l.b16 %v710
        %v751 = vunpack.c.l.b16 %v711
        %v752 = vunpack.c.l.b16 %v712
        %v753 = vunpack.c.l.b16 %v713
        %v754 = vunpack.c.l.b16 %v714
        %v755 = vunpack.c.l.b16 %v715
        %v756 = vunpack.c.l.b16 %v716
        %v757 = vunpack.c.l.b16 %v717
        %v758 = vunpack.c.l.b16 %v718
        %v759 = vunpack.c.l.b16 %v719
        %v760 = vunpack.c.l.b16 %v720
        %v761 = vunpack.c.l.b16 %v721
        %v762 = vunpack.c.l.b16 %v722
        %v763 = vunpack.c.l.b16 %v723
        %v764 = vunpack.c.l.b16 %v724
        %v765 = vpack.c.b16 %v750, %v749
        %v766 = vpack.c.b16 %v752, %v751
        %v767 = vpack.c.b16 %v754, %v753
        %v768 = vpack.c.b16 %v756, %v755
        %v769 = vpack.c.b16 %v758, %v757
        %v770 = vpack.c.b16 %v760, %v759
        %v771 = vpack.c.b16 %v762, %v761
        %v772 = vpack.c.b16 %v764, %v763
        %781 = vmatprep.subr.bf16.mxu0 0
        %782 = vmatpush1.bf16.msra.mxu0 %v772
        %783 = vmatprep.subr.bf16.mxu0 0
        %784 = vmatpush1.bf16.msra.mxu0 %v771
        %785 = vmatprep.subr.bf16.mxu0 0
        %786 = vmatpush1.bf16.msra.mxu0 %v770
        %787 = vmatprep.subr.bf16.mxu0 0
        %788 = vmatpush1.bf16.msra.mxu0 %v769
        %789 = vmatprep.subr.bf16.mxu0 0
        %790 = vmatpush1.bf16.msra.mxu0 %v768
        %791 = vmatprep.subr.bf16.mxu0 0
        %792 = vmatpush1.bf16.msra.mxu0 %v767
        %793 = vmatprep.subr.bf16.mxu0 0
        %794 = vmatpush1.bf16.msra.mxu0 %v766
        %795 = vmatprep.subr.bf16.mxu0 0
        %796 = vmatpush1.bf16.msra.mxu0 %v765
        %797 = vmatprep.subr.bf16.mxu0 0
        %798 = vmatpush2.bf16.msra.mxu0 0
        %799 = vmatprep.subr.bf16.mxu0 0
        %800 = vmatpush2.bf16.msra.mxu0 0
        %801 = vmatprep.subr.bf16.mxu0 0
        %802 = vmatpush2.bf16.msra.mxu0 0
        %803 = vmatprep.subr.bf16.mxu0 0
        %804 = vmatpush2.bf16.msra.mxu0 0
        %805 = vmatprep.subr.bf16.mxu0 0
        %806 = vmatpush2.bf16.msra.mxu0 0
        %807 = vmatprep.subr.bf16.mxu0 0
        %808 = vmatpush2.bf16.msra.mxu0 0
        %809 = vmatprep.subr.bf16.mxu0 0
        %810 = vmatpush2.bf16.msra.mxu0 0
        %811 = vmatprep.subr.bf16.mxu0 0
        %812 = vmatpush2.bf16.msra.mxu0 0
        %813 = vmatprep.mubr.bf16.mxu0 0
        %814 = vmatmul.mubr.bf16.gmra.mxu0 %v725
        %v815 = vpop.f32.mrf.mxu0
        %v816 = vadd.f32 %v731, %v815
        %v817 = vpop.f32.mrf.mxu0
        %v818 = vpop.f32.mrf.mxu0
        %v819 = vpop.f32.mrf.mxu0
        %820 = vdwg.mxu0
        %v821 = vld [vmem:[%s3] sm:$0x1]
        %v822 = vld [vmem:[%s4] sm:$0x1]
        %823 = vadd.xlane.f32.xlu0 %v678
        %v824 = vpop.xlane.xlu0 %823
        %825 = vadd.xlane.f32.xlu0 %v679
        %v826 = vpop.xlane.xlu0 %825
        %v827 = vmul.f32 %v824, %v685
        %v828 = vmul.f32 %v826, %v685
        %v829 = vsub.f32 %v678, %v827
        %v830 = vsub.f32 %v679, %v828
        %v831 = vmul.f32 %v829, %v829
        %v832 = vmul.f32 %v830, %v830
        %833 = vadd.xlane.f32.xlu0 %v831
        %v834 = vpop.xlane.xlu0 %833
        %835 = vadd.xlane.f32.xlu0 %v832
        %v836 = vpop.xlane.xlu0 %835
        %v837 = vmul.f32 %v834, %v685
        %v838 = vmul.f32 %v836, %v685
        %v839 = vadd.f32 %v837, 1e-05
        %v840 = vadd.f32 %v838, 1e-05
        %v841 = vrsqrt.pop %v839
        %v842 = vrsqrt.pop %v840
        %v843 = vmul.f32 %v829, %v841
        %v844 = vmul.f32 %v830, %v842
        %v846 = vlaneseq
        %v847 = vshrl.u32 %v846, 7
        %v848 = vsub.s32 0, %v847
        %v849 = vrot.slane %v821, %v848
        %v851 = vmul.f32 %v843, %v849
        %v852 = vmul.f32 %v844, %v849
        %v854 = vlaneseq
        %v855 = vshrl.u32 %v854, 7
        %v856 = vsub.s32 0, %v855
        %v857 = vrot.slane %v822, %v856
        %v859 = vadd.f32 %v851, %v857
        %v860 = vadd.f32 %v852, %v857
        %v861 = vld [vmem:[%s11] sm:$0xff]
        %v862 = vld [vmem:[%s11 + $0x8] sm:$0xff]
        %v863 = vld [vmem:[%s11 + $0x10] sm:$0xff]
        %v864 = vld [vmem:[%s11 + $0x18] sm:$0xff]
        %v865 = vld [vmem:[%s11 + $0x20] sm:$0xff]
        %v866 = vld [vmem:[%s11 + $0x28] sm:$0xff]
        %v867 = vld [vmem:[%s11 + $0x30] sm:$0xff]
        %v868 = vld [vmem:[%s11 + $0x38] sm:$0xff]
        %v869 = vld [vmem:[%s11 + $0x40] sm:$0xff]
        %v870 = vld [vmem:[%s11 + $0x48] sm:$0xff]
        %v871 = vld [vmem:[%s11 + $0x50] sm:$0xff]
        %v872 = vld [vmem:[%s11 + $0x58] sm:$0xff]
        %v873 = vld [vmem:[%s11 + $0x60] sm:$0xff]
        %v874 = vld [vmem:[%s11 + $0x68] sm:$0xff]
        %v875 = vld [vmem:[%s11 + $0x70] sm:$0xff]
        %v876 = vld [vmem:[%s11 + $0x78] sm:$0xff]
        %v877 = vpack.c.bf16 %v860, %v859
        %v878 = vld [vmem:[%s12] sm:$0x3]
        %v880 = vlaneseq
        %v881 = vshrl.u32 %v880, 7
        %v882 = vsub.s32 0, %v881
        %v883 = vrot.slane %v878, %v882
        %v884 = vlaneseq
        %v885 = vshrl.u32 %v884, 7
        %v886 = vsub.s32 1, %v885
        %v887 = vrot.slane %v878, %v886
        %v906 = vunpack.c.l.b16 %v861
        %v907 = vunpack.c.h.b16 %v861
        %v908 = vunpack.c.l.b16 %v862
        %v909 = vunpack.c.h.b16 %v862
        %v910 = vunpack.c.l.b16 %v863
        %v911 = vunpack.c.h.b16 %v863
        %v912 = vunpack.c.l.b16 %v864
        %v913 = vunpack.c.h.b16 %v864
        %v914 = vunpack.c.l.b16 %v865
        %v915 = vunpack.c.h.b16 %v865
        %v916 = vunpack.c.l.b16 %v866
        %v917 = vunpack.c.h.b16 %v866
        %v918 = vunpack.c.l.b16 %v867
        %v919 = vunpack.c.h.b16 %v867
        %v920 = vunpack.c.l.b16 %v868
        %v921 = vunpack.c.h.b16 %v868
        %v922 = vunpack.c.l.b16 %v869
        %v923 = vunpack.c.h.b16 %v869
        %v924 = vunpack.c.l.b16 %v870
        %v925 = vunpack.c.h.b16 %v870
        %v926 = vunpack.c.l.b16 %v871
        %v927 = vunpack.c.h.b16 %v871
        %v928 = vunpack.c.l.b16 %v872
        %v929 = vunpack.c.h.b16 %v872
        %v930 = vunpack.c.l.b16 %v873
        %v931 = vunpack.c.h.b16 %v873
        %v932 = vunpack.c.l.b16 %v874
        %v933 = vunpack.c.h.b16 %v874
        %v934 = vunpack.c.l.b16 %v875
        %v935 = vunpack.c.h.b16 %v875
        %v936 = vunpack.c.l.b16 %v876
        %v937 = vunpack.c.h.b16 %v876
        %v938 = vpack.c.b16 %v908, %v906
        %v939 = vpack.c.b16 %v909, %v907
        %v940 = vpack.c.b16 %v912, %v910
        %v941 = vpack.c.b16 %v913, %v911
        %v942 = vpack.c.b16 %v916, %v914
        %v943 = vpack.c.b16 %v917, %v915
        %v944 = vpack.c.b16 %v920, %v918
        %v945 = vpack.c.b16 %v921, %v919
        %v946 = vpack.c.b16 %v924, %v922
        %v947 = vpack.c.b16 %v925, %v923
        %v948 = vpack.c.b16 %v928, %v926
        %v949 = vpack.c.b16 %v929, %v927
        %v950 = vpack.c.b16 %v932, %v930
        %v951 = vpack.c.b16 %v933, %v931
        %v952 = vpack.c.b16 %v936, %v934
        %v953 = vpack.c.b16 %v937, %v935
        %970 = vmatprep.subr.bf16.mxu0 %v953
        %971 = vmatpush1.bf16.msra.mxu0 %v952
        %972 = vmatprep.subr.bf16.mxu0 %v951
        %973 = vmatpush1.bf16.msra.mxu0 %v950
        %974 = vmatprep.subr.bf16.mxu0 %v949
        %975 = vmatpush1.bf16.msra.mxu0 %v948
        %976 = vmatprep.subr.bf16.mxu0 %v947
        %977 = vmatpush1.bf16.msra.mxu0 %v946
        %978 = vmatprep.subr.bf16.mxu0 %v945
        %979 = vmatpush1.bf16.msra.mxu0 %v944
        %980 = vmatprep.subr.bf16.mxu0 %v943
        %981 = vmatpush1.bf16.msra.mxu0 %v942
        %982 = vmatprep.subr.bf16.mxu0 %v941
        %983 = vmatpush1.bf16.msra.mxu0 %v940
        %984 = vmatprep.subr.bf16.mxu0 %v939
        %985 = vmatpush1.bf16.msra.mxu0 %v938
        %986 = vmatprep.subr.bf16.mxu0 0
        %987 = vmatpush2.bf16.msra.mxu0 0
        %988 = vmatprep.subr.bf16.mxu0 0
        %989 = vmatpush2.bf16.msra.mxu0 0
        %990 = vmatprep.subr.bf16.mxu0 0
        %991 = vmatpush2.bf16.msra.mxu0 0
        %992 = vmatprep.subr.bf16.mxu0 0
        %993 = vmatpush2.bf16.msra.mxu0 0
        %994 = vmatprep.subr.bf16.mxu0 0
        %995 = vmatpush2.bf16.msra.mxu0 0
        %996 = vmatprep.subr.bf16.mxu0 0
        %997 = vmatpush2.bf16.msra.mxu0 0
        %998 = vmatprep.subr.bf16.mxu0 0
        %999 = vmatpush2.bf16.msra.mxu0 0
        %1000 = vmatprep.subr.bf16.mxu0 0
        %1001 = vmatpush2.bf16.msra.mxu0 0
        %1002 = vmatprep.mubr.bf16.mxu0 0
        %1003 = vmatmul.mubr.bf16.gmra.mxu0 %v877
        %v1004 = vpop.f32.mrf.mxu0
        %v1005 = vadd.f32 %v883, %v1004
        %v1006 = vpop.f32.mrf.mxu0
        %v1007 = vadd.f32 %v887, %v1006
        %v1008 = vpop.f32.mrf.mxu0
        %v1009 = vadd.f32 %v883, %v1008
        %v1010 = vpop.f32.mrf.mxu0
        %v1011 = vadd.f32 %v887, %v1010
        %1012 = vdwg.mxu0
        %v1013 = vld [vmem:[#allocation4] sm:$0xf]
        %v1014 = vld [vmem:[#allocation4 + $0x4] sm:$0xf]
        %v1015 = vld [vmem:[#allocation4 + $0x8] sm:$0xf]
        %v1016 = vld [vmem:[#allocation4 + $0xc] sm:$0xf]
        %v1017 = vld [vmem:[#allocation4 + $0x10] sm:$0xf]
        %v1018 = vld [vmem:[#allocation4 + $0x14] sm:$0xf]
        %v1019 = vld [vmem:[#allocation4 + $0x18] sm:$0xf]
        %v1020 = vld [vmem:[#allocation4 + $0x1c] sm:$0xf]
        %v1021 = vld [vmem:[#allocation4 + $0x20] sm:$0xf]
        %v1022 = vld [vmem:[#allocation4 + $0x24] sm:$0xf]
        %v1023 = vld [vmem:[#allocation4 + $0x28] sm:$0xf]
        %v1024 = vld [vmem:[#allocation4 + $0x2c] sm:$0xf]
        %v1025 = vld [vmem:[#allocation4 + $0x30] sm:$0xf]
        %v1026 = vld [vmem:[#allocation4 + $0x34] sm:$0xf]
        %v1027 = vld [vmem:[#allocation4 + $0x38] sm:$0xf]
        %v1028 = vld [vmem:[#allocation4 + $0x3c] sm:$0xf]
        %v1029 = vpack.c.bf16 %v816, %v816
        %v1030 = vpack.c.bf16 %v1009, %v1005
        %vm1031 = vcmask 261120
        %v1033 = vsel %vm1031, %v1029, 0
        %v1036 = vsel %vm1031, %v1030, 0
        %1038 = vmatprep.subr.bf16.mxu0 0
        %1039 = vmatpush1.bf16.xpose.msra.mxu0 0
        %1040 = vmatprep.subr.bf16.mxu0 0
        %1041 = vmatpush1.bf16.xpose.msra.mxu0 0
        %1042 = vmatprep.subr.bf16.mxu0 0
        %1043 = vmatpush1.bf16.xpose.msra.mxu0 0
        %1044 = vmatprep.subr.bf16.mxu0 0
        %1045 = vmatpush1.bf16.xpose.msra.mxu0 0
        %1046 = vmatprep.subr.bf16.mxu0 0
        %1047 = vmatpush1.bf16.xpose.msra.mxu0 0
        %1048 = vmatprep.subr.bf16.mxu0 0
        %1049 = vmatpush1.bf16.xpose.msra.mxu0 0
        %1050 = vmatprep.subr.bf16.mxu0 0
        %1051 = vmatpush1.bf16.xpose.msra.mxu0 0
        %1052 = vmatprep.subr.bf16.mxu0 0
        %1053 = vmatpush1.bf16.xpose.msra.mxu0 %v1036
        %1054 = vmatprep.subr.bf16.mxu0 0
        %1055 = vmatpush2.bf16.xpose.msra.mxu0 0
        %1056 = vmatprep.subr.bf16.mxu0 0
        %1057 = vmatpush2.bf16.xpose.msra.mxu0 0
        %1058 = vmatprep.subr.bf16.mxu0 0
        %1059 = vmatpush2.bf16.xpose.msra.mxu0 0
        %1060 = vmatprep.subr.bf16.mxu0 0
        %1061 = vmatpush2.bf16.xpose.msra.mxu0 0
        %1062 = vmatprep.subr.bf16.mxu0 0
        %1063 = vmatpush2.bf16.xpose.msra.mxu0 0
        %1064 = vmatprep.subr.bf16.mxu0 0
        %1065 = vmatpush2.bf16.xpose.msra.mxu0 0
        %1066 = vmatprep.subr.bf16.mxu0 0
        %1067 = vmatpush2.bf16.xpose.msra.mxu0 0
        %1068 = vmatprep.subr.bf16.mxu0 0
        %1069 = vmatpush2.bf16.xpose.msra.mxu0 0
        %1070 = vmatprep.mubr.bf16.mxu0 0
        %1071 = vmatmul.mubr.bf16.gmra.mxu0 %v1033
        %v1072 = vpop.f32.mrf.mxu0
        %v1073 = vadd.f32 0.0, %v1072
        %v1074 = vpop.f32.mrf.mxu0
        %v1075 = vpop.f32.mrf.mxu0
        %v1076 = vpop.f32.mrf.mxu0
        %1077 = vdwg.mxu0
        %v1078 = vmul.f32 %v1073, 0.17677669
        %v1080 = vlaneseq
        %v1081 = vshrl.u32 %v1080, 7
        %v1082 = vsub.s32 0, %v1081
        %v1083 = vrot.slane %v680, %v1082
        %v1085 = vadd.f32 %v1078, %v1083
        %vm1086 = vcmask 130048
        %v1087 = vsel %vm1086, %v1085, -inf
        %1088 = vmax.xlane.f32.xlu0 %v1087
        %v1089 = vpop.xlane.xlu0 %1088
        %v1090 = vsub.f32 %v1085, %v1089
        %v1091 = vmul.f32 %v1090, 1.442695
        %v1092 = vpow.pop %v1091
        %v1093 = vsel %vm1086, %v1092, 0.0
        %1094 = vadd.xlane.f32.xlu0 %v1093
        %v1095 = vpop.xlane.xlu0 %1094
        %v1096 = vrcp.pop %v1095
        %v1097 = vmul.f32 %v1092, %v1096
        %v1098 = vpack.c.bf16 %v1097, %v1097
        %v1099 = vpack.c.bf16 %v1011, %v1007
        %v1101 = vsel %vm1086, %v1098, 0
        %1103 = vmatprep.subr.bf16.mxu0 0
        %1104 = vmatpush1.bf16.msra.mxu0 0
        %1105 = vmatprep.subr.bf16.mxu0 0
        %1106 = vmatpush1.bf16.msra.mxu0 0
        %1107 = vmatprep.subr.bf16.mxu0 0
        %1108 = vmatpush1.bf16.msra.mxu0 0
        %1109 = vmatprep.subr.bf16.mxu0 0
        %1110 = vmatpush1.bf16.msra.mxu0 0
        %1111 = vmatprep.subr.bf16.mxu0 0
        %1112 = vmatpush1.bf16.msra.mxu0 0
        %1113 = vmatprep.subr.bf16.mxu0 0
        %1114 = vmatpush1.bf16.msra.mxu0 0
        %1115 = vmatprep.subr.bf16.mxu0 0
        %1116 = vmatpush1.bf16.msra.mxu0 0
        %1117 = vmatprep.subr.bf16.mxu0 0
        %1118 = vmatpush1.bf16.msra.mxu0 %v1099
        %1119 = vmatprep.subr.bf16.mxu0 0
        %1120 = vmatpush2.bf16.msra.mxu0 0
        %1121 = vmatprep.subr.bf16.mxu0 0
        %1122 = vmatpush2.bf16.msra.mxu0 0
        %1123 = vmatprep.subr.bf16.mxu0 0
        %1124 = vmatpush2.bf16.msra.mxu0 0
        %1125 = vmatprep.subr.bf16.mxu0 0
        %1126 = vmatpush2.bf16.msra.mxu0 0
        %1127 = vmatprep.subr.bf16.mxu0 0
        %1128 = vmatpush2.bf16.msra.mxu0 0
        %1129 = vmatprep.subr.bf16.mxu0 0
        %1130 = vmatpush2.bf16.msra.mxu0 0
        %1131 = vmatprep.subr.bf16.mxu0 0
        %1132 = vmatpush2.bf16.msra.mxu0 0
        %1133 = vmatprep.subr.bf16.mxu0 0
        %1134 = vmatpush2.bf16.msra.mxu0 0
        %1135 = vmatprep.mubr.bf16.mxu0 0
        %1136 = vmatmul.mubr.bf16.gmra.mxu0 %v1101
        %v1137 = vpop.f32.mrf.mxu0
        %v1138 = vadd.f32 0.0, %v1137
        %v1139 = vpop.f32.mrf.mxu0
        %v1140 = vpop.f32.mrf.mxu0
        %v1141 = vpop.f32.mrf.mxu0
        %1142 = vdwg.mxu0
        %v1143 = vpack.c.bf16 %v1138, %v1138
        %1145 = vrot.lane.b32.xlu0 %v1029, 96
        %v1146 = vpop.permute.xlu0 %1145
        %1148 = vrot.lane.b32.xlu0 %v1030, 96
        %v1149 = vpop.permute.xlu0 %1148
        %v1151 = vsel %vm1031, %v1146, 0
        %v1154 = vsel %vm1031, %v1149, 0
        %1156 = vmatprep.subr.bf16.mxu0 0
        %1157 = vmatpush1.bf16.xpose.msra.mxu0 0
        %1158 = vmatprep.subr.bf16.mxu0 0
        %1159 = vmatpush1.bf16.xpose.msra.mxu0 0
        %1160 = vmatprep.subr.bf16.mxu0 0
        %1161 = vmatpush1.bf16.xpose.msra.mxu0 0
        %1162 = vmatprep.subr.bf16.mxu0 0
        %1163 = vmatpush1.bf16.xpose.msra.mxu0 0
        %1164 = vmatprep.subr.bf16.mxu0 0
        %1165 = vmatpush1.bf16.xpose.msra.mxu0 0
        %1166 = vmatprep.subr.bf16.mxu0 0
        %1167 = vmatpush1.bf16.xpose.msra.mxu0 0
        %1168 = vmatprep.subr.bf16.mxu0 0
        %1169 = vmatpush1.bf16.xpose.msra.mxu0 0
        %1170 = vmatprep.subr.bf16.mxu0 0
        %1171 = vmatpush1.bf16.xpose.msra.mxu0 %v1154
        %1172 = vmatprep.subr.bf16.mxu0 0
        %1173 = vmatpush2.bf16.xpose.msra.mxu0 0
        %1174 = vmatprep.subr.bf16.mxu0 0
        %1175 = vmatpush2.bf16.xpose.msra.mxu0 0
        %1176 = vmatprep.subr.bf16.mxu0 0
        %1177 = vmatpush2.bf16.xpose.msra.mxu0 0
        %1178 = vmatprep.subr.bf16.mxu0 0
        %1179 = vmatpush2.bf16.xpose.msra.mxu0 0
        %1180 = vmatprep.subr.bf16.mxu0 0
        %1181 = vmatpush2.bf16.xpose.msra.mxu0 0
        %1182 = vmatprep.subr.bf16.mxu0 0
        %1183 = vmatpush2.bf16.xpose.msra.mxu0 0
        %1184 = vmatprep.subr.bf16.mxu0 0
        %1185 = vmatpush2.bf16.xpose.msra.mxu0 0
        %1186 = vmatprep.subr.bf16.mxu0 0
        %1187 = vmatpush2.bf16.xpose.msra.mxu0 0
        %1188 = vmatprep.mubr.bf16.mxu0 0
        %1189 = vmatmul.mubr.bf16.gmra.mxu0 %v1151
        %v1190 = vpop.f32.mrf.mxu0
        %v1191 = vadd.f32 0.0, %v1190
        %v1192 = vpop.f32.mrf.mxu0
        %v1193 = vpop.f32.mrf.mxu0
        %v1194 = vpop.f32.mrf.mxu0
        %1195 = vdwg.mxu0
        %v1196 = vmul.f32 %v1191, 0.17677669
        %v1197 = vadd.f32 %v1196, %v1083
        %v1198 = vsel %vm1086, %v1197, -inf
        %1199 = vmax.xlane.f32.xlu0 %v1198
        %v1200 = vpop.xlane.xlu0 %1199
        %v1201 = vsub.f32 %v1197, %v1200
        %v1202 = vmul.f32 %v1201, 1.442695
        %v1203 = vpow.pop %v1202
        %v1204 = vsel %vm1086, %v1203, 0.0
        %1205 = vadd.xlane.f32.xlu0 %v1204
        %v1206 = vpop.xlane.xlu0 %1205
        %v1207 = vrcp.pop %v1206
        %v1208 = vmul.f32 %v1203, %v1207
        %v1209 = vpack.c.bf16 %v1208, %v1208
        %1211 = vrot.lane.b32.xlu0 %v1099, 96
        %v1212 = vpop.permute.xlu0 %1211
        %v1215 = vsel %vm1086, %v1209, 0
        %1217 = vmatprep.subr.bf16.mxu0 0
        %1218 = vmatpush1.bf16.msra.mxu0 0
        %1219 = vmatprep.subr.bf16.mxu0 0
        %1220 = vmatpush1.bf16.msra.mxu0 0
        %1221 = vmatprep.subr.bf16.mxu0 0
        %1222 = vmatpush1.bf16.msra.mxu0 0
        %1223 = vmatprep.subr.bf16.mxu0 0
        %1224 = vmatpush1.bf16.msra.mxu0 0
        %1225 = vmatprep.subr.bf16.mxu0 0
        %1226 = vmatpush1.bf16.msra.mxu0 0
        %1227 = vmatprep.subr.bf16.mxu0 0
        %1228 = vmatpush1.bf16.msra.mxu0 0
        %1229 = vmatprep.subr.bf16.mxu0 0
        %1230 = vmatpush1.bf16.msra.mxu0 0
        %1231 = vmatprep.subr.bf16.mxu0 0
        %1232 = vmatpush1.bf16.msra.mxu0 %v1212
        %1233 = vmatprep.subr.bf16.mxu0 0
        %1234 = vmatpush2.bf16.msra.mxu0 0
        %1235 = vmatprep.subr.bf16.mxu0 0
        %1236 = vmatpush2.bf16.msra.mxu0 0
        %1237 = vmatprep.subr.bf16.mxu0 0
        %1238 = vmatpush2.bf16.msra.mxu0 0
        %1239 = vmatprep.subr.bf16.mxu0 0
        %1240 = vmatpush2.bf16.msra.mxu0 0
        %1241 = vmatprep.subr.bf16.mxu0 0
        %1242 = vmatpush2.bf16.msra.mxu0 0
        %1243 = vmatprep.subr.bf16.mxu0 0
        %1244 = vmatpush2.bf16.msra.mxu0 0
        %1245 = vmatprep.subr.bf16.mxu0 0
        %1246 = vmatpush2.bf16.msra.mxu0 0
        %1247 = vmatprep.subr.bf16.mxu0 0
        %1248 = vmatpush2.bf16.msra.mxu0 0
        %1249 = vmatprep.mubr.bf16.mxu0 0
        %1250 = vmatmul.mubr.bf16.gmra.mxu0 %v1215
        %v1251 = vpop.f32.mrf.mxu0
        %v1252 = vadd.f32 0.0, %v1251
        %v1253 = vpop.f32.mrf.mxu0
        %v1254 = vpop.f32.mrf.mxu0
        %v1255 = vpop.f32.mrf.mxu0
        %1256 = vdwg.mxu0
        %v1257 = vpack.c.bf16 %v1252, %v1252
        %v1262 = vunpack.c.l.b16 %v1017
        %v1263 = vunpack.c.l.b16 %v1018
        %v1264 = vunpack.c.l.b16 %v1019
        %v1265 = vunpack.c.l.b16 %v1020
        %v1266 = vpack.c.b16 %v1263, %v1262
        %v1267 = vpack.c.b16 %v1265, %v1264
        %v1271 = vsel %vm1031, %v1257, 0
        %1273 = vmatprep.subr.bf16.mxu0 0
        %1274 = vmatpush1.bf16.msra.mxu0 0
        %1275 = vmatprep.subr.bf16.mxu0 0
        %1276 = vmatpush1.bf16.msra.mxu0 0
        %1277 = vmatprep.subr.bf16.mxu0 0
        %1278 = vmatpush1.bf16.msra.mxu0 0
        %1279 = vmatprep.subr.bf16.mxu0 0
        %1280 = vmatpush1.bf16.msra.mxu0 0
        %1281 = vmatprep.subr.bf16.mxu0 0
        %1282 = vmatpush1.bf16.msra.mxu0 0
        %1283 = vmatprep.subr.bf16.mxu0 0
        %1284 = vmatpush1.bf16.msra.mxu0 0
        %1285 = vmatprep.subr.bf16.mxu0 0
        %1286 = vmatpush1.bf16.msra.mxu0 %v1267
        %1287 = vmatprep.subr.bf16.mxu0 0
        %1288 = vmatpush1.bf16.msra.mxu0 %v1266
        %1289 = vmatprep.subr.bf16.mxu0 0
        %1290 = vmatpush2.bf16.msra.mxu0 0
        %1291 = vmatprep.subr.bf16.mxu0 0
        %1292 = vmatpush2.bf16.msra.mxu0 0
        %1293 = vmatprep.subr.bf16.mxu0 0
        %1294 = vmatpush2.bf16.msra.mxu0 0
        %1295 = vmatprep.subr.bf16.mxu0 0
        %1296 = vmatpush2.bf16.msra.mxu0 0
        %1297 = vmatprep.subr.bf16.mxu0 0
        %1298 = vmatpush2.bf16.msra.mxu0 0
        %1299 = vmatprep.subr.bf16.mxu0 0
        %1300 = vmatpush2.bf16.msra.mxu0 0
        %1301 = vmatprep.subr.bf16.mxu0 0
        %1302 = vmatpush2.bf16.msra.mxu0 0
        %1303 = vmatprep.subr.bf16.mxu0 0
        %1304 = vmatpush2.bf16.msra.mxu0 0
        %1305 = vmatprep.mubr.bf16.mxu0 0
        %1306 = vmatmul.mubr.bf16.gmra.mxu0 %v1271
        %v1307 = vpop.f32.mrf.mxu0
        %v1308 = vadd.f32 0.0, %v1307
        %v1309 = vpop.f32.mrf.mxu0
        %v1310 = vpop.f32.mrf.mxu0
        %v1311 = vpop.f32.mrf.mxu0
        %1312 = vdwg.mxu0
        %v1317 = vunpack.c.l.b16 %v1013
        %v1318 = vunpack.c.l.b16 %v1014
        %v1319 = vunpack.c.l.b16 %v1015
        %v1320 = vunpack.c.l.b16 %v1016
        %v1321 = vpack.c.b16 %v1318, %v1317
        %v1322 = vpack.c.b16 %v1320, %v1319
        %v1326 = vsel %vm1031, %v1143, 0
        %1328 = vmatprep.subr.bf16.mxu0 0
        %1329 = vmatpush1.bf16.msra.mxu0 0
        %1330 = vmatprep.subr.bf16.mxu0 0
        %1331 = vmatpush1.bf16.msra.mxu0 0
        %1332 = vmatprep.subr.bf16.mxu0 0
        %1333 = vmatpush1.bf16.msra.mxu0 0
        %1334 = vmatprep.subr.bf16.mxu0 0
        %1335 = vmatpush1.bf16.msra.mxu0 0
        %1336 = vmatprep.subr.bf16.mxu0 0
        %1337 = vmatpush1.bf16.msra.mxu0 0
        %1338 = vmatprep.subr.bf16.mxu0 0
        %1339 = vmatpush1.bf16.msra.mxu0 0
        %1340 = vmatprep.subr.bf16.mxu0 0
        %1341 = vmatpush1.bf16.msra.mxu0 %v1322
        %1342 = vmatprep.subr.bf16.mxu0 0
        %1343 = vmatpush1.bf16.msra.mxu0 %v1321
        %1344 = vmatprep.subr.bf16.mxu0 0
        %1345 = vmatpush2.bf16.msra.mxu0 0
        %1346 = vmatprep.subr.bf16.mxu0 0
        %1347 = vmatpush2.bf16.msra.mxu0 0
        %1348 = vmatprep.subr.bf16.mxu0 0
        %1349 = vmatpush2.bf16.msra.mxu0 0
        %1350 = vmatprep.subr.bf16.mxu0 0
        %1351 = vmatpush2.bf16.msra.mxu0 0
        %1352 = vmatprep.subr.bf16.mxu0 0
        %1353 = vmatpush2.bf16.msra.mxu0 0
        %1354 = vmatprep.subr.bf16.mxu0 0
        %1355 = vmatpush2.bf16.msra.mxu0 0
        %1356 = vmatprep.subr.bf16.mxu0 0
        %1357 = vmatpush2.bf16.msra.mxu0 0
        %1358 = vmatprep.subr.bf16.mxu0 0
        %1359 = vmatpush2.bf16.msra.mxu0 0
        %1360 = vmatprep.mubr.bf16.mxu0 0
        %1361 = vmatmul.mubr.bf16.gmra.mxu0 %v1326
        %v1362 = vpop.f32.mrf.mxu0
        %v1363 = vadd.f32 %v1308, %v1362
        %v1364 = vpop.f32.mrf.mxu0
        %v1365 = vpop.f32.mrf.mxu0
        %v1366 = vpop.f32.mrf.mxu0
        %1367 = vdwg.mxu0
        %1368 = vrot.lane.b32.xlu0 %v1029, 64
        %v1369 = vpop.permute.xlu0 %1368
        %1370 = vrot.lane.b32.xlu0 %v1030, 64
        %v1371 = vpop.permute.xlu0 %1370
        %v1373 = vsel %vm1031, %v1369, 0
        %v1376 = vsel %vm1031, %v1371, 0
        %1378 = vmatprep.subr.bf16.mxu0 0
        %1379 = vmatpush1.bf16.xpose.msra.mxu0 0
        %1380 = vmatprep.subr.bf16.mxu0 0
        %1381 = vmatpush1.bf16.xpose.msra.mxu0 0
        %1382 = vmatprep.subr.bf16.mxu0 0
        %1383 = vmatpush1.bf16.xpose.msra.mxu0 0
        %1384 = vmatprep.subr.bf16.mxu0 0
        %1385 = vmatpush1.bf16.xpose.msra.mxu0 0
        %1386 = vmatprep.subr.bf16.mxu0 0
        %1387 = vmatpush1.bf16.xpose.msra.mxu0 0
        %1388 = vmatprep.subr.bf16.mxu0 0
        %1389 = vmatpush1.bf16.xpose.msra.mxu0 0
        %1390 = vmatprep.subr.bf16.mxu0 0
        %1391 = vmatpush1.bf16.xpose.msra.mxu0 0
        %1392 = vmatprep.subr.bf16.mxu0 0
        %1393 = vmatpush1.bf16.xpose.msra.mxu0 %v1376
        %1394 = vmatprep.subr.bf16.mxu0 0
        %1395 = vmatpush2.bf16.xpose.msra.mxu0 0
        %1396 = vmatprep.subr.bf16.mxu0 0
        %1397 = vmatpush2.bf16.xpose.msra.mxu0 0
        %1398 = vmatprep.subr.bf16.mxu0 0
        %1399 = vmatpush2.bf16.xpose.msra.mxu0 0
        %1400 = vmatprep.subr.bf16.mxu0 0
        %1401 = vmatpush2.bf16.xpose.msra.mxu0 0
        %1402 = vmatprep.subr.bf16.mxu0 0
        %1403 = vmatpush2.bf16.xpose.msra.mxu0 0
        %1404 = vmatprep.subr.bf16.mxu0 0
        %1405 = vmatpush2.bf16.xpose.msra.mxu0 0
        %1406 = vmatprep.subr.bf16.mxu0 0
        %1407 = vmatpush2.bf16.xpose.msra.mxu0 0
        %1408 = vmatprep.subr.bf16.mxu0 0
        %1409 = vmatpush2.bf16.xpose.msra.mxu0 0
        %1410 = vmatprep.mubr.bf16.mxu0 0
        %1411 = vmatmul.mubr.bf16.gmra.mxu0 %v1373
        %v1412 = vpop.f32.mrf.mxu0
        %v1413 = vadd.f32 0.0, %v1412
        %v1414 = vpop.f32.mrf.mxu0
        %v1415 = vpop.f32.mrf.mxu0
        %v1416 = vpop.f32.mrf.mxu0
        %1417 = vdwg.mxu0
        %v1418 = vmul.f32 %v1413, 0.17677669
        %v1419 = vadd.f32 %v1418, %v1083
        %v1420 = vsel %vm1086, %v1419, -inf
        %1421 = vmax.xlane.f32.xlu0 %v1420
        %v1422 = vpop.xlane.xlu0 %1421
        %v1423 = vsub.f32 %v1419, %v1422
        %v1424 = vmul.f32 %v1423, 1.442695
        %v1425 = vpow.pop %v1424
        %v1426 = vsel %vm1086, %v1425, 0.0
        %1427 = vadd.xlane.f32.xlu0 %v1426
        %v1428 = vpop.xlane.xlu0 %1427
        %v1429 = vrcp.pop %v1428
        %v1430 = vmul.f32 %v1425, %v1429
        %v1431 = vpack.c.bf16 %v1430, %v1430
        %1432 = vrot.lane.b32.xlu0 %v1099, 64
        %v1433 = vpop.permute.xlu0 %1432
        %v1436 = vsel %vm1086, %v1431, 0
        %1438 = vmatprep.subr.bf16.mxu0 0
        %1439 = vmatpush1.bf16.msra.mxu0 0
        %1440 = vmatprep.subr.bf16.mxu0 0
        %1441 = vmatpush1.bf16.msra.mxu0 0
        %1442 = vmatprep.subr.bf16.mxu0 0
        %1443 = vmatpush1.bf16.msra.mxu0 0
        %1444 = vmatprep.subr.bf16.mxu0 0
        %1445 = vmatpush1.bf16.msra.mxu0 0
        %1446 = vmatprep.subr.bf16.mxu0 0
        %1447 = vmatpush1.bf16.msra.mxu0 0
        %1448 = vmatprep.subr.bf16.mxu0 0
        %1449 = vmatpush1.bf16.msra.mxu0 0
        %1450 = vmatprep.subr.bf16.mxu0 0
        %1451 = vmatpush1.bf16.msra.mxu0 0
        %1452 = vmatprep.subr.bf16.mxu0 0
        %1453 = vmatpush1.bf16.msra.mxu0 %v1433
        %1454 = vmatprep.subr.bf16.mxu0 0
        %1455 = vmatpush2.bf16.msra.mxu0 0
        %1456 = vmatprep.subr.bf16.mxu0 0
        %1457 = vmatpush2.bf16.msra.mxu0 0
        %1458 = vmatprep.subr.bf16.mxu0 0
        %1459 = vmatpush2.bf16.msra.mxu0 0
        %1460 = vmatprep.subr.bf16.mxu0 0
        %1461 = vmatpush2.bf16.msra.mxu0 0
        %1462 = vmatprep.subr.bf16.mxu0 0
        %1463 = vmatpush2.bf16.msra.mxu0 0
        %1464 = vmatprep.subr.bf16.mxu0 0
        %1465 = vmatpush2.bf16.msra.mxu0 0
        %1466 = vmatprep.subr.bf16.mxu0 0
        %1467 = vmatpush2.bf16.msra.mxu0 0
        %1468 = vmatprep.subr.bf16.mxu0 0
        %1469 = vmatpush2.bf16.msra.mxu0 0
        %1470 = vmatprep.mubr.bf16.mxu0 0
        %1471 = vmatmul.mubr.bf16.gmra.mxu0 %v1436
        %v1472 = vpop.f32.mrf.mxu0
        %v1473 = vadd.f32 0.0, %v1472
        %v1474 = vpop.f32.mrf.mxu0
        %v1475 = vpop.f32.mrf.mxu0
        %v1476 = vpop.f32.mrf.mxu0
        %1477 = vdwg.mxu0
        %v1478 = vpack.c.bf16 %v1473, %v1473
        %v1483 = vunpack.c.l.b16 %v1021
        %v1484 = vunpack.c.l.b16 %v1022
        %v1485 = vunpack.c.l.b16 %v1023
        %v1486 = vunpack.c.l.b16 %v1024
        %v1487 = vpack.c.b16 %v1484, %v1483
        %v1488 = vpack.c.b16 %v1486, %v1485
        %v1492 = vsel %vm1031, %v1478, 0
        %1494 = vmatprep.subr.bf16.mxu0 0
        %1495 = vmatpush1.bf16.msra.mxu0 0
        %1496 = vmatprep.subr.bf16.mxu0 0
        %1497 = vmatpush1.bf16.msra.mxu0 0
        %1498 = vmatprep.subr.bf16.mxu0 0
        %1499 = vmatpush1.bf16.msra.mxu0 0
        %1500 = vmatprep.subr.bf16.mxu0 0
        %1501 = vmatpush1.bf16.msra.mxu0 0
        %1502 = vmatprep.subr.bf16.mxu0 0
        %1503 = vmatpush1.bf16.msra.mxu0 0
        %1504 = vmatprep.subr.bf16.mxu0 0
        %1505 = vmatpush1.bf16.msra.mxu0 0
        %1506 = vmatprep.subr.bf16.mxu0 0
        %1507 = vmatpush1.bf16.msra.mxu0 %v1488
        %1508 = vmatprep.subr.bf16.mxu0 0
        %1509 = vmatpush1.bf16.msra.mxu0 %v1487
        %1510 = vmatprep.subr.bf16.mxu0 0
        %1511 = vmatpush2.bf16.msra.mxu0 0
        %1512 = vmatprep.subr.bf16.mxu0 0
        %1513 = vmatpush2.bf16.msra.mxu0 0
        %1514 = vmatprep.subr.bf16.mxu0 0
        %1515 = vmatpush2.bf16.msra.mxu0 0
        %1516 = vmatprep.subr.bf16.mxu0 0
        %1517 = vmatpush2.bf16.msra.mxu0 0
        %1518 = vmatprep.subr.bf16.mxu0 0
        %1519 = vmatpush2.bf16.msra.mxu0 0
        %1520 = vmatprep.subr.bf16.mxu0 0
        %1521 = vmatpush2.bf16.msra.mxu0 0
        %1522 = vmatprep.subr.bf16.mxu0 0
        %1523 = vmatpush2.bf16.msra.mxu0 0
        %1524 = vmatprep.subr.bf16.mxu0 0
        %1525 = vmatpush2.bf16.msra.mxu0 0
        %1526 = vmatprep.mubr.bf16.mxu0 0
        %1527 = vmatmul.mubr.bf16.gmra.mxu0 %v1492
        %v1528 = vpop.f32.mrf.mxu0
        %v1529 = vadd.f32 0.0, %v1528
        %v1530 = vpop.f32.mrf.mxu0
        %v1531 = vpop.f32.mrf.mxu0
        %v1532 = vpop.f32.mrf.mxu0
        %1533 = vdwg.mxu0
        %v1534 = vadd.f32 %v1363, %v1529
        %1535 = vrot.lane.b32.xlu0 %v1029, 32
        %v1536 = vpop.permute.xlu0 %1535
        %1537 = vrot.lane.b32.xlu0 %v1030, 32
        %v1538 = vpop.permute.xlu0 %1537
        %v1540 = vsel %vm1031, %v1536, 0
        %v1543 = vsel %vm1031, %v1538, 0
        %1545 = vmatprep.subr.bf16.mxu0 0
        %1546 = vmatpush1.bf16.xpose.msra.mxu0 0
        %1547 = vmatprep.subr.bf16.mxu0 0
        %1548 = vmatpush1.bf16.xpose.msra.mxu0 0
        %1549 = vmatprep.subr.bf16.mxu0 0
        %1550 = vmatpush1.bf16.xpose.msra.mxu0 0
        %1551 = vmatprep.subr.bf16.mxu0 0
        %1552 = vmatpush1.bf16.xpose.msra.mxu0 0
        %1553 = vmatprep.subr.bf16.mxu0 0
        %1554 = vmatpush1.bf16.xpose.msra.mxu0 0
        %1555 = vmatprep.subr.bf16.mxu0 0
        %1556 = vmatpush1.bf16.xpose.msra.mxu0 0
        %1557 = vmatprep.subr.bf16.mxu0 0
        %1558 = vmatpush1.bf16.xpose.msra.mxu0 0
        %1559 = vmatprep.subr.bf16.mxu0 0
        %1560 = vmatpush1.bf16.xpose.msra.mxu0 %v1543
        %1561 = vmatprep.subr.bf16.mxu0 0
        %1562 = vmatpush2.bf16.xpose.msra.mxu0 0
        %1563 = vmatprep.subr.bf16.mxu0 0
        %1564 = vmatpush2.bf16.xpose.msra.mxu0 0
        %1565 = vmatprep.subr.bf16.mxu0 0
        %1566 = vmatpush2.bf16.xpose.msra.mxu0 0
        %1567 = vmatprep.subr.bf16.mxu0 0
        %1568 = vmatpush2.bf16.xpose.msra.mxu0 0
        %1569 = vmatprep.subr.bf16.mxu0 0
        %1570 = vmatpush2.bf16.xpose.msra.mxu0 0
        %1571 = vmatprep.subr.bf16.mxu0 0
        %1572 = vmatpush2.bf16.xpose.msra.mxu0 0
        %1573 = vmatprep.subr.bf16.mxu0 0
        %1574 = vmatpush2.bf16.xpose.msra.mxu0 0
        %1575 = vmatprep.subr.bf16.mxu0 0
        %1576 = vmatpush2.bf16.xpose.msra.mxu0 0
        %1577 = vmatprep.mubr.bf16.mxu0 0
        %1578 = vmatmul.mubr.bf16.gmra.mxu0 %v1540
        %v1579 = vpop.f32.mrf.mxu0
        %v1580 = vadd.f32 0.0, %v1579
        %v1581 = vpop.f32.mrf.mxu0
        %v1582 = vpop.f32.mrf.mxu0
        %v1583 = vpop.f32.mrf.mxu0
        %1584 = vdwg.mxu0
        %v1585 = vmul.f32 %v1580, 0.17677669
        %v1586 = vadd.f32 %v1585, %v1083
        %v1587 = vsel %vm1086, %v1586, -inf
        %1588 = vmax.xlane.f32.xlu0 %v1587
        %v1589 = vpop.xlane.xlu0 %1588
        %v1590 = vsub.f32 %v1586, %v1589
        %v1591 = vmul.f32 %v1590, 1.442695
        %v1592 = vpow.pop %v1591
        %v1593 = vsel %vm1086, %v1592, 0.0
        %1594 = vadd.xlane.f32.xlu0 %v1593
        %v1595 = vpop.xlane.xlu0 %1594
        %v1596 = vrcp.pop %v1595
        %v1597 = vmul.f32 %v1592, %v1596
        %v1598 = vpack.c.bf16 %v1597, %v1597
        %1599 = vrot.lane.b32.xlu0 %v1099, 32
        %v1600 = vpop.permute.xlu0 %1599
        %v1603 = vsel %vm1086, %v1598, 0
        %1605 = vmatprep.subr.bf16.mxu0 0
        %1606 = vmatpush1.bf16.msra.mxu0 0
        %1607 = vmatprep.subr.bf16.mxu0 0
        %1608 = vmatpush1.bf16.msra.mxu0 0
        %1609 = vmatprep.subr.bf16.mxu0 0
        %1610 = vmatpush1.bf16.msra.mxu0 0
        %1611 = vmatprep.subr.bf16.mxu0 0
        %1612 = vmatpush1.bf16.msra.mxu0 0
        %1613 = vmatprep.subr.bf16.mxu0 0
        %1614 = vmatpush1.bf16.msra.mxu0 0
        %1615 = vmatprep.subr.bf16.mxu0 0
        %1616 = vmatpush1.bf16.msra.mxu0 0
        %1617 = vmatprep.subr.bf16.mxu0 0
        %1618 = vmatpush1.bf16.msra.mxu0 0
        %1619 = vmatprep.subr.bf16.mxu0 0
        %1620 = vmatpush1.bf16.msra.mxu0 %v1600
        %1621 = vmatprep.subr.bf16.mxu0 0
        %1622 = vmatpush2.bf16.msra.mxu0 0
        %1623 = vmatprep.subr.bf16.mxu0 0
        %1624 = vmatpush2.bf16.msra.mxu0 0
        %1625 = vmatprep.subr.bf16.mxu0 0
        %1626 = vmatpush2.bf16.msra.mxu0 0
        %1627 = vmatprep.subr.bf16.mxu0 0
        %1628 = vmatpush2.bf16.msra.mxu0 0
        %1629 = vmatprep.subr.bf16.mxu0 0
        %1630 = vmatpush2.bf16.msra.mxu0 0
        %1631 = vmatprep.subr.bf16.mxu0 0
        %1632 = vmatpush2.bf16.msra.mxu0 0
        %1633 = vmatprep.subr.bf16.mxu0 0
        %1634 = vmatpush2.bf16.msra.mxu0 0
        %1635 = vmatprep.subr.bf16.mxu0 0
        %1636 = vmatpush2.bf16.msra.mxu0 0
        %1637 = vmatprep.mubr.bf16.mxu0 0
        %1638 = vmatmul.mubr.bf16.gmra.mxu0 %v1603
        %v1639 = vpop.f32.mrf.mxu0
        %v1640 = vadd.f32 0.0, %v1639
        %v1641 = vpop.f32.mrf.mxu0
        %v1642 = vpop.f32.mrf.mxu0
        %v1643 = vpop.f32.mrf.mxu0
        %1644 = vdwg.mxu0
        %v1645 = vpack.c.bf16 %v1640, %v1640
        %v1650 = vunpack.c.l.b16 %v1025
        %v1651 = vunpack.c.l.b16 %v1026
        %v1652 = vunpack.c.l.b16 %v1027
        %v1653 = vunpack.c.l.b16 %v1028
        %v1654 = vpack.c.b16 %v1651, %v1650
        %v1655 = vpack.c.b16 %v1653, %v1652
        %v1659 = vsel %vm1031, %v1645, 0
        %1661 = vmatprep.subr.bf16.mxu0 0
        %1662 = vmatpush1.bf16.msra.mxu0 0
        %1663 = vmatprep.subr.bf16.mxu0 0
        %1664 = vmatpush1.bf16.msra.mxu0 0
        %1665 = vmatprep.subr.bf16.mxu0 0
        %1666 = vmatpush1.bf16.msra.mxu0 0
        %1667 = vmatprep.subr.bf16.mxu0 0
        %1668 = vmatpush1.bf16.msra.mxu0 0
        %1669 = vmatprep.subr.bf16.mxu0 0
        %1670 = vmatpush1.bf16.msra.mxu0 0
        %1671 = vmatprep.subr.bf16.mxu0 0
        %1672 = vmatpush1.bf16.msra.mxu0 0
        %1673 = vmatprep.subr.bf16.mxu0 0
        %1674 = vmatpush1.bf16.msra.mxu0 %v1655
        %1675 = vmatprep.subr.bf16.mxu0 0
        %1676 = vmatpush1.bf16.msra.mxu0 %v1654
        %1677 = vmatprep.subr.bf16.mxu0 0
        %1678 = vmatpush2.bf16.msra.mxu0 0
        %1679 = vmatprep.subr.bf16.mxu0 0
        %1680 = vmatpush2.bf16.msra.mxu0 0
        %1681 = vmatprep.subr.bf16.mxu0 0
        %1682 = vmatpush2.bf16.msra.mxu0 0
        %1683 = vmatprep.subr.bf16.mxu0 0
        %1684 = vmatpush2.bf16.msra.mxu0 0
        %1685 = vmatprep.subr.bf16.mxu0 0
        %1686 = vmatpush2.bf16.msra.mxu0 0
        %1687 = vmatprep.subr.bf16.mxu0 0
        %1688 = vmatpush2.bf16.msra.mxu0 0
        %1689 = vmatprep.subr.bf16.mxu0 0
        %1690 = vmatpush2.bf16.msra.mxu0 0
        %1691 = vmatprep.subr.bf16.mxu0 0
        %1692 = vmatpush2.bf16.msra.mxu0 0
        %1693 = vmatprep.mubr.bf16.mxu0 0
        %1694 = vmatmul.mubr.bf16.gmra.mxu0 %v1659
        %v1695 = vpop.f32.mrf.mxu0
        %v1696 = vadd.f32 0.0, %v1695
        %v1697 = vpop.f32.mrf.mxu0
        %v1698 = vpop.f32.mrf.mxu0
        %v1699 = vpop.f32.mrf.mxu0
        %1700 = vdwg.mxu0
        %v1701 = vadd.f32 %v1534, %v1696
        %v1702 = vadd.f32 %v677, %v1701
        %v1703 = vld [vmem:[%s14] sm:$0x1]
        %v1705 = vlaneseq
        %v1706 = vshrl.u32 %v1705, 7
        %v1707 = vsub.s32 0, %v1706
        %v1708 = vrot.slane %v1703, %v1707
        %v1710 = vadd.f32 %v1702, %v1708
        %v1711 = vld [vmem:[%s7] sm:$0x1]
        %v1712 = vld [vmem:[%s8] sm:$0x1]
        %1713 = vadd.xlane.f32.xlu0 %v1710
        %v1714 = vpop.xlane.xlu0 %1713
        %v1715 = vmul.f32 %v1714, %v685
        %v1716 = vsub.f32 %v1710, %v1715
        %v1717 = vmul.f32 %v1716, %v1716
        %1718 = vadd.xlane.f32.xlu0 %v1717
        %v1719 = vpop.xlane.xlu0 %1718
        %v1720 = vmul.f32 %v1719, %v685
        %v1721 = vadd.f32 %v1720, 1e-05
        %v1722 = vrsqrt.pop %v1721
        %v1723 = vmul.f32 %v1716, %v1722
        %v1725 = vlaneseq
        %v1726 = vshrl.u32 %v1725, 7
        %v1727 = vsub.s32 0, %v1726
        %v1728 = vrot.slane %v1711, %v1727
        %v1730 = vmul.f32 %v1723, %v1728
        %v1732 = vlaneseq
        %v1733 = vshrl.u32 %v1732, 7
        %v1734 = vsub.s32 0, %v1733
        %v1735 = vrot.slane %v1712, %v1734
        %v1737 = vadd.f32 %v1730, %v1735
        %v1738 = vld [vmem:[%s15] sm:$0xff]
        %v1739 = vld [vmem:[%s15 + $0x8] sm:$0xff]
        %v1740 = vld [vmem:[%s15 + $0x10] sm:$0xff]
        %v1741 = vld [vmem:[%s15 + $0x18] sm:$0xff]
        %v1742 = vld [vmem:[%s15 + $0x20] sm:$0xff]
        %v1743 = vld [vmem:[%s15 + $0x28] sm:$0xff]
        %v1744 = vld [vmem:[%s15 + $0x30] sm:$0xff]
        %v1745 = vld [vmem:[%s15 + $0x38] sm:$0xff]
        %v1746 = vld [vmem:[%s15 + $0x40] sm:$0xff]
        %v1747 = vld [vmem:[%s15 + $0x48] sm:$0xff]
        %v1748 = vld [vmem:[%s15 + $0x50] sm:$0xff]
        %v1749 = vld [vmem:[%s15 + $0x58] sm:$0xff]
        %v1750 = vld [vmem:[%s15 + $0x60] sm:$0xff]
        %v1751 = vld [vmem:[%s15 + $0x68] sm:$0xff]
        %v1752 = vld [vmem:[%s15 + $0x70] sm:$0xff]
        %v1753 = vld [vmem:[%s15 + $0x78] sm:$0xff]
        %v1754 = vpack.c.bf16 %v1737, %v1737
        %v1755 = vld [vmem:[%s16] sm:$0x3]
        %v1757 = vlaneseq
        %v1758 = vshrl.u32 %v1757, 7
        %v1759 = vsub.s32 0, %v1758
        %v1760 = vrot.slane %v1755, %v1759
        %v1761 = vlaneseq
        %v1762 = vshrl.u32 %v1761, 7
        %v1763 = vsub.s32 1, %v1762
        %v1764 = vrot.slane %v1755, %v1763
        %v1783 = vunpack.c.l.b16 %v1738
        %v1784 = vunpack.c.h.b16 %v1738
        %v1785 = vunpack.c.l.b16 %v1739
        %v1786 = vunpack.c.h.b16 %v1739
        %v1787 = vunpack.c.l.b16 %v1740
        %v1788 = vunpack.c.h.b16 %v1740
        %v1789 = vunpack.c.l.b16 %v1741
        %v1790 = vunpack.c.h.b16 %v1741
        %v1791 = vunpack.c.l.b16 %v1742
        %v1792 = vunpack.c.h.b16 %v1742
        %v1793 = vunpack.c.l.b16 %v1743
        %v1794 = vunpack.c.h.b16 %v1743
        %v1795 = vunpack.c.l.b16 %v1744
        %v1796 = vunpack.c.h.b16 %v1744
        %v1797 = vunpack.c.l.b16 %v1745
        %v1798 = vunpack.c.h.b16 %v1745
        %v1799 = vunpack.c.l.b16 %v1746
        %v1800 = vunpack.c.h.b16 %v1746
        %v1801 = vunpack.c.l.b16 %v1747
        %v1802 = vunpack.c.h.b16 %v1747
        %v1803 = vunpack.c.l.b16 %v1748
        %v1804 = vunpack.c.h.b16 %v1748
        %v1805 = vunpack.c.l.b16 %v1749
        %v1806 = vunpack.c.h.b16 %v1749
        %v1807 = vunpack.c.l.b16 %v1750
        %v1808 = vunpack.c.h.b16 %v1750
        %v1809 = vunpack.c.l.b16 %v1751
        %v1810 = vunpack.c.h.b16 %v1751
        %v1811 = vunpack.c.l.b16 %v1752
        %v1812 = vunpack.c.h.b16 %v1752
        %v1813 = vunpack.c.l.b16 %v1753
        %v1814 = vunpack.c.h.b16 %v1753
        %v1815 = vpack.c.b16 %v1785, %v1783
        %v1816 = vpack.c.b16 %v1786, %v1784
        %v1817 = vpack.c.b16 %v1789, %v1787
        %v1818 = vpack.c.b16 %v1790, %v1788
        %v1819 = vpack.c.b16 %v1793, %v1791
        %v1820 = vpack.c.b16 %v1794, %v1792
        %v1821 = vpack.c.b16 %v1797, %v1795
        %v1822 = vpack.c.b16 %v1798, %v1796
        %v1823 = vpack.c.b16 %v1801, %v1799
        %v1824 = vpack.c.b16 %v1802, %v1800
        %v1825 = vpack.c.b16 %v1805, %v1803
        %v1826 = vpack.c.b16 %v1806, %v1804
        %v1827 = vpack.c.b16 %v1809, %v1807
        %v1828 = vpack.c.b16 %v1810, %v1808
        %v1829 = vpack.c.b16 %v1813, %v1811
        %v1830 = vpack.c.b16 %v1814, %v1812
        %1847 = vmatprep.subr.bf16.mxu0 %v1830
        %1848 = vmatpush1.bf16.msra.mxu0 %v1829
        %1849 = vmatprep.subr.bf16.mxu0 %v1828
        %1850 = vmatpush1.bf16.msra.mxu0 %v1827
        %1851 = vmatprep.subr.bf16.mxu0 %v1826
        %1852 = vmatpush1.bf16.msra.mxu0 %v1825
        %1853 = vmatprep.subr.bf16.mxu0 %v1824
        %1854 = vmatpush1.bf16.msra.mxu0 %v1823
        %1855 = vmatprep.subr.bf16.mxu0 %v1822
        %1856 = vmatpush1.bf16.msra.mxu0 %v1821
        %1857 = vmatprep.subr.bf16.mxu0 %v1820
        %1858 = vmatpush1.bf16.msra.mxu0 %v1819
        %1859 = vmatprep.subr.bf16.mxu0 %v1818
        %1860 = vmatpush1.bf16.msra.mxu0 %v1817
        %1861 = vmatprep.subr.bf16.mxu0 %v1816
        %1862 = vmatpush1.bf16.msra.mxu0 %v1815
        %1863 = vmatprep.subr.bf16.mxu0 0
        %1864 = vmatpush2.bf16.msra.mxu0 0
        %1865 = vmatprep.subr.bf16.mxu0 0
        %1866 = vmatpush2.bf16.msra.mxu0 0
        %1867 = vmatprep.subr.bf16.mxu0 0
        %1868 = vmatpush2.bf16.msra.mxu0 0
        %1869 = vmatprep.subr.bf16.mxu0 0
        %1870 = vmatpush2.bf16.msra.mxu0 0
        %1871 = vmatprep.subr.bf16.mxu0 0
        %1872 = vmatpush2.bf16.msra.mxu0 0
        %1873 = vmatprep.subr.bf16.mxu0 0
        %1874 = vmatpush2.bf16.msra.mxu0 0
        %1875 = vmatprep.subr.bf16.mxu0 0
        %1876 = vmatpush2.bf16.msra.mxu0 0
        %1877 = vmatprep.subr.bf16.mxu0 0
        %1878 = vmatpush2.bf16.msra.mxu0 0
        %1879 = vmatprep.mubr.bf16.mxu0 0
        %1880 = vmatmul.mubr.bf16.gmra.mxu0 %v1754
        %v1881 = vpop.f32.mrf.mxu0
        %v1882 = vadd.f32 %v1760, %v1881
        %v1883 = vpop.f32.mrf.mxu0
        %v1884 = vadd.f32 %v1764, %v1883
        %v1885 = vpop.f32.mrf.mxu0
        %v1886 = vpop.f32.mrf.mxu0
        %1887 = vdwg.mxu0
        %vm1888 = vcmp.gt.f32.partialorder %v1882, 0.0
        %vm1889 = vcmp.gt.f32.partialorder %v1884, 0.0
        %v1890 = vmul.f32 %v1882, 0.01
        %v1891 = vmul.f32 %v1884, 0.01
        %v1892 = vsel %vm1888, %v1882, %v1890
        %v1893 = vsel %vm1889, %v1884, %v1891
        %v1894 = vld [vmem:[#allocation6] sm:$0xf]
        %v1895 = vld [vmem:[#allocation6 + $0x4] sm:$0xf]
        %v1896 = vld [vmem:[#allocation6 + $0x8] sm:$0xf]
        %v1897 = vld [vmem:[#allocation6 + $0xc] sm:$0xf]
        %v1898 = vld [vmem:[#allocation6 + $0x10] sm:$0xf]
        %v1899 = vld [vmem:[#allocation6 + $0x14] sm:$0xf]
        %v1900 = vld [vmem:[#allocation6 + $0x18] sm:$0xf]
        %v1901 = vld [vmem:[#allocation6 + $0x1c] sm:$0xf]
        %v1902 = vld [vmem:[#allocation6 + $0x20] sm:$0xf]
        %v1903 = vld [vmem:[#allocation6 + $0x24] sm:$0xf]
        %v1904 = vld [vmem:[#allocation6 + $0x28] sm:$0xf]
        %v1905 = vld [vmem:[#allocation6 + $0x2c] sm:$0xf]
        %v1906 = vld [vmem:[#allocation6 + $0x30] sm:$0xf]
        %v1907 = vld [vmem:[#allocation6 + $0x34] sm:$0xf]
        %v1908 = vld [vmem:[#allocation6 + $0x38] sm:$0xf]
        %v1909 = vld [vmem:[#allocation6 + $0x3c] sm:$0xf]
        %v1910 = vld [vmem:[#allocation6 + $0x40] sm:$0xf]
        %v1911 = vld [vmem:[#allocation6 + $0x44] sm:$0xf]
        %v1912 = vld [vmem:[#allocation6 + $0x48] sm:$0xf]
        %v1913 = vld [vmem:[#allocation6 + $0x4c] sm:$0xf]
        %v1914 = vld [vmem:[#allocation6 + $0x50] sm:$0xf]
        %v1915 = vld [vmem:[#allocation6 + $0x54] sm:$0xf]
        %v1916 = vld [vmem:[#allocation6 + $0x58] sm:$0xf]
        %v1917 = vld [vmem:[#allocation6 + $0x5c] sm:$0xf]
        %v1918 = vld [vmem:[#allocation6 + $0x60] sm:$0xf]
        %v1919 = vld [vmem:[#allocation6 + $0x64] sm:$0xf]
        %v1920 = vld [vmem:[#allocation6 + $0x68] sm:$0xf]
        %v1921 = vld [vmem:[#allocation6 + $0x6c] sm:$0xf]
        %v1922 = vld [vmem:[#allocation6 + $0x70] sm:$0xf]
        %v1923 = vld [vmem:[#allocation6 + $0x74] sm:$0xf]
        %v1924 = vld [vmem:[#allocation6 + $0x78] sm:$0xf]
        %v1925 = vld [vmem:[#allocation6 + $0x7c] sm:$0xf]
        %v1926 = vpack.c.bf16 %v1892, %v1892
        %v1927 = vpack.c.bf16 %v1893, %v1893
        %v1960 = vunpack.c.l.b16 %v1894
        %v1961 = vunpack.c.l.b16 %v1895
        %v1962 = vunpack.c.l.b16 %v1896
        %v1963 = vunpack.c.l.b16 %v1897
        %v1964 = vunpack.c.l.b16 %v1898
        %v1965 = vunpack.c.l.b16 %v1899
        %v1966 = vunpack.c.l.b16 %v1900
        %v1967 = vunpack.c.l.b16 %v1901
        %v1968 = vunpack.c.l.b16 %v1902
        %v1969 = vunpack.c.l.b16 %v1903
        %v1970 = vunpack.c.l.b16 %v1904
        %v1971 = vunpack.c.l.b16 %v1905
        %v1972 = vunpack.c.l.b16 %v1906
        %v1973 = vunpack.c.l.b16 %v1907
        %v1974 = vunpack.c.l.b16 %v1908
        %v1975 = vunpack.c.l.b16 %v1909
        %v1976 = vunpack.c.l.b16 %v1910
        %v1977 = vunpack.c.l.b16 %v1911
        %v1978 = vunpack.c.l.b16 %v1912
        %v1979 = vunpack.c.l.b16 %v1913
        %v1980 = vunpack.c.l.b16 %v1914
        %v1981 = vunpack.c.l.b16 %v1915
        %v1982 = vunpack.c.l.b16 %v1916
        %v1983 = vunpack.c.l.b16 %v1917
        %v1984 = vunpack.c.l.b16 %v1918
        %v1985 = vunpack.c.l.b16 %v1919
        %v1986 = vunpack.c.l.b16 %v1920
        %v1987 = vunpack.c.l.b16 %v1921
        %v1988 = vunpack.c.l.b16 %v1922
        %v1989 = vunpack.c.l.b16 %v1923
        %v1990 = vunpack.c.l.b16 %v1924
        %v1991 = vunpack.c.l.b16 %v1925
        %v1992 = vpack.c.b16 %v1961, %v1960
        %v1993 = vpack.c.b16 %v1963, %v1962
        %v1994 = vpack.c.b16 %v1965, %v1964
        %v1995 = vpack.c.b16 %v1967, %v1966
        %v1996 = vpack.c.b16 %v1969, %v1968
        %v1997 = vpack.c.b16 %v1971, %v1970
        %v1998 = vpack.c.b16 %v1973, %v1972
        %v1999 = vpack.c.b16 %v1975, %v1974
        %v2000 = vpack.c.b16 %v1977, %v1976
        %v2001 = vpack.c.b16 %v1979, %v1978
        %v2002 = vpack.c.b16 %v1981, %v1980
        %v2003 = vpack.c.b16 %v1983, %v1982
        %v2004 = vpack.c.b16 %v1985, %v1984
        %v2005 = vpack.c.b16 %v1987, %v1986
        %v2006 = vpack.c.b16 %v1989, %v1988
        %v2007 = vpack.c.b16 %v1991, %v1990
        %2024 = vmatprep.subr.bf16.mxu0 0
        %2025 = vmatpush1.bf16.msra.mxu0 %v1999
        %2026 = vmatprep.subr.bf16.mxu0 0
        %2027 = vmatpush1.bf16.msra.mxu0 %v1998
        %2028 = vmatprep.subr.bf16.mxu0 0
        %2029 = vmatpush1.bf16.msra.mxu0 %v1997
        %2030 = vmatprep.subr.bf16.mxu0 0
        %2031 = vmatpush1.bf16.msra.mxu0 %v1996
        %2032 = vmatprep.subr.bf16.mxu0 0
        %2033 = vmatpush1.bf16.msra.mxu0 %v1995
        %2034 = vmatprep.subr.bf16.mxu0 0
        %2035 = vmatpush1.bf16.msra.mxu0 %v1994
        %2036 = vmatprep.subr.bf16.mxu0 0
        %2037 = vmatpush1.bf16.msra.mxu0 %v1993
        %2038 = vmatprep.subr.bf16.mxu0 0
        %2039 = vmatpush1.bf16.msra.mxu0 %v1992
        %2040 = vmatprep.subr.bf16.mxu0 0
        %2041 = vmatpush2.bf16.msra.mxu0 %v2007
        %2042 = vmatprep.subr.bf16.mxu0 0
        %2043 = vmatpush2.bf16.msra.mxu0 %v2006
        %2044 = vmatprep.subr.bf16.mxu0 0
        %2045 = vmatpush2.bf16.msra.mxu0 %v2005
        %2046 = vmatprep.subr.bf16.mxu0 0
        %2047 = vmatpush2.bf16.msra.mxu0 %v2004
        %2048 = vmatprep.subr.bf16.mxu0 0
        %2049 = vmatpush2.bf16.msra.mxu0 %v2003
        %2050 = vmatprep.subr.bf16.mxu0 0
        %2051 = vmatpush2.bf16.msra.mxu0 %v2002
        %2052 = vmatprep.subr.bf16.mxu0 0
        %2053 = vmatpush2.bf16.msra.mxu0 %v2001
        %2054 = vmatprep.subr.bf16.mxu0 0
        %2055 = vmatpush2.bf16.msra.mxu0 %v2000
        %2056 = vmatprep.mubr.bf16.mxu0 %v1927
        %2057 = vmatmul.mubr.bf16.gmra.mxu0 %v1926
        %v2058 = vpop.f32.mrf.mxu0
        %v2059 = vadd.f32 0.0, %v2058
        %v2060 = vpop.f32.mrf.mxu0
        %v2061 = vpop.f32.mrf.mxu0
        %v2062 = vpop.f32.mrf.mxu0
        %2063 = vdwg.mxu0
        %v2064 = vadd.f32 %v1710, %v2059
        %v2065 = vld [vmem:[%s18] sm:$0x1]
        %v2067 = vlaneseq
        %v2068 = vshrl.u32 %v2067, 7
        %v2069 = vsub.s32 0, %v2068
        %v2070 = vrot.slane %v2065, %v2069
        %v2072 = vadd.f32 %v2064, %v2070
        %2073 = vst [vmem:[%s675] sm:$0xff] %v2072
        %p2074 = scmp.lt.s32.totalorder %s32, 1
        %s2075 = scalar_select %p2074, %s32, 1
        %s2076 = smul.addr %s2075, 8
        %s2077 = scalar_lea.vmem %s19, %s2076
        // Predicated region
        $region109: #{full_cross_attention_encoder_fwd.7} parent=95 // pred_check
          %p2078 = pneg %p464
        $region110: #{full_cross_attention_encoder_fwd.7} parent=95 // pred_check_branch
          %2080 = sbr.rel (%p2078) target = $region112
        $region111: #{full_cross_attention_encoder_fwd.7} parent=95 // pred_region
          _
        $region112: #{full_cross_attention_encoder_fwd.7} parent=95 // pred_fallthru
          _
      $region96: #{full_cross_attention_encoder_fwd.7} parent=5 // pred_fallthru
        _
      %p2081 = scmp.le.s32.totalorder 2, %s27
      // Predicated region
      $region113: #{full_cross_attention_encoder_fwd.7} parent=5 // pred_check
        %p2082 = pneg %p2081
      $region114: #{full_cross_attention_encoder_fwd.7} parent=5 // pred_check_branch
        %2084 = sbr.rel (%p2082) target = $region116
      $region115: #{full_cross_attention_encoder_fwd.7} parent=5 // pred_region
        %s2085 = ssub.s32 %s27, 2
        // Predicated region
        $region117: #{full_cross_attention_encoder_fwd.7} parent=115 // pred_check
          %p2086 = pneg %p470
        $region118: #{full_cross_attention_encoder_fwd.7} parent=115 // pred_check_branch
          %2088 = sbr.rel (%p2086) target = $region120
        $region119: #{full_cross_attention_encoder_fwd.7} parent=115 // pred_region
          %p2089 = scmp.lt.s32.totalorder %s33, 1
          %s2090 = scalar_select %p2089, %s33, 1
          %s2091 = smul.addr %s2090, 8
          %s2092 = scalar_lea.vmem %s19, %s2091
        $region120: #{full_cross_attention_encoder_fwd.7} parent=115 // pred_fallthru
          _
      $region116: #{full_cross_attention_encoder_fwd.7} parent=5 // pred_fallthru
        _
    $region6: #{full_cross_attention_encoder_fwd.7} parent=1 // loop_footer
      %s31 = sadd.s32 1, %s27
    $region7: #{full_cross_attention_encoder_fwd.7} parent=1 // loop_footer_branch
      %26 = sbr.rel target = $region3
    $region8: #{full_cross_attention_encoder_fwd.7} parent=1 // loop_exit
      _
    %2093 = vsyncpa [#allocation3], 1
    %s2094 = scalar_lea.sflag [#allocation3], 1
    %2095 = vsyncpa %s2094, 1
    %2096 = vsyncpa [#allocation5], 1

// kernel: full_cross_attention_encoder_fwd.9
$region0: #{full_cross_attention_encoder_fwd.9}
  #allocation0 [shape = 'u32[]', space=smem, size = 0x4, offset = 0x4, fixed_abs, tag = 'smem constant byte address 0x4 - core index']
  #allocation1 [shape = 'u32[144,128]{1,0:T(1,128)}', space=vmem, size = 0x12000, scoped, tag = 'internal scratch']
  %s0 = inlined_call_operand.vmem [shape: f32[2,8,128], index: 0, kind: input, shape index: {}]
  %s1 = inlined_call_operand.vmem [shape: f32[2,16,128], index: 1, kind: input, shape index: {}]
  %s2 = inlined_call_operand.vmem [shape: f32[2,1,16], index: 2, kind: input, shape index: {}]
  %s3 = inlined_call_operand.vmem [shape: f32[1,128], index: 3, kind: input, shape index: {}]
  %s4 = inlined_call_operand.vmem [shape: f32[1,128], index: 4, kind: input, shape index: {}]
  %s5 = inlined_call_operand.vmem [shape: f32[1,128], index: 5, kind: input, shape index: {}]
  %s6 = inlined_call_operand.vmem [shape: f32[1,128], index: 6, kind: input, shape index: {}]
  %s7 = inlined_call_operand.vmem [shape: f32[1,128], index: 7, kind: input, shape index: {}]
  %s8 = inlined_call_operand.vmem [shape: f32[1,128], index: 8, kind: input, shape index: {}]
  %s9 = inlined_call_operand.vmem [shape: bf16[128,128], index: 9, kind: input, shape index: {}]
  %s10 = inlined_call_operand.vmem [shape: f32[1,128], index: 10, kind: input, shape index: {}]
  %s11 = inlined_call_operand.vmem [shape: bf16[128,256], index: 11, kind: input, shape index: {}]
  %s12 = inlined_call_operand.vmem [shape: f32[1,256], index: 12, kind: input, shape index: {}]
  %s13 = inlined_call_operand.vmem [shape: bf16[128,128], index: 13, kind: input, shape index: {}]
  %s14 = inlined_call_operand.vmem [shape: f32[1,128], index: 14, kind: input, shape index: {}]
  %s15 = inlined_call_operand.vmem [shape: bf16[128,256], index: 15, kind: input, shape index: {}]
  %s16 = inlined_call_operand.vmem [shape: f32[1,256], index: 16, kind: input, shape index: {}]
  %s17 = inlined_call_operand.vmem [shape: bf16[256,128], index: 17, kind: input, shape index: {}]
  %s18 = inlined_call_operand.vmem [shape: f32[1,128], index: 18, kind: input, shape index: {}]
  %s19 = inlined_call_operand.vmem [shape: f32[2,8,128], index: 19, kind: output, shape index: {}]
  %s20 = sld [smem:[#allocation0]]
  $region109: #{full_cross_attention_encoder_fwd.9} parent=0
    _
  %s22 = ssub.s32 1, %s20
  %s23 = scalar_select 0, %s22, %s20
  loop: start=0, step=1, limit=4
  $region2: #{full_cross_attention_encoder_fwd.9} parent=0 // loop_pre_header
    _
  $region3: #{full_cross_attention_encoder_fwd.9} parent=0 // loop_header
    %s25 = sphi 0, %s29
    %p26 = scmp.ge.s32.totalorder %s25, 4
    %s35 = sphi 0, %s37
    %s38 = sphi 0, %s35
    %s39 = sphi 0, %s38
    %s55 = sphi 0, %s39
    %s61 = sphi 0, %s63
    %s64 = sphi 0, %s61
    %s65 = sphi 0, %s64
    %s81 = sphi 0, %s65
    %s87 = sphi 0, %s89
    %s90 = sphi 0, %s87
    %s91 = sphi 0, %s90
    %s107 = sphi 0, %s91
    %s111 = sphi 0, %s111
    %s113 = sphi 0, %s111
    %s114 = sphi 0, %s113
    %s128 = sphi 0, %s114
    %s132 = sphi 0, %s132
    %s134 = sphi 0, %s132
    %s135 = sphi 0, %s134
    %s149 = sphi 0, %s135
    %s153 = sphi 0, %s153
    %s155 = sphi 0, %s153
    %s156 = sphi 0, %s155
    %s170 = sphi 0, %s156
    %s174 = sphi 0, %s174
    %s176 = sphi 0, %s174
    %s177 = sphi 0, %s176
    %s191 = sphi 0, %s177
    %s195 = sphi 0, %s195
    %s197 = sphi 0, %s195
    %s198 = sphi 0, %s197
    %s212 = sphi 0, %s198
    %s216 = sphi 0, %s216
    %s218 = sphi 0, %s216
    %s219 = sphi 0, %s218
    %s233 = sphi 0, %s219
    %s237 = sphi 0, %s237
    %s239 = sphi 0, %s237
    %s240 = sphi 0, %s239
    %s254 = sphi 0, %s240
    %s258 = sphi 0, %s258
    %s260 = sphi 0, %s258
    %s261 = sphi 0, %s260
    %s275 = sphi 0, %s261
    %s279 = sphi 0, %s279
    %s281 = sphi 0, %s279
    %s282 = sphi 0, %s281
    %s296 = sphi 0, %s282
    %s300 = sphi 0, %s300
    %s302 = sphi 0, %s300
    %s303 = sphi 0, %s302
    %s317 = sphi 0, %s303
    %s321 = sphi 0, %s321
    %s323 = sphi 0, %s321
    %s324 = sphi 0, %s323
    %s338 = sphi 0, %s324
    %s342 = sphi 0, %s342
    %s344 = sphi 0, %s342
    %s345 = sphi 0, %s344
    %s359 = sphi 0, %s345
    %s363 = sphi 0, %s363
    %s365 = sphi 0, %s363
    %s366 = sphi 0, %s365
    %s380 = sphi 0, %s366
    %s384 = sphi 0, %s384
    %s386 = sphi 0, %s384
    %s387 = sphi 0, %s386
    %s401 = sphi 0, %s387
    %s405 = sphi 0, %s405
    %s407 = sphi 0, %s405
    %s408 = sphi 0, %s407
    %s422 = sphi 0, %s408
    %s426 = sphi 0, %s426
    %s428 = sphi 0, %s426
    %s429 = sphi 0, %s428
    %s443 = sphi 0, %s429
    %s449 = sphi 0, %s451
    %s452 = sphi 0, %s449
    %s453 = sphi 0, %s452
    %s469 = sphi 0, %s453
  $region4: #{full_cross_attention_encoder_fwd.9} parent=0 // loop_header_branch
    %28 = sbr.rel (%p26) target = $region8
  $region5: #{full_cross_attention_encoder_fwd.9} parent=0 // loop_body
    %s30 = ssub.s32 %s25, 1
    %s31 = ssub.s32 %s25, 2
    %s32 = sadd.s32 %s25, 1
    %s33 = ssub.s32 %s25, %s32
    %p34 = scmp.eq.s32.totalorder %s33, 0
    %s36 = sadd.s32 %s35, 1
    %s37 = scalar_select %p34, %s35, %s36
    %p40 = pneg %p34
    %p41 = scmp.eq.s32.totalorder %s25, 1
    %p42 = por %p40, %p41
    %p43 = scmp.ne.s32.totalorder %s35, %s38
    %p44 = scmp.eq.s32.totalorder %s25, 0
    %p45 = por %p43, %p44
    %p46 = scmp.ne.s32.totalorder %s35, %s38
    %p47 = scmp.eq.s32.totalorder %s30, 1
    %p48 = por %p46, %p47
    %p49 = scmp.ne.s32.totalorder %s38, %s39
    %p50 = scmp.eq.s32.totalorder %s30, 0
    %p51 = por %p49, %p50
    %p52 = scmp.ne.s32.totalorder %s38, %s39
    %p53 = scmp.eq.s32.totalorder %s31, 1
    %p54 = por %p52, %p53
    %p56 = scmp.ne.s32.totalorder %s39, %s55
    %p57 = scmp.eq.s32.totalorder %s31, 0
    %p58 = por %p56, %p57
    %s59 = ssub.s32 %s25, %s32
    %p60 = scmp.eq.s32.totalorder %s59, 0
    %s62 = sadd.s32 %s61, 1
    %s63 = scalar_select %p60, %s61, %s62
    %p66 = pneg %p60
    %p67 = scmp.eq.s32.totalorder %s25, 1
    %p68 = por %p66, %p67
    %p69 = scmp.ne.s32.totalorder %s61, %s64
    %p70 = scmp.eq.s32.totalorder %s25, 0
    %p71 = por %p69, %p70
    %p72 = scmp.ne.s32.totalorder %s61, %s64
    %p73 = scmp.eq.s32.totalorder %s30, 1
    %p74 = por %p72, %p73
    %p75 = scmp.ne.s32.totalorder %s64, %s65
    %p76 = scmp.eq.s32.totalorder %s30, 0
    %p77 = por %p75, %p76
    %p78 = scmp.ne.s32.totalorder %s64, %s65
    %p79 = scmp.eq.s32.totalorder %s31, 1
    %p80 = por %p78, %p79
    %p82 = scmp.ne.s32.totalorder %s65, %s81
    %p83 = scmp.eq.s32.totalorder %s31, 0
    %p84 = por %p82, %p83
    %s85 = ssub.s32 %s25, %s32
    %p86 = scmp.eq.s32.totalorder %s85, 0
    %s88 = sadd.s32 %s87, 1
    %s89 = scalar_select %p86, %s87, %s88
    %p92 = pneg %p86
    %p93 = scmp.eq.s32.totalorder %s25, 1
    %p94 = por %p92, %p93
    %p95 = scmp.ne.s32.totalorder %s87, %s90
    %p96 = scmp.eq.s32.totalorder %s25, 0
    %p97 = por %p95, %p96
    %p98 = scmp.ne.s32.totalorder %s87, %s90
    %p99 = scmp.eq.s32.totalorder %s30, 1
    %p100 = por %p98, %p99
    %p101 = scmp.ne.s32.totalorder %s90, %s91
    %p102 = scmp.eq.s32.totalorder %s30, 0
    %p103 = por %p101, %p102
    %p104 = scmp.ne.s32.totalorder %s90, %s91
    %p105 = scmp.eq.s32.totalorder %s31, 1
    %p106 = por %p104, %p105
    %p108 = scmp.ne.s32.totalorder %s91, %s107
    %p109 = scmp.eq.s32.totalorder %s31, 0
    %p110 = por %p108, %p109
    %s112 = sadd.s32 %s111, 1
    %p115 = scmp.eq.s32.totalorder %s25, 1
    %p116 = scmp.ne.s32.totalorder %s111, %s113
    %p117 = scmp.eq.s32.totalorder %s25, 0
    %p118 = por %p116, %p117
    %p119 = scmp.ne.s32.totalorder %s111, %s113
    %p120 = scmp.eq.s32.totalorder %s30, 1
    %p121 = por %p119, %p120
    %p122 = scmp.ne.s32.totalorder %s113, %s114
    %p123 = scmp.eq.s32.totalorder %s30, 0
    %p124 = por %p122, %p123
    %p125 = scmp.ne.s32.totalorder %s113, %s114
    %p126 = scmp.eq.s32.totalorder %s31, 1
    %p127 = por %p125, %p126
    %p129 = scmp.ne.s32.totalorder %s114, %s128
    %p130 = scmp.eq.s32.totalorder %s31, 0
    %p131 = por %p129, %p130
    %s133 = sadd.s32 %s132, 1
    %p136 = scmp.eq.s32.totalorder %s25, 1
    %p137 = scmp.ne.s32.totalorder %s132, %s134
    %p138 = scmp.eq.s32.totalorder %s25, 0
    %p139 = por %p137, %p138
    %p140 = scmp.ne.s32.totalorder %s132, %s134
    %p141 = scmp.eq.s32.totalorder %s30, 1
    %p142 = por %p140, %p141
    %p143 = scmp.ne.s32.totalorder %s134, %s135
    %p144 = scmp.eq.s32.totalorder %s30, 0
    %p145 = por %p143, %p144
    %p146 = scmp.ne.s32.totalorder %s134, %s135
    %p147 = scmp.eq.s32.totalorder %s31, 1
    %p148 = por %p146, %p147
    %p150 = scmp.ne.s32.totalorder %s135, %s149
    %p151 = scmp.eq.s32.totalorder %s31, 0
    %p152 = por %p150, %p151
    %s154 = sadd.s32 %s153, 1
    %p157 = scmp.eq.s32.totalorder %s25, 1
    %p158 = scmp.ne.s32.totalorder %s153, %s155
    %p159 = scmp.eq.s32.totalorder %s25, 0
    %p160 = por %p158, %p159
    %p161 = scmp.ne.s32.totalorder %s153, %s155
    %p162 = scmp.eq.s32.totalorder %s30, 1
    %p163 = por %p161, %p162
    %p164 = scmp.ne.s32.totalorder %s155, %s156
    %p165 = scmp.eq.s32.totalorder %s30, 0
    %p166 = por %p164, %p165
    %p167 = scmp.ne.s32.totalorder %s155, %s156
    %p168 = scmp.eq.s32.totalorder %s31, 1
    %p169 = por %p167, %p168
    %p171 = scmp.ne.s32.totalorder %s156, %s170
    %p172 = scmp.eq.s32.totalorder %s31, 0
    %p173 = por %p171, %p172
    %s175 = sadd.s32 %s174, 1
    %p178 = scmp.eq.s32.totalorder %s25, 1
    %p179 = scmp.ne.s32.totalorder %s174, %s176
    %p180 = scmp.eq.s32.totalorder %s25, 0
    %p181 = por %p179, %p180
    %p182 = scmp.ne.s32.totalorder %s174, %s176
    %p183 = scmp.eq.s32.totalorder %s30, 1
    %p184 = por %p182, %p183
    %p185 = scmp.ne.s32.totalorder %s176, %s177
    %p186 = scmp.eq.s32.totalorder %s30, 0
    %p187 = por %p185, %p186
    %p188 = scmp.ne.s32.totalorder %s176, %s177
    %p189 = scmp.eq.s32.totalorder %s31, 1
    %p190 = por %p188, %p189
    %p192 = scmp.ne.s32.totalorder %s177, %s191
    %p193 = scmp.eq.s32.totalorder %s31, 0
    %p194 = por %p192, %p193
    %s196 = sadd.s32 %s195, 1
    %p199 = scmp.eq.s32.totalorder %s25, 1
    %p200 = scmp.ne.s32.totalorder %s195, %s197
    %p201 = scmp.eq.s32.totalorder %s25, 0
    %p202 = por %p200, %p201
    %p203 = scmp.ne.s32.totalorder %s195, %s197
    %p204 = scmp.eq.s32.totalorder %s30, 1
    %p205 = por %p203, %p204
    %p206 = scmp.ne.s32.totalorder %s197, %s198
    %p207 = scmp.eq.s32.totalorder %s30, 0
    %p208 = por %p206, %p207
    %p209 = scmp.ne.s32.totalorder %s197, %s198
    %p210 = scmp.eq.s32.totalorder %s31, 1
    %p211 = por %p209, %p210
    %p213 = scmp.ne.s32.totalorder %s198, %s212
    %p214 = scmp.eq.s32.totalorder %s31, 0
    %p215 = por %p213, %p214
    %s217 = sadd.s32 %s216, 1
    %p220 = scmp.eq.s32.totalorder %s25, 1
    %p221 = scmp.ne.s32.totalorder %s216, %s218
    %p222 = scmp.eq.s32.totalorder %s25, 0
    %p223 = por %p221, %p222
    %p224 = scmp.ne.s32.totalorder %s216, %s218
    %p225 = scmp.eq.s32.totalorder %s30, 1
    %p226 = por %p224, %p225
    %p227 = scmp.ne.s32.totalorder %s218, %s219
    %p228 = scmp.eq.s32.totalorder %s30, 0
    %p229 = por %p227, %p228
    %p230 = scmp.ne.s32.totalorder %s218, %s219
    %p231 = scmp.eq.s32.totalorder %s31, 1
    %p232 = por %p230, %p231
    %p234 = scmp.ne.s32.totalorder %s219, %s233
    %p235 = scmp.eq.s32.totalorder %s31, 0
    %p236 = por %p234, %p235
    %s238 = sadd.s32 %s237, 1
    %p241 = scmp.eq.s32.totalorder %s25, 1
    %p242 = scmp.ne.s32.totalorder %s237, %s239
    %p243 = scmp.eq.s32.totalorder %s25, 0
    %p244 = por %p242, %p243
    %p245 = scmp.ne.s32.totalorder %s237, %s239
    %p246 = scmp.eq.s32.totalorder %s30, 1
    %p247 = por %p245, %p246
    %p248 = scmp.ne.s32.totalorder %s239, %s240
    %p249 = scmp.eq.s32.totalorder %s30, 0
    %p250 = por %p248, %p249
    %p251 = scmp.ne.s32.totalorder %s239, %s240
    %p252 = scmp.eq.s32.totalorder %s31, 1
    %p253 = por %p251, %p252
    %p255 = scmp.ne.s32.totalorder %s240, %s254
    %p256 = scmp.eq.s32.totalorder %s31, 0
    %p257 = por %p255, %p256
    %s259 = sadd.s32 %s258, 1
    %p262 = scmp.eq.s32.totalorder %s25, 1
    %p263 = scmp.ne.s32.totalorder %s258, %s260
    %p264 = scmp.eq.s32.totalorder %s25, 0
    %p265 = por %p263, %p264
    %p266 = scmp.ne.s32.totalorder %s258, %s260
    %p267 = scmp.eq.s32.totalorder %s30, 1
    %p268 = por %p266, %p267
    %p269 = scmp.ne.s32.totalorder %s260, %s261
    %p270 = scmp.eq.s32.totalorder %s30, 0
    %p271 = por %p269, %p270
    %p272 = scmp.ne.s32.totalorder %s260, %s261
    %p273 = scmp.eq.s32.totalorder %s31, 1
    %p274 = por %p272, %p273
    %p276 = scmp.ne.s32.totalorder %s261, %s275
    %p277 = scmp.eq.s32.totalorder %s31, 0
    %p278 = por %p276, %p277
    %s280 = sadd.s32 %s279, 1
    %p283 = scmp.eq.s32.totalorder %s25, 1
    %p284 = scmp.ne.s32.totalorder %s279, %s281
    %p285 = scmp.eq.s32.totalorder %s25, 0
    %p286 = por %p284, %p285
    %p287 = scmp.ne.s32.totalorder %s279, %s281
    %p288 = scmp.eq.s32.totalorder %s30, 1
    %p289 = por %p287, %p288
    %p290 = scmp.ne.s32.totalorder %s281, %s282
    %p291 = scmp.eq.s32.totalorder %s30, 0
    %p292 = por %p290, %p291
    %p293 = scmp.ne.s32.totalorder %s281, %s282
    %p294 = scmp.eq.s32.totalorder %s31, 1
    %p295 = por %p293, %p294
    %p297 = scmp.ne.s32.totalorder %s282, %s296
    %p298 = scmp.eq.s32.totalorder %s31, 0
    %p299 = por %p297, %p298
    %s301 = sadd.s32 %s300, 1
    %p304 = scmp.eq.s32.totalorder %s25, 1
    %p305 = scmp.ne.s32.totalorder %s300, %s302
    %p306 = scmp.eq.s32.totalorder %s25, 0
    %p307 = por %p305, %p306
    %p308 = scmp.ne.s32.totalorder %s300, %s302
    %p309 = scmp.eq.s32.totalorder %s30, 1
    %p310 = por %p308, %p309
    %p311 = scmp.ne.s32.totalorder %s302, %s303
    %p312 = scmp.eq.s32.totalorder %s30, 0
    %p313 = por %p311, %p312
    %p314 = scmp.ne.s32.totalorder %s302, %s303
    %p315 = scmp.eq.s32.totalorder %s31, 1
    %p316 = por %p314, %p315
    %p318 = scmp.ne.s32.totalorder %s303, %s317
    %p319 = scmp.eq.s32.totalorder %s31, 0
    %p320 = por %p318, %p319
    %s322 = sadd.s32 %s321, 1
    %p325 = scmp.eq.s32.totalorder %s25, 1
    %p326 = scmp.ne.s32.totalorder %s321, %s323
    %p327 = scmp.eq.s32.totalorder %s25, 0
    %p328 = por %p326, %p327
    %p329 = scmp.ne.s32.totalorder %s321, %s323
    %p330 = scmp.eq.s32.totalorder %s30, 1
    %p331 = por %p329, %p330
    %p332 = scmp.ne.s32.totalorder %s323, %s324
    %p333 = scmp.eq.s32.totalorder %s30, 0
    %p334 = por %p332, %p333
    %p335 = scmp.ne.s32.totalorder %s323, %s324
    %p336 = scmp.eq.s32.totalorder %s31, 1
    %p337 = por %p335, %p336
    %p339 = scmp.ne.s32.totalorder %s324, %s338
    %p340 = scmp.eq.s32.totalorder %s31, 0
    %p341 = por %p339, %p340
    %s343 = sadd.s32 %s342, 1
    %p346 = scmp.eq.s32.totalorder %s25, 1
    %p347 = scmp.ne.s32.totalorder %s342, %s344
    %p348 = scmp.eq.s32.totalorder %s25, 0
    %p349 = por %p347, %p348
    %p350 = scmp.ne.s32.totalorder %s342, %s344
    %p351 = scmp.eq.s32.totalorder %s30, 1
    %p352 = por %p350, %p351
    %p353 = scmp.ne.s32.totalorder %s344, %s345
    %p354 = scmp.eq.s32.totalorder %s30, 0
    %p355 = por %p353, %p354
    %p356 = scmp.ne.s32.totalorder %s344, %s345
    %p357 = scmp.eq.s32.totalorder %s31, 1
    %p358 = por %p356, %p357
    %p360 = scmp.ne.s32.totalorder %s345, %s359
    %p361 = scmp.eq.s32.totalorder %s31, 0
    %p362 = por %p360, %p361
    %s364 = sadd.s32 %s363, 1
    %p367 = scmp.eq.s32.totalorder %s25, 1
    %p368 = scmp.ne.s32.totalorder %s363, %s365
    %p369 = scmp.eq.s32.totalorder %s25, 0
    %p370 = por %p368, %p369
    %p371 = scmp.ne.s32.totalorder %s363, %s365
    %p372 = scmp.eq.s32.totalorder %s30, 1
    %p373 = por %p371, %p372
    %p374 = scmp.ne.s32.totalorder %s365, %s366
    %p375 = scmp.eq.s32.totalorder %s30, 0
    %p376 = por %p374, %p375
    %p377 = scmp.ne.s32.totalorder %s365, %s366
    %p378 = scmp.eq.s32.totalorder %s31, 1
    %p379 = por %p377, %p378
    %p381 = scmp.ne.s32.totalorder %s366, %s380
    %p382 = scmp.eq.s32.totalorder %s31, 0
    %p383 = por %p381, %p382
    %s385 = sadd.s32 %s384, 1
    %p388 = scmp.eq.s32.totalorder %s25, 1
    %p389 = scmp.ne.s32.totalorder %s384, %s386
    %p390 = scmp.eq.s32.totalorder %s25, 0
    %p391 = por %p389, %p390
    %p392 = scmp.ne.s32.totalorder %s384, %s386
    %p393 = scmp.eq.s32.totalorder %s30, 1
    %p394 = por %p392, %p393
    %p395 = scmp.ne.s32.totalorder %s386, %s387
    %p396 = scmp.eq.s32.totalorder %s30, 0
    %p397 = por %p395, %p396
    %p398 = scmp.ne.s32.totalorder %s386, %s387
    %p399 = scmp.eq.s32.totalorder %s31, 1
    %p400 = por %p398, %p399
    %p402 = scmp.ne.s32.totalorder %s387, %s401
    %p403 = scmp.eq.s32.totalorder %s31, 0
    %p404 = por %p402, %p403
    %s406 = sadd.s32 %s405, 1
    %p409 = scmp.eq.s32.totalorder %s25, 1
    %p410 = scmp.ne.s32.totalorder %s405, %s407
    %p411 = scmp.eq.s32.totalorder %s25, 0
    %p412 = por %p410, %p411
    %p413 = scmp.ne.s32.totalorder %s405, %s407
    %p414 = scmp.eq.s32.totalorder %s30, 1
    %p415 = por %p413, %p414
    %p416 = scmp.ne.s32.totalorder %s407, %s408
    %p417 = scmp.eq.s32.totalorder %s30, 0
    %p418 = por %p416, %p417
    %p419 = scmp.ne.s32.totalorder %s407, %s408
    %p420 = scmp.eq.s32.totalorder %s31, 1
    %p421 = por %p419, %p420
    %p423 = scmp.ne.s32.totalorder %s408, %s422
    %p424 = scmp.eq.s32.totalorder %s31, 0
    %p425 = por %p423, %p424
    %s427 = sadd.s32 %s426, 1
    %p430 = scmp.eq.s32.totalorder %s25, 1
    %p431 = scmp.ne.s32.totalorder %s426, %s428
    %p432 = scmp.eq.s32.totalorder %s25, 0
    %p433 = por %p431, %p432
    %p434 = scmp.ne.s32.totalorder %s426, %s428
    %p435 = scmp.eq.s32.totalorder %s30, 1
    %p436 = por %p434, %p435
    %p437 = scmp.ne.s32.totalorder %s428, %s429
    %p438 = scmp.eq.s32.totalorder %s30, 0
    %p439 = por %p437, %p438
    %p440 = scmp.ne.s32.totalorder %s428, %s429
    %p441 = scmp.eq.s32.totalorder %s31, 1
    %p442 = por %p440, %p441
    %p444 = scmp.ne.s32.totalorder %s429, %s443
    %p445 = scmp.eq.s32.totalorder %s31, 0
    %p446 = por %p444, %p445
    %s447 = ssub.s32 %s25, %s32
    %p448 = scmp.eq.s32.totalorder %s447, 0
    %s450 = sadd.s32 %s449, 1
    %s451 = scalar_select %p448, %s449, %s450
    %p454 = pneg %p448
    %p455 = scmp.eq.s32.totalorder %s25, 1
    %p456 = por %p454, %p455
    %p457 = scmp.ne.s32.totalorder %s449, %s452
    %p458 = scmp.eq.s32.totalorder %s25, 0
    %p459 = por %p457, %p458
    %p460 = scmp.ne.s32.totalorder %s449, %s452
    %p461 = scmp.eq.s32.totalorder %s30, 1
    %p462 = por %p460, %p461
    %p463 = scmp.ne.s32.totalorder %s452, %s453
    %p464 = scmp.eq.s32.totalorder %s30, 0
    %p465 = por %p463, %p464
    %p466 = scmp.ne.s32.totalorder %s452, %s453
    %p467 = scmp.eq.s32.totalorder %s31, 1
    %p468 = por %p466, %p467
    %p470 = scmp.ne.s32.totalorder %s453, %s469
    %p471 = scmp.eq.s32.totalorder %s31, 0
    %p472 = por %p470, %p471
    %p473 = scmp.le.s32.totalorder 1, %s25
    %p474 = scmp.lt.s32.totalorder %s25, 3
    %p475 = pnand %p473, %p474
    %p476 = pneg %p475
    // Predicated region
    $region9: #{full_cross_attention_encoder_fwd.9} parent=5 // pred_check
      _
    $region10: #{full_cross_attention_encoder_fwd.9} parent=5 // pred_check_branch
      %478 = sbr.rel (%p475) target = $region12
    $region11: #{full_cross_attention_encoder_fwd.9} parent=5 // pred_region
      %s479 = ssub.s32 %s25, 1
      // Predicated region
      $region13: #{full_cross_attention_encoder_fwd.9} parent=11 // pred_check
        %p480 = pneg %p124
      $region14: #{full_cross_attention_encoder_fwd.9} parent=11 // pred_check_branch
        %482 = sbr.rel (%p480) target = $region16
      $region15: #{full_cross_attention_encoder_fwd.9} parent=11 // pred_region
        _
      $region16: #{full_cross_attention_encoder_fwd.9} parent=11 // pred_fallthru
        _
      // Predicated region
      $region17: #{full_cross_attention_encoder_fwd.9} parent=11 // pred_check
        %p483 = pneg %p145
      $region18: #{full_cross_attention_encoder_fwd.9} parent=11 // pred_check_branch
        %485 = sbr.rel (%p483) target = $region20
      $region19: #{full_cross_attention_encoder_fwd.9} parent=11 // pred_region
        _
      $region20: #{full_cross_attention_encoder_fwd.9} parent=11 // pred_fallthru
        _
      // Predicated region
      $region21: #{full_cross_attention_encoder_fwd.9} parent=11 // pred_check
        %p486 = pneg %p166
      $region22: #{full_cross_attention_encoder_fwd.9} parent=11 // pred_check_branch
        %488 = sbr.rel (%p486) target = $region24
      $region23: #{full_cross_attention_encoder_fwd.9} parent=11 // pred_region
        _
      $region24: #{full_cross_attention_encoder_fwd.9} parent=11 // pred_fallthru
        _
      // Predicated region
      $region25: #{full_cross_attention_encoder_fwd.9} parent=11 // pred_check
        %p489 = pneg %p187
      $region26: #{full_cross_attention_encoder_fwd.9} parent=11 // pred_check_branch
        %491 = sbr.rel (%p489) target = $region28
      $region27: #{full_cross_attention_encoder_fwd.9} parent=11 // pred_region
        _
      $region28: #{full_cross_attention_encoder_fwd.9} parent=11 // pred_fallthru
        _
      // Predicated region
      $region29: #{full_cross_attention_encoder_fwd.9} parent=11 // pred_check
        %p492 = pneg %p208
      $region30: #{full_cross_attention_encoder_fwd.9} parent=11 // pred_check_branch
        %494 = sbr.rel (%p492) target = $region32
      $region31: #{full_cross_attention_encoder_fwd.9} parent=11 // pred_region
        _
      $region32: #{full_cross_attention_encoder_fwd.9} parent=11 // pred_fallthru
        _
      // Predicated region
      $region33: #{full_cross_attention_encoder_fwd.9} parent=11 // pred_check
        %p495 = pneg %p229
      $region34: #{full_cross_attention_encoder_fwd.9} parent=11 // pred_check_branch
        %497 = sbr.rel (%p495) target = $region36
      $region35: #{full_cross_attention_encoder_fwd.9} parent=11 // pred_region
        _
      $region36: #{full_cross_attention_encoder_fwd.9} parent=11 // pred_fallthru
        _
      // Predicated region
      $region37: #{full_cross_attention_encoder_fwd.9} parent=11 // pred_check
        %p498 = pneg %p250
      $region38: #{full_cross_attention_encoder_fwd.9} parent=11 // pred_check_branch
        %500 = sbr.rel (%p498) target = $region40
      $region39: #{full_cross_attention_encoder_fwd.9} parent=11 // pred_region
        _
      $region40: #{full_cross_attention_encoder_fwd.9} parent=11 // pred_fallthru
        _
      // Predicated region
      $region41: #{full_cross_attention_encoder_fwd.9} parent=11 // pred_check
        %p501 = pneg %p271
      $region42: #{full_cross_attention_encoder_fwd.9} parent=11 // pred_check_branch
        %503 = sbr.rel (%p501) target = $region44
      $region43: #{full_cross_attention_encoder_fwd.9} parent=11 // pred_region
        _
      $region44: #{full_cross_attention_encoder_fwd.9} parent=11 // pred_fallthru
        _
      // Predicated region
      $region45: #{full_cross_attention_encoder_fwd.9} parent=11 // pred_check
        %p504 = pneg %p292
      $region46: #{full_cross_attention_encoder_fwd.9} parent=11 // pred_check_branch
        %506 = sbr.rel (%p504) target = $region48
      $region47: #{full_cross_attention_encoder_fwd.9} parent=11 // pred_region
        _
      $region48: #{full_cross_attention_encoder_fwd.9} parent=11 // pred_fallthru
        _
      // Predicated region
      $region49: #{full_cross_attention_encoder_fwd.9} parent=11 // pred_check
        %p507 = pneg %p313
      $region50: #{full_cross_attention_encoder_fwd.9} parent=11 // pred_check_branch
        %509 = sbr.rel (%p507) target = $region52
      $region51: #{full_cross_attention_encoder_fwd.9} parent=11 // pred_region
        _
      $region52: #{full_cross_attention_encoder_fwd.9} parent=11 // pred_fallthru
        _
      // Predicated region
      $region53: #{full_cross_attention_encoder_fwd.9} parent=11 // pred_check
        %p510 = pneg %p334
      $region54: #{full_cross_attention_encoder_fwd.9} parent=11 // pred_check_branch
        %512 = sbr.rel (%p510) target = $region56
      $region55: #{full_cross_attention_encoder_fwd.9} parent=11 // pred_region
        _
      $region56: #{full_cross_attention_encoder_fwd.9} parent=11 // pred_fallthru
        _
      // Predicated region
      $region57: #{full_cross_attention_encoder_fwd.9} parent=11 // pred_check
        %p513 = pneg %p355
      $region58: #{full_cross_attention_encoder_fwd.9} parent=11 // pred_check_branch
        %515 = sbr.rel (%p513) target = $region60
      $region59: #{full_cross_attention_encoder_fwd.9} parent=11 // pred_region
        _
      $region60: #{full_cross_attention_encoder_fwd.9} parent=11 // pred_fallthru
        _
      // Predicated region
      $region61: #{full_cross_attention_encoder_fwd.9} parent=11 // pred_check
        %p516 = pneg %p376
      $region62: #{full_cross_attention_encoder_fwd.9} parent=11 // pred_check_branch
        %518 = sbr.rel (%p516) target = $region64
      $region63: #{full_cross_attention_encoder_fwd.9} parent=11 // pred_region
        _
      $region64: #{full_cross_attention_encoder_fwd.9} parent=11 // pred_fallthru
        _
      // Predicated region
      $region65: #{full_cross_attention_encoder_fwd.9} parent=11 // pred_check
        %p519 = pneg %p397
      $region66: #{full_cross_attention_encoder_fwd.9} parent=11 // pred_check_branch
        %521 = sbr.rel (%p519) target = $region68
      $region67: #{full_cross_attention_encoder_fwd.9} parent=11 // pred_region
        _
      $region68: #{full_cross_attention_encoder_fwd.9} parent=11 // pred_fallthru
        _
      // Predicated region
      $region69: #{full_cross_attention_encoder_fwd.9} parent=11 // pred_check
        %p522 = pneg %p418
      $region70: #{full_cross_attention_encoder_fwd.9} parent=11 // pred_check_branch
        %524 = sbr.rel (%p522) target = $region72
      $region71: #{full_cross_attention_encoder_fwd.9} parent=11 // pred_region
        _
      $region72: #{full_cross_attention_encoder_fwd.9} parent=11 // pred_fallthru
        _
      // Predicated region
      $region73: #{full_cross_attention_encoder_fwd.9} parent=11 // pred_check
        %p525 = pneg %p439
      $region74: #{full_cross_attention_encoder_fwd.9} parent=11 // pred_check_branch
        %527 = sbr.rel (%p525) target = $region76
      $region75: #{full_cross_attention_encoder_fwd.9} parent=11 // pred_region
        _
      $region76: #{full_cross_attention_encoder_fwd.9} parent=11 // pred_fallthru
        _
    $region12: #{full_cross_attention_encoder_fwd.9} parent=5 // pred_fallthru
      _
    %p528 = scmp.lt.s32.totalorder %s25, 2
    // Predicated region
    $region77: #{full_cross_attention_encoder_fwd.9} parent=5 // pred_check
      %p529 = pneg %p528
    $region78: #{full_cross_attention_encoder_fwd.9} parent=5 // pred_check_branch
      %531 = sbr.rel (%p529) target = $region80
    $region79: #{full_cross_attention_encoder_fwd.9} parent=5 // pred_region
      // Predicated region
      $region81: #{full_cross_attention_encoder_fwd.9} parent=79 // pred_check
        %p532 = pneg %p45
      $region82: #{full_cross_attention_encoder_fwd.9} parent=79 // pred_check_branch
        %534 = sbr.rel (%p532) target = $region84
      $region83: #{full_cross_attention_encoder_fwd.9} parent=79 // pred_region
        %p535 = scmp.lt.s32.totalorder %s25, 1
        %s536 = scalar_select %p535, %s25, 1
        %s537 = smul.addr %s536, 8
        %s538 = scalar_lea.vmem %s0, %s537
      $region84: #{full_cross_attention_encoder_fwd.9} parent=79 // pred_fallthru
        _
      // Predicated region
      $region85: #{full_cross_attention_encoder_fwd.9} parent=79 // pred_check
        %p539 = pneg %p71
      $region86: #{full_cross_attention_encoder_fwd.9} parent=79 // pred_check_branch
        %541 = sbr.rel (%p539) target = $region88
      $region87: #{full_cross_attention_encoder_fwd.9} parent=79 // pred_region
        %p542 = scmp.lt.s32.totalorder %s25, 1
        %s543 = scalar_select %p542, %s25, 1
        %s544 = smul.addr %s543, 2
        %s545 = smul.addr %s544, 8
        %s546 = scalar_lea.vmem %s1, %s545
      $region88: #{full_cross_attention_encoder_fwd.9} parent=79 // pred_fallthru
        _
      // Predicated region
      $region89: #{full_cross_attention_encoder_fwd.9} parent=79 // pred_check
        %p547 = pneg %p97
      $region90: #{full_cross_attention_encoder_fwd.9} parent=79 // pred_check_branch
        %549 = sbr.rel (%p547) target = $region92
      $region91: #{full_cross_attention_encoder_fwd.9} parent=79 // pred_region
        %p550 = scmp.lt.s32.totalorder %s25, 1
        %s551 = scalar_select %p550, %s25, 1
        %s552 = scalar_lea.vmem %s2, %s551
      $region92: #{full_cross_attention_encoder_fwd.9} parent=79 // pred_fallthru
        _
    $region80: #{full_cross_attention_encoder_fwd.9} parent=5 // pred_fallthru
      _
    %p553 = scmp.le.s32.totalorder 1, %s25
    %p554 = scmp.lt.s32.totalorder %s25, 3
    %p555 = pnand %p553, %p554
    %p556 = pneg %p555
    // Predicated region
    $region93: #{full_cross_attention_encoder_fwd.9} parent=5 // pred_check
      _
    $region94: #{full_cross_attention_encoder_fwd.9} parent=5 // pred_check_branch
      %558 = sbr.rel (%p555) target = $region96
    $region95: #{full_cross_attention_encoder_fwd.9} parent=5 // pred_region
      %s559 = ssub.s32 %s25, 1
      %p560 = scmp.lt.s32.totalorder %s30, 1
      %s561 = scalar_select %p560, %s30, 1
      %s562 = smul.addr %s561, 8
      %s563 = scalar_lea.vmem %s0, %s562
      %p564 = pneg %p51
      %p565 = pneg %p48
      %p566 = scmp.lt.s32.totalorder %s30, 1
      %s567 = scalar_select %p566, %s30, 1
      %s568 = smul.addr %s567, 2
      %s569 = smul.addr %s568, 8
      %s570 = scalar_lea.vmem %s1, %s569
      %p571 = pneg %p77
      %p572 = pneg %p74
      %p573 = scmp.lt.s32.totalorder %s30, 1
      %s574 = scalar_select %p573, %s30, 1
      %s575 = scalar_lea.vmem %s2, %s574
      %p576 = pneg %p103
      %p577 = pneg %p100
      %p578 = pneg %p124
      %p579 = pneg %p121
      %p580 = pneg %p145
      %p581 = pneg %p142
      %p582 = pneg %p166
      %p583 = pneg %p163
      %p584 = pneg %p187
      %p585 = pneg %p184
      %p586 = pneg %p208
      %p587 = pneg %p205
      %p588 = pneg %p229
      %p589 = pneg %p226
      %p590 = pneg %p250
      %p591 = pneg %p247
      %p592 = pneg %p271
      %p593 = pneg %p268
      %p594 = pneg %p292
      %p595 = pneg %p289
      %p596 = pneg %p313
      %p597 = pneg %p310
      %p598 = pneg %p334
      %p599 = pneg %p331
      %p600 = pneg %p355
      %p601 = pneg %p352
      %p602 = pneg %p376
      %p603 = pneg %p373
      %p604 = pneg %p397
      %p605 = pneg %p394
      %p606 = pneg %p418
      %p607 = pneg %p415
      %p608 = pneg %p439
      %p609 = pneg %p436
      %p610 = pneg %p465
      %p611 = pneg %p462
      %p612 = scmp.lt.s32.totalorder %s30, 1
      %s613 = scalar_select %p612, %s30, 1
      %s614 = smul.addr %s613, 8
      %s615 = scalar_lea.vmem %s19, %s614
      %p616 = scmp.lt.s32.totalorder %s30, 1
      %s617 = scalar_select %p616, %s30, 1
      %s618 = smul.addr %s617, 8
      %s619 = scalar_lea.vmem %s0, %s618
      %p620 = scmp.lt.s32.totalorder %s30, 1
      %s621 = scalar_select %p620, %s30, 1
      %s622 = smul.addr %s621, 2
      %s623 = smul.addr %s622, 8
      %s624 = scalar_lea.vmem %s1, %s623
      %p625 = scmp.lt.s32.totalorder %s30, 1
      %s626 = scalar_select %p625, %s30, 1
      %s627 = scalar_lea.vmem %s2, %s626
      %p628 = scmp.lt.s32.totalorder %s30, 1
      %s629 = scalar_select %p628, %s30, 1
      %s630 = smul.addr %s629, 8
      %s631 = scalar_lea.vmem %s19, %s630
      %v633 = vld [vmem:[%s619] sm:$0xff]
      %v634 = vld [vmem:[%s624] sm:$0xff]
      %v635 = vld [vmem:[%s624 + $0x8] sm:$0xff]
      %v636 = vld [vmem:[%s627] sm:$0x1]
      %v637 = vld [vmem:[%s5] sm:$0x1]
      %v638 = vld [vmem:[%s6] sm:$0x1]
      %639 = vadd.xlane.f32.xlu0 %v633
      %v640 = vpop.xlane.xlu0 %639
      %v641 = vrcp.pop 128.0
      %v642 = vmul.f32 %v640, %v641
      %v643 = vsub.f32 %v633, %v642
      %v644 = vmul.f32 %v643, %v643
      %645 = vadd.xlane.f32.xlu0 %v644
      %v646 = vpop.xlane.xlu0 %645
      %v647 = vmul.f32 %v646, %v641
      %v648 = vadd.f32 %v647, 1e-05
      %v649 = vrsqrt.pop %v648
      %v650 = vmul.f32 %v643, %v649
      %v652 = vlaneseq
      %v653 = vshrl.u32 %v652, 7
      %v654 = vsub.s32 0, %v653
      %v655 = vrot.slane %v637, %v654
      %v657 = vmul.f32 %v650, %v655
      %v659 = vlaneseq
      %v660 = vshrl.u32 %v659, 7
      %v661 = vsub.s32 0, %v660
      %v662 = vrot.slane %v638, %v661
      %v664 = vadd.f32 %v657, %v662
      %v665 = vld [vmem:[%s9] sm:$0xf]
      %v666 = vld [vmem:[%s9 + $0x4] sm:$0xf]
      %v667 = vld [vmem:[%s9 + $0x8] sm:$0xf]
      %v668 = vld [vmem:[%s9 + $0xc] sm:$0xf]
      %v669 = vld [vmem:[%s9 + $0x10] sm:$0xf]
      %v670 = vld [vmem:[%s9 + $0x14] sm:$0xf]
      %v671 = vld [vmem:[%s9 + $0x18] sm:$0xf]
      %v672 = vld [vmem:[%s9 + $0x1c] sm:$0xf]
      %v673 = vld [vmem:[%s9 + $0x20] sm:$0xf]
      %v674 = vld [vmem:[%s9 + $0x24] sm:$0xf]
      %v675 = vld [vmem:[%s9 + $0x28] sm:$0xf]
      %v676 = vld [vmem:[%s9 + $0x2c] sm:$0xf]
      %v677 = vld [vmem:[%s9 + $0x30] sm:$0xf]
      %v678 = vld [vmem:[%s9 + $0x34] sm:$0xf]
      %v679 = vld [vmem:[%s9 + $0x38] sm:$0xf]
      %v680 = vld [vmem:[%s9 + $0x3c] sm:$0xf]
      %v681 = vpack.c.bf16 %v664, %v664
      %v682 = vld [vmem:[%s10] sm:$0x1]
      %v684 = vlaneseq
      %v685 = vshrl.u32 %v684, 7
      %v686 = vsub.s32 0, %v685
      %v687 = vrot.slane %v682, %v686
      %v705 = vunpack.c.l.b16 %v665
      %v706 = vunpack.c.l.b16 %v666
      %v707 = vunpack.c.l.b16 %v667
      %v708 = vunpack.c.l.b16 %v668
      %v709 = vunpack.c.l.b16 %v669
      %v710 = vunpack.c.l.b16 %v670
      %v711 = vunpack.c.l.b16 %v671
      %v712 = vunpack.c.l.b16 %v672
      %v713 = vunpack.c.l.b16 %v673
      %v714 = vunpack.c.l.b16 %v674
      %v715 = vunpack.c.l.b16 %v675
      %v716 = vunpack.c.l.b16 %v676
      %v717 = vunpack.c.l.b16 %v677
      %v718 = vunpack.c.l.b16 %v678
      %v719 = vunpack.c.l.b16 %v679
      %v720 = vunpack.c.l.b16 %v680
      %v721 = vpack.c.b16 %v706, %v705
      %v722 = vpack.c.b16 %v708, %v707
      %v723 = vpack.c.b16 %v710, %v709
      %v724 = vpack.c.b16 %v712, %v711
      %v725 = vpack.c.b16 %v714, %v713
      %v726 = vpack.c.b16 %v716, %v715
      %v727 = vpack.c.b16 %v718, %v717
      %v728 = vpack.c.b16 %v720, %v719
      %737 = vmatprep.subr.bf16.mxu0 0
      %738 = vmatpush1.bf16.msra.mxu0 %v728
      %739 = vmatprep.subr.bf16.mxu0 0
      %740 = vmatpush1.bf16.msra.mxu0 %v727
      %741 = vmatprep.subr.bf16.mxu0 0
      %742 = vmatpush1.bf16.msra.mxu0 %v726
      %743 = vmatprep.subr.bf16.mxu0 0
      %744 = vmatpush1.bf16.msra.mxu0 %v725
      %745 = vmatprep.subr.bf16.mxu0 0
      %746 = vmatpush1.bf16.msra.mxu0 %v724
      %747 = vmatprep.subr.bf16.mxu0 0
      %748 = vmatpush1.bf16.msra.mxu0 %v723
      %749 = vmatprep.subr.bf16.mxu0 0
      %750 = vmatpush1.bf16.msra.mxu0 %v722
      %751 = vmatprep.subr.bf16.mxu0 0
      %752 = vmatpush1.bf16.msra.mxu0 %v721
      %753 = vmatprep.subr.bf16.mxu0 0
      %754 = vmatpush2.bf16.msra.mxu0 0
      %755 = vmatprep.subr.bf16.mxu0 0
      %756 = vmatpush2.bf16.msra.mxu0 0
      %757 = vmatprep.subr.bf16.mxu0 0
      %758 = vmatpush2.bf16.msra.mxu0 0
      %759 = vmatprep.subr.bf16.mxu0 0
      %760 = vmatpush2.bf16.msra.mxu0 0
      %761 = vmatprep.subr.bf16.mxu0 0
      %762 = vmatpush2.bf16.msra.mxu0 0
      %763 = vmatprep.subr.bf16.mxu0 0
      %764 = vmatpush2.bf16.msra.mxu0 0
      %765 = vmatprep.subr.bf16.mxu0 0
      %766 = vmatpush2.bf16.msra.mxu0 0
      %767 = vmatprep.subr.bf16.mxu0 0
      %768 = vmatpush2.bf16.msra.mxu0 0
      %769 = vmatprep.mubr.bf16.mxu0 0
      %770 = vmatmul.mubr.bf16.gmra.mxu0 %v681
      %v771 = vpop.f32.mrf.mxu0
      %v772 = vadd.f32 %v687, %v771
      %v773 = vpop.f32.mrf.mxu0
      %v774 = vpop.f32.mrf.mxu0
      %v775 = vpop.f32.mrf.mxu0
      %776 = vdwg.mxu0
      %v777 = vld [vmem:[%s3] sm:$0x1]
      %v778 = vld [vmem:[%s4] sm:$0x1]
      %779 = vadd.xlane.f32.xlu0 %v634
      %v780 = vpop.xlane.xlu0 %779
      %781 = vadd.xlane.f32.xlu0 %v635
      %v782 = vpop.xlane.xlu0 %781
      %v783 = vmul.f32 %v780, %v641
      %v784 = vmul.f32 %v782, %v641
      %v785 = vsub.f32 %v634, %v783
      %v786 = vsub.f32 %v635, %v784
      %v787 = vmul.f32 %v785, %v785
      %v788 = vmul.f32 %v786, %v786
      %789 = vadd.xlane.f32.xlu0 %v787
      %v790 = vpop.xlane.xlu0 %789
      %791 = vadd.xlane.f32.xlu0 %v788
      %v792 = vpop.xlane.xlu0 %791
      %v793 = vmul.f32 %v790, %v641
      %v794 = vmul.f32 %v792, %v641
      %v795 = vadd.f32 %v793, 1e-05
      %v796 = vadd.f32 %v794, 1e-05
      %v797 = vrsqrt.pop %v795
      %v798 = vrsqrt.pop %v796
      %v799 = vmul.f32 %v785, %v797
      %v800 = vmul.f32 %v786, %v798
      %v802 = vlaneseq
      %v803 = vshrl.u32 %v802, 7
      %v804 = vsub.s32 0, %v803
      %v805 = vrot.slane %v777, %v804
      %v807 = vmul.f32 %v799, %v805
      %v808 = vmul.f32 %v800, %v805
      %v810 = vlaneseq
      %v811 = vshrl.u32 %v810, 7
      %v812 = vsub.s32 0, %v811
      %v813 = vrot.slane %v778, %v812
      %v815 = vadd.f32 %v807, %v813
      %v816 = vadd.f32 %v808, %v813
      %v817 = vld [vmem:[%s11] sm:$0xff]
      %v818 = vld [vmem:[%s11 + $0x8] sm:$0xff]
      %v819 = vld [vmem:[%s11 + $0x10] sm:$0xff]
      %v820 = vld [vmem:[%s11 + $0x18] sm:$0xff]
      %v821 = vld [vmem:[%s11 + $0x20] sm:$0xff]
      %v822 = vld [vmem:[%s11 + $0x28] sm:$0xff]
      %v823 = vld [vmem:[%s11 + $0x30] sm:$0xff]
      %v824 = vld [vmem:[%s11 + $0x38] sm:$0xff]
      %v825 = vld [vmem:[%s11 + $0x40] sm:$0xff]
      %v826 = vld [vmem:[%s11 + $0x48] sm:$0xff]
      %v827 = vld [vmem:[%s11 + $0x50] sm:$0xff]
      %v828 = vld [vmem:[%s11 + $0x58] sm:$0xff]
      %v829 = vld [vmem:[%s11 + $0x60] sm:$0xff]
      %v830 = vld [vmem:[%s11 + $0x68] sm:$0xff]
      %v831 = vld [vmem:[%s11 + $0x70] sm:$0xff]
      %v832 = vld [vmem:[%s11 + $0x78] sm:$0xff]
      %v833 = vpack.c.bf16 %v816, %v815
      %v834 = vld [vmem:[%s12] sm:$0x3]
      %v836 = vlaneseq
      %v837 = vshrl.u32 %v836, 7
      %v838 = vsub.s32 0, %v837
      %v839 = vrot.slane %v834, %v838
      %v840 = vlaneseq
      %v841 = vshrl.u32 %v840, 7
      %v842 = vsub.s32 1, %v841
      %v843 = vrot.slane %v834, %v842
      %v862 = vunpack.c.l.b16 %v817
      %v863 = vunpack.c.h.b16 %v817
      %v864 = vunpack.c.l.b16 %v818
      %v865 = vunpack.c.h.b16 %v818
      %v866 = vunpack.c.l.b16 %v819
      %v867 = vunpack.c.h.b16 %v819
      %v868 = vunpack.c.l.b16 %v820
      %v869 = vunpack.c.h.b16 %v820
      %v870 = vunpack.c.l.b16 %v821
      %v871 = vunpack.c.h.b16 %v821
      %v872 = vunpack.c.l.b16 %v822
      %v873 = vunpack.c.h.b16 %v822
      %v874 = vunpack.c.l.b16 %v823
      %v875 = vunpack.c.h.b16 %v823
      %v876 = vunpack.c.l.b16 %v824
      %v877 = vunpack.c.h.b16 %v824
      %v878 = vunpack.c.l.b16 %v825
      %v879 = vunpack.c.h.b16 %v825
      %v880 = vunpack.c.l.b16 %v826
      %v881 = vunpack.c.h.b16 %v826
      %v882 = vunpack.c.l.b16 %v827
      %v883 = vunpack.c.h.b16 %v827
      %v884 = vunpack.c.l.b16 %v828
      %v885 = vunpack.c.h.b16 %v828
      %v886 = vunpack.c.l.b16 %v829
      %v887 = vunpack.c.h.b16 %v829
      %v888 = vunpack.c.l.b16 %v830
      %v889 = vunpack.c.h.b16 %v830
      %v890 = vunpack.c.l.b16 %v831
      %v891 = vunpack.c.h.b16 %v831
      %v892 = vunpack.c.l.b16 %v832
      %v893 = vunpack.c.h.b16 %v832
      %v894 = vpack.c.b16 %v864, %v862
      %v895 = vpack.c.b16 %v865, %v863
      %v896 = vpack.c.b16 %v868, %v866
      %v897 = vpack.c.b16 %v869, %v867
      %v898 = vpack.c.b16 %v872, %v870
      %v899 = vpack.c.b16 %v873, %v871
      %v900 = vpack.c.b16 %v876, %v874
      %v901 = vpack.c.b16 %v877, %v875
      %v902 = vpack.c.b16 %v880, %v878
      %v903 = vpack.c.b16 %v881, %v879
      %v904 = vpack.c.b16 %v884, %v882
      %v905 = vpack.c.b16 %v885, %v883
      %v906 = vpack.c.b16 %v888, %v886
      %v907 = vpack.c.b16 %v889, %v887
      %v908 = vpack.c.b16 %v892, %v890
      %v909 = vpack.c.b16 %v893, %v891
      %926 = vmatprep.subr.bf16.mxu0 %v909
      %927 = vmatpush1.bf16.msra.mxu0 %v908
      %928 = vmatprep.subr.bf16.mxu0 %v907
      %929 = vmatpush1.bf16.msra.mxu0 %v906
      %930 = vmatprep.subr.bf16.mxu0 %v905
      %931 = vmatpush1.bf16.msra.mxu0 %v904
      %932 = vmatprep.subr.bf16.mxu0 %v903
      %933 = vmatpush1.bf16.msra.mxu0 %v902
      %934 = vmatprep.subr.bf16.mxu0 %v901
      %935 = vmatpush1.bf16.msra.mxu0 %v900
      %936 = vmatprep.subr.bf16.mxu0 %v899
      %937 = vmatpush1.bf16.msra.mxu0 %v898
      %938 = vmatprep.subr.bf16.mxu0 %v897
      %939 = vmatpush1.bf16.msra.mxu0 %v896
      %940 = vmatprep.subr.bf16.mxu0 %v895
      %941 = vmatpush1.bf16.msra.mxu0 %v894
      %942 = vmatprep.subr.bf16.mxu0 0
      %943 = vmatpush2.bf16.msra.mxu0 0
      %944 = vmatprep.subr.bf16.mxu0 0
      %945 = vmatpush2.bf16.msra.mxu0 0
      %946 = vmatprep.subr.bf16.mxu0 0
      %947 = vmatpush2.bf16.msra.mxu0 0
      %948 = vmatprep.subr.bf16.mxu0 0
      %949 = vmatpush2.bf16.msra.mxu0 0
      %950 = vmatprep.subr.bf16.mxu0 0
      %951 = vmatpush2.bf16.msra.mxu0 0
      %952 = vmatprep.subr.bf16.mxu0 0
      %953 = vmatpush2.bf16.msra.mxu0 0
      %954 = vmatprep.subr.bf16.mxu0 0
      %955 = vmatpush2.bf16.msra.mxu0 0
      %956 = vmatprep.subr.bf16.mxu0 0
      %957 = vmatpush2.bf16.msra.mxu0 0
      %958 = vmatprep.mubr.bf16.mxu0 0
      %959 = vmatmul.mubr.bf16.gmra.mxu0 %v833
      %v960 = vpop.f32.mrf.mxu0
      %v961 = vadd.f32 %v839, %v960
      %v962 = vpop.f32.mrf.mxu0
      %v963 = vadd.f32 %v843, %v962
      %v964 = vpop.f32.mrf.mxu0
      %v965 = vadd.f32 %v839, %v964
      %v966 = vpop.f32.mrf.mxu0
      %v967 = vadd.f32 %v843, %v966
      %968 = vdwg.mxu0
      %v969 = vld [vmem:[%s13] sm:$0xf]
      %v970 = vld [vmem:[%s13 + $0x4] sm:$0xf]
      %v971 = vld [vmem:[%s13 + $0x8] sm:$0xf]
      %v972 = vld [vmem:[%s13 + $0xc] sm:$0xf]
      %v973 = vld [vmem:[%s13 + $0x10] sm:$0xf]
      %v974 = vld [vmem:[%s13 + $0x14] sm:$0xf]
      %v975 = vld [vmem:[%s13 + $0x18] sm:$0xf]
      %v976 = vld [vmem:[%s13 + $0x1c] sm:$0xf]
      %v977 = vld [vmem:[%s13 + $0x20] sm:$0xf]
      %v978 = vld [vmem:[%s13 + $0x24] sm:$0xf]
      %v979 = vld [vmem:[%s13 + $0x28] sm:$0xf]
      %v980 = vld [vmem:[%s13 + $0x2c] sm:$0xf]
      %v981 = vld [vmem:[%s13 + $0x30] sm:$0xf]
      %v982 = vld [vmem:[%s13 + $0x34] sm:$0xf]
      %v983 = vld [vmem:[%s13 + $0x38] sm:$0xf]
      %v984 = vld [vmem:[%s13 + $0x3c] sm:$0xf]
      %v985 = vpack.c.bf16 %v772, %v772
      %v986 = vpack.c.bf16 %v965, %v961
      %vm987 = vcmask 261120
      %v989 = vsel %vm987, %v985, 0
      %v992 = vsel %vm987, %v986, 0
      %994 = vmatprep.subr.bf16.mxu0 0
      %995 = vmatpush1.bf16.xpose.msra.mxu0 0
      %996 = vmatprep.subr.bf16.mxu0 0
      %997 = vmatpush1.bf16.xpose.msra.mxu0 0
      %998 = vmatprep.subr.bf16.mxu0 0
      %999 = vmatpush1.bf16.xpose.msra.mxu0 0
      %1000 = vmatprep.subr.bf16.mxu0 0
      %1001 = vmatpush1.bf16.xpose.msra.mxu0 0
      %1002 = vmatprep.subr.bf16.mxu0 0
      %1003 = vmatpush1.bf16.xpose.msra.mxu0 0
      %1004 = vmatprep.subr.bf16.mxu0 0
      %1005 = vmatpush1.bf16.xpose.msra.mxu0 0
      %1006 = vmatprep.subr.bf16.mxu0 0
      %1007 = vmatpush1.bf16.xpose.msra.mxu0 0
      %1008 = vmatprep.subr.bf16.mxu0 0
      %1009 = vmatpush1.bf16.xpose.msra.mxu0 %v992
      %1010 = vmatprep.subr.bf16.mxu0 0
      %1011 = vmatpush2.bf16.xpose.msra.mxu0 0
      %1012 = vmatprep.subr.bf16.mxu0 0
      %1013 = vmatpush2.bf16.xpose.msra.mxu0 0
      %1014 = vmatprep.subr.bf16.mxu0 0
      %1015 = vmatpush2.bf16.xpose.msra.mxu0 0
      %1016 = vmatprep.subr.bf16.mxu0 0
      %1017 = vmatpush2.bf16.xpose.msra.mxu0 0
      %1018 = vmatprep.subr.bf16.mxu0 0
      %1019 = vmatpush2.bf16.xpose.msra.mxu0 0
      %1020 = vmatprep.subr.bf16.mxu0 0
      %1021 = vmatpush2.bf16.xpose.msra.mxu0 0
      %1022 = vmatprep.subr.bf16.mxu0 0
      %1023 = vmatpush2.bf16.xpose.msra.mxu0 0
      %1024 = vmatprep.subr.bf16.mxu0 0
      %1025 = vmatpush2.bf16.xpose.msra.mxu0 0
      %1026 = vmatprep.mubr.bf16.mxu0 0
      %1027 = vmatmul.mubr.bf16.gmra.mxu0 %v989
      %v1028 = vpop.f32.mrf.mxu0
      %v1029 = vadd.f32 0.0, %v1028
      %v1030 = vpop.f32.mrf.mxu0
      %v1031 = vpop.f32.mrf.mxu0
      %v1032 = vpop.f32.mrf.mxu0
      %1033 = vdwg.mxu0
      %v1034 = vmul.f32 %v1029, 0.17677669
      %v1036 = vlaneseq
      %v1037 = vshrl.u32 %v1036, 7
      %v1038 = vsub.s32 0, %v1037
      %v1039 = vrot.slane %v636, %v1038
      %v1041 = vadd.f32 %v1034, %v1039
      %vm1042 = vcmask 130048
      %v1043 = vsel %vm1042, %v1041, -inf
      %1044 = vmax.xlane.f32.xlu0 %v1043
      %v1045 = vpop.xlane.xlu0 %1044
      %v1046 = vsub.f32 %v1041, %v1045
      %v1047 = vmul.f32 %v1046, 1.442695
      %v1048 = vpow.pop %v1047
      %v1049 = vsel %vm1042, %v1048, 0.0
      %1050 = vadd.xlane.f32.xlu0 %v1049
      %v1051 = vpop.xlane.xlu0 %1050
      %v1052 = vrcp.pop %v1051
      %v1053 = vmul.f32 %v1048, %v1052
      %v1054 = vpack.c.bf16 %v1053, %v1053
      %v1055 = vpack.c.bf16 %v967, %v963
      %v1057 = vsel %vm1042, %v1054, 0
      %1059 = vmatprep.subr.bf16.mxu0 0
      %1060 = vmatpush1.bf16.msra.mxu0 0
      %1061 = vmatprep.subr.bf16.mxu0 0
      %1062 = vmatpush1.bf16.msra.mxu0 0
      %1063 = vmatprep.subr.bf16.mxu0 0
      %1064 = vmatpush1.bf16.msra.mxu0 0
      %1065 = vmatprep.subr.bf16.mxu0 0
      %1066 = vmatpush1.bf16.msra.mxu0 0
      %1067 = vmatprep.subr.bf16.mxu0 0
      %1068 = vmatpush1.bf16.msra.mxu0 0
      %1069 = vmatprep.subr.bf16.mxu0 0
      %1070 = vmatpush1.bf16.msra.mxu0 0
      %1071 = vmatprep.subr.bf16.mxu0 0
      %1072 = vmatpush1.bf16.msra.mxu0 0
      %1073 = vmatprep.subr.bf16.mxu0 0
      %1074 = vmatpush1.bf16.msra.mxu0 %v1055
      %1075 = vmatprep.subr.bf16.mxu0 0
      %1076 = vmatpush2.bf16.msra.mxu0 0
      %1077 = vmatprep.subr.bf16.mxu0 0
      %1078 = vmatpush2.bf16.msra.mxu0 0
      %1079 = vmatprep.subr.bf16.mxu0 0
      %1080 = vmatpush2.bf16.msra.mxu0 0
      %1081 = vmatprep.subr.bf16.mxu0 0
      %1082 = vmatpush2.bf16.msra.mxu0 0
      %1083 = vmatprep.subr.bf16.mxu0 0
      %1084 = vmatpush2.bf16.msra.mxu0 0
      %1085 = vmatprep.subr.bf16.mxu0 0
      %1086 = vmatpush2.bf16.msra.mxu0 0
      %1087 = vmatprep.subr.bf16.mxu0 0
      %1088 = vmatpush2.bf16.msra.mxu0 0
      %1089 = vmatprep.subr.bf16.mxu0 0
      %1090 = vmatpush2.bf16.msra.mxu0 0
      %1091 = vmatprep.mubr.bf16.mxu0 0
      %1092 = vmatmul.mubr.bf16.gmra.mxu0 %v1057
      %v1093 = vpop.f32.mrf.mxu0
      %v1094 = vadd.f32 0.0, %v1093
      %v1095 = vpop.f32.mrf.mxu0
      %v1096 = vpop.f32.mrf.mxu0
      %v1097 = vpop.f32.mrf.mxu0
      %1098 = vdwg.mxu0
      %v1099 = vpack.c.bf16 %v1094, %v1094
      %1101 = vrot.lane.b32.xlu0 %v985, 96
      %v1102 = vpop.permute.xlu0 %1101
      %1104 = vrot.lane.b32.xlu0 %v986, 96
      %v1105 = vpop.permute.xlu0 %1104
      %v1107 = vsel %vm987, %v1102, 0
      %v1110 = vsel %vm987, %v1105, 0
      %1112 = vmatprep.subr.bf16.mxu0 0
      %1113 = vmatpush1.bf16.xpose.msra.mxu0 0
      %1114 = vmatprep.subr.bf16.mxu0 0
      %1115 = vmatpush1.bf16.xpose.msra.mxu0 0
      %1116 = vmatprep.subr.bf16.mxu0 0
      %1117 = vmatpush1.bf16.xpose.msra.mxu0 0
      %1118 = vmatprep.subr.bf16.mxu0 0
      %1119 = vmatpush1.bf16.xpose.msra.mxu0 0
      %1120 = vmatprep.subr.bf16.mxu0 0
      %1121 = vmatpush1.bf16.xpose.msra.mxu0 0
      %1122 = vmatprep.subr.bf16.mxu0 0
      %1123 = vmatpush1.bf16.xpose.msra.mxu0 0
      %1124 = vmatprep.subr.bf16.mxu0 0
      %1125 = vmatpush1.bf16.xpose.msra.mxu0 0
      %1126 = vmatprep.subr.bf16.mxu0 0
      %1127 = vmatpush1.bf16.xpose.msra.mxu0 %v1110
      %1128 = vmatprep.subr.bf16.mxu0 0
      %1129 = vmatpush2.bf16.xpose.msra.mxu0 0
      %1130 = vmatprep.subr.bf16.mxu0 0
      %1131 = vmatpush2.bf16.xpose.msra.mxu0 0
      %1132 = vmatprep.subr.bf16.mxu0 0
      %1133 = vmatpush2.bf16.xpose.msra.mxu0 0
      %1134 = vmatprep.subr.bf16.mxu0 0
      %1135 = vmatpush2.bf16.xpose.msra.mxu0 0
      %1136 = vmatprep.subr.bf16.mxu0 0
      %1137 = vmatpush2.bf16.xpose.msra.mxu0 0
      %1138 = vmatprep.subr.bf16.mxu0 0
      %1139 = vmatpush2.bf16.xpose.msra.mxu0 0
      %1140 = vmatprep.subr.bf16.mxu0 0
      %1141 = vmatpush2.bf16.xpose.msra.mxu0 0
      %1142 = vmatprep.subr.bf16.mxu0 0
      %1143 = vmatpush2.bf16.xpose.msra.mxu0 0
      %1144 = vmatprep.mubr.bf16.mxu0 0
      %1145 = vmatmul.mubr.bf16.gmra.mxu0 %v1107
      %v1146 = vpop.f32.mrf.mxu0
      %v1147 = vadd.f32 0.0, %v1146
      %v1148 = vpop.f32.mrf.mxu0
      %v1149 = vpop.f32.mrf.mxu0
      %v1150 = vpop.f32.mrf.mxu0
      %1151 = vdwg.mxu0
      %v1152 = vmul.f32 %v1147, 0.17677669
      %v1153 = vadd.f32 %v1152, %v1039
      %v1154 = vsel %vm1042, %v1153, -inf
      %1155 = vmax.xlane.f32.xlu0 %v1154
      %v1156 = vpop.xlane.xlu0 %1155
      %v1157 = vsub.f32 %v1153, %v1156
      %v1158 = vmul.f32 %v1157, 1.442695
      %v1159 = vpow.pop %v1158
      %v1160 = vsel %vm1042, %v1159, 0.0
      %1161 = vadd.xlane.f32.xlu0 %v1160
      %v1162 = vpop.xlane.xlu0 %1161
      %v1163 = vrcp.pop %v1162
      %v1164 = vmul.f32 %v1159, %v1163
      %v1165 = vpack.c.bf16 %v1164, %v1164
      %1167 = vrot.lane.b32.xlu0 %v1055, 96
      %v1168 = vpop.permute.xlu0 %1167
      %v1171 = vsel %vm1042, %v1165, 0
      %1173 = vmatprep.subr.bf16.mxu0 0
      %1174 = vmatpush1.bf16.msra.mxu0 0
      %1175 = vmatprep.subr.bf16.mxu0 0
      %1176 = vmatpush1.bf16.msra.mxu0 0
      %1177 = vmatprep.subr.bf16.mxu0 0
      %1178 = vmatpush1.bf16.msra.mxu0 0
      %1179 = vmatprep.subr.bf16.mxu0 0
      %1180 = vmatpush1.bf16.msra.mxu0 0
      %1181 = vmatprep.subr.bf16.mxu0 0
      %1182 = vmatpush1.bf16.msra.mxu0 0
      %1183 = vmatprep.subr.bf16.mxu0 0
      %1184 = vmatpush1.bf16.msra.mxu0 0
      %1185 = vmatprep.subr.bf16.mxu0 0
      %1186 = vmatpush1.bf16.msra.mxu0 0
      %1187 = vmatprep.subr.bf16.mxu0 0
      %1188 = vmatpush1.bf16.msra.mxu0 %v1168
      %1189 = vmatprep.subr.bf16.mxu0 0
      %1190 = vmatpush2.bf16.msra.mxu0 0
      %1191 = vmatprep.subr.bf16.mxu0 0
      %1192 = vmatpush2.bf16.msra.mxu0 0
      %1193 = vmatprep.subr.bf16.mxu0 0
      %1194 = vmatpush2.bf16.msra.mxu0 0
      %1195 = vmatprep.subr.bf16.mxu0 0
      %1196 = vmatpush2.bf16.msra.mxu0 0
      %1197 = vmatprep.subr.bf16.mxu0 0
      %1198 = vmatpush2.bf16.msra.mxu0 0
      %1199 = vmatprep.subr.bf16.mxu0 0
      %1200 = vmatpush2.bf16.msra.mxu0 0
      %1201 = vmatprep.subr.bf16.mxu0 0
      %1202 = vmatpush2.bf16.msra.mxu0 0
      %1203 = vmatprep.subr.bf16.mxu0 0
      %1204 = vmatpush2.bf16.msra.mxu0 0
      %1205 = vmatprep.mubr.bf16.mxu0 0
      %1206 = vmatmul.mubr.bf16.gmra.mxu0 %v1171
      %v1207 = vpop.f32.mrf.mxu0
      %v1208 = vadd.f32 0.0, %v1207
      %v1209 = vpop.f32.mrf.mxu0
      %v1210 = vpop.f32.mrf.mxu0
      %v1211 = vpop.f32.mrf.mxu0
      %1212 = vdwg.mxu0
      %v1213 = vpack.c.bf16 %v1208, %v1208
      %v1218 = vunpack.c.l.b16 %v973
      %v1219 = vunpack.c.l.b16 %v974
      %v1220 = vunpack.c.l.b16 %v975
      %v1221 = vunpack.c.l.b16 %v976
      %v1222 = vpack.c.b16 %v1219, %v1218
      %v1223 = vpack.c.b16 %v1221, %v1220
      %v1227 = vsel %vm987, %v1213, 0
      %1229 = vmatprep.subr.bf16.mxu0 0
      %1230 = vmatpush1.bf16.msra.mxu0 0
      %1231 = vmatprep.subr.bf16.mxu0 0
      %1232 = vmatpush1.bf16.msra.mxu0 0
      %1233 = vmatprep.subr.bf16.mxu0 0
      %1234 = vmatpush1.bf16.msra.mxu0 0
      %1235 = vmatprep.subr.bf16.mxu0 0
      %1236 = vmatpush1.bf16.msra.mxu0 0
      %1237 = vmatprep.subr.bf16.mxu0 0
      %1238 = vmatpush1.bf16.msra.mxu0 0
      %1239 = vmatprep.subr.bf16.mxu0 0
      %1240 = vmatpush1.bf16.msra.mxu0 0
      %1241 = vmatprep.subr.bf16.mxu0 0
      %1242 = vmatpush1.bf16.msra.mxu0 %v1223
      %1243 = vmatprep.subr.bf16.mxu0 0
      %1244 = vmatpush1.bf16.msra.mxu0 %v1222
      %1245 = vmatprep.subr.bf16.mxu0 0
      %1246 = vmatpush2.bf16.msra.mxu0 0
      %1247 = vmatprep.subr.bf16.mxu0 0
      %1248 = vmatpush2.bf16.msra.mxu0 0
      %1249 = vmatprep.subr.bf16.mxu0 0
      %1250 = vmatpush2.bf16.msra.mxu0 0
      %1251 = vmatprep.subr.bf16.mxu0 0
      %1252 = vmatpush2.bf16.msra.mxu0 0
      %1253 = vmatprep.subr.bf16.mxu0 0
      %1254 = vmatpush2.bf16.msra.mxu0 0
      %1255 = vmatprep.subr.bf16.mxu0 0
      %1256 = vmatpush2.bf16.msra.mxu0 0
      %1257 = vmatprep.subr.bf16.mxu0 0
      %1258 = vmatpush2.bf16.msra.mxu0 0
      %1259 = vmatprep.subr.bf16.mxu0 0
      %1260 = vmatpush2.bf16.msra.mxu0 0
      %1261 = vmatprep.mubr.bf16.mxu0 0
      %1262 = vmatmul.mubr.bf16.gmra.mxu0 %v1227
      %v1263 = vpop.f32.mrf.mxu0
      %v1264 = vadd.f32 0.0, %v1263
      %v1265 = vpop.f32.mrf.mxu0
      %v1266 = vpop.f32.mrf.mxu0
      %v1267 = vpop.f32.mrf.mxu0
      %1268 = vdwg.mxu0
      %v1273 = vunpack.c.l.b16 %v969
      %v1274 = vunpack.c.l.b16 %v970
      %v1275 = vunpack.c.l.b16 %v971
      %v1276 = vunpack.c.l.b16 %v972
      %v1277 = vpack.c.b16 %v1274, %v1273
      %v1278 = vpack.c.b16 %v1276, %v1275
      %v1282 = vsel %vm987, %v1099, 0
      %1284 = vmatprep.subr.bf16.mxu0 0
      %1285 = vmatpush1.bf16.msra.mxu0 0
      %1286 = vmatprep.subr.bf16.mxu0 0
      %1287 = vmatpush1.bf16.msra.mxu0 0
      %1288 = vmatprep.subr.bf16.mxu0 0
      %1289 = vmatpush1.bf16.msra.mxu0 0
      %1290 = vmatprep.subr.bf16.mxu0 0
      %1291 = vmatpush1.bf16.msra.mxu0 0
      %1292 = vmatprep.subr.bf16.mxu0 0
      %1293 = vmatpush1.bf16.msra.mxu0 0
      %1294 = vmatprep.subr.bf16.mxu0 0
      %1295 = vmatpush1.bf16.msra.mxu0 0
      %1296 = vmatprep.subr.bf16.mxu0 0
      %1297 = vmatpush1.bf16.msra.mxu0 %v1278
      %1298 = vmatprep.subr.bf16.mxu0 0
      %1299 = vmatpush1.bf16.msra.mxu0 %v1277
      %1300 = vmatprep.subr.bf16.mxu0 0
      %1301 = vmatpush2.bf16.msra.mxu0 0
      %1302 = vmatprep.subr.bf16.mxu0 0
      %1303 = vmatpush2.bf16.msra.mxu0 0
      %1304 = vmatprep.subr.bf16.mxu0 0
      %1305 = vmatpush2.bf16.msra.mxu0 0
      %1306 = vmatprep.subr.bf16.mxu0 0
      %1307 = vmatpush2.bf16.msra.mxu0 0
      %1308 = vmatprep.subr.bf16.mxu0 0
      %1309 = vmatpush2.bf16.msra.mxu0 0
      %1310 = vmatprep.subr.bf16.mxu0 0
      %1311 = vmatpush2.bf16.msra.mxu0 0
      %1312 = vmatprep.subr.bf16.mxu0 0
      %1313 = vmatpush2.bf16.msra.mxu0 0
      %1314 = vmatprep.subr.bf16.mxu0 0
      %1315 = vmatpush2.bf16.msra.mxu0 0
      %1316 = vmatprep.mubr.bf16.mxu0 0
      %1317 = vmatmul.mubr.bf16.gmra.mxu0 %v1282
      %v1318 = vpop.f32.mrf.mxu0
      %v1319 = vadd.f32 %v1264, %v1318
      %v1320 = vpop.f32.mrf.mxu0
      %v1321 = vpop.f32.mrf.mxu0
      %v1322 = vpop.f32.mrf.mxu0
      %1323 = vdwg.mxu0
      %1324 = vrot.lane.b32.xlu0 %v985, 64
      %v1325 = vpop.permute.xlu0 %1324
      %1326 = vrot.lane.b32.xlu0 %v986, 64
      %v1327 = vpop.permute.xlu0 %1326
      %v1329 = vsel %vm987, %v1325, 0
      %v1332 = vsel %vm987, %v1327, 0
      %1334 = vmatprep.subr.bf16.mxu0 0
      %1335 = vmatpush1.bf16.xpose.msra.mxu0 0
      %1336 = vmatprep.subr.bf16.mxu0 0
      %1337 = vmatpush1.bf16.xpose.msra.mxu0 0
      %1338 = vmatprep.subr.bf16.mxu0 0
      %1339 = vmatpush1.bf16.xpose.msra.mxu0 0
      %1340 = vmatprep.subr.bf16.mxu0 0
      %1341 = vmatpush1.bf16.xpose.msra.mxu0 0
      %1342 = vmatprep.subr.bf16.mxu0 0
      %1343 = vmatpush1.bf16.xpose.msra.mxu0 0
      %1344 = vmatprep.subr.bf16.mxu0 0
      %1345 = vmatpush1.bf16.xpose.msra.mxu0 0
      %1346 = vmatprep.subr.bf16.mxu0 0
      %1347 = vmatpush1.bf16.xpose.msra.mxu0 0
      %1348 = vmatprep.subr.bf16.mxu0 0
      %1349 = vmatpush1.bf16.xpose.msra.mxu0 %v1332
      %1350 = vmatprep.subr.bf16.mxu0 0
      %1351 = vmatpush2.bf16.xpose.msra.mxu0 0
      %1352 = vmatprep.subr.bf16.mxu0 0
      %1353 = vmatpush2.bf16.xpose.msra.mxu0 0
      %1354 = vmatprep.subr.bf16.mxu0 0
      %1355 = vmatpush2.bf16.xpose.msra.mxu0 0
      %1356 = vmatprep.subr.bf16.mxu0 0
      %1357 = vmatpush2.bf16.xpose.msra.mxu0 0
      %1358 = vmatprep.subr.bf16.mxu0 0
      %1359 = vmatpush2.bf16.xpose.msra.mxu0 0
      %1360 = vmatprep.subr.bf16.mxu0 0
      %1361 = vmatpush2.bf16.xpose.msra.mxu0 0
      %1362 = vmatprep.subr.bf16.mxu0 0
      %1363 = vmatpush2.bf16.xpose.msra.mxu0 0
      %1364 = vmatprep.subr.bf16.mxu0 0
      %1365 = vmatpush2.bf16.xpose.msra.mxu0 0
      %1366 = vmatprep.mubr.bf16.mxu0 0
      %1367 = vmatmul.mubr.bf16.gmra.mxu0 %v1329
      %v1368 = vpop.f32.mrf.mxu0
      %v1369 = vadd.f32 0.0, %v1368
      %v1370 = vpop.f32.mrf.mxu0
      %v1371 = vpop.f32.mrf.mxu0
      %v1372 = vpop.f32.mrf.mxu0
      %1373 = vdwg.mxu0
      %v1374 = vmul.f32 %v1369, 0.17677669
      %v1375 = vadd.f32 %v1374, %v1039
      %v1376 = vsel %vm1042, %v1375, -inf
      %1377 = vmax.xlane.f32.xlu0 %v1376
      %v1378 = vpop.xlane.xlu0 %1377
      %v1379 = vsub.f32 %v1375, %v1378
      %v1380 = vmul.f32 %v1379, 1.442695
      %v1381 = vpow.pop %v1380
      %v1382 = vsel %vm1042, %v1381, 0.0
      %1383 = vadd.xlane.f32.xlu0 %v1382
      %v1384 = vpop.xlane.xlu0 %1383
      %v1385 = vrcp.pop %v1384
      %v1386 = vmul.f32 %v1381, %v1385
      %v1387 = vpack.c.bf16 %v1386, %v1386
      %1388 = vrot.lane.b32.xlu0 %v1055, 64
      %v1389 = vpop.permute.xlu0 %1388
      %v1392 = vsel %vm1042, %v1387, 0
      %1394 = vmatprep.subr.bf16.mxu0 0
      %1395 = vmatpush1.bf16.msra.mxu0 0
      %1396 = vmatprep.subr.bf16.mxu0 0
      %1397 = vmatpush1.bf16.msra.mxu0 0
      %1398 = vmatprep.subr.bf16.mxu0 0
      %1399 = vmatpush1.bf16.msra.mxu0 0
      %1400 = vmatprep.subr.bf16.mxu0 0
      %1401 = vmatpush1.bf16.msra.mxu0 0
      %1402 = vmatprep.subr.bf16.mxu0 0
      %1403 = vmatpush1.bf16.msra.mxu0 0
      %1404 = vmatprep.subr.bf16.mxu0 0
      %1405 = vmatpush1.bf16.msra.mxu0 0
      %1406 = vmatprep.subr.bf16.mxu0 0
      %1407 = vmatpush1.bf16.msra.mxu0 0
      %1408 = vmatprep.subr.bf16.mxu0 0
      %1409 = vmatpush1.bf16.msra.mxu0 %v1389
      %1410 = vmatprep.subr.bf16.mxu0 0
      %1411 = vmatpush2.bf16.msra.mxu0 0
      %1412 = vmatprep.subr.bf16.mxu0 0
      %1413 = vmatpush2.bf16.msra.mxu0 0
      %1414 = vmatprep.subr.bf16.mxu0 0
      %1415 = vmatpush2.bf16.msra.mxu0 0
      %1416 = vmatprep.subr.bf16.mxu0 0
      %1417 = vmatpush2.bf16.msra.mxu0 0
      %1418 = vmatprep.subr.bf16.mxu0 0
      %1419 = vmatpush2.bf16.msra.mxu0 0
      %1420 = vmatprep.subr.bf16.mxu0 0
      %1421 = vmatpush2.bf16.msra.mxu0 0
      %1422 = vmatprep.subr.bf16.mxu0 0
      %1423 = vmatpush2.bf16.msra.mxu0 0
      %1424 = vmatprep.subr.bf16.mxu0 0
      %1425 = vmatpush2.bf16.msra.mxu0 0
      %1426 = vmatprep.mubr.bf16.mxu0 0
      %1427 = vmatmul.mubr.bf16.gmra.mxu0 %v1392
      %v1428 = vpop.f32.mrf.mxu0
      %v1429 = vadd.f32 0.0, %v1428
      %v1430 = vpop.f32.mrf.mxu0
      %v1431 = vpop.f32.mrf.mxu0
      %v1432 = vpop.f32.mrf.mxu0
      %1433 = vdwg.mxu0
      %v1434 = vpack.c.bf16 %v1429, %v1429
      %v1439 = vunpack.c.l.b16 %v977
      %v1440 = vunpack.c.l.b16 %v978
      %v1441 = vunpack.c.l.b16 %v979
      %v1442 = vunpack.c.l.b16 %v980
      %v1443 = vpack.c.b16 %v1440, %v1439
      %v1444 = vpack.c.b16 %v1442, %v1441
      %v1448 = vsel %vm987, %v1434, 0
      %1450 = vmatprep.subr.bf16.mxu0 0
      %1451 = vmatpush1.bf16.msra.mxu0 0
      %1452 = vmatprep.subr.bf16.mxu0 0
      %1453 = vmatpush1.bf16.msra.mxu0 0
      %1454 = vmatprep.subr.bf16.mxu0 0
      %1455 = vmatpush1.bf16.msra.mxu0 0
      %1456 = vmatprep.subr.bf16.mxu0 0
      %1457 = vmatpush1.bf16.msra.mxu0 0
      %1458 = vmatprep.subr.bf16.mxu0 0
      %1459 = vmatpush1.bf16.msra.mxu0 0
      %1460 = vmatprep.subr.bf16.mxu0 0
      %1461 = vmatpush1.bf16.msra.mxu0 0
      %1462 = vmatprep.subr.bf16.mxu0 0
      %1463 = vmatpush1.bf16.msra.mxu0 %v1444
      %1464 = vmatprep.subr.bf16.mxu0 0
      %1465 = vmatpush1.bf16.msra.mxu0 %v1443
      %1466 = vmatprep.subr.bf16.mxu0 0
      %1467 = vmatpush2.bf16.msra.mxu0 0
      %1468 = vmatprep.subr.bf16.mxu0 0
      %1469 = vmatpush2.bf16.msra.mxu0 0
      %1470 = vmatprep.subr.bf16.mxu0 0
      %1471 = vmatpush2.bf16.msra.mxu0 0
      %1472 = vmatprep.subr.bf16.mxu0 0
      %1473 = vmatpush2.bf16.msra.mxu0 0
      %1474 = vmatprep.subr.bf16.mxu0 0
      %1475 = vmatpush2.bf16.msra.mxu0 0
      %1476 = vmatprep.subr.bf16.mxu0 0
      %1477 = vmatpush2.bf16.msra.mxu0 0
      %1478 = vmatprep.subr.bf16.mxu0 0
      %1479 = vmatpush2.bf16.msra.mxu0 0
      %1480 = vmatprep.subr.bf16.mxu0 0
      %1481 = vmatpush2.bf16.msra.mxu0 0
      %1482 = vmatprep.mubr.bf16.mxu0 0
      %1483 = vmatmul.mubr.bf16.gmra.mxu0 %v1448
      %v1484 = vpop.f32.mrf.mxu0
      %v1485 = vadd.f32 0.0, %v1484
      %v1486 = vpop.f32.mrf.mxu0
      %v1487 = vpop.f32.mrf.mxu0
      %v1488 = vpop.f32.mrf.mxu0
      %1489 = vdwg.mxu0
      %v1490 = vadd.f32 %v1319, %v1485
      %1491 = vrot.lane.b32.xlu0 %v985, 32
      %v1492 = vpop.permute.xlu0 %1491
      %1493 = vrot.lane.b32.xlu0 %v986, 32
      %v1494 = vpop.permute.xlu0 %1493
      %v1496 = vsel %vm987, %v1492, 0
      %v1499 = vsel %vm987, %v1494, 0
      %1501 = vmatprep.subr.bf16.mxu0 0
      %1502 = vmatpush1.bf16.xpose.msra.mxu0 0
      %1503 = vmatprep.subr.bf16.mxu0 0
      %1504 = vmatpush1.bf16.xpose.msra.mxu0 0
      %1505 = vmatprep.subr.bf16.mxu0 0
      %1506 = vmatpush1.bf16.xpose.msra.mxu0 0
      %1507 = vmatprep.subr.bf16.mxu0 0
      %1508 = vmatpush1.bf16.xpose.msra.mxu0 0
      %1509 = vmatprep.subr.bf16.mxu0 0
      %1510 = vmatpush1.bf16.xpose.msra.mxu0 0
      %1511 = vmatprep.subr.bf16.mxu0 0
      %1512 = vmatpush1.bf16.xpose.msra.mxu0 0
      %1513 = vmatprep.subr.bf16.mxu0 0
      %1514 = vmatpush1.bf16.xpose.msra.mxu0 0
      %1515 = vmatprep.subr.bf16.mxu0 0
      %1516 = vmatpush1.bf16.xpose.msra.mxu0 %v1499
      %1517 = vmatprep.subr.bf16.mxu0 0
      %1518 = vmatpush2.bf16.xpose.msra.mxu0 0
      %1519 = vmatprep.subr.bf16.mxu0 0
      %1520 = vmatpush2.bf16.xpose.msra.mxu0 0
      %1521 = vmatprep.subr.bf16.mxu0 0
      %1522 = vmatpush2.bf16.xpose.msra.mxu0 0
      %1523 = vmatprep.subr.bf16.mxu0 0
      %1524 = vmatpush2.bf16.xpose.msra.mxu0 0
      %1525 = vmatprep.subr.bf16.mxu0 0
      %1526 = vmatpush2.bf16.xpose.msra.mxu0 0
      %1527 = vmatprep.subr.bf16.mxu0 0
      %1528 = vmatpush2.bf16.xpose.msra.mxu0 0
      %1529 = vmatprep.subr.bf16.mxu0 0
      %1530 = vmatpush2.bf16.xpose.msra.mxu0 0
      %1531 = vmatprep.subr.bf16.mxu0 0
      %1532 = vmatpush2.bf16.xpose.msra.mxu0 0
      %1533 = vmatprep.mubr.bf16.mxu0 0
      %1534 = vmatmul.mubr.bf16.gmra.mxu0 %v1496
      %v1535 = vpop.f32.mrf.mxu0
      %v1536 = vadd.f32 0.0, %v1535
      %v1537 = vpop.f32.mrf.mxu0
      %v1538 = vpop.f32.mrf.mxu0
      %v1539 = vpop.f32.mrf.mxu0
      %1540 = vdwg.mxu0
      %v1541 = vmul.f32 %v1536, 0.17677669
      %v1542 = vadd.f32 %v1541, %v1039
      %v1543 = vsel %vm1042, %v1542, -inf
      %1544 = vmax.xlane.f32.xlu0 %v1543
      %v1545 = vpop.xlane.xlu0 %1544
      %v1546 = vsub.f32 %v1542, %v1545
      %v1547 = vmul.f32 %v1546, 1.442695
      %v1548 = vpow.pop %v1547
      %v1549 = vsel %vm1042, %v1548, 0.0
      %1550 = vadd.xlane.f32.xlu0 %v1549
      %v1551 = vpop.xlane.xlu0 %1550
      %v1552 = vrcp.pop %v1551
      %v1553 = vmul.f32 %v1548, %v1552
      %v1554 = vpack.c.bf16 %v1553, %v1553
      %1555 = vrot.lane.b32.xlu0 %v1055, 32
      %v1556 = vpop.permute.xlu0 %1555
      %v1559 = vsel %vm1042, %v1554, 0
      %1561 = vmatprep.subr.bf16.mxu0 0
      %1562 = vmatpush1.bf16.msra.mxu0 0
      %1563 = vmatprep.subr.bf16.mxu0 0
      %1564 = vmatpush1.bf16.msra.mxu0 0
      %1565 = vmatprep.subr.bf16.mxu0 0
      %1566 = vmatpush1.bf16.msra.mxu0 0
      %1567 = vmatprep.subr.bf16.mxu0 0
      %1568 = vmatpush1.bf16.msra.mxu0 0
      %1569 = vmatprep.subr.bf16.mxu0 0
      %1570 = vmatpush1.bf16.msra.mxu0 0
      %1571 = vmatprep.subr.bf16.mxu0 0
      %1572 = vmatpush1.bf16.msra.mxu0 0
      %1573 = vmatprep.subr.bf16.mxu0 0
      %1574 = vmatpush1.bf16.msra.mxu0 0
      %1575 = vmatprep.subr.bf16.mxu0 0
      %1576 = vmatpush1.bf16.msra.mxu0 %v1556
      %1577 = vmatprep.subr.bf16.mxu0 0
      %1578 = vmatpush2.bf16.msra.mxu0 0
      %1579 = vmatprep.subr.bf16.mxu0 0
      %1580 = vmatpush2.bf16.msra.mxu0 0
      %1581 = vmatprep.subr.bf16.mxu0 0
      %1582 = vmatpush2.bf16.msra.mxu0 0
      %1583 = vmatprep.subr.bf16.mxu0 0
      %1584 = vmatpush2.bf16.msra.mxu0 0
      %1585 = vmatprep.subr.bf16.mxu0 0
      %1586 = vmatpush2.bf16.msra.mxu0 0
      %1587 = vmatprep.subr.bf16.mxu0 0
      %1588 = vmatpush2.bf16.msra.mxu0 0
      %1589 = vmatprep.subr.bf16.mxu0 0
      %1590 = vmatpush2.bf16.msra.mxu0 0
      %1591 = vmatprep.subr.bf16.mxu0 0
      %1592 = vmatpush2.bf16.msra.mxu0 0
      %1593 = vmatprep.mubr.bf16.mxu0 0
      %1594 = vmatmul.mubr.bf16.gmra.mxu0 %v1559
      %v1595 = vpop.f32.mrf.mxu0
      %v1596 = vadd.f32 0.0, %v1595
      %v1597 = vpop.f32.mrf.mxu0
      %v1598 = vpop.f32.mrf.mxu0
      %v1599 = vpop.f32.mrf.mxu0
      %1600 = vdwg.mxu0
      %v1601 = vpack.c.bf16 %v1596, %v1596
      %v1606 = vunpack.c.l.b16 %v981
      %v1607 = vunpack.c.l.b16 %v982
      %v1608 = vunpack.c.l.b16 %v983
      %v1609 = vunpack.c.l.b16 %v984
      %v1610 = vpack.c.b16 %v1607, %v1606
      %v1611 = vpack.c.b16 %v1609, %v1608
      %v1615 = vsel %vm987, %v1601, 0
      %1617 = vmatprep.subr.bf16.mxu0 0
      %1618 = vmatpush1.bf16.msra.mxu0 0
      %1619 = vmatprep.subr.bf16.mxu0 0
      %1620 = vmatpush1.bf16.msra.mxu0 0
      %1621 = vmatprep.subr.bf16.mxu0 0
      %1622 = vmatpush1.bf16.msra.mxu0 0
      %1623 = vmatprep.subr.bf16.mxu0 0
      %1624 = vmatpush1.bf16.msra.mxu0 0
      %1625 = vmatprep.subr.bf16.mxu0 0
      %1626 = vmatpush1.bf16.msra.mxu0 0
      %1627 = vmatprep.subr.bf16.mxu0 0
      %1628 = vmatpush1.bf16.msra.mxu0 0
      %1629 = vmatprep.subr.bf16.mxu0 0
      %1630 = vmatpush1.bf16.msra.mxu0 %v1611
      %1631 = vmatprep.subr.bf16.mxu0 0
      %1632 = vmatpush1.bf16.msra.mxu0 %v1610
      %1633 = vmatprep.subr.bf16.mxu0 0
      %1634 = vmatpush2.bf16.msra.mxu0 0
      %1635 = vmatprep.subr.bf16.mxu0 0
      %1636 = vmatpush2.bf16.msra.mxu0 0
      %1637 = vmatprep.subr.bf16.mxu0 0
      %1638 = vmatpush2.bf16.msra.mxu0 0
      %1639 = vmatprep.subr.bf16.mxu0 0
      %1640 = vmatpush2.bf16.msra.mxu0 0
      %1641 = vmatprep.subr.bf16.mxu0 0
      %1642 = vmatpush2.bf16.msra.mxu0 0
      %1643 = vmatprep.subr.bf16.mxu0 0
      %1644 = vmatpush2.bf16.msra.mxu0 0
      %1645 = vmatprep.subr.bf16.mxu0 0
      %1646 = vmatpush2.bf16.msra.mxu0 0
      %1647 = vmatprep.subr.bf16.mxu0 0
      %1648 = vmatpush2.bf16.msra.mxu0 0
      %1649 = vmatprep.mubr.bf16.mxu0 0
      %1650 = vmatmul.mubr.bf16.gmra.mxu0 %v1615
      %v1651 = vpop.f32.mrf.mxu0
      %v1652 = vadd.f32 0.0, %v1651
      %v1653 = vpop.f32.mrf.mxu0
      %v1654 = vpop.f32.mrf.mxu0
      %v1655 = vpop.f32.mrf.mxu0
      %1656 = vdwg.mxu0
      %v1657 = vadd.f32 %v1490, %v1652
      %v1658 = vadd.f32 %v633, %v1657
      %v1659 = vld [vmem:[%s14] sm:$0x1]
      %v1661 = vlaneseq
      %v1662 = vshrl.u32 %v1661, 7
      %v1663 = vsub.s32 0, %v1662
      %v1664 = vrot.slane %v1659, %v1663
      %v1666 = vadd.f32 %v1658, %v1664
      %v1667 = vld [vmem:[%s7] sm:$0x1]
      %v1668 = vld [vmem:[%s8] sm:$0x1]
      %1669 = vadd.xlane.f32.xlu0 %v1666
      %v1670 = vpop.xlane.xlu0 %1669
      %v1671 = vmul.f32 %v1670, %v641
      %v1672 = vsub.f32 %v1666, %v1671
      %v1673 = vmul.f32 %v1672, %v1672
      %1674 = vadd.xlane.f32.xlu0 %v1673
      %v1675 = vpop.xlane.xlu0 %1674
      %v1676 = vmul.f32 %v1675, %v641
      %v1677 = vadd.f32 %v1676, 1e-05
      %v1678 = vrsqrt.pop %v1677
      %v1679 = vmul.f32 %v1672, %v1678
      %v1681 = vlaneseq
      %v1682 = vshrl.u32 %v1681, 7
      %v1683 = vsub.s32 0, %v1682
      %v1684 = vrot.slane %v1667, %v1683
      %v1686 = vmul.f32 %v1679, %v1684
      %v1688 = vlaneseq
      %v1689 = vshrl.u32 %v1688, 7
      %v1690 = vsub.s32 0, %v1689
      %v1691 = vrot.slane %v1668, %v1690
      %v1693 = vadd.f32 %v1686, %v1691
      %v1694 = vld [vmem:[%s15] sm:$0xff]
      %v1695 = vld [vmem:[%s15 + $0x8] sm:$0xff]
      %v1696 = vld [vmem:[%s15 + $0x10] sm:$0xff]
      %v1697 = vld [vmem:[%s15 + $0x18] sm:$0xff]
      %v1698 = vld [vmem:[%s15 + $0x20] sm:$0xff]
      %v1699 = vld [vmem:[%s15 + $0x28] sm:$0xff]
      %v1700 = vld [vmem:[%s15 + $0x30] sm:$0xff]
      %v1701 = vld [vmem:[%s15 + $0x38] sm:$0xff]
      %v1702 = vld [vmem:[%s15 + $0x40] sm:$0xff]
      %v1703 = vld [vmem:[%s15 + $0x48] sm:$0xff]
      %v1704 = vld [vmem:[%s15 + $0x50] sm:$0xff]
      %v1705 = vld [vmem:[%s15 + $0x58] sm:$0xff]
      %v1706 = vld [vmem:[%s15 + $0x60] sm:$0xff]
      %v1707 = vld [vmem:[%s15 + $0x68] sm:$0xff]
      %v1708 = vld [vmem:[%s15 + $0x70] sm:$0xff]
      %v1709 = vld [vmem:[%s15 + $0x78] sm:$0xff]
      %v1710 = vpack.c.bf16 %v1693, %v1693
      %v1711 = vld [vmem:[%s16] sm:$0x3]
      %v1713 = vlaneseq
      %v1714 = vshrl.u32 %v1713, 7
      %v1715 = vsub.s32 0, %v1714
      %v1716 = vrot.slane %v1711, %v1715
      %v1717 = vlaneseq
      %v1718 = vshrl.u32 %v1717, 7
      %v1719 = vsub.s32 1, %v1718
      %v1720 = vrot.slane %v1711, %v1719
      %v1739 = vunpack.c.l.b16 %v1694
      %v1740 = vunpack.c.h.b16 %v1694
      %v1741 = vunpack.c.l.b16 %v1695
      %v1742 = vunpack.c.h.b16 %v1695
      %v1743 = vunpack.c.l.b16 %v1696
      %v1744 = vunpack.c.h.b16 %v1696
      %v1745 = vunpack.c.l.b16 %v1697
      %v1746 = vunpack.c.h.b16 %v1697
      %v1747 = vunpack.c.l.b16 %v1698
      %v1748 = vunpack.c.h.b16 %v1698
      %v1749 = vunpack.c.l.b16 %v1699
      %v1750 = vunpack.c.h.b16 %v1699
      %v1751 = vunpack.c.l.b16 %v1700
      %v1752 = vunpack.c.h.b16 %v1700
      %v1753 = vunpack.c.l.b16 %v1701
      %v1754 = vunpack.c.h.b16 %v1701
      %v1755 = vunpack.c.l.b16 %v1702
      %v1756 = vunpack.c.h.b16 %v1702
      %v1757 = vunpack.c.l.b16 %v1703
      %v1758 = vunpack.c.h.b16 %v1703
      %v1759 = vunpack.c.l.b16 %v1704
      %v1760 = vunpack.c.h.b16 %v1704
      %v1761 = vunpack.c.l.b16 %v1705
      %v1762 = vunpack.c.h.b16 %v1705
      %v1763 = vunpack.c.l.b16 %v1706
      %v1764 = vunpack.c.h.b16 %v1706
      %v1765 = vunpack.c.l.b16 %v1707
      %v1766 = vunpack.c.h.b16 %v1707
      %v1767 = vunpack.c.l.b16 %v1708
      %v1768 = vunpack.c.h.b16 %v1708
      %v1769 = vunpack.c.l.b16 %v1709
      %v1770 = vunpack.c.h.b16 %v1709
      %v1771 = vpack.c.b16 %v1741, %v1739
      %v1772 = vpack.c.b16 %v1742, %v1740
      %v1773 = vpack.c.b16 %v1745, %v1743
      %v1774 = vpack.c.b16 %v1746, %v1744
      %v1775 = vpack.c.b16 %v1749, %v1747
      %v1776 = vpack.c.b16 %v1750, %v1748
      %v1777 = vpack.c.b16 %v1753, %v1751
      %v1778 = vpack.c.b16 %v1754, %v1752
      %v1779 = vpack.c.b16 %v1757, %v1755
      %v1780 = vpack.c.b16 %v1758, %v1756
      %v1781 = vpack.c.b16 %v1761, %v1759
      %v1782 = vpack.c.b16 %v1762, %v1760
      %v1783 = vpack.c.b16 %v1765, %v1763
      %v1784 = vpack.c.b16 %v1766, %v1764
      %v1785 = vpack.c.b16 %v1769, %v1767
      %v1786 = vpack.c.b16 %v1770, %v1768
      %1803 = vmatprep.subr.bf16.mxu0 %v1786
      %1804 = vmatpush1.bf16.msra.mxu0 %v1785
      %1805 = vmatprep.subr.bf16.mxu0 %v1784
      %1806 = vmatpush1.bf16.msra.mxu0 %v1783
      %1807 = vmatprep.subr.bf16.mxu0 %v1782
      %1808 = vmatpush1.bf16.msra.mxu0 %v1781
      %1809 = vmatprep.subr.bf16.mxu0 %v1780
      %1810 = vmatpush1.bf16.msra.mxu0 %v1779
      %1811 = vmatprep.subr.bf16.mxu0 %v1778
      %1812 = vmatpush1.bf16.msra.mxu0 %v1777
      %1813 = vmatprep.subr.bf16.mxu0 %v1776
      %1814 = vmatpush1.bf16.msra.mxu0 %v1775
      %1815 = vmatprep.subr.bf16.mxu0 %v1774
      %1816 = vmatpush1.bf16.msra.mxu0 %v1773
      %1817 = vmatprep.subr.bf16.mxu0 %v1772
      %1818 = vmatpush1.bf16.msra.mxu0 %v1771
      %1819 = vmatprep.subr.bf16.mxu0 0
      %1820 = vmatpush2.bf16.msra.mxu0 0
      %1821 = vmatprep.subr.bf16.mxu0 0
      %1822 = vmatpush2.bf16.msra.mxu0 0
      %1823 = vmatprep.subr.bf16.mxu0 0
      %1824 = vmatpush2.bf16.msra.mxu0 0
      %1825 = vmatprep.subr.bf16.mxu0 0
      %1826 = vmatpush2.bf16.msra.mxu0 0
      %1827 = vmatprep.subr.bf16.mxu0 0
      %1828 = vmatpush2.bf16.msra.mxu0 0
      %1829 = vmatprep.subr.bf16.mxu0 0
      %1830 = vmatpush2.bf16.msra.mxu0 0
      %1831 = vmatprep.subr.bf16.mxu0 0
      %1832 = vmatpush2.bf16.msra.mxu0 0
      %1833 = vmatprep.subr.bf16.mxu0 0
      %1834 = vmatpush2.bf16.msra.mxu0 0
      %1835 = vmatprep.mubr.bf16.mxu0 0
      %1836 = vmatmul.mubr.bf16.gmra.mxu0 %v1710
      %v1837 = vpop.f32.mrf.mxu0
      %v1838 = vadd.f32 %v1716, %v1837
      %v1839 = vpop.f32.mrf.mxu0
      %v1840 = vadd.f32 %v1720, %v1839
      %v1841 = vpop.f32.mrf.mxu0
      %v1842 = vpop.f32.mrf.mxu0
      %1843 = vdwg.mxu0
      %vm1844 = vcmp.gt.f32.partialorder %v1838, 0.0
      %vm1845 = vcmp.gt.f32.partialorder %v1840, 0.0
      %v1846 = vmul.f32 %v1838, 0.01
      %v1847 = vmul.f32 %v1840, 0.01
      %v1848 = vsel %vm1844, %v1838, %v1846
      %v1849 = vsel %vm1845, %v1840, %v1847
      %v1850 = vld [vmem:[%s17] sm:$0xf]
      %v1851 = vld [vmem:[%s17 + $0x4] sm:$0xf]
      %v1852 = vld [vmem:[%s17 + $0x8] sm:$0xf]
      %v1853 = vld [vmem:[%s17 + $0xc] sm:$0xf]
      %v1854 = vld [vmem:[%s17 + $0x10] sm:$0xf]
      %v1855 = vld [vmem:[%s17 + $0x14] sm:$0xf]
      %v1856 = vld [vmem:[%s17 + $0x18] sm:$0xf]
      %v1857 = vld [vmem:[%s17 + $0x1c] sm:$0xf]
      %v1858 = vld [vmem:[%s17 + $0x20] sm:$0xf]
      %v1859 = vld [vmem:[%s17 + $0x24] sm:$0xf]
      %v1860 = vld [vmem:[%s17 + $0x28] sm:$0xf]
      %v1861 = vld [vmem:[%s17 + $0x2c] sm:$0xf]
      %v1862 = vld [vmem:[%s17 + $0x30] sm:$0xf]
      %v1863 = vld [vmem:[%s17 + $0x34] sm:$0xf]
      %v1864 = vld [vmem:[%s17 + $0x38] sm:$0xf]
      %v1865 = vld [vmem:[%s17 + $0x3c] sm:$0xf]
      %v1866 = vld [vmem:[%s17 + $0x40] sm:$0xf]
      %v1867 = vld [vmem:[%s17 + $0x44] sm:$0xf]
      %v1868 = vld [vmem:[%s17 + $0x48] sm:$0xf]
      %v1869 = vld [vmem:[%s17 + $0x4c] sm:$0xf]
      %v1870 = vld [vmem:[%s17 + $0x50] sm:$0xf]
      %v1871 = vld [vmem:[%s17 + $0x54] sm:$0xf]
      %v1872 = vld [vmem:[%s17 + $0x58] sm:$0xf]
      %v1873 = vld [vmem:[%s17 + $0x5c] sm:$0xf]
      %v1874 = vld [vmem:[%s17 + $0x60] sm:$0xf]
      %v1875 = vld [vmem:[%s17 + $0x64] sm:$0xf]
      %v1876 = vld [vmem:[%s17 + $0x68] sm:$0xf]
      %v1877 = vld [vmem:[%s17 + $0x6c] sm:$0xf]
      %v1878 = vld [vmem:[%s17 + $0x70] sm:$0xf]
      %v1879 = vld [vmem:[%s17 + $0x74] sm:$0xf]
      %v1880 = vld [vmem:[%s17 + $0x78] sm:$0xf]
      %v1881 = vld [vmem:[%s17 + $0x7c] sm:$0xf]
      %v1882 = vpack.c.bf16 %v1848, %v1848
      %v1883 = vpack.c.bf16 %v1849, %v1849
      %v1916 = vunpack.c.l.b16 %v1850
      %v1917 = vunpack.c.l.b16 %v1851
      %v1918 = vunpack.c.l.b16 %v1852
      %v1919 = vunpack.c.l.b16 %v1853
      %v1920 = vunpack.c.l.b16 %v1854
      %v1921 = vunpack.c.l.b16 %v1855
      %v1922 = vunpack.c.l.b16 %v1856
      %v1923 = vunpack.c.l.b16 %v1857
      %v1924 = vunpack.c.l.b16 %v1858
      %v1925 = vunpack.c.l.b16 %v1859
      %v1926 = vunpack.c.l.b16 %v1860
      %v1927 = vunpack.c.l.b16 %v1861
      %v1928 = vunpack.c.l.b16 %v1862
      %v1929 = vunpack.c.l.b16 %v1863
      %v1930 = vunpack.c.l.b16 %v1864
      %v1931 = vunpack.c.l.b16 %v1865
      %v1932 = vunpack.c.l.b16 %v1866
      %v1933 = vunpack.c.l.b16 %v1867
      %v1934 = vunpack.c.l.b16 %v1868
      %v1935 = vunpack.c.l.b16 %v1869
      %v1936 = vunpack.c.l.b16 %v1870
      %v1937 = vunpack.c.l.b16 %v1871
      %v1938 = vunpack.c.l.b16 %v1872
      %v1939 = vunpack.c.l.b16 %v1873
      %v1940 = vunpack.c.l.b16 %v1874
      %v1941 = vunpack.c.l.b16 %v1875
      %v1942 = vunpack.c.l.b16 %v1876
      %v1943 = vunpack.c.l.b16 %v1877
      %v1944 = vunpack.c.l.b16 %v1878
      %v1945 = vunpack.c.l.b16 %v1879
      %v1946 = vunpack.c.l.b16 %v1880
      %v1947 = vunpack.c.l.b16 %v1881
      %v1948 = vpack.c.b16 %v1917, %v1916
      %v1949 = vpack.c.b16 %v1919, %v1918
      %v1950 = vpack.c.b16 %v1921, %v1920
      %v1951 = vpack.c.b16 %v1923, %v1922
      %v1952 = vpack.c.b16 %v1925, %v1924
      %v1953 = vpack.c.b16 %v1927, %v1926
      %v1954 = vpack.c.b16 %v1929, %v1928
      %v1955 = vpack.c.b16 %v1931, %v1930
      %v1956 = vpack.c.b16 %v1933, %v1932
      %v1957 = vpack.c.b16 %v1935, %v1934
      %v1958 = vpack.c.b16 %v1937, %v1936
      %v1959 = vpack.c.b16 %v1939, %v1938
      %v1960 = vpack.c.b16 %v1941, %v1940
      %v1961 = vpack.c.b16 %v1943, %v1942
      %v1962 = vpack.c.b16 %v1945, %v1944
      %v1963 = vpack.c.b16 %v1947, %v1946
      %1980 = vmatprep.subr.bf16.mxu0 0
      %1981 = vmatpush1.bf16.msra.mxu0 %v1955
      %1982 = vmatprep.subr.bf16.mxu0 0
      %1983 = vmatpush1.bf16.msra.mxu0 %v1954
      %1984 = vmatprep.subr.bf16.mxu0 0
      %1985 = vmatpush1.bf16.msra.mxu0 %v1953
      %1986 = vmatprep.subr.bf16.mxu0 0
      %1987 = vmatpush1.bf16.msra.mxu0 %v1952
      %1988 = vmatprep.subr.bf16.mxu0 0
      %1989 = vmatpush1.bf16.msra.mxu0 %v1951
      %1990 = vmatprep.subr.bf16.mxu0 0
      %1991 = vmatpush1.bf16.msra.mxu0 %v1950
      %1992 = vmatprep.subr.bf16.mxu0 0
      %1993 = vmatpush1.bf16.msra.mxu0 %v1949
      %1994 = vmatprep.subr.bf16.mxu0 0
      %1995 = vmatpush1.bf16.msra.mxu0 %v1948
      %1996 = vmatprep.subr.bf16.mxu0 0
      %1997 = vmatpush2.bf16.msra.mxu0 %v1963
      %1998 = vmatprep.subr.bf16.mxu0 0
      %1999 = vmatpush2.bf16.msra.mxu0 %v1962
      %2000 = vmatprep.subr.bf16.mxu0 0
      %2001 = vmatpush2.bf16.msra.mxu0 %v1961
      %2002 = vmatprep.subr.bf16.mxu0 0
      %2003 = vmatpush2.bf16.msra.mxu0 %v1960
      %2004 = vmatprep.subr.bf16.mxu0 0
      %2005 = vmatpush2.bf16.msra.mxu0 %v1959
      %2006 = vmatprep.subr.bf16.mxu0 0
      %2007 = vmatpush2.bf16.msra.mxu0 %v1958
      %2008 = vmatprep.subr.bf16.mxu0 0
      %2009 = vmatpush2.bf16.msra.mxu0 %v1957
      %2010 = vmatprep.subr.bf16.mxu0 0
      %2011 = vmatpush2.bf16.msra.mxu0 %v1956
      %2012 = vmatprep.mubr.bf16.mxu0 %v1883
      %2013 = vmatmul.mubr.bf16.gmra.mxu0 %v1882
      %v2014 = vpop.f32.mrf.mxu0
      %v2015 = vadd.f32 0.0, %v2014
      %v2016 = vpop.f32.mrf.mxu0
      %v2017 = vpop.f32.mrf.mxu0
      %v2018 = vpop.f32.mrf.mxu0
      %2019 = vdwg.mxu0
      %v2020 = vadd.f32 %v1666, %v2015
      %v2021 = vld [vmem:[%s18] sm:$0x1]
      %v2023 = vlaneseq
      %v2024 = vshrl.u32 %v2023, 7
      %v2025 = vsub.s32 0, %v2024
      %v2026 = vrot.slane %v2021, %v2025
      %v2028 = vadd.f32 %v2020, %v2026
      %2029 = vst [vmem:[%s631] sm:$0xff] %v2028
      %p2030 = scmp.lt.s32.totalorder %s30, 1
      %s2031 = scalar_select %p2030, %s30, 1
      %s2032 = smul.addr %s2031, 8
      %s2033 = scalar_lea.vmem %s19, %s2032
      // Predicated region
      $region97: #{full_cross_attention_encoder_fwd.9} parent=95 // pred_check
        %p2034 = pneg %p462
      $region98: #{full_cross_attention_encoder_fwd.9} parent=95 // pred_check_branch
        %2036 = sbr.rel (%p2034) target = $region100
      $region99: #{full_cross_attention_encoder_fwd.9} parent=95 // pred_region
        _
      $region100: #{full_cross_attention_encoder_fwd.9} parent=95 // pred_fallthru
        _
    $region96: #{full_cross_attention_encoder_fwd.9} parent=5 // pred_fallthru
      _
    %p2037 = scmp.le.s32.totalorder 2, %s25
    // Predicated region
    $region101: #{full_cross_attention_encoder_fwd.9} parent=5 // pred_check
      %p2038 = pneg %p2037
    $region102: #{full_cross_attention_encoder_fwd.9} parent=5 // pred_check_branch
      %2040 = sbr.rel (%p2038) target = $region104
    $region103: #{full_cross_attention_encoder_fwd.9} parent=5 // pred_region
      %s2041 = ssub.s32 %s25, 2
      // Predicated region
      $region105: #{full_cross_attention_encoder_fwd.9} parent=103 // pred_check
        %p2042 = pneg %p468
      $region106: #{full_cross_attention_encoder_fwd.9} parent=103 // pred_check_branch
        %2044 = sbr.rel (%p2042) target = $region108
      $region107: #{full_cross_attention_encoder_fwd.9} parent=103 // pred_region
        %p2045 = scmp.lt.s32.totalorder %s31, 1
        %s2046 = scalar_select %p2045, %s31, 1
        %s2047 = smul.addr %s2046, 8
        %s2048 = scalar_lea.vmem %s19, %s2047
      $region108: #{full_cross_attention_encoder_fwd.9} parent=103 // pred_fallthru
        _
    $region104: #{full_cross_attention_encoder_fwd.9} parent=5 // pred_fallthru
      _
  $region6: #{full_cross_attention_encoder_fwd.9} parent=0 // loop_footer
    %s29 = sadd.s32 1, %s25
  $region7: #{full_cross_attention_encoder_fwd.9} parent=0 // loop_footer_branch
    %24 = sbr.rel target = $region3
  $region8: #{full_cross_attention_encoder_fwd.9} parent=0 // loop_exit
    _

// kernel: full_cross_attention_encoder_fwd.8
$region0: #{full_cross_attention_encoder_fwd.8}
  #allocation0 [shape = 'u32[]', space=smem, size = 0x4, offset = 0x4, fixed_abs, tag = 'smem constant byte address 0x4 - core index']
  #allocation1 [shape = 'u32[144,128]{1,0:T(1,128)}', space=vmem, size = 0x12000, scoped, tag = 'internal scratch']
  %s0 = inlined_call_operand.vmem [shape: f32[2,16,128], index: 0, kind: input, shape index: {}]
  %s1 = inlined_call_operand.vmem [shape: f32[2,8,128], index: 1, kind: input, shape index: {}]
  %s2 = inlined_call_operand.vmem [shape: f32[2,1,8], index: 2, kind: input, shape index: {}]
  %s3 = inlined_call_operand.vmem [shape: f32[1,128], index: 3, kind: input, shape index: {}]
  %s4 = inlined_call_operand.vmem [shape: f32[1,128], index: 4, kind: input, shape index: {}]
  %s5 = inlined_call_operand.vmem [shape: f32[1,128], index: 5, kind: input, shape index: {}]
  %s6 = inlined_call_operand.vmem [shape: f32[1,128], index: 6, kind: input, shape index: {}]
  %s7 = inlined_call_operand.vmem [shape: f32[1,128], index: 7, kind: input, shape index: {}]
  %s8 = inlined_call_operand.vmem [shape: f32[1,128], index: 8, kind: input, shape index: {}]
  %s9 = inlined_call_operand.vmem [shape: bf16[128,128], index: 9, kind: input, shape index: {}]
  %s10 = inlined_call_operand.vmem [shape: f32[1,128], index: 10, kind: input, shape index: {}]
  %s11 = inlined_call_operand.vmem [shape: bf16[128,256], index: 11, kind: input, shape index: {}]
  %s12 = inlined_call_operand.vmem [shape: f32[1,256], index: 12, kind: input, shape index: {}]
  %s13 = inlined_call_operand.vmem [shape: bf16[128,128], index: 13, kind: input, shape index: {}]
  %s14 = inlined_call_operand.vmem [shape: f32[1,128], index: 14, kind: input, shape index: {}]
  %s15 = inlined_call_operand.vmem [shape: bf16[128,256], index: 15, kind: input, shape index: {}]
  %s16 = inlined_call_operand.vmem [shape: f32[1,256], index: 16, kind: input, shape index: {}]
  %s17 = inlined_call_operand.vmem [shape: bf16[256,128], index: 17, kind: input, shape index: {}]
  %s18 = inlined_call_operand.vmem [shape: f32[1,128], index: 18, kind: input, shape index: {}]
  %s19 = inlined_call_operand.vmem [shape: f32[2,16,128], index: 19, kind: output, shape index: {}]
  %s20 = sld [smem:[#allocation0]]
  $region109: #{full_cross_attention_encoder_fwd.8} parent=0
    _
  %s22 = ssub.s32 1, %s20
  %s23 = scalar_select 0, %s22, %s20
  loop: start=0, step=1, limit=4
  $region2: #{full_cross_attention_encoder_fwd.8} parent=0 // loop_pre_header
    _
  $region3: #{full_cross_attention_encoder_fwd.8} parent=0 // loop_header
    %s25 = sphi 0, %s29
    %p26 = scmp.ge.s32.totalorder %s25, 4
    %s35 = sphi 0, %s37
    %s38 = sphi 0, %s35
    %s39 = sphi 0, %s38
    %s55 = sphi 0, %s39
    %s61 = sphi 0, %s63
    %s64 = sphi 0, %s61
    %s65 = sphi 0, %s64
    %s81 = sphi 0, %s65
    %s87 = sphi 0, %s89
    %s90 = sphi 0, %s87
    %s91 = sphi 0, %s90
    %s107 = sphi 0, %s91
    %s111 = sphi 0, %s111
    %s113 = sphi 0, %s111
    %s114 = sphi 0, %s113
    %s128 = sphi 0, %s114
    %s132 = sphi 0, %s132
    %s134 = sphi 0, %s132
    %s135 = sphi 0, %s134
    %s149 = sphi 0, %s135
    %s153 = sphi 0, %s153
    %s155 = sphi 0, %s153
    %s156 = sphi 0, %s155
    %s170 = sphi 0, %s156
    %s174 = sphi 0, %s174
    %s176 = sphi 0, %s174
    %s177 = sphi 0, %s176
    %s191 = sphi 0, %s177
    %s195 = sphi 0, %s195
    %s197 = sphi 0, %s195
    %s198 = sphi 0, %s197
    %s212 = sphi 0, %s198
    %s216 = sphi 0, %s216
    %s218 = sphi 0, %s216
    %s219 = sphi 0, %s218
    %s233 = sphi 0, %s219
    %s237 = sphi 0, %s237
    %s239 = sphi 0, %s237
    %s240 = sphi 0, %s239
    %s254 = sphi 0, %s240
    %s258 = sphi 0, %s258
    %s260 = sphi 0, %s258
    %s261 = sphi 0, %s260
    %s275 = sphi 0, %s261
    %s279 = sphi 0, %s279
    %s281 = sphi 0, %s279
    %s282 = sphi 0, %s281
    %s296 = sphi 0, %s282
    %s300 = sphi 0, %s300
    %s302 = sphi 0, %s300
    %s303 = sphi 0, %s302
    %s317 = sphi 0, %s303
    %s321 = sphi 0, %s321
    %s323 = sphi 0, %s321
    %s324 = sphi 0, %s323
    %s338 = sphi 0, %s324
    %s342 = sphi 0, %s342
    %s344 = sphi 0, %s342
    %s345 = sphi 0, %s344
    %s359 = sphi 0, %s345
    %s363 = sphi 0, %s363
    %s365 = sphi 0, %s363
    %s366 = sphi 0, %s365
    %s380 = sphi 0, %s366
    %s384 = sphi 0, %s384
    %s386 = sphi 0, %s384
    %s387 = sphi 0, %s386
    %s401 = sphi 0, %s387
    %s405 = sphi 0, %s405
    %s407 = sphi 0, %s405
    %s408 = sphi 0, %s407
    %s422 = sphi 0, %s408
    %s426 = sphi 0, %s426
    %s428 = sphi 0, %s426
    %s429 = sphi 0, %s428
    %s443 = sphi 0, %s429
    %s449 = sphi 0, %s451
    %s452 = sphi 0, %s449
    %s453 = sphi 0, %s452
    %s469 = sphi 0, %s453
  $region4: #{full_cross_attention_encoder_fwd.8} parent=0 // loop_header_branch
    %28 = sbr.rel (%p26) target = $region8
  $region5: #{full_cross_attention_encoder_fwd.8} parent=0 // loop_body
    %s30 = ssub.s32 %s25, 1
    %s31 = ssub.s32 %s25, 2
    %s32 = sadd.s32 %s25, 1
    %s33 = ssub.s32 %s25, %s32
    %p34 = scmp.eq.s32.totalorder %s33, 0
    %s36 = sadd.s32 %s35, 1
    %s37 = scalar_select %p34, %s35, %s36
    %p40 = pneg %p34
    %p41 = scmp.eq.s32.totalorder %s25, 1
    %p42 = por %p40, %p41
    %p43 = scmp.ne.s32.totalorder %s35, %s38
    %p44 = scmp.eq.s32.totalorder %s25, 0
    %p45 = por %p43, %p44
    %p46 = scmp.ne.s32.totalorder %s35, %s38
    %p47 = scmp.eq.s32.totalorder %s30, 1
    %p48 = por %p46, %p47
    %p49 = scmp.ne.s32.totalorder %s38, %s39
    %p50 = scmp.eq.s32.totalorder %s30, 0
    %p51 = por %p49, %p50
    %p52 = scmp.ne.s32.totalorder %s38, %s39
    %p53 = scmp.eq.s32.totalorder %s31, 1
    %p54 = por %p52, %p53
    %p56 = scmp.ne.s32.totalorder %s39, %s55
    %p57 = scmp.eq.s32.totalorder %s31, 0
    %p58 = por %p56, %p57
    %s59 = ssub.s32 %s25, %s32
    %p60 = scmp.eq.s32.totalorder %s59, 0
    %s62 = sadd.s32 %s61, 1
    %s63 = scalar_select %p60, %s61, %s62
    %p66 = pneg %p60
    %p67 = scmp.eq.s32.totalorder %s25, 1
    %p68 = por %p66, %p67
    %p69 = scmp.ne.s32.totalorder %s61, %s64
    %p70 = scmp.eq.s32.totalorder %s25, 0
    %p71 = por %p69, %p70
    %p72 = scmp.ne.s32.totalorder %s61, %s64
    %p73 = scmp.eq.s32.totalorder %s30, 1
    %p74 = por %p72, %p73
    %p75 = scmp.ne.s32.totalorder %s64, %s65
    %p76 = scmp.eq.s32.totalorder %s30, 0
    %p77 = por %p75, %p76
    %p78 = scmp.ne.s32.totalorder %s64, %s65
    %p79 = scmp.eq.s32.totalorder %s31, 1
    %p80 = por %p78, %p79
    %p82 = scmp.ne.s32.totalorder %s65, %s81
    %p83 = scmp.eq.s32.totalorder %s31, 0
    %p84 = por %p82, %p83
    %s85 = ssub.s32 %s25, %s32
    %p86 = scmp.eq.s32.totalorder %s85, 0
    %s88 = sadd.s32 %s87, 1
    %s89 = scalar_select %p86, %s87, %s88
    %p92 = pneg %p86
    %p93 = scmp.eq.s32.totalorder %s25, 1
    %p94 = por %p92, %p93
    %p95 = scmp.ne.s32.totalorder %s87, %s90
    %p96 = scmp.eq.s32.totalorder %s25, 0
    %p97 = por %p95, %p96
    %p98 = scmp.ne.s32.totalorder %s87, %s90
    %p99 = scmp.eq.s32.totalorder %s30, 1
    %p100 = por %p98, %p99
    %p101 = scmp.ne.s32.totalorder %s90, %s91
    %p102 = scmp.eq.s32.totalorder %s30, 0
    %p103 = por %p101, %p102
    %p104 = scmp.ne.s32.totalorder %s90, %s91
    %p105 = scmp.eq.s32.totalorder %s31, 1
    %p106 = por %p104, %p105
    %p108 = scmp.ne.s32.totalorder %s91, %s107
    %p109 = scmp.eq.s32.totalorder %s31, 0
    %p110 = por %p108, %p109
    %s112 = sadd.s32 %s111, 1
    %p115 = scmp.eq.s32.totalorder %s25, 1
    %p116 = scmp.ne.s32.totalorder %s111, %s113
    %p117 = scmp.eq.s32.totalorder %s25, 0
    %p118 = por %p116, %p117
    %p119 = scmp.ne.s32.totalorder %s111, %s113
    %p120 = scmp.eq.s32.totalorder %s30, 1
    %p121 = por %p119, %p120
    %p122 = scmp.ne.s32.totalorder %s113, %s114
    %p123 = scmp.eq.s32.totalorder %s30, 0
    %p124 = por %p122, %p123
    %p125 = scmp.ne.s32.totalorder %s113, %s114
    %p126 = scmp.eq.s32.totalorder %s31, 1
    %p127 = por %p125, %p126
    %p129 = scmp.ne.s32.totalorder %s114, %s128
    %p130 = scmp.eq.s32.totalorder %s31, 0
    %p131 = por %p129, %p130
    %s133 = sadd.s32 %s132, 1
    %p136 = scmp.eq.s32.totalorder %s25, 1
    %p137 = scmp.ne.s32.totalorder %s132, %s134
    %p138 = scmp.eq.s32.totalorder %s25, 0
    %p139 = por %p137, %p138
    %p140 = scmp.ne.s32.totalorder %s132, %s134
    %p141 = scmp.eq.s32.totalorder %s30, 1
    %p142 = por %p140, %p141
    %p143 = scmp.ne.s32.totalorder %s134, %s135
    %p144 = scmp.eq.s32.totalorder %s30, 0
    %p145 = por %p143, %p144
    %p146 = scmp.ne.s32.totalorder %s134, %s135
    %p147 = scmp.eq.s32.totalorder %s31, 1
    %p148 = por %p146, %p147
    %p150 = scmp.ne.s32.totalorder %s135, %s149
    %p151 = scmp.eq.s32.totalorder %s31, 0
    %p152 = por %p150, %p151
    %s154 = sadd.s32 %s153, 1
    %p157 = scmp.eq.s32.totalorder %s25, 1
    %p158 = scmp.ne.s32.totalorder %s153, %s155
    %p159 = scmp.eq.s32.totalorder %s25, 0
    %p160 = por %p158, %p159
    %p161 = scmp.ne.s32.totalorder %s153, %s155
    %p162 = scmp.eq.s32.totalorder %s30, 1
    %p163 = por %p161, %p162
    %p164 = scmp.ne.s32.totalorder %s155, %s156
    %p165 = scmp.eq.s32.totalorder %s30, 0
    %p166 = por %p164, %p165
    %p167 = scmp.ne.s32.totalorder %s155, %s156
    %p168 = scmp.eq.s32.totalorder %s31, 1
    %p169 = por %p167, %p168
    %p171 = scmp.ne.s32.totalorder %s156, %s170
    %p172 = scmp.eq.s32.totalorder %s31, 0
    %p173 = por %p171, %p172
    %s175 = sadd.s32 %s174, 1
    %p178 = scmp.eq.s32.totalorder %s25, 1
    %p179 = scmp.ne.s32.totalorder %s174, %s176
    %p180 = scmp.eq.s32.totalorder %s25, 0
    %p181 = por %p179, %p180
    %p182 = scmp.ne.s32.totalorder %s174, %s176
    %p183 = scmp.eq.s32.totalorder %s30, 1
    %p184 = por %p182, %p183
    %p185 = scmp.ne.s32.totalorder %s176, %s177
    %p186 = scmp.eq.s32.totalorder %s30, 0
    %p187 = por %p185, %p186
    %p188 = scmp.ne.s32.totalorder %s176, %s177
    %p189 = scmp.eq.s32.totalorder %s31, 1
    %p190 = por %p188, %p189
    %p192 = scmp.ne.s32.totalorder %s177, %s191
    %p193 = scmp.eq.s32.totalorder %s31, 0
    %p194 = por %p192, %p193
    %s196 = sadd.s32 %s195, 1
    %p199 = scmp.eq.s32.totalorder %s25, 1
    %p200 = scmp.ne.s32.totalorder %s195, %s197
    %p201 = scmp.eq.s32.totalorder %s25, 0
    %p202 = por %p200, %p201
    %p203 = scmp.ne.s32.totalorder %s195, %s197
    %p204 = scmp.eq.s32.totalorder %s30, 1
    %p205 = por %p203, %p204
    %p206 = scmp.ne.s32.totalorder %s197, %s198
    %p207 = scmp.eq.s32.totalorder %s30, 0
    %p208 = por %p206, %p207
    %p209 = scmp.ne.s32.totalorder %s197, %s198
    %p210 = scmp.eq.s32.totalorder %s31, 1
    %p211 = por %p209, %p210
    %p213 = scmp.ne.s32.totalorder %s198, %s212
    %p214 = scmp.eq.s32.totalorder %s31, 0
    %p215 = por %p213, %p214
    %s217 = sadd.s32 %s216, 1
    %p220 = scmp.eq.s32.totalorder %s25, 1
    %p221 = scmp.ne.s32.totalorder %s216, %s218
    %p222 = scmp.eq.s32.totalorder %s25, 0
    %p223 = por %p221, %p222
    %p224 = scmp.ne.s32.totalorder %s216, %s218
    %p225 = scmp.eq.s32.totalorder %s30, 1
    %p226 = por %p224, %p225
    %p227 = scmp.ne.s32.totalorder %s218, %s219
    %p228 = scmp.eq.s32.totalorder %s30, 0
    %p229 = por %p227, %p228
    %p230 = scmp.ne.s32.totalorder %s218, %s219
    %p231 = scmp.eq.s32.totalorder %s31, 1
    %p232 = por %p230, %p231
    %p234 = scmp.ne.s32.totalorder %s219, %s233
    %p235 = scmp.eq.s32.totalorder %s31, 0
    %p236 = por %p234, %p235
    %s238 = sadd.s32 %s237, 1
    %p241 = scmp.eq.s32.totalorder %s25, 1
    %p242 = scmp.ne.s32.totalorder %s237, %s239
    %p243 = scmp.eq.s32.totalorder %s25, 0
    %p244 = por %p242, %p243
    %p245 = scmp.ne.s32.totalorder %s237, %s239
    %p246 = scmp.eq.s32.totalorder %s30, 1
    %p247 = por %p245, %p246
    %p248 = scmp.ne.s32.totalorder %s239, %s240
    %p249 = scmp.eq.s32.totalorder %s30, 0
    %p250 = por %p248, %p249
    %p251 = scmp.ne.s32.totalorder %s239, %s240
    %p252 = scmp.eq.s32.totalorder %s31, 1
    %p253 = por %p251, %p252
    %p255 = scmp.ne.s32.totalorder %s240, %s254
    %p256 = scmp.eq.s32.totalorder %s31, 0
    %p257 = por %p255, %p256
    %s259 = sadd.s32 %s258, 1
    %p262 = scmp.eq.s32.totalorder %s25, 1
    %p263 = scmp.ne.s32.totalorder %s258, %s260
    %p264 = scmp.eq.s32.totalorder %s25, 0
    %p265 = por %p263, %p264
    %p266 = scmp.ne.s32.totalorder %s258, %s260
    %p267 = scmp.eq.s32.totalorder %s30, 1
    %p268 = por %p266, %p267
    %p269 = scmp.ne.s32.totalorder %s260, %s261
    %p270 = scmp.eq.s32.totalorder %s30, 0
    %p271 = por %p269, %p270
    %p272 = scmp.ne.s32.totalorder %s260, %s261
    %p273 = scmp.eq.s32.totalorder %s31, 1
    %p274 = por %p272, %p273
    %p276 = scmp.ne.s32.totalorder %s261, %s275
    %p277 = scmp.eq.s32.totalorder %s31, 0
    %p278 = por %p276, %p277
    %s280 = sadd.s32 %s279, 1
    %p283 = scmp.eq.s32.totalorder %s25, 1
    %p284 = scmp.ne.s32.totalorder %s279, %s281
    %p285 = scmp.eq.s32.totalorder %s25, 0
    %p286 = por %p284, %p285
    %p287 = scmp.ne.s32.totalorder %s279, %s281
    %p288 = scmp.eq.s32.totalorder %s30, 1
    %p289 = por %p287, %p288
    %p290 = scmp.ne.s32.totalorder %s281, %s282
    %p291 = scmp.eq.s32.totalorder %s30, 0
    %p292 = por %p290, %p291
    %p293 = scmp.ne.s32.totalorder %s281, %s282
    %p294 = scmp.eq.s32.totalorder %s31, 1
    %p295 = por %p293, %p294
    %p297 = scmp.ne.s32.totalorder %s282, %s296
    %p298 = scmp.eq.s32.totalorder %s31, 0
    %p299 = por %p297, %p298
    %s301 = sadd.s32 %s300, 1
    %p304 = scmp.eq.s32.totalorder %s25, 1
    %p305 = scmp.ne.s32.totalorder %s300, %s302
    %p306 = scmp.eq.s32.totalorder %s25, 0
    %p307 = por %p305, %p306
    %p308 = scmp.ne.s32.totalorder %s300, %s302
    %p309 = scmp.eq.s32.totalorder %s30, 1
    %p310 = por %p308, %p309
    %p311 = scmp.ne.s32.totalorder %s302, %s303
    %p312 = scmp.eq.s32.totalorder %s30, 0
    %p313 = por %p311, %p312
    %p314 = scmp.ne.s32.totalorder %s302, %s303
    %p315 = scmp.eq.s32.totalorder %s31, 1
    %p316 = por %p314, %p315
    %p318 = scmp.ne.s32.totalorder %s303, %s317
    %p319 = scmp.eq.s32.totalorder %s31, 0
    %p320 = por %p318, %p319
    %s322 = sadd.s32 %s321, 1
    %p325 = scmp.eq.s32.totalorder %s25, 1
    %p326 = scmp.ne.s32.totalorder %s321, %s323
    %p327 = scmp.eq.s32.totalorder %s25, 0
    %p328 = por %p326, %p327
    %p329 = scmp.ne.s32.totalorder %s321, %s323
    %p330 = scmp.eq.s32.totalorder %s30, 1
    %p331 = por %p329, %p330
    %p332 = scmp.ne.s32.totalorder %s323, %s324
    %p333 = scmp.eq.s32.totalorder %s30, 0
    %p334 = por %p332, %p333
    %p335 = scmp.ne.s32.totalorder %s323, %s324
    %p336 = scmp.eq.s32.totalorder %s31, 1
    %p337 = por %p335, %p336
    %p339 = scmp.ne.s32.totalorder %s324, %s338
    %p340 = scmp.eq.s32.totalorder %s31, 0
    %p341 = por %p339, %p340
    %s343 = sadd.s32 %s342, 1
    %p346 = scmp.eq.s32.totalorder %s25, 1
    %p347 = scmp.ne.s32.totalorder %s342, %s344
    %p348 = scmp.eq.s32.totalorder %s25, 0
    %p349 = por %p347, %p348
    %p350 = scmp.ne.s32.totalorder %s342, %s344
    %p351 = scmp.eq.s32.totalorder %s30, 1
    %p352 = por %p350, %p351
    %p353 = scmp.ne.s32.totalorder %s344, %s345
    %p354 = scmp.eq.s32.totalorder %s30, 0
    %p355 = por %p353, %p354
    %p356 = scmp.ne.s32.totalorder %s344, %s345
    %p357 = scmp.eq.s32.totalorder %s31, 1
    %p358 = por %p356, %p357
    %p360 = scmp.ne.s32.totalorder %s345, %s359
    %p361 = scmp.eq.s32.totalorder %s31, 0
    %p362 = por %p360, %p361
    %s364 = sadd.s32 %s363, 1
    %p367 = scmp.eq.s32.totalorder %s25, 1
    %p368 = scmp.ne.s32.totalorder %s363, %s365
    %p369 = scmp.eq.s32.totalorder %s25, 0
    %p370 = por %p368, %p369
    %p371 = scmp.ne.s32.totalorder %s363, %s365
    %p372 = scmp.eq.s32.totalorder %s30, 1
    %p373 = por %p371, %p372
    %p374 = scmp.ne.s32.totalorder %s365, %s366
    %p375 = scmp.eq.s32.totalorder %s30, 0
    %p376 = por %p374, %p375
    %p377 = scmp.ne.s32.totalorder %s365, %s366
    %p378 = scmp.eq.s32.totalorder %s31, 1
    %p379 = por %p377, %p378
    %p381 = scmp.ne.s32.totalorder %s366, %s380
    %p382 = scmp.eq.s32.totalorder %s31, 0
    %p383 = por %p381, %p382
    %s385 = sadd.s32 %s384, 1
    %p388 = scmp.eq.s32.totalorder %s25, 1
    %p389 = scmp.ne.s32.totalorder %s384, %s386
    %p390 = scmp.eq.s32.totalorder %s25, 0
    %p391 = por %p389, %p390
    %p392 = scmp.ne.s32.totalorder %s384, %s386
    %p393 = scmp.eq.s32.totalorder %s30, 1
    %p394 = por %p392, %p393
    %p395 = scmp.ne.s32.totalorder %s386, %s387
    %p396 = scmp.eq.s32.totalorder %s30, 0
    %p397 = por %p395, %p396
    %p398 = scmp.ne.s32.totalorder %s386, %s387
    %p399 = scmp.eq.s32.totalorder %s31, 1
    %p400 = por %p398, %p399
    %p402 = scmp.ne.s32.totalorder %s387, %s401
    %p403 = scmp.eq.s32.totalorder %s31, 0
    %p404 = por %p402, %p403
    %s406 = sadd.s32 %s405, 1
    %p409 = scmp.eq.s32.totalorder %s25, 1
    %p410 = scmp.ne.s32.totalorder %s405, %s407
    %p411 = scmp.eq.s32.totalorder %s25, 0
    %p412 = por %p410, %p411
    %p413 = scmp.ne.s32.totalorder %s405, %s407
    %p414 = scmp.eq.s32.totalorder %s30, 1
    %p415 = por %p413, %p414
    %p416 = scmp.ne.s32.totalorder %s407, %s408
    %p417 = scmp.eq.s32.totalorder %s30, 0
    %p418 = por %p416, %p417
    %p419 = scmp.ne.s32.totalorder %s407, %s408
    %p420 = scmp.eq.s32.totalorder %s31, 1
    %p421 = por %p419, %p420
    %p423 = scmp.ne.s32.totalorder %s408, %s422
    %p424 = scmp.eq.s32.totalorder %s31, 0
    %p425 = por %p423, %p424
    %s427 = sadd.s32 %s426, 1
    %p430 = scmp.eq.s32.totalorder %s25, 1
    %p431 = scmp.ne.s32.totalorder %s426, %s428
    %p432 = scmp.eq.s32.totalorder %s25, 0
    %p433 = por %p431, %p432
    %p434 = scmp.ne.s32.totalorder %s426, %s428
    %p435 = scmp.eq.s32.totalorder %s30, 1
    %p436 = por %p434, %p435
    %p437 = scmp.ne.s32.totalorder %s428, %s429
    %p438 = scmp.eq.s32.totalorder %s30, 0
    %p439 = por %p437, %p438
    %p440 = scmp.ne.s32.totalorder %s428, %s429
    %p441 = scmp.eq.s32.totalorder %s31, 1
    %p442 = por %p440, %p441
    %p444 = scmp.ne.s32.totalorder %s429, %s443
    %p445 = scmp.eq.s32.totalorder %s31, 0
    %p446 = por %p444, %p445
    %s447 = ssub.s32 %s25, %s32
    %p448 = scmp.eq.s32.totalorder %s447, 0
    %s450 = sadd.s32 %s449, 1
    %s451 = scalar_select %p448, %s449, %s450
    %p454 = pneg %p448
    %p455 = scmp.eq.s32.totalorder %s25, 1
    %p456 = por %p454, %p455
    %p457 = scmp.ne.s32.totalorder %s449, %s452
    %p458 = scmp.eq.s32.totalorder %s25, 0
    %p459 = por %p457, %p458
    %p460 = scmp.ne.s32.totalorder %s449, %s452
    %p461 = scmp.eq.s32.totalorder %s30, 1
    %p462 = por %p460, %p461
    %p463 = scmp.ne.s32.totalorder %s452, %s453
    %p464 = scmp.eq.s32.totalorder %s30, 0
    %p465 = por %p463, %p464
    %p466 = scmp.ne.s32.totalorder %s452, %s453
    %p467 = scmp.eq.s32.totalorder %s31, 1
    %p468 = por %p466, %p467
    %p470 = scmp.ne.s32.totalorder %s453, %s469
    %p471 = scmp.eq.s32.totalorder %s31, 0
    %p472 = por %p470, %p471
    %p473 = scmp.le.s32.totalorder 1, %s25
    %p474 = scmp.lt.s32.totalorder %s25, 3
    %p475 = pnand %p473, %p474
    %p476 = pneg %p475
    // Predicated region
    $region9: #{full_cross_attention_encoder_fwd.8} parent=5 // pred_check
      _
    $region10: #{full_cross_attention_encoder_fwd.8} parent=5 // pred_check_branch
      %478 = sbr.rel (%p475) target = $region12
    $region11: #{full_cross_attention_encoder_fwd.8} parent=5 // pred_region
      %s479 = ssub.s32 %s25, 1
      // Predicated region
      $region13: #{full_cross_attention_encoder_fwd.8} parent=11 // pred_check
        %p480 = pneg %p124
      $region14: #{full_cross_attention_encoder_fwd.8} parent=11 // pred_check_branch
        %482 = sbr.rel (%p480) target = $region16
      $region15: #{full_cross_attention_encoder_fwd.8} parent=11 // pred_region
        _
      $region16: #{full_cross_attention_encoder_fwd.8} parent=11 // pred_fallthru
        _
      // Predicated region
      $region17: #{full_cross_attention_encoder_fwd.8} parent=11 // pred_check
        %p483 = pneg %p145
      $region18: #{full_cross_attention_encoder_fwd.8} parent=11 // pred_check_branch
        %485 = sbr.rel (%p483) target = $region20
      $region19: #{full_cross_attention_encoder_fwd.8} parent=11 // pred_region
        _
      $region20: #{full_cross_attention_encoder_fwd.8} parent=11 // pred_fallthru
        _
      // Predicated region
      $region21: #{full_cross_attention_encoder_fwd.8} parent=11 // pred_check
        %p486 = pneg %p166
      $region22: #{full_cross_attention_encoder_fwd.8} parent=11 // pred_check_branch
        %488 = sbr.rel (%p486) target = $region24
      $region23: #{full_cross_attention_encoder_fwd.8} parent=11 // pred_region
        _
      $region24: #{full_cross_attention_encoder_fwd.8} parent=11 // pred_fallthru
        _
      // Predicated region
      $region25: #{full_cross_attention_encoder_fwd.8} parent=11 // pred_check
        %p489 = pneg %p187
      $region26: #{full_cross_attention_encoder_fwd.8} parent=11 // pred_check_branch
        %491 = sbr.rel (%p489) target = $region28
      $region27: #{full_cross_attention_encoder_fwd.8} parent=11 // pred_region
        _
      $region28: #{full_cross_attention_encoder_fwd.8} parent=11 // pred_fallthru
        _
      // Predicated region
      $region29: #{full_cross_attention_encoder_fwd.8} parent=11 // pred_check
        %p492 = pneg %p208
      $region30: #{full_cross_attention_encoder_fwd.8} parent=11 // pred_check_branch
        %494 = sbr.rel (%p492) target = $region32
      $region31: #{full_cross_attention_encoder_fwd.8} parent=11 // pred_region
        _
      $region32: #{full_cross_attention_encoder_fwd.8} parent=11 // pred_fallthru
        _
      // Predicated region
      $region33: #{full_cross_attention_encoder_fwd.8} parent=11 // pred_check
        %p495 = pneg %p229
      $region34: #{full_cross_attention_encoder_fwd.8} parent=11 // pred_check_branch
        %497 = sbr.rel (%p495) target = $region36
      $region35: #{full_cross_attention_encoder_fwd.8} parent=11 // pred_region
        _
      $region36: #{full_cross_attention_encoder_fwd.8} parent=11 // pred_fallthru
        _
      // Predicated region
      $region37: #{full_cross_attention_encoder_fwd.8} parent=11 // pred_check
        %p498 = pneg %p250
      $region38: #{full_cross_attention_encoder_fwd.8} parent=11 // pred_check_branch
        %500 = sbr.rel (%p498) target = $region40
      $region39: #{full_cross_attention_encoder_fwd.8} parent=11 // pred_region
        _
      $region40: #{full_cross_attention_encoder_fwd.8} parent=11 // pred_fallthru
        _
      // Predicated region
      $region41: #{full_cross_attention_encoder_fwd.8} parent=11 // pred_check
        %p501 = pneg %p271
      $region42: #{full_cross_attention_encoder_fwd.8} parent=11 // pred_check_branch
        %503 = sbr.rel (%p501) target = $region44
      $region43: #{full_cross_attention_encoder_fwd.8} parent=11 // pred_region
        _
      $region44: #{full_cross_attention_encoder_fwd.8} parent=11 // pred_fallthru
        _
      // Predicated region
      $region45: #{full_cross_attention_encoder_fwd.8} parent=11 // pred_check
        %p504 = pneg %p292
      $region46: #{full_cross_attention_encoder_fwd.8} parent=11 // pred_check_branch
        %506 = sbr.rel (%p504) target = $region48
      $region47: #{full_cross_attention_encoder_fwd.8} parent=11 // pred_region
        _
      $region48: #{full_cross_attention_encoder_fwd.8} parent=11 // pred_fallthru
        _
      // Predicated region
      $region49: #{full_cross_attention_encoder_fwd.8} parent=11 // pred_check
        %p507 = pneg %p313
      $region50: #{full_cross_attention_encoder_fwd.8} parent=11 // pred_check_branch
        %509 = sbr.rel (%p507) target = $region52
      $region51: #{full_cross_attention_encoder_fwd.8} parent=11 // pred_region
        _
      $region52: #{full_cross_attention_encoder_fwd.8} parent=11 // pred_fallthru
        _
      // Predicated region
      $region53: #{full_cross_attention_encoder_fwd.8} parent=11 // pred_check
        %p510 = pneg %p334
      $region54: #{full_cross_attention_encoder_fwd.8} parent=11 // pred_check_branch
        %512 = sbr.rel (%p510) target = $region56
      $region55: #{full_cross_attention_encoder_fwd.8} parent=11 // pred_region
        _
      $region56: #{full_cross_attention_encoder_fwd.8} parent=11 // pred_fallthru
        _
      // Predicated region
      $region57: #{full_cross_attention_encoder_fwd.8} parent=11 // pred_check
        %p513 = pneg %p355
      $region58: #{full_cross_attention_encoder_fwd.8} parent=11 // pred_check_branch
        %515 = sbr.rel (%p513) target = $region60
      $region59: #{full_cross_attention_encoder_fwd.8} parent=11 // pred_region
        _
      $region60: #{full_cross_attention_encoder_fwd.8} parent=11 // pred_fallthru
        _
      // Predicated region
      $region61: #{full_cross_attention_encoder_fwd.8} parent=11 // pred_check
        %p516 = pneg %p376
      $region62: #{full_cross_attention_encoder_fwd.8} parent=11 // pred_check_branch
        %518 = sbr.rel (%p516) target = $region64
      $region63: #{full_cross_attention_encoder_fwd.8} parent=11 // pred_region
        _
      $region64: #{full_cross_attention_encoder_fwd.8} parent=11 // pred_fallthru
        _
      // Predicated region
      $region65: #{full_cross_attention_encoder_fwd.8} parent=11 // pred_check
        %p519 = pneg %p397
      $region66: #{full_cross_attention_encoder_fwd.8} parent=11 // pred_check_branch
        %521 = sbr.rel (%p519) target = $region68
      $region67: #{full_cross_attention_encoder_fwd.8} parent=11 // pred_region
        _
      $region68: #{full_cross_attention_encoder_fwd.8} parent=11 // pred_fallthru
        _
      // Predicated region
      $region69: #{full_cross_attention_encoder_fwd.8} parent=11 // pred_check
        %p522 = pneg %p418
      $region70: #{full_cross_attention_encoder_fwd.8} parent=11 // pred_check_branch
        %524 = sbr.rel (%p522) target = $region72
      $region71: #{full_cross_attention_encoder_fwd.8} parent=11 // pred_region
        _
      $region72: #{full_cross_attention_encoder_fwd.8} parent=11 // pred_fallthru
        _
      // Predicated region
      $region73: #{full_cross_attention_encoder_fwd.8} parent=11 // pred_check
        %p525 = pneg %p439
      $region74: #{full_cross_attention_encoder_fwd.8} parent=11 // pred_check_branch
        %527 = sbr.rel (%p525) target = $region76
      $region75: #{full_cross_attention_encoder_fwd.8} parent=11 // pred_region
        _
      $region76: #{full_cross_attention_encoder_fwd.8} parent=11 // pred_fallthru
        _
    $region12: #{full_cross_attention_encoder_fwd.8} parent=5 // pred_fallthru
      _
    %p528 = scmp.lt.s32.totalorder %s25, 2
    // Predicated region
    $region77: #{full_cross_attention_encoder_fwd.8} parent=5 // pred_check
      %p529 = pneg %p528
    $region78: #{full_cross_attention_encoder_fwd.8} parent=5 // pred_check_branch
      %531 = sbr.rel (%p529) target = $region80
    $region79: #{full_cross_attention_encoder_fwd.8} parent=5 // pred_region
      // Predicated region
      $region81: #{full_cross_attention_encoder_fwd.8} parent=79 // pred_check
        %p532 = pneg %p45
      $region82: #{full_cross_attention_encoder_fwd.8} parent=79 // pred_check_branch
        %534 = sbr.rel (%p532) target = $region84
      $region83: #{full_cross_attention_encoder_fwd.8} parent=79 // pred_region
        %p535 = scmp.lt.s32.totalorder %s25, 1
        %s536 = scalar_select %p535, %s25, 1
        %s537 = smul.addr %s536, 2
        %s538 = smul.addr %s537, 8
        %s539 = scalar_lea.vmem %s0, %s538
      $region84: #{full_cross_attention_encoder_fwd.8} parent=79 // pred_fallthru
        _
      // Predicated region
      $region85: #{full_cross_attention_encoder_fwd.8} parent=79 // pred_check
        %p540 = pneg %p71
      $region86: #{full_cross_attention_encoder_fwd.8} parent=79 // pred_check_branch
        %542 = sbr.rel (%p540) target = $region88
      $region87: #{full_cross_attention_encoder_fwd.8} parent=79 // pred_region
        %p543 = scmp.lt.s32.totalorder %s25, 1
        %s544 = scalar_select %p543, %s25, 1
        %s545 = smul.addr %s544, 8
        %s546 = scalar_lea.vmem %s1, %s545
      $region88: #{full_cross_attention_encoder_fwd.8} parent=79 // pred_fallthru
        _
      // Predicated region
      $region89: #{full_cross_attention_encoder_fwd.8} parent=79 // pred_check
        %p547 = pneg %p97
      $region90: #{full_cross_attention_encoder_fwd.8} parent=79 // pred_check_branch
        %549 = sbr.rel (%p547) target = $region92
      $region91: #{full_cross_attention_encoder_fwd.8} parent=79 // pred_region
        %p550 = scmp.lt.s32.totalorder %s25, 1
        %s551 = scalar_select %p550, %s25, 1
        %s552 = scalar_lea.vmem %s2, %s551
      $region92: #{full_cross_attention_encoder_fwd.8} parent=79 // pred_fallthru
        _
    $region80: #{full_cross_attention_encoder_fwd.8} parent=5 // pred_fallthru
      _
    %p553 = scmp.le.s32.totalorder 1, %s25
    %p554 = scmp.lt.s32.totalorder %s25, 3
    %p555 = pnand %p553, %p554
    %p556 = pneg %p555
    // Predicated region
    $region93: #{full_cross_attention_encoder_fwd.8} parent=5 // pred_check
      _
    $region94: #{full_cross_attention_encoder_fwd.8} parent=5 // pred_check_branch
      %558 = sbr.rel (%p555) target = $region96
    $region95: #{full_cross_attention_encoder_fwd.8} parent=5 // pred_region
      %s559 = ssub.s32 %s25, 1
      %p560 = scmp.lt.s32.totalorder %s30, 1
      %s561 = scalar_select %p560, %s30, 1
      %s562 = smul.addr %s561, 2
      %s563 = smul.addr %s562, 8
      %s564 = scalar_lea.vmem %s0, %s563
      %p565 = pneg %p51
      %p566 = pneg %p48
      %p567 = scmp.lt.s32.totalorder %s30, 1
      %s568 = scalar_select %p567, %s30, 1
      %s569 = smul.addr %s568, 8
      %s570 = scalar_lea.vmem %s1, %s569
      %p571 = pneg %p77
      %p572 = pneg %p74
      %p573 = scmp.lt.s32.totalorder %s30, 1
      %s574 = scalar_select %p573, %s30, 1
      %s575 = scalar_lea.vmem %s2, %s574
      %p576 = pneg %p103
      %p577 = pneg %p100
      %p578 = pneg %p124
      %p579 = pneg %p121
      %p580 = pneg %p145
      %p581 = pneg %p142
      %p582 = pneg %p166
      %p583 = pneg %p163
      %p584 = pneg %p187
      %p585 = pneg %p184
      %p586 = pneg %p208
      %p587 = pneg %p205
      %p588 = pneg %p229
      %p589 = pneg %p226
      %p590 = pneg %p250
      %p591 = pneg %p247
      %p592 = pneg %p271
      %p593 = pneg %p268
      %p594 = pneg %p292
      %p595 = pneg %p289
      %p596 = pneg %p313
      %p597 = pneg %p310
      %p598 = pneg %p334
      %p599 = pneg %p331
      %p600 = pneg %p355
      %p601 = pneg %p352
      %p602 = pneg %p376
      %p603 = pneg %p373
      %p604 = pneg %p397
      %p605 = pneg %p394
      %p606 = pneg %p418
      %p607 = pneg %p415
      %p608 = pneg %p439
      %p609 = pneg %p436
      %p610 = pneg %p465
      %p611 = pneg %p462
      %p612 = scmp.lt.s32.totalorder %s30, 1
      %s613 = scalar_select %p612, %s30, 1
      %s614 = smul.addr %s613, 2
      %s615 = smul.addr %s614, 8
      %s616 = scalar_lea.vmem %s19, %s615
      %p617 = scmp.lt.s32.totalorder %s30, 1
      %s618 = scalar_select %p617, %s30, 1
      %s619 = smul.addr %s618, 2
      %s620 = smul.addr %s619, 8
      %s621 = scalar_lea.vmem %s0, %s620
      %p622 = scmp.lt.s32.totalorder %s30, 1
      %s623 = scalar_select %p622, %s30, 1
      %s624 = smul.addr %s623, 8
      %s625 = scalar_lea.vmem %s1, %s624
      %p626 = scmp.lt.s32.totalorder %s30, 1
      %s627 = scalar_select %p626, %s30, 1
      %s628 = scalar_lea.vmem %s2, %s627
      %p629 = scmp.lt.s32.totalorder %s30, 1
      %s630 = scalar_select %p629, %s30, 1
      %s631 = smul.addr %s630, 2
      %s632 = smul.addr %s631, 8
      %s633 = scalar_lea.vmem %s19, %s632
      %v635 = vld [vmem:[%s621] sm:$0xff]
      %v636 = vld [vmem:[%s621 + $0x8] sm:$0xff]
      %v637 = vld [vmem:[%s625] sm:$0xff]
      %v638 = vld [vmem:[%s628] sm:$0x1]
      %v639 = vld [vmem:[%s5] sm:$0x1]
      %v640 = vld [vmem:[%s6] sm:$0x1]
      %641 = vadd.xlane.f32.xlu0 %v635
      %v642 = vpop.xlane.xlu0 %641
      %643 = vadd.xlane.f32.xlu0 %v636
      %v644 = vpop.xlane.xlu0 %643
      %v645 = vrcp.pop 128.0
      %v646 = vmul.f32 %v642, %v645
      %v647 = vmul.f32 %v644, %v645
      %v648 = vsub.f32 %v635, %v646
      %v649 = vsub.f32 %v636, %v647
      %v650 = vmul.f32 %v648, %v648
      %v651 = vmul.f32 %v649, %v649
      %652 = vadd.xlane.f32.xlu0 %v650
      %v653 = vpop.xlane.xlu0 %652
      %654 = vadd.xlane.f32.xlu0 %v651
      %v655 = vpop.xlane.xlu0 %654
      %v656 = vmul.f32 %v653, %v645
      %v657 = vmul.f32 %v655, %v645
      %v658 = vadd.f32 %v656, 1e-05
      %v659 = vadd.f32 %v657, 1e-05
      %v660 = vrsqrt.pop %v658
      %v661 = vrsqrt.pop %v659
      %v662 = vmul.f32 %v648, %v660
      %v663 = vmul.f32 %v649, %v661
      %v665 = vlaneseq
      %v666 = vshrl.u32 %v665, 7
      %v667 = vsub.s32 0, %v666
      %v668 = vrot.slane %v639, %v667
      %v670 = vmul.f32 %v662, %v668
      %v671 = vmul.f32 %v663, %v668
      %v673 = vlaneseq
      %v674 = vshrl.u32 %v673, 7
      %v675 = vsub.s32 0, %v674
      %v676 = vrot.slane %v640, %v675
      %v678 = vadd.f32 %v670, %v676
      %v679 = vadd.f32 %v671, %v676
      %v680 = vld [vmem:[%s9] sm:$0xf]
      %v681 = vld [vmem:[%s9 + $0x4] sm:$0xf]
      %v682 = vld [vmem:[%s9 + $0x8] sm:$0xf]
      %v683 = vld [vmem:[%s9 + $0xc] sm:$0xf]
      %v684 = vld [vmem:[%s9 + $0x10] sm:$0xf]
      %v685 = vld [vmem:[%s9 + $0x14] sm:$0xf]
      %v686 = vld [vmem:[%s9 + $0x18] sm:$0xf]
      %v687 = vld [vmem:[%s9 + $0x1c] sm:$0xf]
      %v688 = vld [vmem:[%s9 + $0x20] sm:$0xf]
      %v689 = vld [vmem:[%s9 + $0x24] sm:$0xf]
      %v690 = vld [vmem:[%s9 + $0x28] sm:$0xf]
      %v691 = vld [vmem:[%s9 + $0x2c] sm:$0xf]
      %v692 = vld [vmem:[%s9 + $0x30] sm:$0xf]
      %v693 = vld [vmem:[%s9 + $0x34] sm:$0xf]
      %v694 = vld [vmem:[%s9 + $0x38] sm:$0xf]
      %v695 = vld [vmem:[%s9 + $0x3c] sm:$0xf]
      %v696 = vpack.c.bf16 %v679, %v678
      %v697 = vld [vmem:[%s10] sm:$0x1]
      %v699 = vlaneseq
      %v700 = vshrl.u32 %v699, 7
      %v701 = vsub.s32 0, %v700
      %v702 = vrot.slane %v697, %v701
      %v720 = vunpack.c.l.b16 %v680
      %v721 = vunpack.c.l.b16 %v681
      %v722 = vunpack.c.l.b16 %v682
      %v723 = vunpack.c.l.b16 %v683
      %v724 = vunpack.c.l.b16 %v684
      %v725 = vunpack.c.l.b16 %v685
      %v726 = vunpack.c.l.b16 %v686
      %v727 = vunpack.c.l.b16 %v687
      %v728 = vunpack.c.l.b16 %v688
      %v729 = vunpack.c.l.b16 %v689
      %v730 = vunpack.c.l.b16 %v690
      %v731 = vunpack.c.l.b16 %v691
      %v732 = vunpack.c.l.b16 %v692
      %v733 = vunpack.c.l.b16 %v693
      %v734 = vunpack.c.l.b16 %v694
      %v735 = vunpack.c.l.b16 %v695
      %v736 = vpack.c.b16 %v721, %v720
      %v737 = vpack.c.b16 %v723, %v722
      %v738 = vpack.c.b16 %v725, %v724
      %v739 = vpack.c.b16 %v727, %v726
      %v740 = vpack.c.b16 %v729, %v728
      %v741 = vpack.c.b16 %v731, %v730
      %v742 = vpack.c.b16 %v733, %v732
      %v743 = vpack.c.b16 %v735, %v734
      %752 = vmatprep.subr.bf16.mxu0 0
      %753 = vmatpush1.bf16.msra.mxu0 %v743
      %754 = vmatprep.subr.bf16.mxu0 0
      %755 = vmatpush1.bf16.msra.mxu0 %v742
      %756 = vmatprep.subr.bf16.mxu0 0
      %757 = vmatpush1.bf16.msra.mxu0 %v741
      %758 = vmatprep.subr.bf16.mxu0 0
      %759 = vmatpush1.bf16.msra.mxu0 %v740
      %760 = vmatprep.subr.bf16.mxu0 0
      %761 = vmatpush1.bf16.msra.mxu0 %v739
      %762 = vmatprep.subr.bf16.mxu0 0
      %763 = vmatpush1.bf16.msra.mxu0 %v738
      %764 = vmatprep.subr.bf16.mxu0 0
      %765 = vmatpush1.bf16.msra.mxu0 %v737
      %766 = vmatprep.subr.bf16.mxu0 0
      %767 = vmatpush1.bf16.msra.mxu0 %v736
      %768 = vmatprep.subr.bf16.mxu0 0
      %769 = vmatpush2.bf16.msra.mxu0 0
      %770 = vmatprep.subr.bf16.mxu0 0
      %771 = vmatpush2.bf16.msra.mxu0 0
      %772 = vmatprep.subr.bf16.mxu0 0
      %773 = vmatpush2.bf16.msra.mxu0 0
      %774 = vmatprep.subr.bf16.mxu0 0
      %775 = vmatpush2.bf16.msra.mxu0 0
      %776 = vmatprep.subr.bf16.mxu0 0
      %777 = vmatpush2.bf16.msra.mxu0 0
      %778 = vmatprep.subr.bf16.mxu0 0
      %779 = vmatpush2.bf16.msra.mxu0 0
      %780 = vmatprep.subr.bf16.mxu0 0
      %781 = vmatpush2.bf16.msra.mxu0 0
      %782 = vmatprep.subr.bf16.mxu0 0
      %783 = vmatpush2.bf16.msra.mxu0 0
      %784 = vmatprep.mubr.bf16.mxu0 0
      %785 = vmatmul.mubr.bf16.gmra.mxu0 %v696
      %v786 = vpop.f32.mrf.mxu0
      %v787 = vadd.f32 %v702, %v786
      %v788 = vpop.f32.mrf.mxu0
      %v789 = vpop.f32.mrf.mxu0
      %v790 = vadd.f32 %v702, %v789
      %v791 = vpop.f32.mrf.mxu0
      %792 = vdwg.mxu0
      %v793 = vld [vmem:[%s3] sm:$0x1]
      %v794 = vld [vmem:[%s4] sm:$0x1]
      %795 = vadd.xlane.f32.xlu0 %v637
      %v796 = vpop.xlane.xlu0 %795
      %v797 = vmul.f32 %v796, %v645
      %v798 = vsub.f32 %v637, %v797
      %v799 = vmul.f32 %v798, %v798
      %800 = vadd.xlane.f32.xlu0 %v799
      %v801 = vpop.xlane.xlu0 %800
      %v802 = vmul.f32 %v801, %v645
      %v803 = vadd.f32 %v802, 1e-05
      %v804 = vrsqrt.pop %v803
      %v805 = vmul.f32 %v798, %v804
      %v807 = vlaneseq
      %v808 = vshrl.u32 %v807, 7
      %v809 = vsub.s32 0, %v808
      %v810 = vrot.slane %v793, %v809
      %v812 = vmul.f32 %v805, %v810
      %v814 = vlaneseq
      %v815 = vshrl.u32 %v814, 7
      %v816 = vsub.s32 0, %v815
      %v817 = vrot.slane %v794, %v816
      %v819 = vadd.f32 %v812, %v817
      %v820 = vld [vmem:[%s11] sm:$0xff]
      %v821 = vld [vmem:[%s11 + $0x8] sm:$0xff]
      %v822 = vld [vmem:[%s11 + $0x10] sm:$0xff]
      %v823 = vld [vmem:[%s11 + $0x18] sm:$0xff]
      %v824 = vld [vmem:[%s11 + $0x20] sm:$0xff]
      %v825 = vld [vmem:[%s11 + $0x28] sm:$0xff]
      %v826 = vld [vmem:[%s11 + $0x30] sm:$0xff]
      %v827 = vld [vmem:[%s11 + $0x38] sm:$0xff]
      %v828 = vld [vmem:[%s11 + $0x40] sm:$0xff]
      %v829 = vld [vmem:[%s11 + $0x48] sm:$0xff]
      %v830 = vld [vmem:[%s11 + $0x50] sm:$0xff]
      %v831 = vld [vmem:[%s11 + $0x58] sm:$0xff]
      %v832 = vld [vmem:[%s11 + $0x60] sm:$0xff]
      %v833 = vld [vmem:[%s11 + $0x68] sm:$0xff]
      %v834 = vld [vmem:[%s11 + $0x70] sm:$0xff]
      %v835 = vld [vmem:[%s11 + $0x78] sm:$0xff]
      %v836 = vpack.c.bf16 %v819, %v819
      %v837 = vld [vmem:[%s12] sm:$0x3]
      %v839 = vlaneseq
      %v840 = vshrl.u32 %v839, 7
      %v841 = vsub.s32 0, %v840
      %v842 = vrot.slane %v837, %v841
      %v843 = vlaneseq
      %v844 = vshrl.u32 %v843, 7
      %v845 = vsub.s32 1, %v844
      %v846 = vrot.slane %v837, %v845
      %v865 = vunpack.c.l.b16 %v820
      %v866 = vunpack.c.h.b16 %v820
      %v867 = vunpack.c.l.b16 %v821
      %v868 = vunpack.c.h.b16 %v821
      %v869 = vunpack.c.l.b16 %v822
      %v870 = vunpack.c.h.b16 %v822
      %v871 = vunpack.c.l.b16 %v823
      %v872 = vunpack.c.h.b16 %v823
      %v873 = vunpack.c.l.b16 %v824
      %v874 = vunpack.c.h.b16 %v824
      %v875 = vunpack.c.l.b16 %v825
      %v876 = vunpack.c.h.b16 %v825
      %v877 = vunpack.c.l.b16 %v826
      %v878 = vunpack.c.h.b16 %v826
      %v879 = vunpack.c.l.b16 %v827
      %v880 = vunpack.c.h.b16 %v827
      %v881 = vunpack.c.l.b16 %v828
      %v882 = vunpack.c.h.b16 %v828
      %v883 = vunpack.c.l.b16 %v829
      %v884 = vunpack.c.h.b16 %v829
      %v885 = vunpack.c.l.b16 %v830
      %v886 = vunpack.c.h.b16 %v830
      %v887 = vunpack.c.l.b16 %v831
      %v888 = vunpack.c.h.b16 %v831
      %v889 = vunpack.c.l.b16 %v832
      %v890 = vunpack.c.h.b16 %v832
      %v891 = vunpack.c.l.b16 %v833
      %v892 = vunpack.c.h.b16 %v833
      %v893 = vunpack.c.l.b16 %v834
      %v894 = vunpack.c.h.b16 %v834
      %v895 = vunpack.c.l.b16 %v835
      %v896 = vunpack.c.h.b16 %v835
      %v897 = vpack.c.b16 %v867, %v865
      %v898 = vpack.c.b16 %v868, %v866
      %v899 = vpack.c.b16 %v871, %v869
      %v900 = vpack.c.b16 %v872, %v870
      %v901 = vpack.c.b16 %v875, %v873
      %v902 = vpack.c.b16 %v876, %v874
      %v903 = vpack.c.b16 %v879, %v877
      %v904 = vpack.c.b16 %v880, %v878
      %v905 = vpack.c.b16 %v883, %v881
      %v906 = vpack.c.b16 %v884, %v882
      %v907 = vpack.c.b16 %v887, %v885
      %v908 = vpack.c.b16 %v888, %v886
      %v909 = vpack.c.b16 %v891, %v889
      %v910 = vpack.c.b16 %v892, %v890
      %v911 = vpack.c.b16 %v895, %v893
      %v912 = vpack.c.b16 %v896, %v894
      %929 = vmatprep.subr.bf16.mxu0 %v912
      %930 = vmatpush1.bf16.msra.mxu0 %v911
      %931 = vmatprep.subr.bf16.mxu0 %v910
      %932 = vmatpush1.bf16.msra.mxu0 %v909
      %933 = vmatprep.subr.bf16.mxu0 %v908
      %934 = vmatpush1.bf16.msra.mxu0 %v907
      %935 = vmatprep.subr.bf16.mxu0 %v906
      %936 = vmatpush1.bf16.msra.mxu0 %v905
      %937 = vmatprep.subr.bf16.mxu0 %v904
      %938 = vmatpush1.bf16.msra.mxu0 %v903
      %939 = vmatprep.subr.bf16.mxu0 %v902
      %940 = vmatpush1.bf16.msra.mxu0 %v901
      %941 = vmatprep.subr.bf16.mxu0 %v900
      %942 = vmatpush1.bf16.msra.mxu0 %v899
      %943 = vmatprep.subr.bf16.mxu0 %v898
      %944 = vmatpush1.bf16.msra.mxu0 %v897
      %945 = vmatprep.subr.bf16.mxu0 0
      %946 = vmatpush2.bf16.msra.mxu0 0
      %947 = vmatprep.subr.bf16.mxu0 0
      %948 = vmatpush2.bf16.msra.mxu0 0
      %949 = vmatprep.subr.bf16.mxu0 0
      %950 = vmatpush2.bf16.msra.mxu0 0
      %951 = vmatprep.subr.bf16.mxu0 0
      %952 = vmatpush2.bf16.msra.mxu0 0
      %953 = vmatprep.subr.bf16.mxu0 0
      %954 = vmatpush2.bf16.msra.mxu0 0
      %955 = vmatprep.subr.bf16.mxu0 0
      %956 = vmatpush2.bf16.msra.mxu0 0
      %957 = vmatprep.subr.bf16.mxu0 0
      %958 = vmatpush2.bf16.msra.mxu0 0
      %959 = vmatprep.subr.bf16.mxu0 0
      %960 = vmatpush2.bf16.msra.mxu0 0
      %961 = vmatprep.mubr.bf16.mxu0 0
      %962 = vmatmul.mubr.bf16.gmra.mxu0 %v836
      %v963 = vpop.f32.mrf.mxu0
      %v964 = vadd.f32 %v842, %v963
      %v965 = vpop.f32.mrf.mxu0
      %v966 = vadd.f32 %v846, %v965
      %v967 = vpop.f32.mrf.mxu0
      %v968 = vpop.f32.mrf.mxu0
      %969 = vdwg.mxu0
      %v970 = vld [vmem:[%s13] sm:$0xf]
      %v971 = vld [vmem:[%s13 + $0x4] sm:$0xf]
      %v972 = vld [vmem:[%s13 + $0x8] sm:$0xf]
      %v973 = vld [vmem:[%s13 + $0xc] sm:$0xf]
      %v974 = vld [vmem:[%s13 + $0x10] sm:$0xf]
      %v975 = vld [vmem:[%s13 + $0x14] sm:$0xf]
      %v976 = vld [vmem:[%s13 + $0x18] sm:$0xf]
      %v977 = vld [vmem:[%s13 + $0x1c] sm:$0xf]
      %v978 = vld [vmem:[%s13 + $0x20] sm:$0xf]
      %v979 = vld [vmem:[%s13 + $0x24] sm:$0xf]
      %v980 = vld [vmem:[%s13 + $0x28] sm:$0xf]
      %v981 = vld [vmem:[%s13 + $0x2c] sm:$0xf]
      %v982 = vld [vmem:[%s13 + $0x30] sm:$0xf]
      %v983 = vld [vmem:[%s13 + $0x34] sm:$0xf]
      %v984 = vld [vmem:[%s13 + $0x38] sm:$0xf]
      %v985 = vld [vmem:[%s13 + $0x3c] sm:$0xf]
      %v986 = vpack.c.bf16 %v790, %v787
      %v987 = vpack.c.bf16 %v964, %v964
      %vm988 = vcmask 261120
      %v990 = vsel %vm988, %v986, 0
      %v993 = vsel %vm988, %v987, 0
      %995 = vmatprep.subr.bf16.mxu0 0
      %996 = vmatpush1.bf16.xpose.msra.mxu0 0
      %997 = vmatprep.subr.bf16.mxu0 0
      %998 = vmatpush1.bf16.xpose.msra.mxu0 0
      %999 = vmatprep.subr.bf16.mxu0 0
      %1000 = vmatpush1.bf16.xpose.msra.mxu0 0
      %1001 = vmatprep.subr.bf16.mxu0 0
      %1002 = vmatpush1.bf16.xpose.msra.mxu0 0
      %1003 = vmatprep.subr.bf16.mxu0 0
      %1004 = vmatpush1.bf16.xpose.msra.mxu0 0
      %1005 = vmatprep.subr.bf16.mxu0 0
      %1006 = vmatpush1.bf16.xpose.msra.mxu0 0
      %1007 = vmatprep.subr.bf16.mxu0 0
      %1008 = vmatpush1.bf16.xpose.msra.mxu0 0
      %1009 = vmatprep.subr.bf16.mxu0 0
      %1010 = vmatpush1.bf16.xpose.msra.mxu0 %v993
      %1011 = vmatprep.subr.bf16.mxu0 0
      %1012 = vmatpush2.bf16.xpose.msra.mxu0 0
      %1013 = vmatprep.subr.bf16.mxu0 0
      %1014 = vmatpush2.bf16.xpose.msra.mxu0 0
      %1015 = vmatprep.subr.bf16.mxu0 0
      %1016 = vmatpush2.bf16.xpose.msra.mxu0 0
      %1017 = vmatprep.subr.bf16.mxu0 0
      %1018 = vmatpush2.bf16.xpose.msra.mxu0 0
      %1019 = vmatprep.subr.bf16.mxu0 0
      %1020 = vmatpush2.bf16.xpose.msra.mxu0 0
      %1021 = vmatprep.subr.bf16.mxu0 0
      %1022 = vmatpush2.bf16.xpose.msra.mxu0 0
      %1023 = vmatprep.subr.bf16.mxu0 0
      %1024 = vmatpush2.bf16.xpose.msra.mxu0 0
      %1025 = vmatprep.subr.bf16.mxu0 0
      %1026 = vmatpush2.bf16.xpose.msra.mxu0 0
      %1027 = vmatprep.mubr.bf16.mxu0 0
      %1028 = vmatmul.mubr.bf16.gmra.mxu0 %v990
      %v1029 = vpop.f32.mrf.mxu0
      %v1030 = vadd.f32 0.0, %v1029
      %v1031 = vpop.f32.mrf.mxu0
      %v1032 = vpop.f32.mrf.mxu0
      %v1033 = vadd.f32 0.0, %v1032
      %v1034 = vpop.f32.mrf.mxu0
      %1035 = vdwg.mxu0
      %v1036 = vmul.f32 %v1030, 0.17677669
      %v1037 = vmul.f32 %v1033, 0.17677669
      %v1039 = vlaneseq
      %v1040 = vshrl.u32 %v1039, 7
      %v1041 = vsub.s32 0, %v1040
      %v1042 = vrot.slane %v638, %v1041
      %v1044 = vadd.f32 %v1036, %v1042
      %v1045 = vadd.f32 %v1037, %v1042
      %vm1046 = vcmask 64512
      %v1047 = vsel %vm1046, %v1044, -inf
      %1048 = vmax.xlane.f32.xlu0 %v1047
      %v1049 = vpop.xlane.xlu0 %1048
      %v1050 = vsel %vm1046, %v1045, -inf
      %1051 = vmax.xlane.f32.xlu0 %v1050
      %v1052 = vpop.xlane.xlu0 %1051
      %v1053 = vsub.f32 %v1044, %v1049
      %v1054 = vsub.f32 %v1045, %v1052
      %v1055 = vmul.f32 %v1053, 1.442695
      %v1056 = vpow.pop %v1055
      %v1057 = vmul.f32 %v1054, 1.442695
      %v1058 = vpow.pop %v1057
      %v1059 = vsel %vm1046, %v1056, 0.0
      %1060 = vadd.xlane.f32.xlu0 %v1059
      %v1061 = vpop.xlane.xlu0 %1060
      %v1062 = vsel %vm1046, %v1058, 0.0
      %1063 = vadd.xlane.f32.xlu0 %v1062
      %v1064 = vpop.xlane.xlu0 %1063
      %v1065 = vrcp.pop %v1061
      %v1066 = vrcp.pop %v1064
      %v1067 = vmul.f32 %v1056, %v1065
      %v1068 = vmul.f32 %v1058, %v1066
      %v1069 = vpack.c.bf16 %v1068, %v1067
      %v1070 = vpack.c.bf16 %v966, %v966
      %v1072 = vsel %vm1046, %v1069, 0
      %vm1074 = vcmask 1043456
      %v1076 = vsel %vm1074, %v1070, 0
      %1078 = vmatprep.subr.bf16.mxu0 0
      %1079 = vmatpush1.bf16.msra.mxu0 0
      %1080 = vmatprep.subr.bf16.mxu0 0
      %1081 = vmatpush1.bf16.msra.mxu0 0
      %1082 = vmatprep.subr.bf16.mxu0 0
      %1083 = vmatpush1.bf16.msra.mxu0 0
      %1084 = vmatprep.subr.bf16.mxu0 0
      %1085 = vmatpush1.bf16.msra.mxu0 0
      %1086 = vmatprep.subr.bf16.mxu0 0
      %1087 = vmatpush1.bf16.msra.mxu0 0
      %1088 = vmatprep.subr.bf16.mxu0 0
      %1089 = vmatpush1.bf16.msra.mxu0 0
      %1090 = vmatprep.subr.bf16.mxu0 0
      %1091 = vmatpush1.bf16.msra.mxu0 0
      %1092 = vmatprep.subr.bf16.mxu0 0
      %1093 = vmatpush1.bf16.msra.mxu0 %v1076
      %1094 = vmatprep.subr.bf16.mxu0 0
      %1095 = vmatpush2.bf16.msra.mxu0 0
      %1096 = vmatprep.subr.bf16.mxu0 0
      %1097 = vmatpush2.bf16.msra.mxu0 0
      %1098 = vmatprep.subr.bf16.mxu0 0
      %1099 = vmatpush2.bf16.msra.mxu0 0
      %1100 = vmatprep.subr.bf16.mxu0 0
      %1101 = vmatpush2.bf16.msra.mxu0 0
      %1102 = vmatprep.subr.bf16.mxu0 0
      %1103 = vmatpush2.bf16.msra.mxu0 0
      %1104 = vmatprep.subr.bf16.mxu0 0
      %1105 = vmatpush2.bf16.msra.mxu0 0
      %1106 = vmatprep.subr.bf16.mxu0 0
      %1107 = vmatpush2.bf16.msra.mxu0 0
      %1108 = vmatprep.subr.bf16.mxu0 0
      %1109 = vmatpush2.bf16.msra.mxu0 0
      %1110 = vmatprep.mubr.bf16.mxu0 0
      %1111 = vmatmul.mubr.bf16.gmra.mxu0 %v1072
      %v1112 = vpop.f32.mrf.mxu0
      %v1113 = vadd.f32 0.0, %v1112
      %v1114 = vpop.f32.mrf.mxu0
      %v1115 = vpop.f32.mrf.mxu0
      %v1116 = vadd.f32 0.0, %v1115
      %v1117 = vpop.f32.mrf.mxu0
      %1118 = vdwg.mxu0
      %v1119 = vpack.c.bf16 %v1116, %v1113
      %1121 = vrot.lane.b32.xlu0 %v986, 96
      %v1122 = vpop.permute.xlu0 %1121
      %1124 = vrot.lane.b32.xlu0 %v987, 96
      %v1125 = vpop.permute.xlu0 %1124
      %v1127 = vsel %vm988, %v1122, 0
      %v1130 = vsel %vm988, %v1125, 0
      %1132 = vmatprep.subr.bf16.mxu0 0
      %1133 = vmatpush1.bf16.xpose.msra.mxu0 0
      %1134 = vmatprep.subr.bf16.mxu0 0
      %1135 = vmatpush1.bf16.xpose.msra.mxu0 0
      %1136 = vmatprep.subr.bf16.mxu0 0
      %1137 = vmatpush1.bf16.xpose.msra.mxu0 0
      %1138 = vmatprep.subr.bf16.mxu0 0
      %1139 = vmatpush1.bf16.xpose.msra.mxu0 0
      %1140 = vmatprep.subr.bf16.mxu0 0
      %1141 = vmatpush1.bf16.xpose.msra.mxu0 0
      %1142 = vmatprep.subr.bf16.mxu0 0
      %1143 = vmatpush1.bf16.xpose.msra.mxu0 0
      %1144 = vmatprep.subr.bf16.mxu0 0
      %1145 = vmatpush1.bf16.xpose.msra.mxu0 0
      %1146 = vmatprep.subr.bf16.mxu0 0
      %1147 = vmatpush1.bf16.xpose.msra.mxu0 %v1130
      %1148 = vmatprep.subr.bf16.mxu0 0
      %1149 = vmatpush2.bf16.xpose.msra.mxu0 0
      %1150 = vmatprep.subr.bf16.mxu0 0
      %1151 = vmatpush2.bf16.xpose.msra.mxu0 0
      %1152 = vmatprep.subr.bf16.mxu0 0
      %1153 = vmatpush2.bf16.xpose.msra.mxu0 0
      %1154 = vmatprep.subr.bf16.mxu0 0
      %1155 = vmatpush2.bf16.xpose.msra.mxu0 0
      %1156 = vmatprep.subr.bf16.mxu0 0
      %1157 = vmatpush2.bf16.xpose.msra.mxu0 0
      %1158 = vmatprep.subr.bf16.mxu0 0
      %1159 = vmatpush2.bf16.xpose.msra.mxu0 0
      %1160 = vmatprep.subr.bf16.mxu0 0
      %1161 = vmatpush2.bf16.xpose.msra.mxu0 0
      %1162 = vmatprep.subr.bf16.mxu0 0
      %1163 = vmatpush2.bf16.xpose.msra.mxu0 0
      %1164 = vmatprep.mubr.bf16.mxu0 0
      %1165 = vmatmul.mubr.bf16.gmra.mxu0 %v1127
      %v1166 = vpop.f32.mrf.mxu0
      %v1167 = vadd.f32 0.0, %v1166
      %v1168 = vpop.f32.mrf.mxu0
      %v1169 = vpop.f32.mrf.mxu0
      %v1170 = vadd.f32 0.0, %v1169
      %v1171 = vpop.f32.mrf.mxu0
      %1172 = vdwg.mxu0
      %v1173 = vmul.f32 %v1167, 0.17677669
      %v1174 = vmul.f32 %v1170, 0.17677669
      %v1175 = vadd.f32 %v1173, %v1042
      %v1176 = vadd.f32 %v1174, %v1042
      %v1177 = vsel %vm1046, %v1175, -inf
      %1178 = vmax.xlane.f32.xlu0 %v1177
      %v1179 = vpop.xlane.xlu0 %1178
      %v1180 = vsel %vm1046, %v1176, -inf
      %1181 = vmax.xlane.f32.xlu0 %v1180
      %v1182 = vpop.xlane.xlu0 %1181
      %v1183 = vsub.f32 %v1175, %v1179
      %v1184 = vsub.f32 %v1176, %v1182
      %v1185 = vmul.f32 %v1183, 1.442695
      %v1186 = vpow.pop %v1185
      %v1187 = vmul.f32 %v1184, 1.442695
      %v1188 = vpow.pop %v1187
      %v1189 = vsel %vm1046, %v1186, 0.0
      %1190 = vadd.xlane.f32.xlu0 %v1189
      %v1191 = vpop.xlane.xlu0 %1190
      %v1192 = vsel %vm1046, %v1188, 0.0
      %1193 = vadd.xlane.f32.xlu0 %v1192
      %v1194 = vpop.xlane.xlu0 %1193
      %v1195 = vrcp.pop %v1191
      %v1196 = vrcp.pop %v1194
      %v1197 = vmul.f32 %v1186, %v1195
      %v1198 = vmul.f32 %v1188, %v1196
      %v1199 = vpack.c.bf16 %v1198, %v1197
      %1201 = vrot.lane.b32.xlu0 %v1070, 96
      %v1202 = vpop.permute.xlu0 %1201
      %v1204 = vsel %vm1046, %v1199, 0
      %v1207 = vsel %vm1074, %v1202, 0
      %1209 = vmatprep.subr.bf16.mxu0 0
      %1210 = vmatpush1.bf16.msra.mxu0 0
      %1211 = vmatprep.subr.bf16.mxu0 0
      %1212 = vmatpush1.bf16.msra.mxu0 0
      %1213 = vmatprep.subr.bf16.mxu0 0
      %1214 = vmatpush1.bf16.msra.mxu0 0
      %1215 = vmatprep.subr.bf16.mxu0 0
      %1216 = vmatpush1.bf16.msra.mxu0 0
      %1217 = vmatprep.subr.bf16.mxu0 0
      %1218 = vmatpush1.bf16.msra.mxu0 0
      %1219 = vmatprep.subr.bf16.mxu0 0
      %1220 = vmatpush1.bf16.msra.mxu0 0
      %1221 = vmatprep.subr.bf16.mxu0 0
      %1222 = vmatpush1.bf16.msra.mxu0 0
      %1223 = vmatprep.subr.bf16.mxu0 0
      %1224 = vmatpush1.bf16.msra.mxu0 %v1207
      %1225 = vmatprep.subr.bf16.mxu0 0
      %1226 = vmatpush2.bf16.msra.mxu0 0
      %1227 = vmatprep.subr.bf16.mxu0 0
      %1228 = vmatpush2.bf16.msra.mxu0 0
      %1229 = vmatprep.subr.bf16.mxu0 0
      %1230 = vmatpush2.bf16.msra.mxu0 0
      %1231 = vmatprep.subr.bf16.mxu0 0
      %1232 = vmatpush2.bf16.msra.mxu0 0
      %1233 = vmatprep.subr.bf16.mxu0 0
      %1234 = vmatpush2.bf16.msra.mxu0 0
      %1235 = vmatprep.subr.bf16.mxu0 0
      %1236 = vmatpush2.bf16.msra.mxu0 0
      %1237 = vmatprep.subr.bf16.mxu0 0
      %1238 = vmatpush2.bf16.msra.mxu0 0
      %1239 = vmatprep.subr.bf16.mxu0 0
      %1240 = vmatpush2.bf16.msra.mxu0 0
      %1241 = vmatprep.mubr.bf16.mxu0 0
      %1242 = vmatmul.mubr.bf16.gmra.mxu0 %v1204
      %v1243 = vpop.f32.mrf.mxu0
      %v1244 = vadd.f32 0.0, %v1243
      %v1245 = vpop.f32.mrf.mxu0
      %v1246 = vpop.f32.mrf.mxu0
      %v1247 = vadd.f32 0.0, %v1246
      %v1248 = vpop.f32.mrf.mxu0
      %1249 = vdwg.mxu0
      %v1250 = vpack.c.bf16 %v1247, %v1244
      %v1255 = vunpack.c.l.b16 %v974
      %v1256 = vunpack.c.l.b16 %v975
      %v1257 = vunpack.c.l.b16 %v976
      %v1258 = vunpack.c.l.b16 %v977
      %v1259 = vpack.c.b16 %v1256, %v1255
      %v1260 = vpack.c.b16 %v1258, %v1257
      %v1264 = vsel %vm988, %v1250, 0
      %1266 = vmatprep.subr.bf16.mxu0 0
      %1267 = vmatpush1.bf16.msra.mxu0 0
      %1268 = vmatprep.subr.bf16.mxu0 0
      %1269 = vmatpush1.bf16.msra.mxu0 0
      %1270 = vmatprep.subr.bf16.mxu0 0
      %1271 = vmatpush1.bf16.msra.mxu0 0
      %1272 = vmatprep.subr.bf16.mxu0 0
      %1273 = vmatpush1.bf16.msra.mxu0 0
      %1274 = vmatprep.subr.bf16.mxu0 0
      %1275 = vmatpush1.bf16.msra.mxu0 0
      %1276 = vmatprep.subr.bf16.mxu0 0
      %1277 = vmatpush1.bf16.msra.mxu0 0
      %1278 = vmatprep.subr.bf16.mxu0 0
      %1279 = vmatpush1.bf16.msra.mxu0 %v1260
      %1280 = vmatprep.subr.bf16.mxu0 0
      %1281 = vmatpush1.bf16.msra.mxu0 %v1259
      %1282 = vmatprep.subr.bf16.mxu0 0
      %1283 = vmatpush2.bf16.msra.mxu0 0
      %1284 = vmatprep.subr.bf16.mxu0 0
      %1285 = vmatpush2.bf16.msra.mxu0 0
      %1286 = vmatprep.subr.bf16.mxu0 0
      %1287 = vmatpush2.bf16.msra.mxu0 0
      %1288 = vmatprep.subr.bf16.mxu0 0
      %1289 = vmatpush2.bf16.msra.mxu0 0
      %1290 = vmatprep.subr.bf16.mxu0 0
      %1291 = vmatpush2.bf16.msra.mxu0 0
      %1292 = vmatprep.subr.bf16.mxu0 0
      %1293 = vmatpush2.bf16.msra.mxu0 0
      %1294 = vmatprep.subr.bf16.mxu0 0
      %1295 = vmatpush2.bf16.msra.mxu0 0
      %1296 = vmatprep.subr.bf16.mxu0 0
      %1297 = vmatpush2.bf16.msra.mxu0 0
      %1298 = vmatprep.mubr.bf16.mxu0 0
      %1299 = vmatmul.mubr.bf16.gmra.mxu0 %v1264
      %v1300 = vpop.f32.mrf.mxu0
      %v1301 = vadd.f32 0.0, %v1300
      %v1302 = vpop.f32.mrf.mxu0
      %v1303 = vpop.f32.mrf.mxu0
      %v1304 = vadd.f32 0.0, %v1303
      %v1305 = vpop.f32.mrf.mxu0
      %1306 = vdwg.mxu0
      %v1311 = vunpack.c.l.b16 %v970
      %v1312 = vunpack.c.l.b16 %v971
      %v1313 = vunpack.c.l.b16 %v972
      %v1314 = vunpack.c.l.b16 %v973
      %v1315 = vpack.c.b16 %v1312, %v1311
      %v1316 = vpack.c.b16 %v1314, %v1313
      %v1320 = vsel %vm988, %v1119, 0
      %1322 = vmatprep.subr.bf16.mxu0 0
      %1323 = vmatpush1.bf16.msra.mxu0 0
      %1324 = vmatprep.subr.bf16.mxu0 0
      %1325 = vmatpush1.bf16.msra.mxu0 0
      %1326 = vmatprep.subr.bf16.mxu0 0
      %1327 = vmatpush1.bf16.msra.mxu0 0
      %1328 = vmatprep.subr.bf16.mxu0 0
      %1329 = vmatpush1.bf16.msra.mxu0 0
      %1330 = vmatprep.subr.bf16.mxu0 0
      %1331 = vmatpush1.bf16.msra.mxu0 0
      %1332 = vmatprep.subr.bf16.mxu0 0
      %1333 = vmatpush1.bf16.msra.mxu0 0
      %1334 = vmatprep.subr.bf16.mxu0 0
      %1335 = vmatpush1.bf16.msra.mxu0 %v1316
      %1336 = vmatprep.subr.bf16.mxu0 0
      %1337 = vmatpush1.bf16.msra.mxu0 %v1315
      %1338 = vmatprep.subr.bf16.mxu0 0
      %1339 = vmatpush2.bf16.msra.mxu0 0
      %1340 = vmatprep.subr.bf16.mxu0 0
      %1341 = vmatpush2.bf16.msra.mxu0 0
      %1342 = vmatprep.subr.bf16.mxu0 0
      %1343 = vmatpush2.bf16.msra.mxu0 0
      %1344 = vmatprep.subr.bf16.mxu0 0
      %1345 = vmatpush2.bf16.msra.mxu0 0
      %1346 = vmatprep.subr.bf16.mxu0 0
      %1347 = vmatpush2.bf16.msra.mxu0 0
      %1348 = vmatprep.subr.bf16.mxu0 0
      %1349 = vmatpush2.bf16.msra.mxu0 0
      %1350 = vmatprep.subr.bf16.mxu0 0
      %1351 = vmatpush2.bf16.msra.mxu0 0
      %1352 = vmatprep.subr.bf16.mxu0 0
      %1353 = vmatpush2.bf16.msra.mxu0 0
      %1354 = vmatprep.mubr.bf16.mxu0 0
      %1355 = vmatmul.mubr.bf16.gmra.mxu0 %v1320
      %v1356 = vpop.f32.mrf.mxu0
      %v1357 = vadd.f32 %v1301, %v1356
      %v1358 = vpop.f32.mrf.mxu0
      %v1359 = vpop.f32.mrf.mxu0
      %v1360 = vadd.f32 %v1304, %v1359
      %v1361 = vpop.f32.mrf.mxu0
      %1362 = vdwg.mxu0
      %1363 = vrot.lane.b32.xlu0 %v986, 64
      %v1364 = vpop.permute.xlu0 %1363
      %1365 = vrot.lane.b32.xlu0 %v987, 64
      %v1366 = vpop.permute.xlu0 %1365
      %v1368 = vsel %vm988, %v1364, 0
      %v1371 = vsel %vm988, %v1366, 0
      %1373 = vmatprep.subr.bf16.mxu0 0
      %1374 = vmatpush1.bf16.xpose.msra.mxu0 0
      %1375 = vmatprep.subr.bf16.mxu0 0
      %1376 = vmatpush1.bf16.xpose.msra.mxu0 0
      %1377 = vmatprep.subr.bf16.mxu0 0
      %1378 = vmatpush1.bf16.xpose.msra.mxu0 0
      %1379 = vmatprep.subr.bf16.mxu0 0
      %1380 = vmatpush1.bf16.xpose.msra.mxu0 0
      %1381 = vmatprep.subr.bf16.mxu0 0
      %1382 = vmatpush1.bf16.xpose.msra.mxu0 0
      %1383 = vmatprep.subr.bf16.mxu0 0
      %1384 = vmatpush1.bf16.xpose.msra.mxu0 0
      %1385 = vmatprep.subr.bf16.mxu0 0
      %1386 = vmatpush1.bf16.xpose.msra.mxu0 0
      %1387 = vmatprep.subr.bf16.mxu0 0
      %1388 = vmatpush1.bf16.xpose.msra.mxu0 %v1371
      %1389 = vmatprep.subr.bf16.mxu0 0
      %1390 = vmatpush2.bf16.xpose.msra.mxu0 0
      %1391 = vmatprep.subr.bf16.mxu0 0
      %1392 = vmatpush2.bf16.xpose.msra.mxu0 0
      %1393 = vmatprep.subr.bf16.mxu0 0
      %1394 = vmatpush2.bf16.xpose.msra.mxu0 0
      %1395 = vmatprep.subr.bf16.mxu0 0
      %1396 = vmatpush2.bf16.xpose.msra.mxu0 0
      %1397 = vmatprep.subr.bf16.mxu0 0
      %1398 = vmatpush2.bf16.xpose.msra.mxu0 0
      %1399 = vmatprep.subr.bf16.mxu0 0
      %1400 = vmatpush2.bf16.xpose.msra.mxu0 0
      %1401 = vmatprep.subr.bf16.mxu0 0
      %1402 = vmatpush2.bf16.xpose.msra.mxu0 0
      %1403 = vmatprep.subr.bf16.mxu0 0
      %1404 = vmatpush2.bf16.xpose.msra.mxu0 0
      %1405 = vmatprep.mubr.bf16.mxu0 0
      %1406 = vmatmul.mubr.bf16.gmra.mxu0 %v1368
      %v1407 = vpop.f32.mrf.mxu0
      %v1408 = vadd.f32 0.0, %v1407
      %v1409 = vpop.f32.mrf.mxu0
      %v1410 = vpop.f32.mrf.mxu0
      %v1411 = vadd.f32 0.0, %v1410
      %v1412 = vpop.f32.mrf.mxu0
      %1413 = vdwg.mxu0
      %v1414 = vmul.f32 %v1408, 0.17677669
      %v1415 = vmul.f32 %v1411, 0.17677669
      %v1416 = vadd.f32 %v1414, %v1042
      %v1417 = vadd.f32 %v1415, %v1042
      %v1418 = vsel %vm1046, %v1416, -inf
      %1419 = vmax.xlane.f32.xlu0 %v1418
      %v1420 = vpop.xlane.xlu0 %1419
      %v1421 = vsel %vm1046, %v1417, -inf
      %1422 = vmax.xlane.f32.xlu0 %v1421
      %v1423 = vpop.xlane.xlu0 %1422
      %v1424 = vsub.f32 %v1416, %v1420
      %v1425 = vsub.f32 %v1417, %v1423
      %v1426 = vmul.f32 %v1424, 1.442695
      %v1427 = vpow.pop %v1426
      %v1428 = vmul.f32 %v1425, 1.442695
      %v1429 = vpow.pop %v1428
      %v1430 = vsel %vm1046, %v1427, 0.0
      %1431 = vadd.xlane.f32.xlu0 %v1430
      %v1432 = vpop.xlane.xlu0 %1431
      %v1433 = vsel %vm1046, %v1429, 0.0
      %1434 = vadd.xlane.f32.xlu0 %v1433
      %v1435 = vpop.xlane.xlu0 %1434
      %v1436 = vrcp.pop %v1432
      %v1437 = vrcp.pop %v1435
      %v1438 = vmul.f32 %v1427, %v1436
      %v1439 = vmul.f32 %v1429, %v1437
      %v1440 = vpack.c.bf16 %v1439, %v1438
      %1441 = vrot.lane.b32.xlu0 %v1070, 64
      %v1442 = vpop.permute.xlu0 %1441
      %v1444 = vsel %vm1046, %v1440, 0
      %v1447 = vsel %vm1074, %v1442, 0
      %1449 = vmatprep.subr.bf16.mxu0 0
      %1450 = vmatpush1.bf16.msra.mxu0 0
      %1451 = vmatprep.subr.bf16.mxu0 0
      %1452 = vmatpush1.bf16.msra.mxu0 0
      %1453 = vmatprep.subr.bf16.mxu0 0
      %1454 = vmatpush1.bf16.msra.mxu0 0
      %1455 = vmatprep.subr.bf16.mxu0 0
      %1456 = vmatpush1.bf16.msra.mxu0 0
      %1457 = vmatprep.subr.bf16.mxu0 0
      %1458 = vmatpush1.bf16.msra.mxu0 0
      %1459 = vmatprep.subr.bf16.mxu0 0
      %1460 = vmatpush1.bf16.msra.mxu0 0
      %1461 = vmatprep.subr.bf16.mxu0 0
      %1462 = vmatpush1.bf16.msra.mxu0 0
      %1463 = vmatprep.subr.bf16.mxu0 0
      %1464 = vmatpush1.bf16.msra.mxu0 %v1447
      %1465 = vmatprep.subr.bf16.mxu0 0
      %1466 = vmatpush2.bf16.msra.mxu0 0
      %1467 = vmatprep.subr.bf16.mxu0 0
      %1468 = vmatpush2.bf16.msra.mxu0 0
      %1469 = vmatprep.subr.bf16.mxu0 0
      %1470 = vmatpush2.bf16.msra.mxu0 0
      %1471 = vmatprep.subr.bf16.mxu0 0
      %1472 = vmatpush2.bf16.msra.mxu0 0
      %1473 = vmatprep.subr.bf16.mxu0 0
      %1474 = vmatpush2.bf16.msra.mxu0 0
      %1475 = vmatprep.subr.bf16.mxu0 0
      %1476 = vmatpush2.bf16.msra.mxu0 0
      %1477 = vmatprep.subr.bf16.mxu0 0
      %1478 = vmatpush2.bf16.msra.mxu0 0
      %1479 = vmatprep.subr.bf16.mxu0 0
      %1480 = vmatpush2.bf16.msra.mxu0 0
      %1481 = vmatprep.mubr.bf16.mxu0 0
      %1482 = vmatmul.mubr.bf16.gmra.mxu0 %v1444
      %v1483 = vpop.f32.mrf.mxu0
      %v1484 = vadd.f32 0.0, %v1483
      %v1485 = vpop.f32.mrf.mxu0
      %v1486 = vpop.f32.mrf.mxu0
      %v1487 = vadd.f32 0.0, %v1486
      %v1488 = vpop.f32.mrf.mxu0
      %1489 = vdwg.mxu0
      %v1490 = vpack.c.bf16 %v1487, %v1484
      %v1495 = vunpack.c.l.b16 %v978
      %v1496 = vunpack.c.l.b16 %v979
      %v1497 = vunpack.c.l.b16 %v980
      %v1498 = vunpack.c.l.b16 %v981
      %v1499 = vpack.c.b16 %v1496, %v1495
      %v1500 = vpack.c.b16 %v1498, %v1497
      %v1504 = vsel %vm988, %v1490, 0
      %1506 = vmatprep.subr.bf16.mxu0 0
      %1507 = vmatpush1.bf16.msra.mxu0 0
      %1508 = vmatprep.subr.bf16.mxu0 0
      %1509 = vmatpush1.bf16.msra.mxu0 0
      %1510 = vmatprep.subr.bf16.mxu0 0
      %1511 = vmatpush1.bf16.msra.mxu0 0
      %1512 = vmatprep.subr.bf16.mxu0 0
      %1513 = vmatpush1.bf16.msra.mxu0 0
      %1514 = vmatprep.subr.bf16.mxu0 0
      %1515 = vmatpush1.bf16.msra.mxu0 0
      %1516 = vmatprep.subr.bf16.mxu0 0
      %1517 = vmatpush1.bf16.msra.mxu0 0
      %1518 = vmatprep.subr.bf16.mxu0 0
      %1519 = vmatpush1.bf16.msra.mxu0 %v1500
      %1520 = vmatprep.subr.bf16.mxu0 0
      %1521 = vmatpush1.bf16.msra.mxu0 %v1499
      %1522 = vmatprep.subr.bf16.mxu0 0
      %1523 = vmatpush2.bf16.msra.mxu0 0
      %1524 = vmatprep.subr.bf16.mxu0 0
      %1525 = vmatpush2.bf16.msra.mxu0 0
      %1526 = vmatprep.subr.bf16.mxu0 0
      %1527 = vmatpush2.bf16.msra.mxu0 0
      %1528 = vmatprep.subr.bf16.mxu0 0
      %1529 = vmatpush2.bf16.msra.mxu0 0
      %1530 = vmatprep.subr.bf16.mxu0 0
      %1531 = vmatpush2.bf16.msra.mxu0 0
      %1532 = vmatprep.subr.bf16.mxu0 0
      %1533 = vmatpush2.bf16.msra.mxu0 0
      %1534 = vmatprep.subr.bf16.mxu0 0
      %1535 = vmatpush2.bf16.msra.mxu0 0
      %1536 = vmatprep.subr.bf16.mxu0 0
      %1537 = vmatpush2.bf16.msra.mxu0 0
      %1538 = vmatprep.mubr.bf16.mxu0 0
      %1539 = vmatmul.mubr.bf16.gmra.mxu0 %v1504
      %v1540 = vpop.f32.mrf.mxu0
      %v1541 = vadd.f32 0.0, %v1540
      %v1542 = vpop.f32.mrf.mxu0
      %v1543 = vpop.f32.mrf.mxu0
      %v1544 = vadd.f32 0.0, %v1543
      %v1545 = vpop.f32.mrf.mxu0
      %1546 = vdwg.mxu0
      %v1547 = vadd.f32 %v1357, %v1541
      %v1548 = vadd.f32 %v1360, %v1544
      %1549 = vrot.lane.b32.xlu0 %v986, 32
      %v1550 = vpop.permute.xlu0 %1549
      %1551 = vrot.lane.b32.xlu0 %v987, 32
      %v1552 = vpop.permute.xlu0 %1551
      %v1554 = vsel %vm988, %v1550, 0
      %v1557 = vsel %vm988, %v1552, 0
      %1559 = vmatprep.subr.bf16.mxu0 0
      %1560 = vmatpush1.bf16.xpose.msra.mxu0 0
      %1561 = vmatprep.subr.bf16.mxu0 0
      %1562 = vmatpush1.bf16.xpose.msra.mxu0 0
      %1563 = vmatprep.subr.bf16.mxu0 0
      %1564 = vmatpush1.bf16.xpose.msra.mxu0 0
      %1565 = vmatprep.subr.bf16.mxu0 0
      %1566 = vmatpush1.bf16.xpose.msra.mxu0 0
      %1567 = vmatprep.subr.bf16.mxu0 0
      %1568 = vmatpush1.bf16.xpose.msra.mxu0 0
      %1569 = vmatprep.subr.bf16.mxu0 0
      %1570 = vmatpush1.bf16.xpose.msra.mxu0 0
      %1571 = vmatprep.subr.bf16.mxu0 0
      %1572 = vmatpush1.bf16.xpose.msra.mxu0 0
      %1573 = vmatprep.subr.bf16.mxu0 0
      %1574 = vmatpush1.bf16.xpose.msra.mxu0 %v1557
      %1575 = vmatprep.subr.bf16.mxu0 0
      %1576 = vmatpush2.bf16.xpose.msra.mxu0 0
      %1577 = vmatprep.subr.bf16.mxu0 0
      %1578 = vmatpush2.bf16.xpose.msra.mxu0 0
      %1579 = vmatprep.subr.bf16.mxu0 0
      %1580 = vmatpush2.bf16.xpose.msra.mxu0 0
      %1581 = vmatprep.subr.bf16.mxu0 0
      %1582 = vmatpush2.bf16.xpose.msra.mxu0 0
      %1583 = vmatprep.subr.bf16.mxu0 0
      %1584 = vmatpush2.bf16.xpose.msra.mxu0 0
      %1585 = vmatprep.subr.bf16.mxu0 0
      %1586 = vmatpush2.bf16.xpose.msra.mxu0 0
      %1587 = vmatprep.subr.bf16.mxu0 0
      %1588 = vmatpush2.bf16.xpose.msra.mxu0 0
      %1589 = vmatprep.subr.bf16.mxu0 0
      %1590 = vmatpush2.bf16.xpose.msra.mxu0 0
      %1591 = vmatprep.mubr.bf16.mxu0 0
      %1592 = vmatmul.mubr.bf16.gmra.mxu0 %v1554
      %v1593 = vpop.f32.mrf.mxu0
      %v1594 = vadd.f32 0.0, %v1593
      %v1595 = vpop.f32.mrf.mxu0
      %v1596 = vpop.f32.mrf.mxu0
      %v1597 = vadd.f32 0.0, %v1596
      %v1598 = vpop.f32.mrf.mxu0
      %1599 = vdwg.mxu0
      %v1600 = vmul.f32 %v1594, 0.17677669
      %v1601 = vmul.f32 %v1597, 0.17677669
      %v1602 = vadd.f32 %v1600, %v1042
      %v1603 = vadd.f32 %v1601, %v1042
      %v1604 = vsel %vm1046, %v1602, -inf
      %1605 = vmax.xlane.f32.xlu0 %v1604
      %v1606 = vpop.xlane.xlu0 %1605
      %v1607 = vsel %vm1046, %v1603, -inf
      %1608 = vmax.xlane.f32.xlu0 %v1607
      %v1609 = vpop.xlane.xlu0 %1608
      %v1610 = vsub.f32 %v1602, %v1606
      %v1611 = vsub.f32 %v1603, %v1609
      %v1612 = vmul.f32 %v1610, 1.442695
      %v1613 = vpow.pop %v1612
      %v1614 = vmul.f32 %v1611, 1.442695
      %v1615 = vpow.pop %v1614
      %v1616 = vsel %vm1046, %v1613, 0.0
      %1617 = vadd.xlane.f32.xlu0 %v1616
      %v1618 = vpop.xlane.xlu0 %1617
      %v1619 = vsel %vm1046, %v1615, 0.0
      %1620 = vadd.xlane.f32.xlu0 %v1619
      %v1621 = vpop.xlane.xlu0 %1620
      %v1622 = vrcp.pop %v1618
      %v1623 = vrcp.pop %v1621
      %v1624 = vmul.f32 %v1613, %v1622
      %v1625 = vmul.f32 %v1615, %v1623
      %v1626 = vpack.c.bf16 %v1625, %v1624
      %1627 = vrot.lane.b32.xlu0 %v1070, 32
      %v1628 = vpop.permute.xlu0 %1627
      %v1630 = vsel %vm1046, %v1626, 0
      %v1633 = vsel %vm1074, %v1628, 0
      %1635 = vmatprep.subr.bf16.mxu0 0
      %1636 = vmatpush1.bf16.msra.mxu0 0
      %1637 = vmatprep.subr.bf16.mxu0 0
      %1638 = vmatpush1.bf16.msra.mxu0 0
      %1639 = vmatprep.subr.bf16.mxu0 0
      %1640 = vmatpush1.bf16.msra.mxu0 0
      %1641 = vmatprep.subr.bf16.mxu0 0
      %1642 = vmatpush1.bf16.msra.mxu0 0
      %1643 = vmatprep.subr.bf16.mxu0 0
      %1644 = vmatpush1.bf16.msra.mxu0 0
      %1645 = vmatprep.subr.bf16.mxu0 0
      %1646 = vmatpush1.bf16.msra.mxu0 0
      %1647 = vmatprep.subr.bf16.mxu0 0
      %1648 = vmatpush1.bf16.msra.mxu0 0
      %1649 = vmatprep.subr.bf16.mxu0 0
      %1650 = vmatpush1.bf16.msra.mxu0 %v1633
      %1651 = vmatprep.subr.bf16.mxu0 0
      %1652 = vmatpush2.bf16.msra.mxu0 0
      %1653 = vmatprep.subr.bf16.mxu0 0
      %1654 = vmatpush2.bf16.msra.mxu0 0
      %1655 = vmatprep.subr.bf16.mxu0 0
      %1656 = vmatpush2.bf16.msra.mxu0 0
      %1657 = vmatprep.subr.bf16.mxu0 0
      %1658 = vmatpush2.bf16.msra.mxu0 0
      %1659 = vmatprep.subr.bf16.mxu0 0
      %1660 = vmatpush2.bf16.msra.mxu0 0
      %1661 = vmatprep.subr.bf16.mxu0 0
      %1662 = vmatpush2.bf16.msra.mxu0 0
      %1663 = vmatprep.subr.bf16.mxu0 0
      %1664 = vmatpush2.bf16.msra.mxu0 0
      %1665 = vmatprep.subr.bf16.mxu0 0
      %1666 = vmatpush2.bf16.msra.mxu0 0
      %1667 = vmatprep.mubr.bf16.mxu0 0
      %1668 = vmatmul.mubr.bf16.gmra.mxu0 %v1630
      %v1669 = vpop.f32.mrf.mxu0
      %v1670 = vadd.f32 0.0, %v1669
      %v1671 = vpop.f32.mrf.mxu0
      %v1672 = vpop.f32.mrf.mxu0
      %v1673 = vadd.f32 0.0, %v1672
      %v1674 = vpop.f32.mrf.mxu0
      %1675 = vdwg.mxu0
      %v1676 = vpack.c.bf16 %v1673, %v1670
      %v1681 = vunpack.c.l.b16 %v982
      %v1682 = vunpack.c.l.b16 %v983
      %v1683 = vunpack.c.l.b16 %v984
      %v1684 = vunpack.c.l.b16 %v985
      %v1685 = vpack.c.b16 %v1682, %v1681
      %v1686 = vpack.c.b16 %v1684, %v1683
      %v1690 = vsel %vm988, %v1676, 0
      %1692 = vmatprep.subr.bf16.mxu0 0
      %1693 = vmatpush1.bf16.msra.mxu0 0
      %1694 = vmatprep.subr.bf16.mxu0 0
      %1695 = vmatpush1.bf16.msra.mxu0 0
      %1696 = vmatprep.subr.bf16.mxu0 0
      %1697 = vmatpush1.bf16.msra.mxu0 0
      %1698 = vmatprep.subr.bf16.mxu0 0
      %1699 = vmatpush1.bf16.msra.mxu0 0
      %1700 = vmatprep.subr.bf16.mxu0 0
      %1701 = vmatpush1.bf16.msra.mxu0 0
      %1702 = vmatprep.subr.bf16.mxu0 0
      %1703 = vmatpush1.bf16.msra.mxu0 0
      %1704 = vmatprep.subr.bf16.mxu0 0
      %1705 = vmatpush1.bf16.msra.mxu0 %v1686
      %1706 = vmatprep.subr.bf16.mxu0 0
      %1707 = vmatpush1.bf16.msra.mxu0 %v1685
      %1708 = vmatprep.subr.bf16.mxu0 0
      %1709 = vmatpush2.bf16.msra.mxu0 0
      %1710 = vmatprep.subr.bf16.mxu0 0
      %1711 = vmatpush2.bf16.msra.mxu0 0
      %1712 = vmatprep.subr.bf16.mxu0 0
      %1713 = vmatpush2.bf16.msra.mxu0 0
      %1714 = vmatprep.subr.bf16.mxu0 0
      %1715 = vmatpush2.bf16.msra.mxu0 0
      %1716 = vmatprep.subr.bf16.mxu0 0
      %1717 = vmatpush2.bf16.msra.mxu0 0
      %1718 = vmatprep.subr.bf16.mxu0 0
      %1719 = vmatpush2.bf16.msra.mxu0 0
      %1720 = vmatprep.subr.bf16.mxu0 0
      %1721 = vmatpush2.bf16.msra.mxu0 0
      %1722 = vmatprep.subr.bf16.mxu0 0
      %1723 = vmatpush2.bf16.msra.mxu0 0
      %1724 = vmatprep.mubr.bf16.mxu0 0
      %1725 = vmatmul.mubr.bf16.gmra.mxu0 %v1690
      %v1726 = vpop.f32.mrf.mxu0
      %v1727 = vadd.f32 0.0, %v1726
      %v1728 = vpop.f32.mrf.mxu0
      %v1729 = vpop.f32.mrf.mxu0
      %v1730 = vadd.f32 0.0, %v1729
      %v1731 = vpop.f32.mrf.mxu0
      %1732 = vdwg.mxu0
      %v1733 = vadd.f32 %v1547, %v1727
      %v1734 = vadd.f32 %v1548, %v1730
      %v1735 = vadd.f32 %v635, %v1733
      %v1736 = vadd.f32 %v636, %v1734
      %v1737 = vld [vmem:[%s14] sm:$0x1]
      %v1739 = vlaneseq
      %v1740 = vshrl.u32 %v1739, 7
      %v1741 = vsub.s32 0, %v1740
      %v1742 = vrot.slane %v1737, %v1741
      %v1744 = vadd.f32 %v1735, %v1742
      %v1745 = vadd.f32 %v1736, %v1742
      %v1746 = vld [vmem:[%s7] sm:$0x1]
      %v1747 = vld [vmem:[%s8] sm:$0x1]
      %1748 = vadd.xlane.f32.xlu0 %v1744
      %v1749 = vpop.xlane.xlu0 %1748
      %1750 = vadd.xlane.f32.xlu0 %v1745
      %v1751 = vpop.xlane.xlu0 %1750
      %v1752 = vmul.f32 %v1749, %v645
      %v1753 = vmul.f32 %v1751, %v645
      %v1754 = vsub.f32 %v1744, %v1752
      %v1755 = vsub.f32 %v1745, %v1753
      %v1756 = vmul.f32 %v1754, %v1754
      %v1757 = vmul.f32 %v1755, %v1755
      %1758 = vadd.xlane.f32.xlu0 %v1756
      %v1759 = vpop.xlane.xlu0 %1758
      %1760 = vadd.xlane.f32.xlu0 %v1757
      %v1761 = vpop.xlane.xlu0 %1760
      %v1762 = vmul.f32 %v1759, %v645
      %v1763 = vmul.f32 %v1761, %v645
      %v1764 = vadd.f32 %v1762, 1e-05
      %v1765 = vadd.f32 %v1763, 1e-05
      %v1766 = vrsqrt.pop %v1764
      %v1767 = vrsqrt.pop %v1765
      %v1768 = vmul.f32 %v1754, %v1766
      %v1769 = vmul.f32 %v1755, %v1767
      %v1771 = vlaneseq
      %v1772 = vshrl.u32 %v1771, 7
      %v1773 = vsub.s32 0, %v1772
      %v1774 = vrot.slane %v1746, %v1773
      %v1776 = vmul.f32 %v1768, %v1774
      %v1777 = vmul.f32 %v1769, %v1774
      %v1779 = vlaneseq
      %v1780 = vshrl.u32 %v1779, 7
      %v1781 = vsub.s32 0, %v1780
      %v1782 = vrot.slane %v1747, %v1781
      %v1784 = vadd.f32 %v1776, %v1782
      %v1785 = vadd.f32 %v1777, %v1782
      %v1786 = vld [vmem:[%s15] sm:$0xff]
      %v1787 = vld [vmem:[%s15 + $0x8] sm:$0xff]
      %v1788 = vld [vmem:[%s15 + $0x10] sm:$0xff]
      %v1789 = vld [vmem:[%s15 + $0x18] sm:$0xff]
      %v1790 = vld [vmem:[%s15 + $0x20] sm:$0xff]
      %v1791 = vld [vmem:[%s15 + $0x28] sm:$0xff]
      %v1792 = vld [vmem:[%s15 + $0x30] sm:$0xff]
      %v1793 = vld [vmem:[%s15 + $0x38] sm:$0xff]
      %v1794 = vld [vmem:[%s15 + $0x40] sm:$0xff]
      %v1795 = vld [vmem:[%s15 + $0x48] sm:$0xff]
      %v1796 = vld [vmem:[%s15 + $0x50] sm:$0xff]
      %v1797 = vld [vmem:[%s15 + $0x58] sm:$0xff]
      %v1798 = vld [vmem:[%s15 + $0x60] sm:$0xff]
      %v1799 = vld [vmem:[%s15 + $0x68] sm:$0xff]
      %v1800 = vld [vmem:[%s15 + $0x70] sm:$0xff]
      %v1801 = vld [vmem:[%s15 + $0x78] sm:$0xff]
      %v1802 = vpack.c.bf16 %v1785, %v1784
      %v1803 = vld [vmem:[%s16] sm:$0x3]
      %v1805 = vlaneseq
      %v1806 = vshrl.u32 %v1805, 7
      %v1807 = vsub.s32 0, %v1806
      %v1808 = vrot.slane %v1803, %v1807
      %v1809 = vlaneseq
      %v1810 = vshrl.u32 %v1809, 7
      %v1811 = vsub.s32 1, %v1810
      %v1812 = vrot.slane %v1803, %v1811
      %v1831 = vunpack.c.l.b16 %v1786
      %v1832 = vunpack.c.h.b16 %v1786
      %v1833 = vunpack.c.l.b16 %v1787
      %v1834 = vunpack.c.h.b16 %v1787
      %v1835 = vunpack.c.l.b16 %v1788
      %v1836 = vunpack.c.h.b16 %v1788
      %v1837 = vunpack.c.l.b16 %v1789
      %v1838 = vunpack.c.h.b16 %v1789
      %v1839 = vunpack.c.l.b16 %v1790
      %v1840 = vunpack.c.h.b16 %v1790
      %v1841 = vunpack.c.l.b16 %v1791
      %v1842 = vunpack.c.h.b16 %v1791
      %v1843 = vunpack.c.l.b16 %v1792
      %v1844 = vunpack.c.h.b16 %v1792
      %v1845 = vunpack.c.l.b16 %v1793
      %v1846 = vunpack.c.h.b16 %v1793
      %v1847 = vunpack.c.l.b16 %v1794
      %v1848 = vunpack.c.h.b16 %v1794
      %v1849 = vunpack.c.l.b16 %v1795
      %v1850 = vunpack.c.h.b16 %v1795
      %v1851 = vunpack.c.l.b16 %v1796
      %v1852 = vunpack.c.h.b16 %v1796
      %v1853 = vunpack.c.l.b16 %v1797
      %v1854 = vunpack.c.h.b16 %v1797
      %v1855 = vunpack.c.l.b16 %v1798
      %v1856 = vunpack.c.h.b16 %v1798
      %v1857 = vunpack.c.l.b16 %v1799
      %v1858 = vunpack.c.h.b16 %v1799
      %v1859 = vunpack.c.l.b16 %v1800
      %v1860 = vunpack.c.h.b16 %v1800
      %v1861 = vunpack.c.l.b16 %v1801
      %v1862 = vunpack.c.h.b16 %v1801
      %v1863 = vpack.c.b16 %v1833, %v1831
      %v1864 = vpack.c.b16 %v1834, %v1832
      %v1865 = vpack.c.b16 %v1837, %v1835
      %v1866 = vpack.c.b16 %v1838, %v1836
      %v1867 = vpack.c.b16 %v1841, %v1839
      %v1868 = vpack.c.b16 %v1842, %v1840
      %v1869 = vpack.c.b16 %v1845, %v1843
      %v1870 = vpack.c.b16 %v1846, %v1844
      %v1871 = vpack.c.b16 %v1849, %v1847
      %v1872 = vpack.c.b16 %v1850, %v1848
      %v1873 = vpack.c.b16 %v1853, %v1851
      %v1874 = vpack.c.b16 %v1854, %v1852
      %v1875 = vpack.c.b16 %v1857, %v1855
      %v1876 = vpack.c.b16 %v1858, %v1856
      %v1877 = vpack.c.b16 %v1861, %v1859
      %v1878 = vpack.c.b16 %v1862, %v1860
      %1895 = vmatprep.subr.bf16.mxu0 %v1878
      %1896 = vmatpush1.bf16.msra.mxu0 %v1877
      %1897 = vmatprep.subr.bf16.mxu0 %v1876
      %1898 = vmatpush1.bf16.msra.mxu0 %v1875
      %1899 = vmatprep.subr.bf16.mxu0 %v1874
      %1900 = vmatpush1.bf16.msra.mxu0 %v1873
      %1901 = vmatprep.subr.bf16.mxu0 %v1872
      %1902 = vmatpush1.bf16.msra.mxu0 %v1871
      %1903 = vmatprep.subr.bf16.mxu0 %v1870
      %1904 = vmatpush1.bf16.msra.mxu0 %v1869
      %1905 = vmatprep.subr.bf16.mxu0 %v1868
      %1906 = vmatpush1.bf16.msra.mxu0 %v1867
      %1907 = vmatprep.subr.bf16.mxu0 %v1866
      %1908 = vmatpush1.bf16.msra.mxu0 %v1865
      %1909 = vmatprep.subr.bf16.mxu0 %v1864
      %1910 = vmatpush1.bf16.msra.mxu0 %v1863
      %1911 = vmatprep.subr.bf16.mxu0 0
      %1912 = vmatpush2.bf16.msra.mxu0 0
      %1913 = vmatprep.subr.bf16.mxu0 0
      %1914 = vmatpush2.bf16.msra.mxu0 0
      %1915 = vmatprep.subr.bf16.mxu0 0
      %1916 = vmatpush2.bf16.msra.mxu0 0
      %1917 = vmatprep.subr.bf16.mxu0 0
      %1918 = vmatpush2.bf16.msra.mxu0 0
      %1919 = vmatprep.subr.bf16.mxu0 0
      %1920 = vmatpush2.bf16.msra.mxu0 0
      %1921 = vmatprep.subr.bf16.mxu0 0
      %1922 = vmatpush2.bf16.msra.mxu0 0
      %1923 = vmatprep.subr.bf16.mxu0 0
      %1924 = vmatpush2.bf16.msra.mxu0 0
      %1925 = vmatprep.subr.bf16.mxu0 0
      %1926 = vmatpush2.bf16.msra.mxu0 0
      %1927 = vmatprep.mubr.bf16.mxu0 0
      %1928 = vmatmul.mubr.bf16.gmra.mxu0 %v1802
      %v1929 = vpop.f32.mrf.mxu0
      %v1930 = vadd.f32 %v1808, %v1929
      %v1931 = vpop.f32.mrf.mxu0
      %v1932 = vadd.f32 %v1812, %v1931
      %v1933 = vpop.f32.mrf.mxu0
      %v1934 = vadd.f32 %v1808, %v1933
      %v1935 = vpop.f32.mrf.mxu0
      %v1936 = vadd.f32 %v1812, %v1935
      %1937 = vdwg.mxu0
      %vm1938 = vcmp.gt.f32.partialorder %v1930, 0.0
      %vm1939 = vcmp.gt.f32.partialorder %v1932, 0.0
      %vm1940 = vcmp.gt.f32.partialorder %v1934, 0.0
      %vm1941 = vcmp.gt.f32.partialorder %v1936, 0.0
      %v1942 = vmul.f32 %v1930, 0.01
      %v1943 = vmul.f32 %v1932, 0.01
      %v1944 = vmul.f32 %v1934, 0.01
      %v1945 = vmul.f32 %v1936, 0.01
      %v1946 = vsel %vm1938, %v1930, %v1942
      %v1947 = vsel %vm1939, %v1932, %v1943
      %v1948 = vsel %vm1940, %v1934, %v1944
      %v1949 = vsel %vm1941, %v1936, %v1945
      %v1950 = vld [vmem:[%s17] sm:$0xf]
      %v1951 = vld [vmem:[%s17 + $0x4] sm:$0xf]
      %v1952 = vld [vmem:[%s17 + $0x8] sm:$0xf]
      %v1953 = vld [vmem:[%s17 + $0xc] sm:$0xf]
      %v1954 = vld [vmem:[%s17 + $0x10] sm:$0xf]
      %v1955 = vld [vmem:[%s17 + $0x14] sm:$0xf]
      %v1956 = vld [vmem:[%s17 + $0x18] sm:$0xf]
      %v1957 = vld [vmem:[%s17 + $0x1c] sm:$0xf]
      %v1958 = vld [vmem:[%s17 + $0x20] sm:$0xf]
      %v1959 = vld [vmem:[%s17 + $0x24] sm:$0xf]
      %v1960 = vld [vmem:[%s17 + $0x28] sm:$0xf]
      %v1961 = vld [vmem:[%s17 + $0x2c] sm:$0xf]
      %v1962 = vld [vmem:[%s17 + $0x30] sm:$0xf]
      %v1963 = vld [vmem:[%s17 + $0x34] sm:$0xf]
      %v1964 = vld [vmem:[%s17 + $0x38] sm:$0xf]
      %v1965 = vld [vmem:[%s17 + $0x3c] sm:$0xf]
      %v1966 = vld [vmem:[%s17 + $0x40] sm:$0xf]
      %v1967 = vld [vmem:[%s17 + $0x44] sm:$0xf]
      %v1968 = vld [vmem:[%s17 + $0x48] sm:$0xf]
      %v1969 = vld [vmem:[%s17 + $0x4c] sm:$0xf]
      %v1970 = vld [vmem:[%s17 + $0x50] sm:$0xf]
      %v1971 = vld [vmem:[%s17 + $0x54] sm:$0xf]
      %v1972 = vld [vmem:[%s17 + $0x58] sm:$0xf]
      %v1973 = vld [vmem:[%s17 + $0x5c] sm:$0xf]
      %v1974 = vld [vmem:[%s17 + $0x60] sm:$0xf]
      %v1975 = vld [vmem:[%s17 + $0x64] sm:$0xf]
      %v1976 = vld [vmem:[%s17 + $0x68] sm:$0xf]
      %v1977 = vld [vmem:[%s17 + $0x6c] sm:$0xf]
      %v1978 = vld [vmem:[%s17 + $0x70] sm:$0xf]
      %v1979 = vld [vmem:[%s17 + $0x74] sm:$0xf]
      %v1980 = vld [vmem:[%s17 + $0x78] sm:$0xf]
      %v1981 = vld [vmem:[%s17 + $0x7c] sm:$0xf]
      %v1982 = vpack.c.bf16 %v1948, %v1946
      %v1983 = vpack.c.bf16 %v1949, %v1947
      %v2016 = vunpack.c.l.b16 %v1950
      %v2017 = vunpack.c.l.b16 %v1951
      %v2018 = vunpack.c.l.b16 %v1952
      %v2019 = vunpack.c.l.b16 %v1953
      %v2020 = vunpack.c.l.b16 %v1954
      %v2021 = vunpack.c.l.b16 %v1955
      %v2022 = vunpack.c.l.b16 %v1956
      %v2023 = vunpack.c.l.b16 %v1957
      %v2024 = vunpack.c.l.b16 %v1958
      %v2025 = vunpack.c.l.b16 %v1959
      %v2026 = vunpack.c.l.b16 %v1960
      %v2027 = vunpack.c.l.b16 %v1961
      %v2028 = vunpack.c.l.b16 %v1962
      %v2029 = vunpack.c.l.b16 %v1963
      %v2030 = vunpack.c.l.b16 %v1964
      %v2031 = vunpack.c.l.b16 %v1965
      %v2032 = vunpack.c.l.b16 %v1966
      %v2033 = vunpack.c.l.b16 %v1967
      %v2034 = vunpack.c.l.b16 %v1968
      %v2035 = vunpack.c.l.b16 %v1969
      %v2036 = vunpack.c.l.b16 %v1970
      %v2037 = vunpack.c.l.b16 %v1971
      %v2038 = vunpack.c.l.b16 %v1972
      %v2039 = vunpack.c.l.b16 %v1973
      %v2040 = vunpack.c.l.b16 %v1974
      %v2041 = vunpack.c.l.b16 %v1975
      %v2042 = vunpack.c.l.b16 %v1976
      %v2043 = vunpack.c.l.b16 %v1977
      %v2044 = vunpack.c.l.b16 %v1978
      %v2045 = vunpack.c.l.b16 %v1979
      %v2046 = vunpack.c.l.b16 %v1980
      %v2047 = vunpack.c.l.b16 %v1981
      %v2048 = vpack.c.b16 %v2017, %v2016
      %v2049 = vpack.c.b16 %v2019, %v2018
      %v2050 = vpack.c.b16 %v2021, %v2020
      %v2051 = vpack.c.b16 %v2023, %v2022
      %v2052 = vpack.c.b16 %v2025, %v2024
      %v2053 = vpack.c.b16 %v2027, %v2026
      %v2054 = vpack.c.b16 %v2029, %v2028
      %v2055 = vpack.c.b16 %v2031, %v2030
      %v2056 = vpack.c.b16 %v2033, %v2032
      %v2057 = vpack.c.b16 %v2035, %v2034
      %v2058 = vpack.c.b16 %v2037, %v2036
      %v2059 = vpack.c.b16 %v2039, %v2038
      %v2060 = vpack.c.b16 %v2041, %v2040
      %v2061 = vpack.c.b16 %v2043, %v2042
      %v2062 = vpack.c.b16 %v2045, %v2044
      %v2063 = vpack.c.b16 %v2047, %v2046
      %2080 = vmatprep.subr.bf16.mxu0 0
      %2081 = vmatpush1.bf16.msra.mxu0 %v2055
      %2082 = vmatprep.subr.bf16.mxu0 0
      %2083 = vmatpush1.bf16.msra.mxu0 %v2054
      %2084 = vmatprep.subr.bf16.mxu0 0
      %2085 = vmatpush1.bf16.msra.mxu0 %v2053
      %2086 = vmatprep.subr.bf16.mxu0 0
      %2087 = vmatpush1.bf16.msra.mxu0 %v2052
      %2088 = vmatprep.subr.bf16.mxu0 0
      %2089 = vmatpush1.bf16.msra.mxu0 %v2051
      %2090 = vmatprep.subr.bf16.mxu0 0
      %2091 = vmatpush1.bf16.msra.mxu0 %v2050
      %2092 = vmatprep.subr.bf16.mxu0 0
      %2093 = vmatpush1.bf16.msra.mxu0 %v2049
      %2094 = vmatprep.subr.bf16.mxu0 0
      %2095 = vmatpush1.bf16.msra.mxu0 %v2048
      %2096 = vmatprep.subr.bf16.mxu0 0
      %2097 = vmatpush2.bf16.msra.mxu0 %v2063
      %2098 = vmatprep.subr.bf16.mxu0 0
      %2099 = vmatpush2.bf16.msra.mxu0 %v2062
      %2100 = vmatprep.subr.bf16.mxu0 0
      %2101 = vmatpush2.bf16.msra.mxu0 %v2061
      %2102 = vmatprep.subr.bf16.mxu0 0
      %2103 = vmatpush2.bf16.msra.mxu0 %v2060
      %2104 = vmatprep.subr.bf16.mxu0 0
      %2105 = vmatpush2.bf16.msra.mxu0 %v2059
      %2106 = vmatprep.subr.bf16.mxu0 0
      %2107 = vmatpush2.bf16.msra.mxu0 %v2058
      %2108 = vmatprep.subr.bf16.mxu0 0
      %2109 = vmatpush2.bf16.msra.mxu0 %v2057
      %2110 = vmatprep.subr.bf16.mxu0 0
      %2111 = vmatpush2.bf16.msra.mxu0 %v2056
      %2112 = vmatprep.mubr.bf16.mxu0 %v1983
      %2113 = vmatmul.mubr.bf16.gmra.mxu0 %v1982
      %v2114 = vpop.f32.mrf.mxu0
      %v2115 = vadd.f32 0.0, %v2114
      %v2116 = vpop.f32.mrf.mxu0
      %v2117 = vpop.f32.mrf.mxu0
      %v2118 = vadd.f32 0.0, %v2117
      %v2119 = vpop.f32.mrf.mxu0
      %2120 = vdwg.mxu0
      %v2121 = vadd.f32 %v1744, %v2115
      %v2122 = vadd.f32 %v1745, %v2118
      %v2123 = vld [vmem:[%s18] sm:$0x1]
      %v2125 = vlaneseq
      %v2126 = vshrl.u32 %v2125, 7
      %v2127 = vsub.s32 0, %v2126
      %v2128 = vrot.slane %v2123, %v2127
      %v2130 = vadd.f32 %v2121, %v2128
      %v2131 = vadd.f32 %v2122, %v2128
      %2132 = vst [vmem:[%s633] sm:$0xff] %v2130
      %2133 = vst [vmem:[%s633 + $0x8] sm:$0xff] %v2131
      %p2134 = scmp.lt.s32.totalorder %s30, 1
      %s2135 = scalar_select %p2134, %s30, 1
      %s2136 = smul.addr %s2135, 2
      %s2137 = smul.addr %s2136, 8
      %s2138 = scalar_lea.vmem %s19, %s2137
      // Predicated region
      $region97: #{full_cross_attention_encoder_fwd.8} parent=95 // pred_check
        %p2139 = pneg %p462
      $region98: #{full_cross_attention_encoder_fwd.8} parent=95 // pred_check_branch
        %2141 = sbr.rel (%p2139) target = $region100
      $region99: #{full_cross_attention_encoder_fwd.8} parent=95 // pred_region
        _
      $region100: #{full_cross_attention_encoder_fwd.8} parent=95 // pred_fallthru
        _
    $region96: #{full_cross_attention_encoder_fwd.8} parent=5 // pred_fallthru
      _
    %p2142 = scmp.le.s32.totalorder 2, %s25
    // Predicated region
    $region101: #{full_cross_attention_encoder_fwd.8} parent=5 // pred_check
      %p2143 = pneg %p2142
    $region102: #{full_cross_attention_encoder_fwd.8} parent=5 // pred_check_branch
      %2145 = sbr.rel (%p2143) target = $region104
    $region103: #{full_cross_attention_encoder_fwd.8} parent=5 // pred_region
      %s2146 = ssub.s32 %s25, 2
      // Predicated region
      $region105: #{full_cross_attention_encoder_fwd.8} parent=103 // pred_check
        %p2147 = pneg %p468
      $region106: #{full_cross_attention_encoder_fwd.8} parent=103 // pred_check_branch
        %2149 = sbr.rel (%p2147) target = $region108
      $region107: #{full_cross_attention_encoder_fwd.8} parent=103 // pred_region
        %p2150 = scmp.lt.s32.totalorder %s31, 1
        %s2151 = scalar_select %p2150, %s31, 1
        %s2152 = smul.addr %s2151, 2
        %s2153 = smul.addr %s2152, 8
        %s2154 = scalar_lea.vmem %s19, %s2153
      $region108: #{full_cross_attention_encoder_fwd.8} parent=103 // pred_fallthru
        _
    $region104: #{full_cross_attention_encoder_fwd.8} parent=5 // pred_fallthru
      _
  $region6: #{full_cross_attention_encoder_fwd.8} parent=0 // loop_footer
    %s29 = sadd.s32 1, %s25
  $region7: #{full_cross_attention_encoder_fwd.8} parent=0 // loop_footer_branch
    %24 = sbr.rel target = $region3
  $region8: #{full_cross_attention_encoder_fwd.8} parent=0 // loop_exit
    _

// kernel: full_cross_attention_encoder_fwd.11
$region0: #{full_cross_attention_encoder_fwd.11}
  #allocation0 [shape = 'u32[]', space=smem, size = 0x4, offset = 0x4, fixed_abs, tag = 'smem constant byte address 0x4 - core index']
  #allocation1 [shape = 'u32[144,128]{1,0:T(1,128)}', space=vmem, size = 0x12000, scoped, tag = 'internal scratch']
  %s0 = inlined_call_operand.vmem [shape: f32[32,128], index: 0, kind: input, shape index: {}]
  %s1 = inlined_call_operand.vmem [shape: bf16[128,256], index: 1, kind: input, shape index: {}]
  %s2 = inlined_call_operand.vmem [shape: f32[1,256], index: 2, kind: input, shape index: {}]
  %s3 = inlined_call_operand.vmem [shape: bf16[256,128], index: 3, kind: input, shape index: {}]
  %s4 = inlined_call_operand.vmem [shape: f32[1,128], index: 4, kind: input, shape index: {}]
  %s5 = inlined_call_operand.vmem [shape: f32[32,128], index: 5, kind: output, shape index: {}]
  %s6 = sld [smem:[#allocation0]]
  $region53: #{full_cross_attention_encoder_fwd.11} parent=0
    _
  %s8 = ssub.s32 1, %s6
  %s9 = scalar_select 0, %s8, %s6
  loop: start=0, step=1, limit=4
  $region2: #{full_cross_attention_encoder_fwd.11} parent=0 // loop_pre_header
    _
  $region3: #{full_cross_attention_encoder_fwd.11} parent=0 // loop_header
    %s11 = sphi 0, %s15
    %p12 = scmp.ge.s32.totalorder %s11, 4
    %s21 = sphi 0, %s23
    %s24 = sphi 0, %s21
    %s25 = sphi 0, %s24
    %s41 = sphi 0, %s25
    %s45 = sphi 0, %s45
    %s47 = sphi 0, %s45
    %s48 = sphi 0, %s47
    %s62 = sphi 0, %s48
    %s66 = sphi 0, %s66
    %s68 = sphi 0, %s66
    %s69 = sphi 0, %s68
    %s83 = sphi 0, %s69
    %s87 = sphi 0, %s87
    %s89 = sphi 0, %s87
    %s90 = sphi 0, %s89
    %s104 = sphi 0, %s90
    %s108 = sphi 0, %s108
    %s110 = sphi 0, %s108
    %s111 = sphi 0, %s110
    %s125 = sphi 0, %s111
    %s131 = sphi 0, %s133
    %s134 = sphi 0, %s131
    %s135 = sphi 0, %s134
    %s151 = sphi 0, %s135
  $region4: #{full_cross_attention_encoder_fwd.11} parent=0 // loop_header_branch
    %14 = sbr.rel (%p12) target = $region8
  $region5: #{full_cross_attention_encoder_fwd.11} parent=0 // loop_body
    %s16 = ssub.s32 %s11, 1
    %s17 = ssub.s32 %s11, 2
    %s18 = sadd.s32 %s11, 1
    %s19 = ssub.s32 %s11, %s18
    %p20 = scmp.eq.s32.totalorder %s19, 0
    %s22 = sadd.s32 %s21, 1
    %s23 = scalar_select %p20, %s21, %s22
    %p26 = pneg %p20
    %p27 = scmp.eq.s32.totalorder %s11, 1
    %p28 = por %p26, %p27
    %p29 = scmp.ne.s32.totalorder %s21, %s24
    %p30 = scmp.eq.s32.totalorder %s11, 0
    %p31 = por %p29, %p30
    %p32 = scmp.ne.s32.totalorder %s21, %s24
    %p33 = scmp.eq.s32.totalorder %s16, 1
    %p34 = por %p32, %p33
    %p35 = scmp.ne.s32.totalorder %s24, %s25
    %p36 = scmp.eq.s32.totalorder %s16, 0
    %p37 = por %p35, %p36
    %p38 = scmp.ne.s32.totalorder %s24, %s25
    %p39 = scmp.eq.s32.totalorder %s17, 1
    %p40 = por %p38, %p39
    %p42 = scmp.ne.s32.totalorder %s25, %s41
    %p43 = scmp.eq.s32.totalorder %s17, 0
    %p44 = por %p42, %p43
    %s46 = sadd.s32 %s45, 1
    %p49 = scmp.eq.s32.totalorder %s11, 1
    %p50 = scmp.ne.s32.totalorder %s45, %s47
    %p51 = scmp.eq.s32.totalorder %s11, 0
    %p52 = por %p50, %p51
    %p53 = scmp.ne.s32.totalorder %s45, %s47
    %p54 = scmp.eq.s32.totalorder %s16, 1
    %p55 = por %p53, %p54
    %p56 = scmp.ne.s32.totalorder %s47, %s48
    %p57 = scmp.eq.s32.totalorder %s16, 0
    %p58 = por %p56, %p57
    %p59 = scmp.ne.s32.totalorder %s47, %s48
    %p60 = scmp.eq.s32.totalorder %s17, 1
    %p61 = por %p59, %p60
    %p63 = scmp.ne.s32.totalorder %s48, %s62
    %p64 = scmp.eq.s32.totalorder %s17, 0
    %p65 = por %p63, %p64
    %s67 = sadd.s32 %s66, 1
    %p70 = scmp.eq.s32.totalorder %s11, 1
    %p71 = scmp.ne.s32.totalorder %s66, %s68
    %p72 = scmp.eq.s32.totalorder %s11, 0
    %p73 = por %p71, %p72
    %p74 = scmp.ne.s32.totalorder %s66, %s68
    %p75 = scmp.eq.s32.totalorder %s16, 1
    %p76 = por %p74, %p75
    %p77 = scmp.ne.s32.totalorder %s68, %s69
    %p78 = scmp.eq.s32.totalorder %s16, 0
    %p79 = por %p77, %p78
    %p80 = scmp.ne.s32.totalorder %s68, %s69
    %p81 = scmp.eq.s32.totalorder %s17, 1
    %p82 = por %p80, %p81
    %p84 = scmp.ne.s32.totalorder %s69, %s83
    %p85 = scmp.eq.s32.totalorder %s17, 0
    %p86 = por %p84, %p85
    %s88 = sadd.s32 %s87, 1
    %p91 = scmp.eq.s32.totalorder %s11, 1
    %p92 = scmp.ne.s32.totalorder %s87, %s89
    %p93 = scmp.eq.s32.totalorder %s11, 0
    %p94 = por %p92, %p93
    %p95 = scmp.ne.s32.totalorder %s87, %s89
    %p96 = scmp.eq.s32.totalorder %s16, 1
    %p97 = por %p95, %p96
    %p98 = scmp.ne.s32.totalorder %s89, %s90
    %p99 = scmp.eq.s32.totalorder %s16, 0
    %p100 = por %p98, %p99
    %p101 = scmp.ne.s32.totalorder %s89, %s90
    %p102 = scmp.eq.s32.totalorder %s17, 1
    %p103 = por %p101, %p102
    %p105 = scmp.ne.s32.totalorder %s90, %s104
    %p106 = scmp.eq.s32.totalorder %s17, 0
    %p107 = por %p105, %p106
    %s109 = sadd.s32 %s108, 1
    %p112 = scmp.eq.s32.totalorder %s11, 1
    %p113 = scmp.ne.s32.totalorder %s108, %s110
    %p114 = scmp.eq.s32.totalorder %s11, 0
    %p115 = por %p113, %p114
    %p116 = scmp.ne.s32.totalorder %s108, %s110
    %p117 = scmp.eq.s32.totalorder %s16, 1
    %p118 = por %p116, %p117
    %p119 = scmp.ne.s32.totalorder %s110, %s111
    %p120 = scmp.eq.s32.totalorder %s16, 0
    %p121 = por %p119, %p120
    %p122 = scmp.ne.s32.totalorder %s110, %s111
    %p123 = scmp.eq.s32.totalorder %s17, 1
    %p124 = por %p122, %p123
    %p126 = scmp.ne.s32.totalorder %s111, %s125
    %p127 = scmp.eq.s32.totalorder %s17, 0
    %p128 = por %p126, %p127
    %s129 = ssub.s32 %s11, %s18
    %p130 = scmp.eq.s32.totalorder %s129, 0
    %s132 = sadd.s32 %s131, 1
    %s133 = scalar_select %p130, %s131, %s132
    %p136 = pneg %p130
    %p137 = scmp.eq.s32.totalorder %s11, 1
    %p138 = por %p136, %p137
    %p139 = scmp.ne.s32.totalorder %s131, %s134
    %p140 = scmp.eq.s32.totalorder %s11, 0
    %p141 = por %p139, %p140
    %p142 = scmp.ne.s32.totalorder %s131, %s134
    %p143 = scmp.eq.s32.totalorder %s16, 1
    %p144 = por %p142, %p143
    %p145 = scmp.ne.s32.totalorder %s134, %s135
    %p146 = scmp.eq.s32.totalorder %s16, 0
    %p147 = por %p145, %p146
    %p148 = scmp.ne.s32.totalorder %s134, %s135
    %p149 = scmp.eq.s32.totalorder %s17, 1
    %p150 = por %p148, %p149
    %p152 = scmp.ne.s32.totalorder %s135, %s151
    %p153 = scmp.eq.s32.totalorder %s17, 0
    %p154 = por %p152, %p153
    %p155 = scmp.le.s32.totalorder 1, %s11
    %p156 = scmp.lt.s32.totalorder %s11, 3
    %p157 = pnand %p155, %p156
    %p158 = pneg %p157
    // Predicated region
    $region9: #{full_cross_attention_encoder_fwd.11} parent=5 // pred_check
      _
    $region10: #{full_cross_attention_encoder_fwd.11} parent=5 // pred_check_branch
      %160 = sbr.rel (%p157) target = $region12
    $region11: #{full_cross_attention_encoder_fwd.11} parent=5 // pred_region
      %s161 = ssub.s32 %s11, 1
      // Predicated region
      $region13: #{full_cross_attention_encoder_fwd.11} parent=11 // pred_check
        %p162 = pneg %p58
      $region14: #{full_cross_attention_encoder_fwd.11} parent=11 // pred_check_branch
        %164 = sbr.rel (%p162) target = $region16
      $region15: #{full_cross_attention_encoder_fwd.11} parent=11 // pred_region
        _
      $region16: #{full_cross_attention_encoder_fwd.11} parent=11 // pred_fallthru
        _
      // Predicated region
      $region17: #{full_cross_attention_encoder_fwd.11} parent=11 // pred_check
        %p165 = pneg %p79
      $region18: #{full_cross_attention_encoder_fwd.11} parent=11 // pred_check_branch
        %167 = sbr.rel (%p165) target = $region20
      $region19: #{full_cross_attention_encoder_fwd.11} parent=11 // pred_region
        _
      $region20: #{full_cross_attention_encoder_fwd.11} parent=11 // pred_fallthru
        _
      // Predicated region
      $region21: #{full_cross_attention_encoder_fwd.11} parent=11 // pred_check
        %p168 = pneg %p100
      $region22: #{full_cross_attention_encoder_fwd.11} parent=11 // pred_check_branch
        %170 = sbr.rel (%p168) target = $region24
      $region23: #{full_cross_attention_encoder_fwd.11} parent=11 // pred_region
        _
      $region24: #{full_cross_attention_encoder_fwd.11} parent=11 // pred_fallthru
        _
      // Predicated region
      $region25: #{full_cross_attention_encoder_fwd.11} parent=11 // pred_check
        %p171 = pneg %p121
      $region26: #{full_cross_attention_encoder_fwd.11} parent=11 // pred_check_branch
        %173 = sbr.rel (%p171) target = $region28
      $region27: #{full_cross_attention_encoder_fwd.11} parent=11 // pred_region
        _
      $region28: #{full_cross_attention_encoder_fwd.11} parent=11 // pred_fallthru
        _
    $region12: #{full_cross_attention_encoder_fwd.11} parent=5 // pred_fallthru
      _
    %p174 = scmp.lt.s32.totalorder %s11, 2
    // Predicated region
    $region29: #{full_cross_attention_encoder_fwd.11} parent=5 // pred_check
      %p175 = pneg %p174
    $region30: #{full_cross_attention_encoder_fwd.11} parent=5 // pred_check_branch
      %177 = sbr.rel (%p175) target = $region32
    $region31: #{full_cross_attention_encoder_fwd.11} parent=5 // pred_region
      // Predicated region
      $region33: #{full_cross_attention_encoder_fwd.11} parent=31 // pred_check
        %p178 = pneg %p31
      $region34: #{full_cross_attention_encoder_fwd.11} parent=31 // pred_check_branch
        %180 = sbr.rel (%p178) target = $region36
      $region35: #{full_cross_attention_encoder_fwd.11} parent=31 // pred_region
        %s181 = smul.u32 2, %s11
        %p182 = scmp.lt.s32.totalorder %s181, 3
        %s183 = scalar_select %p182, %s181, 3
        %s184 = smul.addr %s183, 8
        %s185 = scalar_lea.vmem %s0, %s184
        %s186 = smul.u32 2, %s11
      $region36: #{full_cross_attention_encoder_fwd.11} parent=31 // pred_fallthru
        _
    $region32: #{full_cross_attention_encoder_fwd.11} parent=5 // pred_fallthru
      _
    %p187 = scmp.le.s32.totalorder 1, %s11
    %p188 = scmp.lt.s32.totalorder %s11, 3
    %p189 = pnand %p187, %p188
    %p190 = pneg %p189
    // Predicated region
    $region37: #{full_cross_attention_encoder_fwd.11} parent=5 // pred_check
      _
    $region38: #{full_cross_attention_encoder_fwd.11} parent=5 // pred_check_branch
      %192 = sbr.rel (%p189) target = $region40
    $region39: #{full_cross_attention_encoder_fwd.11} parent=5 // pred_region
      %s193 = ssub.s32 %s11, 1
      %s194 = smul.u32 2, %s16
      %p195 = scmp.lt.s32.totalorder %s194, 3
      %s196 = scalar_select %p195, %s194, 3
      %s197 = smul.addr %s196, 8
      %s198 = scalar_lea.vmem %s0, %s197
      %p199 = pneg %p37
      %p200 = pneg %p34
      %p201 = pneg %p58
      %p202 = pneg %p55
      %p203 = pneg %p79
      %p204 = pneg %p76
      %p205 = pneg %p100
      %p206 = pneg %p97
      %p207 = pneg %p121
      %p208 = pneg %p118
      %p209 = pneg %p147
      %p210 = pneg %p144
      %s211 = smul.u32 2, %s16
      %p212 = scmp.lt.s32.totalorder %s211, 3
      %s213 = scalar_select %p212, %s211, 3
      %s214 = smul.addr %s213, 8
      %s215 = scalar_lea.vmem %s5, %s214
      %s216 = smul.u32 2, %s16
      %p217 = scmp.lt.s32.totalorder %s216, 3
      %s218 = scalar_select %p217, %s216, 3
      %s219 = smul.addr %s218, 8
      %s220 = scalar_lea.vmem %s0, %s219
      %s221 = smul.u32 2, %s16
      %s222 = smul.u32 2, %s16
      %p223 = scmp.lt.s32.totalorder %s222, 3
      %s224 = scalar_select %p223, %s222, 3
      %s225 = smul.addr %s224, 8
      %s226 = scalar_lea.vmem %s5, %s225
      %s227 = smul.u32 2, %s16
      %v229 = vld [vmem:[%s220] sm:$0xff]
      %v230 = vld [vmem:[%s220 + $0x8] sm:$0xff]
      %v231 = vld [vmem:[%s1] sm:$0xff]
      %v232 = vld [vmem:[%s1 + $0x8] sm:$0xff]
      %v233 = vld [vmem:[%s1 + $0x10] sm:$0xff]
      %v234 = vld [vmem:[%s1 + $0x18] sm:$0xff]
      %v235 = vld [vmem:[%s1 + $0x20] sm:$0xff]
      %v236 = vld [vmem:[%s1 + $0x28] sm:$0xff]
      %v237 = vld [vmem:[%s1 + $0x30] sm:$0xff]
      %v238 = vld [vmem:[%s1 + $0x38] sm:$0xff]
      %v239 = vld [vmem:[%s1 + $0x40] sm:$0xff]
      %v240 = vld [vmem:[%s1 + $0x48] sm:$0xff]
      %v241 = vld [vmem:[%s1 + $0x50] sm:$0xff]
      %v242 = vld [vmem:[%s1 + $0x58] sm:$0xff]
      %v243 = vld [vmem:[%s1 + $0x60] sm:$0xff]
      %v244 = vld [vmem:[%s1 + $0x68] sm:$0xff]
      %v245 = vld [vmem:[%s1 + $0x70] sm:$0xff]
      %v246 = vld [vmem:[%s1 + $0x78] sm:$0xff]
      %v247 = vpack.c.bf16 %v230, %v229
      %v248 = vld [vmem:[%s2] sm:$0x3]
      %v250 = vlaneseq
      %v251 = vshrl.u32 %v250, 7
      %v252 = vsub.s32 0, %v251
      %v253 = vrot.slane %v248, %v252
      %v254 = vlaneseq
      %v255 = vshrl.u32 %v254, 7
      %v256 = vsub.s32 1, %v255
      %v257 = vrot.slane %v248, %v256
      %v276 = vunpack.c.l.b16 %v231
      %v277 = vunpack.c.h.b16 %v231
      %v278 = vunpack.c.l.b16 %v232
      %v279 = vunpack.c.h.b16 %v232
      %v280 = vunpack.c.l.b16 %v233
      %v281 = vunpack.c.h.b16 %v233
      %v282 = vunpack.c.l.b16 %v234
      %v283 = vunpack.c.h.b16 %v234
      %v284 = vunpack.c.l.b16 %v235
      %v285 = vunpack.c.h.b16 %v235
      %v286 = vunpack.c.l.b16 %v236
      %v287 = vunpack.c.h.b16 %v236
      %v288 = vunpack.c.l.b16 %v237
      %v289 = vunpack.c.h.b16 %v237
      %v290 = vunpack.c.l.b16 %v238
      %v291 = vunpack.c.h.b16 %v238
      %v292 = vunpack.c.l.b16 %v239
      %v293 = vunpack.c.h.b16 %v239
      %v294 = vunpack.c.l.b16 %v240
      %v295 = vunpack.c.h.b16 %v240
      %v296 = vunpack.c.l.b16 %v241
      %v297 = vunpack.c.h.b16 %v241
      %v298 = vunpack.c.l.b16 %v242
      %v299 = vunpack.c.h.b16 %v242
      %v300 = vunpack.c.l.b16 %v243
      %v301 = vunpack.c.h.b16 %v243
      %v302 = vunpack.c.l.b16 %v244
      %v303 = vunpack.c.h.b16 %v244
      %v304 = vunpack.c.l.b16 %v245
      %v305 = vunpack.c.h.b16 %v245
      %v306 = vunpack.c.l.b16 %v246
      %v307 = vunpack.c.h.b16 %v246
      %v308 = vpack.c.b16 %v278, %v276
      %v309 = vpack.c.b16 %v279, %v277
      %v310 = vpack.c.b16 %v282, %v280
      %v311 = vpack.c.b16 %v283, %v281
      %v312 = vpack.c.b16 %v286, %v284
      %v313 = vpack.c.b16 %v287, %v285
      %v314 = vpack.c.b16 %v290, %v288
      %v315 = vpack.c.b16 %v291, %v289
      %v316 = vpack.c.b16 %v294, %v292
      %v317 = vpack.c.b16 %v295, %v293
      %v318 = vpack.c.b16 %v298, %v296
      %v319 = vpack.c.b16 %v299, %v297
      %v320 = vpack.c.b16 %v302, %v300
      %v321 = vpack.c.b16 %v303, %v301
      %v322 = vpack.c.b16 %v306, %v304
      %v323 = vpack.c.b16 %v307, %v305
      %340 = vmatprep.subr.bf16.mxu0 %v323
      %341 = vmatpush1.bf16.msra.mxu0 %v322
      %342 = vmatprep.subr.bf16.mxu0 %v321
      %343 = vmatpush1.bf16.msra.mxu0 %v320
      %344 = vmatprep.subr.bf16.mxu0 %v319
      %345 = vmatpush1.bf16.msra.mxu0 %v318
      %346 = vmatprep.subr.bf16.mxu0 %v317
      %347 = vmatpush1.bf16.msra.mxu0 %v316
      %348 = vmatprep.subr.bf16.mxu0 %v315
      %349 = vmatpush1.bf16.msra.mxu0 %v314
      %350 = vmatprep.subr.bf16.mxu0 %v313
      %351 = vmatpush1.bf16.msra.mxu0 %v312
      %352 = vmatprep.subr.bf16.mxu0 %v311
      %353 = vmatpush1.bf16.msra.mxu0 %v310
      %354 = vmatprep.subr.bf16.mxu0 %v309
      %355 = vmatpush1.bf16.msra.mxu0 %v308
      %356 = vmatprep.subr.bf16.mxu0 0
      %357 = vmatpush2.bf16.msra.mxu0 0
      %358 = vmatprep.subr.bf16.mxu0 0
      %359 = vmatpush2.bf16.msra.mxu0 0
      %360 = vmatprep.subr.bf16.mxu0 0
      %361 = vmatpush2.bf16.msra.mxu0 0
      %362 = vmatprep.subr.bf16.mxu0 0
      %363 = vmatpush2.bf16.msra.mxu0 0
      %364 = vmatprep.subr.bf16.mxu0 0
      %365 = vmatpush2.bf16.msra.mxu0 0
      %366 = vmatprep.subr.bf16.mxu0 0
      %367 = vmatpush2.bf16.msra.mxu0 0
      %368 = vmatprep.subr.bf16.mxu0 0
      %369 = vmatpush2.bf16.msra.mxu0 0
      %370 = vmatprep.subr.bf16.mxu0 0
      %371 = vmatpush2.bf16.msra.mxu0 0
      %372 = vmatprep.mubr.bf16.mxu0 0
      %373 = vmatmul.mubr.bf16.gmra.mxu0 %v247
      %v374 = vpop.f32.mrf.mxu0
      %v375 = vadd.f32 %v253, %v374
      %v376 = vpop.f32.mrf.mxu0
      %v377 = vadd.f32 %v257, %v376
      %v378 = vpop.f32.mrf.mxu0
      %v379 = vadd.f32 %v253, %v378
      %v380 = vpop.f32.mrf.mxu0
      %v381 = vadd.f32 %v257, %v380
      %382 = vdwg.mxu0
      %vm383 = vcmp.gt.f32.partialorder %v375, 0.0
      %vm384 = vcmp.gt.f32.partialorder %v377, 0.0
      %vm385 = vcmp.gt.f32.partialorder %v379, 0.0
      %vm386 = vcmp.gt.f32.partialorder %v381, 0.0
      %v387 = vmul.f32 %v375, 0.01
      %v388 = vmul.f32 %v377, 0.01
      %v389 = vmul.f32 %v379, 0.01
      %v390 = vmul.f32 %v381, 0.01
      %v391 = vsel %vm383, %v375, %v387
      %v392 = vsel %vm384, %v377, %v388
      %v393 = vsel %vm385, %v379, %v389
      %v394 = vsel %vm386, %v381, %v390
      %v395 = vld [vmem:[%s3] sm:$0xf]
      %v396 = vld [vmem:[%s3 + $0x4] sm:$0xf]
      %v397 = vld [vmem:[%s3 + $0x8] sm:$0xf]
      %v398 = vld [vmem:[%s3 + $0xc] sm:$0xf]
      %v399 = vld [vmem:[%s3 + $0x10] sm:$0xf]
      %v400 = vld [vmem:[%s3 + $0x14] sm:$0xf]
      %v401 = vld [vmem:[%s3 + $0x18] sm:$0xf]
      %v402 = vld [vmem:[%s3 + $0x1c] sm:$0xf]
      %v403 = vld [vmem:[%s3 + $0x20] sm:$0xf]
      %v404 = vld [vmem:[%s3 + $0x24] sm:$0xf]
      %v405 = vld [vmem:[%s3 + $0x28] sm:$0xf]
      %v406 = vld [vmem:[%s3 + $0x2c] sm:$0xf]
      %v407 = vld [vmem:[%s3 + $0x30] sm:$0xf]
      %v408 = vld [vmem:[%s3 + $0x34] sm:$0xf]
      %v409 = vld [vmem:[%s3 + $0x38] sm:$0xf]
      %v410 = vld [vmem:[%s3 + $0x3c] sm:$0xf]
      %v411 = vld [vmem:[%s3 + $0x40] sm:$0xf]
      %v412 = vld [vmem:[%s3 + $0x44] sm:$0xf]
      %v413 = vld [vmem:[%s3 + $0x48] sm:$0xf]
      %v414 = vld [vmem:[%s3 + $0x4c] sm:$0xf]
      %v415 = vld [vmem:[%s3 + $0x50] sm:$0xf]
      %v416 = vld [vmem:[%s3 + $0x54] sm:$0xf]
      %v417 = vld [vmem:[%s3 + $0x58] sm:$0xf]
      %v418 = vld [vmem:[%s3 + $0x5c] sm:$0xf]
      %v419 = vld [vmem:[%s3 + $0x60] sm:$0xf]
      %v420 = vld [vmem:[%s3 + $0x64] sm:$0xf]
      %v421 = vld [vmem:[%s3 + $0x68] sm:$0xf]
      %v422 = vld [vmem:[%s3 + $0x6c] sm:$0xf]
      %v423 = vld [vmem:[%s3 + $0x70] sm:$0xf]
      %v424 = vld [vmem:[%s3 + $0x74] sm:$0xf]
      %v425 = vld [vmem:[%s3 + $0x78] sm:$0xf]
      %v426 = vld [vmem:[%s3 + $0x7c] sm:$0xf]
      %v427 = vpack.c.bf16 %v393, %v391
      %v428 = vpack.c.bf16 %v394, %v392
      %v429 = vld [vmem:[%s4] sm:$0x1]
      %v431 = vlaneseq
      %v432 = vshrl.u32 %v431, 7
      %v433 = vsub.s32 0, %v432
      %v434 = vrot.slane %v429, %v433
      %v468 = vunpack.c.l.b16 %v395
      %v469 = vunpack.c.l.b16 %v396
      %v470 = vunpack.c.l.b16 %v397
      %v471 = vunpack.c.l.b16 %v398
      %v472 = vunpack.c.l.b16 %v399
      %v473 = vunpack.c.l.b16 %v400
      %v474 = vunpack.c.l.b16 %v401
      %v475 = vunpack.c.l.b16 %v402
      %v476 = vunpack.c.l.b16 %v403
      %v477 = vunpack.c.l.b16 %v404
      %v478 = vunpack.c.l.b16 %v405
      %v479 = vunpack.c.l.b16 %v406
      %v480 = vunpack.c.l.b16 %v407
      %v481 = vunpack.c.l.b16 %v408
      %v482 = vunpack.c.l.b16 %v409
      %v483 = vunpack.c.l.b16 %v410
      %v484 = vunpack.c.l.b16 %v411
      %v485 = vunpack.c.l.b16 %v412
      %v486 = vunpack.c.l.b16 %v413
      %v487 = vunpack.c.l.b16 %v414
      %v488 = vunpack.c.l.b16 %v415
      %v489 = vunpack.c.l.b16 %v416
      %v490 = vunpack.c.l.b16 %v417
      %v491 = vunpack.c.l.b16 %v418
      %v492 = vunpack.c.l.b16 %v419
      %v493 = vunpack.c.l.b16 %v420
      %v494 = vunpack.c.l.b16 %v421
      %v495 = vunpack.c.l.b16 %v422
      %v496 = vunpack.c.l.b16 %v423
      %v497 = vunpack.c.l.b16 %v424
      %v498 = vunpack.c.l.b16 %v425
      %v499 = vunpack.c.l.b16 %v426
      %v500 = vpack.c.b16 %v469, %v468
      %v501 = vpack.c.b16 %v471, %v470
      %v502 = vpack.c.b16 %v473, %v472
      %v503 = vpack.c.b16 %v475, %v474
      %v504 = vpack.c.b16 %v477, %v476
      %v505 = vpack.c.b16 %v479, %v478
      %v506 = vpack.c.b16 %v481, %v480
      %v507 = vpack.c.b16 %v483, %v482
      %v508 = vpack.c.b16 %v485, %v484
      %v509 = vpack.c.b16 %v487, %v486
      %v510 = vpack.c.b16 %v489, %v488
      %v511 = vpack.c.b16 %v491, %v490
      %v512 = vpack.c.b16 %v493, %v492
      %v513 = vpack.c.b16 %v495, %v494
      %v514 = vpack.c.b16 %v497, %v496
      %v515 = vpack.c.b16 %v499, %v498
      %532 = vmatprep.subr.bf16.mxu0 0
      %533 = vmatpush1.bf16.msra.mxu0 %v507
      %534 = vmatprep.subr.bf16.mxu0 0
      %535 = vmatpush1.bf16.msra.mxu0 %v506
      %536 = vmatprep.subr.bf16.mxu0 0
      %537 = vmatpush1.bf16.msra.mxu0 %v505
      %538 = vmatprep.subr.bf16.mxu0 0
      %539 = vmatpush1.bf16.msra.mxu0 %v504
      %540 = vmatprep.subr.bf16.mxu0 0
      %541 = vmatpush1.bf16.msra.mxu0 %v503
      %542 = vmatprep.subr.bf16.mxu0 0
      %543 = vmatpush1.bf16.msra.mxu0 %v502
      %544 = vmatprep.subr.bf16.mxu0 0
      %545 = vmatpush1.bf16.msra.mxu0 %v501
      %546 = vmatprep.subr.bf16.mxu0 0
      %547 = vmatpush1.bf16.msra.mxu0 %v500
      %548 = vmatprep.subr.bf16.mxu0 0
      %549 = vmatpush2.bf16.msra.mxu0 %v515
      %550 = vmatprep.subr.bf16.mxu0 0
      %551 = vmatpush2.bf16.msra.mxu0 %v514
      %552 = vmatprep.subr.bf16.mxu0 0
      %553 = vmatpush2.bf16.msra.mxu0 %v513
      %554 = vmatprep.subr.bf16.mxu0 0
      %555 = vmatpush2.bf16.msra.mxu0 %v512
      %556 = vmatprep.subr.bf16.mxu0 0
      %557 = vmatpush2.bf16.msra.mxu0 %v511
      %558 = vmatprep.subr.bf16.mxu0 0
      %559 = vmatpush2.bf16.msra.mxu0 %v510
      %560 = vmatprep.subr.bf16.mxu0 0
      %561 = vmatpush2.bf16.msra.mxu0 %v509
      %562 = vmatprep.subr.bf16.mxu0 0
      %563 = vmatpush2.bf16.msra.mxu0 %v508
      %564 = vmatprep.mubr.bf16.mxu0 %v428
      %565 = vmatmul.mubr.bf16.gmra.mxu0 %v427
      %v566 = vpop.f32.mrf.mxu0
      %v567 = vadd.f32 %v434, %v566
      %v568 = vpop.f32.mrf.mxu0
      %v569 = vpop.f32.mrf.mxu0
      %v570 = vadd.f32 %v434, %v569
      %v571 = vpop.f32.mrf.mxu0
      %572 = vdwg.mxu0
      %573 = vst [vmem:[%s226] sm:$0xff] %v567
      %574 = vst [vmem:[%s226 + $0x8] sm:$0xff] %v570
      %s575 = smul.u32 2, %s16
      %p576 = scmp.lt.s32.totalorder %s575, 3
      %s577 = scalar_select %p576, %s575, 3
      %s578 = smul.addr %s577, 8
      %s579 = scalar_lea.vmem %s5, %s578
      // Predicated region
      $region41: #{full_cross_attention_encoder_fwd.11} parent=39 // pred_check
        %p580 = pneg %p144
      $region42: #{full_cross_attention_encoder_fwd.11} parent=39 // pred_check_branch
        %582 = sbr.rel (%p580) target = $region44
      $region43: #{full_cross_attention_encoder_fwd.11} parent=39 // pred_region
        %s583 = smul.u32 2, %s16
      $region44: #{full_cross_attention_encoder_fwd.11} parent=39 // pred_fallthru
        _
    $region40: #{full_cross_attention_encoder_fwd.11} parent=5 // pred_fallthru
      _
    %p584 = scmp.le.s32.totalorder 2, %s11
    // Predicated region
    $region45: #{full_cross_attention_encoder_fwd.11} parent=5 // pred_check
      %p585 = pneg %p584
    $region46: #{full_cross_attention_encoder_fwd.11} parent=5 // pred_check_branch
      %587 = sbr.rel (%p585) target = $region48
    $region47: #{full_cross_attention_encoder_fwd.11} parent=5 // pred_region
      %s588 = ssub.s32 %s11, 2
      // Predicated region
      $region49: #{full_cross_attention_encoder_fwd.11} parent=47 // pred_check
        %p589 = pneg %p150
      $region50: #{full_cross_attention_encoder_fwd.11} parent=47 // pred_check_branch
        %591 = sbr.rel (%p589) target = $region52
      $region51: #{full_cross_attention_encoder_fwd.11} parent=47 // pred_region
        %s592 = smul.u32 2, %s17
        %p593 = scmp.lt.s32.totalorder %s592, 3
        %s594 = scalar_select %p593, %s592, 3
        %s595 = smul.addr %s594, 8
        %s596 = scalar_lea.vmem %s5, %s595
      $region52: #{full_cross_attention_encoder_fwd.11} parent=47 // pred_fallthru
        _
    $region48: #{full_cross_attention_encoder_fwd.11} parent=5 // pred_fallthru
      _
  $region6: #{full_cross_attention_encoder_fwd.11} parent=0 // loop_footer
    %s15 = sadd.s32 1, %s11
  $region7: #{full_cross_attention_encoder_fwd.11} parent=0 // loop_footer_branch
    %10 = sbr.rel target = $region3
  $region8: #{full_cross_attention_encoder_fwd.11} parent=0 // loop_exit
    _

</llo_original>
